<compile_context>
chip_gen: v7x
topology: tpu7x:2x2x1
jax: 0.10.0
libtpu: 0.0.40
codegen_flags: <defaults>
</compile_context>

<pallas_src>
import jax
import jax.numpy as jnp
import numpy as np
from jax.experimental import pallas as pl
from jax.experimental.pallas import tpu as pltpu

IN_CH = 4   # in_channels of the module
NB = 8      # batch rows per grid step (fills the 8 sublanes of a vreg)


def _make_kernel(C, H, W):
    Wp = W + 4                  # padded width (pad 2 each side)
    L = (H + 4) * Wp            # padded flat frame length
    s0 = 2 * Wp + 2             # flat index of output pixel (0, 0)
    Lacc = (H - 1) * Wp + W     # length of the output window in the flat frame

    def kernel(mask_ref, x_ref,
               w1r, b1r, w2ar, b2ar, w2br, b2br,
               w3ar, b3ar, w3br, b3br, w4r, b4r,
               o_ref):
        f32 = jnp.float32
        xf = [x_ref[c] for c in range(C)]            # (NB, L) padded flat frame
        xs = [v[:, s0:s0 + Lacc] for v in xf]        # (NB, Lacc) output window
        mask = mask_ref[...]                         # (1, L), 1 inside the image

        def win(a, off):
            # `a` shifted by (dh, dw) with off = dh*Wp + dw, restricted to the
            # output window: one static lane-window slice per tap.
            return a[:, s0 + off:s0 + off + Lacc]

        def conv1x1(wr, br, o, src, bias_img=None):
            # 1x1 conv over `src` (list of C per-channel (NB, *) images).
            if bias_img is None:
                acc = jnp.zeros(src[0].shape, f32) + br[o]
            else:
                acc = bias_img * br[o]               # bias only inside the image
            for c in range(C):
                acc = acc + wr[o * C + c] * src[c]
            return acc

        # ---- branch 1: 1x1 conv ---------------------------------------------
        for o in range(2):
            o_ref[o] = conv1x1(w1r, b1r, o, xs)

        # ---- branch 4: 1x1 conv (pad 1) -> 3x3 max-pool, stride 1 ------------
        for o in range(2):
            u = conv1x1(w4r, b4r, o, xf)             # valid on the pad-1 ring
            m = win(u, 0)
            for dh in (-1, 0, 1):
                for dw in (-1, 0, 1):
                    if dh == 0 and dw == 0:
                        continue
                    m = jnp.maximum(m, win(u, dh * Wp + dw))
            o_ref[8 + o] = m

        # ---- branch 2: 1x1 conv -> 3x3 conv (pad 1) ---------------------------
        t2 = [conv1x1(w2ar, b2ar, o, xf, mask) for o in range(2)]
        acc2 = [jnp.zeros((NB, Lacc), f32) + b2br[o] for o in range(3)]
        for kh in range(3):
            for kw in range(3):
                off = (kh - 1) * Wp + (kw - 1)
                for c in range(2):
                    s = win(t2[c], off)
                    for o in range(3):
                        acc2[o] = acc2[o] + w2br[((o * 2 + c) * 3 + kh) * 3 + kw] * s
        for o in range(3):
            o_ref[2 + o] = acc2[o]

        # ---- branch 3: 1x1 conv -> 5x5 conv (pad 2) ---------------------------
        t3 = [conv1x1(w3ar, b3ar, o, xf, mask) for o in range(2)]
        acc3 = [jnp.zeros((NB, Lacc), f32) + b3br[o] for o in range(3)]
        for kh in range(5):
            for kw in range(5):
                off = (kh - 2) * Wp + (kw - 2)
                for c in range(2):
                    s = win(t3[c], off)
                    for o in range(3):
                        acc3[o] = acc3[o] + w3br[((o * 2 + c) * 5 + kh) * 5 + kw] * s
        for o in range(3):
            o_ref[5 + o] = acc3[o]

        # TODO(synk): for real InceptionA channel counts (Cin~192, Cout 32-64)
        # switch the scalar-broadcast FMAs to im2col + jnp.dot on the MXU and
        # add an H-tiled grid axis (with halos) so blocks fit v7x's 64 MiB VMEM.

    return kernel, Wp, L, s0, Lacc


@jax.jit
def inception_a(x, params):
    """x: (N, C, H, W) f32 -> (N, 10, H, W) f32 (matches InceptionA.forward)."""
    N, C, H, W = x.shape
    (w1, b1, w2a, b2a, w2b, b2b, w3a, b3a, w3b, b3b, w4, b4) = params
    kernel, Wp, L, s0, Lacc = _make_kernel(C, H, W)

    npad = pl.cdiv(N, NB) * NB
    # Single zero-padded copy of the input (pad 2 each side), flattened so the
    # whole spatial extent sits on the lane axis; batch goes to the sublanes.
    xp = jnp.pad(x, ((0, npad - N), (0, 0), (2, 2), (2, 2)))
    xpf = xp.reshape(npad, C, L).transpose(1, 0, 2)              # (C, npad, L)
    mask = jnp.pad(jnp.ones((H, W), jnp.float32),
                   ((2, 2), (2, 2))).reshape(1, L)               # interior mask

    smem = pl.BlockSpec(memory_space=pltpu.MemorySpace.SMEM)
    flat = lambda a: a.reshape(-1).astype(jnp.float32)

    out = pl.pallas_call(
        kernel,
        out_shape=jax.ShapeDtypeStruct((10, npad, Lacc), jnp.float32),
        grid=(npad // NB,),
        in_specs=[
            pl.BlockSpec((1, L), lambda n: (0, 0)),
            pl.BlockSpec((C, NB, L), lambda n: (0, n, 0)),
        ] + [smem] * 12,
        out_specs=pl.BlockSpec((10, NB, Lacc), lambda n: (0, n, 0)),
        compiler_params=pltpu.CompilerParams(
            dimension_semantics=("parallel",)),
    )(mask, xpf,
      flat(w1), flat(b1), flat(w2a), flat(b2a), flat(w2b), flat(b2b),
      flat(w3a), flat(b3a), flat(w3b), flat(b3b), flat(w4), flat(b4))

    # Lane-dense flat output -> NCHW (cheap XLA layout plumbing on tiny data).
    out = jnp.pad(out, ((0, 0), (0, 0), (0, Wp - W)))            # (10,npad,H*Wp)
    out = out.reshape(10, npad, H, Wp)[:, :N, :, :W]
    return out.transpose(1, 0, 2, 3)                             # (N, 10, H, W)


def _ref_inception(x, params):
    """Pure-JAX (XLA) reference with PyTorch semantics, for verification."""
    (w1, b1, w2a, b2a, w2b, b2b, w3a, b3a, w3b, b3b, w4, b4) = params

    def conv(x, w, b, pad):
        y = jax.lax.conv_general_dilated(
            x, w, (1, 1), [(pad, pad), (pad, pad)],
            dimension_numbers=('NCHW', 'OIHW', 'NCHW'))
        return y + b[None, :, None, None]

    x1 = conv(x, w1, b1, 0)
    x2 = conv(conv(x, w2a, b2a, 0), w2b, b2b, 1)
    x3 = conv(conv(x, w3a, b3a, 0), w3b, b3b, 2)
    y4 = conv(x, w4, b4, 1)
    x4 = jax.lax.reduce_window(y4, -jnp.inf, jax.lax.max,
                               (1, 1, 3, 3), (1, 1, 1, 1), 'VALID')
    return jnp.concatenate([x1, x2, x3, x4], axis=1)


def _init_params(key):
    ks = jax.random.split(key, 12)
    mk = lambda k, s: 0.1 * jax.random.normal(k, s, jnp.float32)
    w1  = mk(ks[0],  (2, IN_CH, 1, 1)); b1  = mk(ks[1],  (2,))
    w2a = mk(ks[2],  (2, IN_CH, 1, 1)); b2a = mk(ks[3],  (2,))
    w2b = mk(ks[4],  (3, 2, 3, 3));     b2b = mk(ks[5],  (3,))
    w3a = mk(ks[6],  (2, IN_CH, 1, 1)); b3a = mk(ks[7],  (2,))
    w3b = mk(ks[8],  (3, 2, 5, 5));     b3b = mk(ks[9],  (3,))
    w4  = mk(ks[10], (2, IN_CH, 1, 1)); b4  = mk(ks[11], (2,))
    return (w1, b1, w2a, b2a, w2b, b2b, w3a, b3a, w3b, b3b, w4, b4)


if __name__ == "__main__":
    N, C, H, W = 16, IN_CH, 16, 16      # 2 grid steps of 8 images each
    key = jax.random.PRNGKey(0)
    kx, kp = jax.random.split(key)
    x = jax.random.normal(kx, (N, C, H, W), jnp.float32)
    params = _init_params(kp)

    out = jax.block_until_ready(inception_a(x, params))
    assert out.shape == (N, 10, H, W)

    ref = _ref_inception(x, params)
    np.testing.assert_allclose(np.asarray(out), np.asarray(ref),
                               rtol=1e-4, atol=1e-4)
    print("KERNEL_OK")
</pallas_src>

<mosaic_0001>
module attributes {stable_mosaic.version = 11 : i64} {
  func.func @kernel(%arg0: i32, %arg1: memref<1x400xf32, #tpu.memory_space<vmem>>, %arg2: memref<4x8x400xf32, #tpu.memory_space<vmem>>, %arg3: memref<8xf32, #tpu.memory_space<smem>>, %arg4: memref<2xf32, #tpu.memory_space<smem>>, %arg5: memref<8xf32, #tpu.memory_space<smem>>, %arg6: memref<2xf32, #tpu.memory_space<smem>>, %arg7: memref<54xf32, #tpu.memory_space<smem>>, %arg8: memref<3xf32, #tpu.memory_space<smem>>, %arg9: memref<8xf32, #tpu.memory_space<smem>>, %arg10: memref<2xf32, #tpu.memory_space<smem>>, %arg11: memref<150xf32, #tpu.memory_space<smem>>, %arg12: memref<3xf32, #tpu.memory_space<smem>>, %arg13: memref<8xf32, #tpu.memory_space<smem>>, %arg14: memref<2xf32, #tpu.memory_space<smem>>, %arg15: memref<10x8x316xf32, #tpu.memory_space<vmem>>) attributes {dimension_semantics = [#tpu.dimension_semantics<parallel>], iteration_bounds = array<i64: 2>, scalar_prefetch = 0 : i64, scratch_operands = 0 : i64, tpu.core_type = #tpu.core_type<tc>, window_params = [{pipeline_mode = #tpu.pipeline_mode<synchronous>, transform_indices = @transform_0, window_bounds = array<i64: 1, 400>}, {transform_indices = @transform_1, window_bounds = array<i64: 4, 8, 400>}, {transform_indices = @transform_2, window_bounds = array<i64: 8>}, {transform_indices = @transform_3, window_bounds = array<i64: 2>}, {transform_indices = @transform_4, window_bounds = array<i64: 8>}, {transform_indices = @transform_5, window_bounds = array<i64: 2>}, {transform_indices = @transform_6, window_bounds = array<i64: 54>}, {transform_indices = @transform_7, window_bounds = array<i64: 3>}, {transform_indices = @transform_8, window_bounds = array<i64: 8>}, {transform_indices = @transform_9, window_bounds = array<i64: 2>}, {transform_indices = @transform_10, window_bounds = array<i64: 150>}, {transform_indices = @transform_11, window_bounds = array<i64: 3>}, {transform_indices = @transform_12, window_bounds = array<i64: 8>}, {transform_indices = @transform_13, window_bounds = array<i64: 2>}, {transform_indices = @transform_14, window_bounds = array<i64: 10, 8, 316>}]} {
    %c0 = arith.constant 0 : index
    %c0_0 = arith.constant 0 : index
    %c0_1 = arith.constant 0 : index
    %0 = vector.load %arg2[%c0, %c0_0, %c0_1] : memref<4x8x400xf32, #tpu.memory_space<vmem>>, vector<1x8x400xf32>
    %1 = vector.shape_cast %0 : vector<1x8x400xf32> to vector<8x400xf32>
    %c1 = arith.constant 1 : index
    %c0_2 = arith.constant 0 : index
    %c0_3 = arith.constant 0 : index
    %2 = vector.load %arg2[%c1, %c0_2, %c0_3] : memref<4x8x400xf32, #tpu.memory_space<vmem>>, vector<1x8x400xf32>
    %3 = vector.shape_cast %2 : vector<1x8x400xf32> to vector<8x400xf32>
    %c2 = arith.constant 2 : index
    %c0_4 = arith.constant 0 : index
    %c0_5 = arith.constant 0 : index
    %4 = vector.load %arg2[%c2, %c0_4, %c0_5] : memref<4x8x400xf32, #tpu.memory_space<vmem>>, vector<1x8x400xf32>
    %5 = vector.shape_cast %4 : vector<1x8x400xf32> to vector<8x400xf32>
    %c3 = arith.constant 3 : index
    %c0_6 = arith.constant 0 : index
    %c0_7 = arith.constant 0 : index
    %6 = vector.load %arg2[%c3, %c0_6, %c0_7] : memref<4x8x400xf32, #tpu.memory_space<vmem>>, vector<1x8x400xf32>
    %7 = vector.shape_cast %6 : vector<1x8x400xf32> to vector<8x400xf32>
    %8 = vector.extract_strided_slice %1 {offsets = [0, 42], sizes = [8, 316], strides = [1, 1]} : vector<8x400xf32> to vector<8x316xf32>
    %9 = vector.extract_strided_slice %3 {offsets = [0, 42], sizes = [8, 316], strides = [1, 1]} : vector<8x400xf32> to vector<8x316xf32>
    %10 = vector.extract_strided_slice %5 {offsets = [0, 42], sizes = [8, 316], strides = [1, 1]} : vector<8x400xf32> to vector<8x316xf32>
    %11 = vector.extract_strided_slice %7 {offsets = [0, 42], sizes = [8, 316], strides = [1, 1]} : vector<8x400xf32> to vector<8x316xf32>
    %c0_8 = arith.constant 0 : index
    %c0_9 = arith.constant 0 : index
    %12 = vector.load %arg1[%c0_8, %c0_9] : memref<1x400xf32, #tpu.memory_space<vmem>>, vector<1x400xf32>
    %cst = arith.constant 0.000000e+00 : f32
    %13 = vector.broadcast %cst : f32 to vector<8x316xf32>
    %c0_10 = arith.constant 0 : index
    %14 = memref.load %arg4[%c0_10] : memref<2xf32, #tpu.memory_space<smem>>
    %15 = vector.broadcast %14 : f32 to vector<8x316xf32>
    %16 = arith.addf %13, %15 : vector<8x316xf32>
    %c0_11 = arith.constant 0 : index
    %17 = memref.load %arg3[%c0_11] : memref<8xf32, #tpu.memory_space<smem>>
    %18 = vector.broadcast %17 : f32 to vector<8x316xf32>
    %19 = arith.mulf %18, %8 : vector<8x316xf32>
    %20 = arith.addf %16, %19 : vector<8x316xf32>
    %c1_12 = arith.constant 1 : index
    %21 = memref.load %arg3[%c1_12] : memref<8xf32, #tpu.memory_space<smem>>
    %22 = vector.broadcast %21 : f32 to vector<8x316xf32>
    %23 = arith.mulf %22, %9 : vector<8x316xf32>
    %24 = arith.addf %20, %23 : vector<8x316xf32>
    %c2_13 = arith.constant 2 : index
    %25 = memref.load %arg3[%c2_13] : memref<8xf32, #tpu.memory_space<smem>>
    %26 = vector.broadcast %25 : f32 to vector<8x316xf32>
    %27 = arith.mulf %26, %10 : vector<8x316xf32>
    %28 = arith.addf %24, %27 : vector<8x316xf32>
    %c3_14 = arith.constant 3 : index
    %29 = memref.load %arg3[%c3_14] : memref<8xf32, #tpu.memory_space<smem>>
    %30 = vector.broadcast %29 : f32 to vector<8x316xf32>
    %31 = arith.mulf %30, %11 : vector<8x316xf32>
    %32 = arith.addf %28, %31 : vector<8x316xf32>
    %c0_15 = arith.constant 0 : index
    %c0_16 = arith.constant 0 : index
    %c0_17 = arith.constant 0 : index
    %33 = vector.load %arg15[%c0_15, %c0_16, %c0_17] : memref<10x8x316xf32, #tpu.memory_space<vmem>>, vector<1x8x316xf32>
    %34 = vector.shape_cast %33 : vector<1x8x316xf32> to vector<8x316xf32>
    %35 = vector.shape_cast %32 : vector<8x316xf32> to vector<1x8x316xf32>
    tpu.vector_store %arg15[%c0_15, %c0_16, %c0_17], %35 {strides = array<i32>} : memref<10x8x316xf32, #tpu.memory_space<vmem>>, vector<1x8x316xf32>,
    %cst_18 = arith.constant 0.000000e+00 : f32
    %36 = vector.broadcast %cst_18 : f32 to vector<8x316xf32>
    %c1_19 = arith.constant 1 : index
    %37 = memref.load %arg4[%c1_19] : memref<2xf32, #tpu.memory_space<smem>>
    %38 = vector.broadcast %37 : f32 to vector<8x316xf32>
    %39 = arith.addf %36, %38 : vector<8x316xf32>
    %c4 = arith.constant 4 : index
    %40 = memref.load %arg3[%c4] : memref<8xf32, #tpu.memory_space<smem>>
    %41 = vector.broadcast %40 : f32 to vector<8x316xf32>
    %42 = arith.mulf %41, %8 : vector<8x316xf32>
    %43 = arith.addf %39, %42 : vector<8x316xf32>
    %c5 = arith.constant 5 : index
    %44 = memref.load %arg3[%c5] : memref<8xf32, #tpu.memory_space<smem>>
    %45 = vector.broadcast %44 : f32 to vector<8x316xf32>
    %46 = arith.mulf %45, %9 : vector<8x316xf32>
    %47 = arith.addf %43, %46 : vector<8x316xf32>
    %c6 = arith.constant 6 : index
    %48 = memref.load %arg3[%c6] : memref<8xf32, #tpu.memory_space<smem>>
    %49 = vector.broadcast %48 : f32 to vector<8x316xf32>
    %50 = arith.mulf %49, %10 : vector<8x316xf32>
    %51 = arith.addf %47, %50 : vector<8x316xf32>
    %c7 = arith.constant 7 : index
    %52 = memref.load %arg3[%c7] : memref<8xf32, #tpu.memory_space<smem>>
    %53 = vector.broadcast %52 : f32 to vector<8x316xf32>
    %54 = arith.mulf %53, %11 : vector<8x316xf32>
    %55 = arith.addf %51, %54 : vector<8x316xf32>
    %c1_20 = arith.constant 1 : index
    %c0_21 = arith.constant 0 : index
    %c0_22 = arith.constant 0 : index
    %56 = vector.load %arg15[%c1_20, %c0_21, %c0_22] : memref<10x8x316xf32, #tpu.memory_space<vmem>>, vector<1x8x316xf32>
    %57 = vector.shape_cast %56 : vector<1x8x316xf32> to vector<8x316xf32>
    %58 = vector.shape_cast %55 : vector<8x316xf32> to vector<1x8x316xf32>
    tpu.vector_store %arg15[%c1_20, %c0_21, %c0_22], %58 {strides = array<i32>} : memref<10x8x316xf32, #tpu.memory_space<vmem>>, vector<1x8x316xf32>,
    %cst_23 = arith.constant 0.000000e+00 : f32
    %59 = vector.broadcast %cst_23 : f32 to vector<8x400xf32>
    %c0_24 = arith.constant 0 : index
    %60 = memref.load %arg14[%c0_24] : memref<2xf32, #tpu.memory_space<smem>>
    %61 = vector.broadcast %60 : f32 to vector<8x400xf32>
    %62 = arith.addf %59, %61 : vector<8x400xf32>
    %c0_25 = arith.constant 0 : index
    %63 = memref.load %arg13[%c0_25] : memref<8xf32, #tpu.memory_space<smem>>
    %64 = vector.broadcast %63 : f32 to vector<8x400xf32>
    %65 = arith.mulf %64, %1 : vector<8x400xf32>
    %66 = arith.addf %62, %65 : vector<8x400xf32>
    %c1_26 = arith.constant 1 : index
    %67 = memref.load %arg13[%c1_26] : memref<8xf32, #tpu.memory_space<smem>>
    %68 = vector.broadcast %67 : f32 to vector<8x400xf32>
    %69 = arith.mulf %68, %3 : vector<8x400xf32>
    %70 = arith.addf %66, %69 : vector<8x400xf32>
    %c2_27 = arith.constant 2 : index
    %71 = memref.load %arg13[%c2_27] : memref<8xf32, #tpu.memory_space<smem>>
    %72 = vector.broadcast %71 : f32 to vector<8x400xf32>
    %73 = arith.mulf %72, %5 : vector<8x400xf32>
    %74 = arith.addf %70, %73 : vector<8x400xf32>
    %c3_28 = arith.constant 3 : index
    %75 = memref.load %arg13[%c3_28] : memref<8xf32, #tpu.memory_space<smem>>
    %76 = vector.broadcast %75 : f32 to vector<8x400xf32>
    %77 = arith.mulf %76, %7 : vector<8x400xf32>
    %78 = arith.addf %74, %77 : vector<8x400xf32>
    %79 = vector.extract_strided_slice %78 {offsets = [0, 42], sizes = [8, 316], strides = [1, 1]} : vector<8x400xf32> to vector<8x316xf32>
    %80 = vector.extract_strided_slice %78 {offsets = [0, 21], sizes = [8, 316], strides = [1, 1]} : vector<8x400xf32> to vector<8x316xf32>
    %81 = arith.maximumf %79, %80 : vector<8x316xf32>
    %82 = vector.extract_strided_slice %78 {offsets = [0, 22], sizes = [8, 316], strides = [1, 1]} : vector<8x400xf32> to vector<8x316xf32>
    %83 = arith.maximumf %81, %82 : vector<8x316xf32>
    %84 = vector.extract_strided_slice %78 {offsets = [0, 23], sizes = [8, 316], strides = [1, 1]} : vector<8x400xf32> to vector<8x316xf32>
    %85 = arith.maximumf %83, %84 : vector<8x316xf32>
    %86 = vector.extract_strided_slice %78 {offsets = [0, 41], sizes = [8, 316], strides = [1, 1]} : vector<8x400xf32> to vector<8x316xf32>
    %87 = arith.maximumf %85, %86 : vector<8x316xf32>
    %88 = vector.extract_strided_slice %78 {offsets = [0, 43], sizes = [8, 316], strides = [1, 1]} : vector<8x400xf32> to vector<8x316xf32>
    %89 = arith.maximumf %87, %88 : vector<8x316xf32>
    %90 = vector.extract_strided_slice %78 {offsets = [0, 61], sizes = [8, 316], strides = [1, 1]} : vector<8x400xf32> to vector<8x316xf32>
    %91 = arith.maximumf %89, %90 : vector<8x316xf32>
    %92 = vector.extract_strided_slice %78 {offsets = [0, 62], sizes = [8, 316], strides = [1, 1]} : vector<8x400xf32> to vector<8x316xf32>
    %93 = arith.maximumf %91, %92 : vector<8x316xf32>
    %94 = vector.extract_strided_slice %78 {offsets = [0, 63], sizes = [8, 316], strides = [1, 1]} : vector<8x400xf32> to vector<8x316xf32>
    %95 = arith.maximumf %93, %94 : vector<8x316xf32>
    %c8 = arith.constant 8 : index
    %c0_29 = arith.constant 0 : index
    %c0_30 = arith.constant 0 : index
    %96 = vector.load %arg15[%c8, %c0_29, %c0_30] : memref<10x8x316xf32, #tpu.memory_space<vmem>>, vector<1x8x316xf32>
    %97 = vector.shape_cast %96 : vector<1x8x316xf32> to vector<8x316xf32>
    %98 = vector.shape_cast %95 : vector<8x316xf32> to vector<1x8x316xf32>
    tpu.vector_store %arg15[%c8, %c0_29, %c0_30], %98 {strides = array<i32>} : memref<10x8x316xf32, #tpu.memory_space<vmem>>, vector<1x8x316xf32>,
    %cst_31 = arith.constant 0.000000e+00 : f32
    %99 = vector.broadcast %cst_31 : f32 to vector<8x400xf32>
    %c1_32 = arith.constant 1 : index
    %100 = memref.load %arg14[%c1_32] : memref<2xf32, #tpu.memory_space<smem>>
    %101 = vector.broadcast %100 : f32 to vector<8x400xf32>
    %102 = arith.addf %99, %101 : vector<8x400xf32>
    %c4_33 = arith.constant 4 : index
    %103 = memref.load %arg13[%c4_33] : memref<8xf32, #tpu.memory_space<smem>>
    %104 = vector.broadcast %103 : f32 to vector<8x400xf32>
    %105 = arith.mulf %104, %1 : vector<8x400xf32>
    %106 = arith.addf %102, %105 : vector<8x400xf32>
    %c5_34 = arith.constant 5 : index
    %107 = memref.load %arg13[%c5_34] : memref<8xf32, #tpu.memory_space<smem>>
    %108 = vector.broadcast %107 : f32 to vector<8x400xf32>
    %109 = arith.mulf %108, %3 : vector<8x400xf32>
    %110 = arith.addf %106, %109 : vector<8x400xf32>
    %c6_35 = arith.constant 6 : index
    %111 = memref.load %arg13[%c6_35] : memref<8xf32, #tpu.memory_space<smem>>
    %112 = vector.broadcast %111 : f32 to vector<8x400xf32>
    %113 = arith.mulf %112, %5 : vector<8x400xf32>
    %114 = arith.addf %110, %113 : vector<8x400xf32>
    %c7_36 = arith.constant 7 : index
    %115 = memref.load %arg13[%c7_36] : memref<8xf32, #tpu.memory_space<smem>>
    %116 = vector.broadcast %115 : f32 to vector<8x400xf32>
    %117 = arith.mulf %116, %7 : vector<8x400xf32>
    %118 = arith.addf %114, %117 : vector<8x400xf32>
    %119 = vector.extract_strided_slice %118 {offsets = [0, 42], sizes = [8, 316], strides = [1, 1]} : vector<8x400xf32> to vector<8x316xf32>
    %120 = vector.extract_strided_slice %118 {offsets = [0, 21], sizes = [8, 316], strides = [1, 1]} : vector<8x400xf32> to vector<8x316xf32>
    %121 = arith.maximumf %119, %120 : vector<8x316xf32>
    %122 = vector.extract_strided_slice %118 {offsets = [0, 22], sizes = [8, 316], strides = [1, 1]} : vector<8x400xf32> to vector<8x316xf32>
    %123 = arith.maximumf %121, %122 : vector<8x316xf32>
    %124 = vector.extract_strided_slice %118 {offsets = [0, 23], sizes = [8, 316], strides = [1, 1]} : vector<8x400xf32> to vector<8x316xf32>
    %125 = arith.maximumf %123, %124 : vector<8x316xf32>
    %126 = vector.extract_strided_slice %118 {offsets = [0, 41], sizes = [8, 316], strides = [1, 1]} : vector<8x400xf32> to vector<8x316xf32>
    %127 = arith.maximumf %125, %126 : vector<8x316xf32>
    %128 = vector.extract_strided_slice %118 {offsets = [0, 43], sizes = [8, 316], strides = [1, 1]} : vector<8x400xf32> to vector<8x316xf32>
    %129 = arith.maximumf %127, %128 : vector<8x316xf32>
    %130 = vector.extract_strided_slice %118 {offsets = [0, 61], sizes = [8, 316], strides = [1, 1]} : vector<8x400xf32> to vector<8x316xf32>
    %131 = arith.maximumf %129, %130 : vector<8x316xf32>
    %132 = vector.extract_strided_slice %118 {offsets = [0, 62], sizes = [8, 316], strides = [1, 1]} : vector<8x400xf32> to vector<8x316xf32>
    %133 = arith.maximumf %131, %132 : vector<8x316xf32>
    %134 = vector.extract_strided_slice %118 {offsets = [0, 63], sizes = [8, 316], strides = [1, 1]} : vector<8x400xf32> to vector<8x316xf32>
    %135 = arith.maximumf %133, %134 : vector<8x316xf32>
    %c9 = arith.constant 9 : index
    %c0_37 = arith.constant 0 : index
    %c0_38 = arith.constant 0 : index
    %136 = vector.load %arg15[%c9, %c0_37, %c0_38] : memref<10x8x316xf32, #tpu.memory_space<vmem>>, vector<1x8x316xf32>
    %137 = vector.shape_cast %136 : vector<1x8x316xf32> to vector<8x316xf32>
    %138 = vector.shape_cast %135 : vector<8x316xf32> to vector<1x8x316xf32>
    tpu.vector_store %arg15[%c9, %c0_37, %c0_38], %138 {strides = array<i32>} : memref<10x8x316xf32, #tpu.memory_space<vmem>>, vector<1x8x316xf32>,
    %c0_39 = arith.constant 0 : index
    %139 = memref.load %arg6[%c0_39] : memref<2xf32, #tpu.memory_space<smem>>
    %140 = vector.broadcast %139 : f32 to vector<1x400xf32>
    %141 = arith.mulf %12, %140 : vector<1x400xf32>
    %c0_40 = arith.constant 0 : index
    %142 = memref.load %arg5[%c0_40] : memref<8xf32, #tpu.memory_space<smem>>
    %143 = vector.broadcast %142 : f32 to vector<8x400xf32>
    %144 = arith.mulf %143, %1 : vector<8x400xf32>
    %145 = vector.broadcast %141 : vector<1x400xf32> to vector<8x400xf32>
    %146 = arith.addf %145, %144 : vector<8x400xf32>
    %c1_41 = arith.constant 1 : index
    %147 = memref.load %arg5[%c1_41] : memref<8xf32, #tpu.memory_space<smem>>
    %148 = vector.broadcast %147 : f32 to vector<8x400xf32>
    %149 = arith.mulf %148, %3 : vector<8x400xf32>
    %150 = arith.addf %146, %149 : vector<8x400xf32>
    %c2_42 = arith.constant 2 : index
    %151 = memref.load %arg5[%c2_42] : memref<8xf32, #tpu.memory_space<smem>>
    %152 = vector.broadcast %151 : f32 to vector<8x400xf32>
    %153 = arith.mulf %152, %5 : vector<8x400xf32>
    %154 = arith.addf %150, %153 : vector<8x400xf32>
    %c3_43 = arith.constant 3 : index
    %155 = memref.load %arg5[%c3_43] : memref<8xf32, #tpu.memory_space<smem>>
    %156 = vector.broadcast %155 : f32 to vector<8x400xf32>
    %157 = arith.mulf %156, %7 : vector<8x400xf32>
    %158 = arith.addf %154, %157 : vector<8x400xf32>
    %c1_44 = arith.constant 1 : index
    %159 = memref.load %arg6[%c1_44] : memref<2xf32, #tpu.memory_space<smem>>
    %160 = vector.broadcast %159 : f32 to vector<1x400xf32>
    %161 = arith.mulf %12, %160 : vector<1x400xf32>
    %c4_45 = arith.constant 4 : index
    %162 = memref.load %arg5[%c4_45] : memref<8xf32, #tpu.memory_space<smem>>
    %163 = vector.broadcast %162 : f32 to vector<8x400xf32>
    %164 = arith.mulf %163, %1 : vector<8x400xf32>
    %165 = vector.broadcast %161 : vector<1x400xf32> to vector<8x400xf32>
    %166 = arith.addf %165, %164 : vector<8x400xf32>
    %c5_46 = arith.constant 5 : index
    %167 = memref.load %arg5[%c5_46] : memref<8xf32, #tpu.memory_space<smem>>
    %168 = vector.broadcast %167 : f32 to vector<8x400xf32>
    %169 = arith.mulf %168, %3 : vector<8x400xf32>
    %170 = arith.addf %166, %169 : vector<8x400xf32>
    %c6_47 = arith.constant 6 : index
    %171 = memref.load %arg5[%c6_47] : memref<8xf32, #tpu.memory_space<smem>>
    %172 = vector.broadcast %171 : f32 to vector<8x400xf32>
    %173 = arith.mulf %172, %5 : vector<8x400xf32>
    %174 = arith.addf %170, %173 : vector<8x400xf32>
    %c7_48 = arith.constant 7 : index
    %175 = memref.load %arg5[%c7_48] : memref<8xf32, #tpu.memory_space<smem>>
    %176 = vector.broadcast %175 : f32 to vector<8x400xf32>
    %177 = arith.mulf %176, %7 : vector<8x400xf32>
    %178 = arith.addf %174, %177 : vector<8x400xf32>
    %cst_49 = arith.constant 0.000000e+00 : f32
    %179 = vector.broadcast %cst_49 : f32 to vector<8x316xf32>
    %c0_50 = arith.constant 0 : index
    %180 = memref.load %arg8[%c0_50] : memref<3xf32, #tpu.memory_space<smem>>
    %181 = vector.broadcast %180 : f32 to vector<8x316xf32>
    %182 = arith.addf %179, %181 : vector<8x316xf32>
    %cst_51 = arith.constant 0.000000e+00 : f32
    %183 = vector.broadcast %cst_51 : f32 to vector<8x316xf32>
    %c1_52 = arith.constant 1 : index
    %184 = memref.load %arg8[%c1_52] : memref<3xf32, #tpu.memory_space<smem>>
    %185 = vector.broadcast %184 : f32 to vector<8x316xf32>
    %186 = arith.addf %183, %185 : vector<8x316xf32>
    %cst_53 = arith.constant 0.000000e+00 : f32
    %187 = vector.broadcast %cst_53 : f32 to vector<8x316xf32>
    %c2_54 = arith.constant 2 : index
    %188 = memref.load %arg8[%c2_54] : memref<3xf32, #tpu.memory_space<smem>>
    %189 = vector.broadcast %188 : f32 to vector<8x316xf32>
    %190 = arith.addf %187, %189 : vector<8x316xf32>
    %191 = vector.extract_strided_slice %158 {offsets = [0, 21], sizes = [8, 316], strides = [1, 1]} : vector<8x400xf32> to vector<8x316xf32>
    %c0_55 = arith.constant 0 : index
    %192 = memref.load %arg7[%c0_55] : memref<54xf32, #tpu.memory_space<smem>>
    %193 = vector.broadcast %192 : f32 to vector<8x316xf32>
    %194 = arith.mulf %193, %191 : vector<8x316xf32>
    %195 = arith.addf %182, %194 : vector<8x316xf32>
    %c18 = arith.constant 18 : index
    %196 = memref.load %arg7[%c18] : memref<54xf32, #tpu.memory_space<smem>>
    %197 = vector.broadcast %196 : f32 to vector<8x316xf32>
    %198 = arith.mulf %197, %191 : vector<8x316xf32>
    %199 = arith.addf %186, %198 : vector<8x316xf32>
    %c36 = arith.constant 36 : index
    %200 = memref.load %arg7[%c36] : memref<54xf32, #tpu.memory_space<smem>>
    %201 = vector.broadcast %200 : f32 to vector<8x316xf32>
    %202 = arith.mulf %201, %191 : vector<8x316xf32>
    %203 = arith.addf %190, %202 : vector<8x316xf32>
    %204 = vector.extract_strided_slice %178 {offsets = [0, 21], sizes = [8, 316], strides = [1, 1]} : vector<8x400xf32> to vector<8x316xf32>
    %c9_56 = arith.constant 9 : index
    %205 = memref.load %arg7[%c9_56] : memref<54xf32, #tpu.memory_space<smem>>
    %206 = vector.broadcast %205 : f32 to vector<8x316xf32>
    %207 = arith.mulf %206, %204 : vector<8x316xf32>
    %208 = arith.addf %195, %207 : vector<8x316xf32>
    %c27 = arith.constant 27 : index
    %209 = memref.load %arg7[%c27] : memref<54xf32, #tpu.memory_space<smem>>
    %210 = vector.broadcast %209 : f32 to vector<8x316xf32>
    %211 = arith.mulf %210, %204 : vector<8x316xf32>
    %212 = arith.addf %199, %211 : vector<8x316xf32>
    %c45 = arith.constant 45 : index
    %213 = memref.load %arg7[%c45] : memref<54xf32, #tpu.memory_space<smem>>
    %214 = vector.broadcast %213 : f32 to vector<8x316xf32>
    %215 = arith.mulf %214, %204 : vector<8x316xf32>
    %216 = arith.addf %203, %215 : vector<8x316xf32>
    %217 = vector.extract_strided_slice %158 {offsets = [0, 22], sizes = [8, 316], strides = [1, 1]} : vector<8x400xf32> to vector<8x316xf32>
    %c1_57 = arith.constant 1 : index
    %218 = memref.load %arg7[%c1_57] : memref<54xf32, #tpu.memory_space<smem>>
    %219 = vector.broadcast %218 : f32 to vector<8x316xf32>
    %220 = arith.mulf %219, %217 : vector<8x316xf32>
    %221 = arith.addf %208, %220 : vector<8x316xf32>
    %c19 = arith.constant 19 : index
    %222 = memref.load %arg7[%c19] : memref<54xf32, #tpu.memory_space<smem>>
    %223 = vector.broadcast %222 : f32 to vector<8x316xf32>
    %224 = arith.mulf %223, %217 : vector<8x316xf32>
    %225 = arith.addf %212, %224 : vector<8x316xf32>
    %c37 = arith.constant 37 : index
    %226 = memref.load %arg7[%c37] : memref<54xf32, #tpu.memory_space<smem>>
    %227 = vector.broadcast %226 : f32 to vector<8x316xf32>
    %228 = arith.mulf %227, %217 : vector<8x316xf32>
    %229 = arith.addf %216, %228 : vector<8x316xf32>
    %230 = vector.extract_strided_slice %178 {offsets = [0, 22], sizes = [8, 316], strides = [1, 1]} : vector<8x400xf32> to vector<8x316xf32>
    %c10 = arith.constant 10 : index
    %231 = memref.load %arg7[%c10] : memref<54xf32, #tpu.memory_space<smem>>
    %232 = vector.broadcast %231 : f32 to vector<8x316xf32>
    %233 = arith.mulf %232, %230 : vector<8x316xf32>
    %234 = arith.addf %221, %233 : vector<8x316xf32>
    %c28 = arith.constant 28 : index
    %235 = memref.load %arg7[%c28] : memref<54xf32, #tpu.memory_space<smem>>
    %236 = vector.broadcast %235 : f32 to vector<8x316xf32>
    %237 = arith.mulf %236, %230 : vector<8x316xf32>
    %238 = arith.addf %225, %237 : vector<8x316xf32>
    %c46 = arith.constant 46 : index
    %239 = memref.load %arg7[%c46] : memref<54xf32, #tpu.memory_space<smem>>
    %240 = vector.broadcast %239 : f32 to vector<8x316xf32>
    %241 = arith.mulf %240, %230 : vector<8x316xf32>
    %242 = arith.addf %229, %241 : vector<8x316xf32>
    %243 = vector.extract_strided_slice %158 {offsets = [0, 23], sizes = [8, 316], strides = [1, 1]} : vector<8x400xf32> to vector<8x316xf32>
    %c2_58 = arith.constant 2 : index
    %244 = memref.load %arg7[%c2_58] : memref<54xf32, #tpu.memory_space<smem>>
    %245 = vector.broadcast %244 : f32 to vector<8x316xf32>
    %246 = arith.mulf %245, %243 : vector<8x316xf32>
    %247 = arith.addf %234, %246 : vector<8x316xf32>
    %c20 = arith.constant 20 : index
    %248 = memref.load %arg7[%c20] : memref<54xf32, #tpu.memory_space<smem>>
    %249 = vector.broadcast %248 : f32 to vector<8x316xf32>
    %250 = arith.mulf %249, %243 : vector<8x316xf32>
    %251 = arith.addf %238, %250 : vector<8x316xf32>
    %c38 = arith.constant 38 : index
    %252 = memref.load %arg7[%c38] : memref<54xf32, #tpu.memory_space<smem>>
    %253 = vector.broadcast %252 : f32 to vector<8x316xf32>
    %254 = arith.mulf %253, %243 : vector<8x316xf32>
    %255 = arith.addf %242, %254 : vector<8x316xf32>
    %256 = vector.extract_strided_slice %178 {offsets = [0, 23], sizes = [8, 316], strides = [1, 1]} : vector<8x400xf32> to vector<8x316xf32>
    %c11 = arith.constant 11 : index
    %257 = memref.load %arg7[%c11] : memref<54xf32, #tpu.memory_space<smem>>
    %258 = vector.broadcast %257 : f32 to vector<8x316xf32>
    %259 = arith.mulf %258, %256 : vector<8x316xf32>
    %260 = arith.addf %247, %259 : vector<8x316xf32>
    %c29 = arith.constant 29 : index
    %261 = memref.load %arg7[%c29] : memref<54xf32, #tpu.memory_space<smem>>
    %262 = vector.broadcast %261 : f32 to vector<8x316xf32>
    %263 = arith.mulf %262, %256 : vector<8x316xf32>
    %264 = arith.addf %251, %263 : vector<8x316xf32>
    %c47 = arith.constant 47 : index
    %265 = memref.load %arg7[%c47] : memref<54xf32, #tpu.memory_space<smem>>
    %266 = vector.broadcast %265 : f32 to vector<8x316xf32>
    %267 = arith.mulf %266, %256 : vector<8x316xf32>
    %268 = arith.addf %255, %267 : vector<8x316xf32>
    %269 = vector.extract_strided_slice %158 {offsets = [0, 41], sizes = [8, 316], strides = [1, 1]} : vector<8x400xf32> to vector<8x316xf32>
    %c3_59 = arith.constant 3 : index
    %270 = memref.load %arg7[%c3_59] : memref<54xf32, #tpu.memory_space<smem>>
    %271 = vector.broadcast %270 : f32 to vector<8x316xf32>
    %272 = arith.mulf %271, %269 : vector<8x316xf32>
    %273 = arith.addf %260, %272 : vector<8x316xf32>
    %c21 = arith.constant 21 : index
    %274 = memref.load %arg7[%c21] : memref<54xf32, #tpu.memory_space<smem>>
    %275 = vector.broadcast %274 : f32 to vector<8x316xf32>
    %276 = arith.mulf %275, %269 : vector<8x316xf32>
    %277 = arith.addf %264, %276 : vector<8x316xf32>
    %c39 = arith.constant 39 : index
    %278 = memref.load %arg7[%c39] : memref<54xf32, #tpu.memory_space<smem>>
    %279 = vector.broadcast %278 : f32 to vector<8x316xf32>
    %280 = arith.mulf %279, %269 : vector<8x316xf32>
    %281 = arith.addf %268, %280 : vector<8x316xf32>
    %282 = vector.extract_strided_slice %178 {offsets = [0, 41], sizes = [8, 316], strides = [1, 1]} : vector<8x400xf32> to vector<8x316xf32>
    %c12 = arith.constant 12 : index
    %283 = memref.load %arg7[%c12] : memref<54xf32, #tpu.memory_space<smem>>
    %284 = vector.broadcast %283 : f32 to vector<8x316xf32>
    %285 = arith.mulf %284, %282 : vector<8x316xf32>
    %286 = arith.addf %273, %285 : vector<8x316xf32>
    %c30 = arith.constant 30 : index
    %287 = memref.load %arg7[%c30] : memref<54xf32, #tpu.memory_space<smem>>
    %288 = vector.broadcast %287 : f32 to vector<8x316xf32>
    %289 = arith.mulf %288, %282 : vector<8x316xf32>
    %290 = arith.addf %277, %289 : vector<8x316xf32>
    %c48 = arith.constant 48 : index
    %291 = memref.load %arg7[%c48] : memref<54xf32, #tpu.memory_space<smem>>
    %292 = vector.broadcast %291 : f32 to vector<8x316xf32>
    %293 = arith.mulf %292, %282 : vector<8x316xf32>
    %294 = arith.addf %281, %293 : vector<8x316xf32>
    %295 = vector.extract_strided_slice %158 {offsets = [0, 42], sizes = [8, 316], strides = [1, 1]} : vector<8x400xf32> to vector<8x316xf32>
    %c4_60 = arith.constant 4 : index
    %296 = memref.load %arg7[%c4_60] : memref<54xf32, #tpu.memory_space<smem>>
    %297 = vector.broadcast %296 : f32 to vector<8x316xf32>
    %298 = arith.mulf %297, %295 : vector<8x316xf32>
    %299 = arith.addf %286, %298 : vector<8x316xf32>
    %c22 = arith.constant 22 : index
    %300 = memref.load %arg7[%c22] : memref<54xf32, #tpu.memory_space<smem>>
    %301 = vector.broadcast %300 : f32 to vector<8x316xf32>
    %302 = arith.mulf %301, %295 : vector<8x316xf32>
    %303 = arith.addf %290, %302 : vector<8x316xf32>
    %c40 = arith.constant 40 : index
    %304 = memref.load %arg7[%c40] : memref<54xf32, #tpu.memory_space<smem>>
    %305 = vector.broadcast %304 : f32 to vector<8x316xf32>
    %306 = arith.mulf %305, %295 : vector<8x316xf32>
    %307 = arith.addf %294, %306 : vector<8x316xf32>
    %308 = vector.extract_strided_slice %178 {offsets = [0, 42], sizes = [8, 316], strides = [1, 1]} : vector<8x400xf32> to vector<8x316xf32>
    %c13 = arith.constant 13 : index
    %309 = memref.load %arg7[%c13] : memref<54xf32, #tpu.memory_space<smem>>
    %310 = vector.broadcast %309 : f32 to vector<8x316xf32>
    %311 = arith.mulf %310, %308 : vector<8x316xf32>
    %312 = arith.addf %299, %311 : vector<8x316xf32>
    %c31 = arith.constant 31 : index
    %313 = memref.load %arg7[%c31] : memref<54xf32, #tpu.memory_space<smem>>
    %314 = vector.broadcast %313 : f32 to vector<8x316xf32>
    %315 = arith.mulf %314, %308 : vector<8x316xf32>
    %316 = arith.addf %303, %315 : vector<8x316xf32>
    %c49 = arith.constant 49 : index
    %317 = memref.load %arg7[%c49] : memref<54xf32, #tpu.memory_space<smem>>
    %318 = vector.broadcast %317 : f32 to vector<8x316xf32>
    %319 = arith.mulf %318, %308 : vector<8x316xf32>
    %320 = arith.addf %307, %319 : vector<8x316xf32>
    %321 = vector.extract_strided_slice %158 {offsets = [0, 43], sizes = [8, 316], strides = [1, 1]} : vector<8x400xf32> to vector<8x316xf32>
    %c5_61 = arith.constant 5 : index
    %322 = memref.load %arg7[%c5_61] : memref<54xf32, #tpu.memory_space<smem>>
    %323 = vector.broadcast %322 : f32 to vector<8x316xf32>
    %324 = arith.mulf %323, %321 : vector<8x316xf32>
    %325 = arith.addf %312, %324 : vector<8x316xf32>
    %c23 = arith.constant 23 : index
    %326 = memref.load %arg7[%c23] : memref<54xf32, #tpu.memory_space<smem>>
    %327 = vector.broadcast %326 : f32 to vector<8x316xf32>
    %328 = arith.mulf %327, %321 : vector<8x316xf32>
    %329 = arith.addf %316, %328 : vector<8x316xf32>
    %c41 = arith.constant 41 : index
    %330 = memref.load %arg7[%c41] : memref<54xf32, #tpu.memory_space<smem>>
    %331 = vector.broadcast %330 : f32 to vector<8x316xf32>
    %332 = arith.mulf %331, %321 : vector<8x316xf32>
    %333 = arith.addf %320, %332 : vector<8x316xf32>
    %334 = vector.extract_strided_slice %178 {offsets = [0, 43], sizes = [8, 316], strides = [1, 1]} : vector<8x400xf32> to vector<8x316xf32>
    %c14 = arith.constant 14 : index
    %335 = memref.load %arg7[%c14] : memref<54xf32, #tpu.memory_space<smem>>
    %336 = vector.broadcast %335 : f32 to vector<8x316xf32>
    %337 = arith.mulf %336, %334 : vector<8x316xf32>
    %338 = arith.addf %325, %337 : vector<8x316xf32>
    %c32 = arith.constant 32 : index
    %339 = memref.load %arg7[%c32] : memref<54xf32, #tpu.memory_space<smem>>
    %340 = vector.broadcast %339 : f32 to vector<8x316xf32>
    %341 = arith.mulf %340, %334 : vector<8x316xf32>
    %342 = arith.addf %329, %341 : vector<8x316xf32>
    %c50 = arith.constant 50 : index
    %343 = memref.load %arg7[%c50] : memref<54xf32, #tpu.memory_space<smem>>
    %344 = vector.broadcast %343 : f32 to vector<8x316xf32>
    %345 = arith.mulf %344, %334 : vector<8x316xf32>
    %346 = arith.addf %333, %345 : vector<8x316xf32>
    %347 = vector.extract_strided_slice %158 {offsets = [0, 61], sizes = [8, 316], strides = [1, 1]} : vector<8x400xf32> to vector<8x316xf32>
    %c6_62 = arith.constant 6 : index
    %348 = memref.load %arg7[%c6_62] : memref<54xf32, #tpu.memory_space<smem>>
    %349 = vector.broadcast %348 : f32 to vector<8x316xf32>
    %350 = arith.mulf %349, %347 : vector<8x316xf32>
    %351 = arith.addf %338, %350 : vector<8x316xf32>
    %c24 = arith.constant 24 : index
    %352 = memref.load %arg7[%c24] : memref<54xf32, #tpu.memory_space<smem>>
    %353 = vector.broadcast %352 : f32 to vector<8x316xf32>
    %354 = arith.mulf %353, %347 : vector<8x316xf32>
    %355 = arith.addf %342, %354 : vector<8x316xf32>
    %c42 = arith.constant 42 : index
    %356 = memref.load %arg7[%c42] : memref<54xf32, #tpu.memory_space<smem>>
    %357 = vector.broadcast %356 : f32 to vector<8x316xf32>
    %358 = arith.mulf %357, %347 : vector<8x316xf32>
    %359 = arith.addf %346, %358 : vector<8x316xf32>
    %360 = vector.extract_strided_slice %178 {offsets = [0, 61], sizes = [8, 316], strides = [1, 1]} : vector<8x400xf32> to vector<8x316xf32>
    %c15 = arith.constant 15 : index
    %361 = memref.load %arg7[%c15] : memref<54xf32, #tpu.memory_space<smem>>
    %362 = vector.broadcast %361 : f32 to vector<8x316xf32>
    %363 = arith.mulf %362, %360 : vector<8x316xf32>
    %364 = arith.addf %351, %363 : vector<8x316xf32>
    %c33 = arith.constant 33 : index
    %365 = memref.load %arg7[%c33] : memref<54xf32, #tpu.memory_space<smem>>
    %366 = vector.broadcast %365 : f32 to vector<8x316xf32>
    %367 = arith.mulf %366, %360 : vector<8x316xf32>
    %368 = arith.addf %355, %367 : vector<8x316xf32>
    %c51 = arith.constant 51 : index
    %369 = memref.load %arg7[%c51] : memref<54xf32, #tpu.memory_space<smem>>
    %370 = vector.broadcast %369 : f32 to vector<8x316xf32>
    %371 = arith.mulf %370, %360 : vector<8x316xf32>
    %372 = arith.addf %359, %371 : vector<8x316xf32>
    %373 = vector.extract_strided_slice %158 {offsets = [0, 62], sizes = [8, 316], strides = [1, 1]} : vector<8x400xf32> to vector<8x316xf32>
    %c7_63 = arith.constant 7 : index
    %374 = memref.load %arg7[%c7_63] : memref<54xf32, #tpu.memory_space<smem>>
    %375 = vector.broadcast %374 : f32 to vector<8x316xf32>
    %376 = arith.mulf %375, %373 : vector<8x316xf32>
    %377 = arith.addf %364, %376 : vector<8x316xf32>
    %c25 = arith.constant 25 : index
    %378 = memref.load %arg7[%c25] : memref<54xf32, #tpu.memory_space<smem>>
    %379 = vector.broadcast %378 : f32 to vector<8x316xf32>
    %380 = arith.mulf %379, %373 : vector<8x316xf32>
    %381 = arith.addf %368, %380 : vector<8x316xf32>
    %c43 = arith.constant 43 : index
    %382 = memref.load %arg7[%c43] : memref<54xf32, #tpu.memory_space<smem>>
    %383 = vector.broadcast %382 : f32 to vector<8x316xf32>
    %384 = arith.mulf %383, %373 : vector<8x316xf32>
    %385 = arith.addf %372, %384 : vector<8x316xf32>
    %386 = vector.extract_strided_slice %178 {offsets = [0, 62], sizes = [8, 316], strides = [1, 1]} : vector<8x400xf32> to vector<8x316xf32>
    %c16 = arith.constant 16 : index
    %387 = memref.load %arg7[%c16] : memref<54xf32, #tpu.memory_space<smem>>
    %388 = vector.broadcast %387 : f32 to vector<8x316xf32>
    %389 = arith.mulf %388, %386 : vector<8x316xf32>
    %390 = arith.addf %377, %389 : vector<8x316xf32>
    %c34 = arith.constant 34 : index
    %391 = memref.load %arg7[%c34] : memref<54xf32, #tpu.memory_space<smem>>
    %392 = vector.broadcast %391 : f32 to vector<8x316xf32>
    %393 = arith.mulf %392, %386 : vector<8x316xf32>
    %394 = arith.addf %381, %393 : vector<8x316xf32>
    %c52 = arith.constant 52 : index
    %395 = memref.load %arg7[%c52] : memref<54xf32, #tpu.memory_space<smem>>
    %396 = vector.broadcast %395 : f32 to vector<8x316xf32>
    %397 = arith.mulf %396, %386 : vector<8x316xf32>
    %398 = arith.addf %385, %397 : vector<8x316xf32>
    %399 = vector.extract_strided_slice %158 {offsets = [0, 63], sizes = [8, 316], strides = [1, 1]} : vector<8x400xf32> to vector<8x316xf32>
    %c8_64 = arith.constant 8 : index
    %400 = memref.load %arg7[%c8_64] : memref<54xf32, #tpu.memory_space<smem>>
    %401 = vector.broadcast %400 : f32 to vector<8x316xf32>
    %402 = arith.mulf %401, %399 : vector<8x316xf32>
    %403 = arith.addf %390, %402 : vector<8x316xf32>
    %c26 = arith.constant 26 : index
    %404 = memref.load %arg7[%c26] : memref<54xf32, #tpu.memory_space<smem>>
    %405 = vector.broadcast %404 : f32 to vector<8x316xf32>
    %406 = arith.mulf %405, %399 : vector<8x316xf32>
    %407 = arith.addf %394, %406 : vector<8x316xf32>
    %c44 = arith.constant 44 : index
    %408 = memref.load %arg7[%c44] : memref<54xf32, #tpu.memory_space<smem>>
    %409 = vector.broadcast %408 : f32 to vector<8x316xf32>
    %410 = arith.mulf %409, %399 : vector<8x316xf32>
    %411 = arith.addf %398, %410 : vector<8x316xf32>
    %412 = vector.extract_strided_slice %178 {offsets = [0, 63], sizes = [8, 316], strides = [1, 1]} : vector<8x400xf32> to vector<8x316xf32>
    %c17 = arith.constant 17 : index
    %413 = memref.load %arg7[%c17] : memref<54xf32, #tpu.memory_space<smem>>
    %414 = vector.broadcast %413 : f32 to vector<8x316xf32>
    %415 = arith.mulf %414, %412 : vector<8x316xf32>
    %416 = arith.addf %403, %415 : vector<8x316xf32>
    %c35 = arith.constant 35 : index
    %417 = memref.load %arg7[%c35] : memref<54xf32, #tpu.memory_space<smem>>
    %418 = vector.broadcast %417 : f32 to vector<8x316xf32>
    %419 = arith.mulf %418, %412 : vector<8x316xf32>
    %420 = arith.addf %407, %419 : vector<8x316xf32>
    %c53 = arith.constant 53 : index
    %421 = memref.load %arg7[%c53] : memref<54xf32, #tpu.memory_space<smem>>
    %422 = vector.broadcast %421 : f32 to vector<8x316xf32>
    %423 = arith.mulf %422, %412 : vector<8x316xf32>
    %424 = arith.addf %411, %423 : vector<8x316xf32>
    %c2_65 = arith.constant 2 : index
    %c0_66 = arith.constant 0 : index
    %c0_67 = arith.constant 0 : index
    %425 = vector.load %arg15[%c2_65, %c0_66, %c0_67] : memref<10x8x316xf32, #tpu.memory_space<vmem>>, vector<1x8x316xf32>
    %426 = vector.shape_cast %425 : vector<1x8x316xf32> to vector<8x316xf32>
    %427 = vector.shape_cast %416 : vector<8x316xf32> to vector<1x8x316xf32>
    tpu.vector_store %arg15[%c2_65, %c0_66, %c0_67], %427 {strides = array<i32>} : memref<10x8x316xf32, #tpu.memory_space<vmem>>, vector<1x8x316xf32>,
    %c3_68 = arith.constant 3 : index
    %c0_69 = arith.constant 0 : index
    %c0_70 = arith.constant 0 : index
    %428 = vector.load %arg15[%c3_68, %c0_69, %c0_70] : memref<10x8x316xf32, #tpu.memory_space<vmem>>, vector<1x8x316xf32>
    %429 = vector.shape_cast %428 : vector<1x8x316xf32> to vector<8x316xf32>
    %430 = vector.shape_cast %420 : vector<8x316xf32> to vector<1x8x316xf32>
    tpu.vector_store %arg15[%c3_68, %c0_69, %c0_70], %430 {strides = array<i32>} : memref<10x8x316xf32, #tpu.memory_space<vmem>>, vector<1x8x316xf32>,
    %c4_71 = arith.constant 4 : index
    %c0_72 = arith.constant 0 : index
    %c0_73 = arith.constant 0 : index
    %431 = vector.load %arg15[%c4_71, %c0_72, %c0_73] : memref<10x8x316xf32, #tpu.memory_space<vmem>>, vector<1x8x316xf32>
    %432 = vector.shape_cast %431 : vector<1x8x316xf32> to vector<8x316xf32>
    %433 = vector.shape_cast %424 : vector<8x316xf32> to vector<1x8x316xf32>
    tpu.vector_store %arg15[%c4_71, %c0_72, %c0_73], %433 {strides = array<i32>} : memref<10x8x316xf32, #tpu.memory_space<vmem>>, vector<1x8x316xf32>,
    %c0_74 = arith.constant 0 : index
    %434 = memref.load %arg10[%c0_74] : memref<2xf32, #tpu.memory_space<smem>>
    %435 = vector.broadcast %434 : f32 to vector<1x400xf32>
    %436 = arith.mulf %12, %435 : vector<1x400xf32>
    %c0_75 = arith.constant 0 : index
    %437 = memref.load %arg9[%c0_75] : memref<8xf32, #tpu.memory_space<smem>>
    %438 = vector.broadcast %437 : f32 to vector<8x400xf32>
    %439 = arith.mulf %438, %1 : vector<8x400xf32>
    %440 = vector.broadcast %436 : vector<1x400xf32> to vector<8x400xf32>
    %441 = arith.addf %440, %439 : vector<8x400xf32>
    %c1_76 = arith.constant 1 : index
    %442 = memref.load %arg9[%c1_76] : memref<8xf32, #tpu.memory_space<smem>>
    %443 = vector.broadcast %442 : f32 to vector<8x400xf32>
    %444 = arith.mulf %443, %3 : vector<8x400xf32>
    %445 = arith.addf %441, %444 : vector<8x400xf32>
    %c2_77 = arith.constant 2 : index
    %446 = memref.load %arg9[%c2_77] : memref<8xf32, #tpu.memory_space<smem>>
    %447 = vector.broadcast %446 : f32 to vector<8x400xf32>
    %448 = arith.mulf %447, %5 : vector<8x400xf32>
    %449 = arith.addf %445, %448 : vector<8x400xf32>
    %c3_78 = arith.constant 3 : index
    %450 = memref.load %arg9[%c3_78] : memref<8xf32, #tpu.memory_space<smem>>
    %451 = vector.broadcast %450 : f32 to vector<8x400xf32>
    %452 = arith.mulf %451, %7 : vector<8x400xf32>
    %453 = arith.addf %449, %452 : vector<8x400xf32>
    %c1_79 = arith.constant 1 : index
    %454 = memref.load %arg10[%c1_79] : memref<2xf32, #tpu.memory_space<smem>>
    %455 = vector.broadcast %454 : f32 to vector<1x400xf32>
    %456 = arith.mulf %12, %455 : vector<1x400xf32>
    %c4_80 = arith.constant 4 : index
    %457 = memref.load %arg9[%c4_80] : memref<8xf32, #tpu.memory_space<smem>>
    %458 = vector.broadcast %457 : f32 to vector<8x400xf32>
    %459 = arith.mulf %458, %1 : vector<8x400xf32>
    %460 = vector.broadcast %456 : vector<1x400xf32> to vector<8x400xf32>
    %461 = arith.addf %460, %459 : vector<8x400xf32>
    %c5_81 = arith.constant 5 : index
    %462 = memref.load %arg9[%c5_81] : memref<8xf32, #tpu.memory_space<smem>>
    %463 = vector.broadcast %462 : f32 to vector<8x400xf32>
    %464 = arith.mulf %463, %3 : vector<8x400xf32>
    %465 = arith.addf %461, %464 : vector<8x400xf32>
    %c6_82 = arith.constant 6 : index
    %466 = memref.load %arg9[%c6_82] : memref<8xf32, #tpu.memory_space<smem>>
    %467 = vector.broadcast %466 : f32 to vector<8x400xf32>
    %468 = arith.mulf %467, %5 : vector<8x400xf32>
    %469 = arith.addf %465, %468 : vector<8x400xf32>
    %c7_83 = arith.constant 7 : index
    %470 = memref.load %arg9[%c7_83] : memref<8xf32, #tpu.memory_space<smem>>
    %471 = vector.broadcast %470 : f32 to vector<8x400xf32>
    %472 = arith.mulf %471, %7 : vector<8x400xf32>
    %473 = arith.addf %469, %472 : vector<8x400xf32>
    %cst_84 = arith.constant 0.000000e+00 : f32
    %474 = vector.broadcast %cst_84 : f32 to vector<8x316xf32>
    %c0_85 = arith.constant 0 : index
    %475 = memref.load %arg12[%c0_85] : memref<3xf32, #tpu.memory_space<smem>>
    %476 = vector.broadcast %475 : f32 to vector<8x316xf32>
    %477 = arith.addf %474, %476 : vector<8x316xf32>
    %cst_86 = arith.constant 0.000000e+00 : f32
    %478 = vector.broadcast %cst_86 : f32 to vector<8x316xf32>
    %c1_87 = arith.constant 1 : index
    %479 = memref.load %arg12[%c1_87] : memref<3xf32, #tpu.memory_space<smem>>
    %480 = vector.broadcast %479 : f32 to vector<8x316xf32>
    %481 = arith.addf %478, %480 : vector<8x316xf32>
    %cst_88 = arith.constant 0.000000e+00 : f32
    %482 = vector.broadcast %cst_88 : f32 to vector<8x316xf32>
    %c2_89 = arith.constant 2 : index
    %483 = memref.load %arg12[%c2_89] : memref<3xf32, #tpu.memory_space<smem>>
    %484 = vector.broadcast %483 : f32 to vector<8x316xf32>
    %485 = arith.addf %482, %484 : vector<8x316xf32>
    %486 = vector.extract_strided_slice %453 {offsets = [0, 0], sizes = [8, 316], strides = [1, 1]} : vector<8x400xf32> to vector<8x316xf32>
    %c0_90 = arith.constant 0 : index
    %487 = memref.load %arg11[%c0_90] : memref<150xf32, #tpu.memory_space<smem>>
    %488 = vector.broadcast %487 : f32 to vector<8x316xf32>
    %489 = arith.mulf %488, %486 : vector<8x316xf32>
    %490 = arith.addf %477, %489 : vector<8x316xf32>
    %c50_91 = arith.constant 50 : index
    %491 = memref.load %arg11[%c50_91] : memref<150xf32, #tpu.memory_space<smem>>
    %492 = vector.broadcast %491 : f32 to vector<8x316xf32>
    %493 = arith.mulf %492, %486 : vector<8x316xf32>
    %494 = arith.addf %481, %493 : vector<8x316xf32>
    %c100 = arith.constant 100 : index
    %495 = memref.load %arg11[%c100] : memref<150xf32, #tpu.memory_space<smem>>
    %496 = vector.broadcast %495 : f32 to vector<8x316xf32>
    %497 = arith.mulf %496, %486 : vector<8x316xf32>
    %498 = arith.addf %485, %497 : vector<8x316xf32>
    %499 = vector.extract_strided_slice %473 {offsets = [0, 0], sizes = [8, 316], strides = [1, 1]} : vector<8x400xf32> to vector<8x316xf32>
    %c25_92 = arith.constant 25 : index
    %500 = memref.load %arg11[%c25_92] : memref<150xf32, #tpu.memory_space<smem>>
    %501 = vector.broadcast %500 : f32 to vector<8x316xf32>
    %502 = arith.mulf %501, %499 : vector<8x316xf32>
    %503 = arith.addf %490, %502 : vector<8x316xf32>
    %c75 = arith.constant 75 : index
    %504 = memref.load %arg11[%c75] : memref<150xf32, #tpu.memory_space<smem>>
    %505 = vector.broadcast %504 : f32 to vector<8x316xf32>
    %506 = arith.mulf %505, %499 : vector<8x316xf32>
    %507 = arith.addf %494, %506 : vector<8x316xf32>
    %c125 = arith.constant 125 : index
    %508 = memref.load %arg11[%c125] : memref<150xf32, #tpu.memory_space<smem>>
    %509 = vector.broadcast %508 : f32 to vector<8x316xf32>
    %510 = arith.mulf %509, %499 : vector<8x316xf32>
    %511 = arith.addf %498, %510 : vector<8x316xf32>
    %512 = vector.extract_strided_slice %453 {offsets = [0, 1], sizes = [8, 316], strides = [1, 1]} : vector<8x400xf32> to vector<8x316xf32>
    %c1_93 = arith.constant 1 : index
    %513 = memref.load %arg11[%c1_93] : memref<150xf32, #tpu.memory_space<smem>>
    %514 = vector.broadcast %513 : f32 to vector<8x316xf32>
    %515 = arith.mulf %514, %512 : vector<8x316xf32>
    %516 = arith.addf %503, %515 : vector<8x316xf32>
    %c51_94 = arith.constant 51 : index
    %517 = memref.load %arg11[%c51_94] : memref<150xf32, #tpu.memory_space<smem>>
    %518 = vector.broadcast %517 : f32 to vector<8x316xf32>
    %519 = arith.mulf %518, %512 : vector<8x316xf32>
    %520 = arith.addf %507, %519 : vector<8x316xf32>
    %c101 = arith.constant 101 : index
    %521 = memref.load %arg11[%c101] : memref<150xf32, #tpu.memory_space<smem>>
    %522 = vector.broadcast %521 : f32 to vector<8x316xf32>
    %523 = arith.mulf %522, %512 : vector<8x316xf32>
    %524 = arith.addf %511, %523 : vector<8x316xf32>
    %525 = vector.extract_strided_slice %473 {offsets = [0, 1], sizes = [8, 316], strides = [1, 1]} : vector<8x400xf32> to vector<8x316xf32>
    %c26_95 = arith.constant 26 : index
    %526 = memref.load %arg11[%c26_95] : memref<150xf32, #tpu.memory_space<smem>>
    %527 = vector.broadcast %526 : f32 to vector<8x316xf32>
    %528 = arith.mulf %527, %525 : vector<8x316xf32>
    %529 = arith.addf %516, %528 : vector<8x316xf32>
    %c76 = arith.constant 76 : index
    %530 = memref.load %arg11[%c76] : memref<150xf32, #tpu.memory_space<smem>>
    %531 = vector.broadcast %530 : f32 to vector<8x316xf32>
    %532 = arith.mulf %531, %525 : vector<8x316xf32>
    %533 = arith.addf %520, %532 : vector<8x316xf32>
    %c126 = arith.constant 126 : index
    %534 = memref.load %arg11[%c126] : memref<150xf32, #tpu.memory_space<smem>>
    %535 = vector.broadcast %534 : f32 to vector<8x316xf32>
    %536 = arith.mulf %535, %525 : vector<8x316xf32>
    %537 = arith.addf %524, %536 : vector<8x316xf32>
    %538 = vector.extract_strided_slice %453 {offsets = [0, 2], sizes = [8, 316], strides = [1, 1]} : vector<8x400xf32> to vector<8x316xf32>
    %c2_96 = arith.constant 2 : index
    %539 = memref.load %arg11[%c2_96] : memref<150xf32, #tpu.memory_space<smem>>
    %540 = vector.broadcast %539 : f32 to vector<8x316xf32>
    %541 = arith.mulf %540, %538 : vector<8x316xf32>
    %542 = arith.addf %529, %541 : vector<8x316xf32>
    %c52_97 = arith.constant 52 : index
    %543 = memref.load %arg11[%c52_97] : memref<150xf32, #tpu.memory_space<smem>>
    %544 = vector.broadcast %543 : f32 to vector<8x316xf32>
    %545 = arith.mulf %544, %538 : vector<8x316xf32>
    %546 = arith.addf %533, %545 : vector<8x316xf32>
    %c102 = arith.constant 102 : index
    %547 = memref.load %arg11[%c102] : memref<150xf32, #tpu.memory_space<smem>>
    %548 = vector.broadcast %547 : f32 to vector<8x316xf32>
    %549 = arith.mulf %548, %538 : vector<8x316xf32>
    %550 = arith.addf %537, %549 : vector<8x316xf32>
    %551 = vector.extract_strided_slice %473 {offsets = [0, 2], sizes = [8, 316], strides = [1, 1]} : vector<8x400xf32> to vector<8x316xf32>
    %c27_98 = arith.constant 27 : index
    %552 = memref.load %arg11[%c27_98] : memref<150xf32, #tpu.memory_space<smem>>
    %553 = vector.broadcast %552 : f32 to vector<8x316xf32>
    %554 = arith.mulf %553, %551 : vector<8x316xf32>
    %555 = arith.addf %542, %554 : vector<8x316xf32>
    %c77 = arith.constant 77 : index
    %556 = memref.load %arg11[%c77] : memref<150xf32, #tpu.memory_space<smem>>
    %557 = vector.broadcast %556 : f32 to vector<8x316xf32>
    %558 = arith.mulf %557, %551 : vector<8x316xf32>
    %559 = arith.addf %546, %558 : vector<8x316xf32>
    %c127 = arith.constant 127 : index
    %560 = memref.load %arg11[%c127] : memref<150xf32, #tpu.memory_space<smem>>
    %561 = vector.broadcast %560 : f32 to vector<8x316xf32>
    %562 = arith.mulf %561, %551 : vector<8x316xf32>
    %563 = arith.addf %550, %562 : vector<8x316xf32>
    %564 = vector.extract_strided_slice %453 {offsets = [0, 3], sizes = [8, 316], strides = [1, 1]} : vector<8x400xf32> to vector<8x316xf32>
    %c3_99 = arith.constant 3 : index
    %565 = memref.load %arg11[%c3_99] : memref<150xf32, #tpu.memory_space<smem>>
    %566 = vector.broadcast %565 : f32 to vector<8x316xf32>
    %567 = arith.mulf %566, %564 : vector<8x316xf32>
    %568 = arith.addf %555, %567 : vector<8x316xf32>
    %c53_100 = arith.constant 53 : index
    %569 = memref.load %arg11[%c53_100] : memref<150xf32, #tpu.memory_space<smem>>
    %570 = vector.broadcast %569 : f32 to vector<8x316xf32>
    %571 = arith.mulf %570, %564 : vector<8x316xf32>
    %572 = arith.addf %559, %571 : vector<8x316xf32>
    %c103 = arith.constant 103 : index
    %573 = memref.load %arg11[%c103] : memref<150xf32, #tpu.memory_space<smem>>
    %574 = vector.broadcast %573 : f32 to vector<8x316xf32>
    %575 = arith.mulf %574, %564 : vector<8x316xf32>
    %576 = arith.addf %563, %575 : vector<8x316xf32>
    %577 = vector.extract_strided_slice %473 {offsets = [0, 3], sizes = [8, 316], strides = [1, 1]} : vector<8x400xf32> to vector<8x316xf32>
    %c28_101 = arith.constant 28 : index
    %578 = memref.load %arg11[%c28_101] : memref<150xf32, #tpu.memory_space<smem>>
    %579 = vector.broadcast %578 : f32 to vector<8x316xf32>
    %580 = arith.mulf %579, %577 : vector<8x316xf32>
    %581 = arith.addf %568, %580 : vector<8x316xf32>
    %c78 = arith.constant 78 : index
    %582 = memref.load %arg11[%c78] : memref<150xf32, #tpu.memory_space<smem>>
    %583 = vector.broadcast %582 : f32 to vector<8x316xf32>
    %584 = arith.mulf %583, %577 : vector<8x316xf32>
    %585 = arith.addf %572, %584 : vector<8x316xf32>
    %c128 = arith.constant 128 : index
    %586 = memref.load %arg11[%c128] : memref<150xf32, #tpu.memory_space<smem>>
    %587 = vector.broadcast %586 : f32 to vector<8x316xf32>
    %588 = arith.mulf %587, %577 : vector<8x316xf32>
    %589 = arith.addf %576, %588 : vector<8x316xf32>
    %590 = vector.extract_strided_slice %453 {offsets = [0, 4], sizes = [8, 316], strides = [1, 1]} : vector<8x400xf32> to vector<8x316xf32>
    %c4_102 = arith.constant 4 : index
    %591 = memref.load %arg11[%c4_102] : memref<150xf32, #tpu.memory_space<smem>>
    %592 = vector.broadcast %591 : f32 to vector<8x316xf32>
    %593 = arith.mulf %592, %590 : vector<8x316xf32>
    %594 = arith.addf %581, %593 : vector<8x316xf32>
    %c54 = arith.constant 54 : index
    %595 = memref.load %arg11[%c54] : memref<150xf32, #tpu.memory_space<smem>>
    %596 = vector.broadcast %595 : f32 to vector<8x316xf32>
    %597 = arith.mulf %596, %590 : vector<8x316xf32>
    %598 = arith.addf %585, %597 : vector<8x316xf32>
    %c104 = arith.constant 104 : index
    %599 = memref.load %arg11[%c104] : memref<150xf32, #tpu.memory_space<smem>>
    %600 = vector.broadcast %599 : f32 to vector<8x316xf32>
    %601 = arith.mulf %600, %590 : vector<8x316xf32>
    %602 = arith.addf %589, %601 : vector<8x316xf32>
    %603 = vector.extract_strided_slice %473 {offsets = [0, 4], sizes = [8, 316], strides = [1, 1]} : vector<8x400xf32> to vector<8x316xf32>
    %c29_103 = arith.constant 29 : index
    %604 = memref.load %arg11[%c29_103] : memref<150xf32, #tpu.memory_space<smem>>
    %605 = vector.broadcast %604 : f32 to vector<8x316xf32>
    %606 = arith.mulf %605, %603 : vector<8x316xf32>
    %607 = arith.addf %594, %606 : vector<8x316xf32>
    %c79 = arith.constant 79 : index
    %608 = memref.load %arg11[%c79] : memref<150xf32, #tpu.memory_space<smem>>
    %609 = vector.broadcast %608 : f32 to vector<8x316xf32>
    %610 = arith.mulf %609, %603 : vector<8x316xf32>
    %611 = arith.addf %598, %610 : vector<8x316xf32>
    %c129 = arith.constant 129 : index
    %612 = memref.load %arg11[%c129] : memref<150xf32, #tpu.memory_space<smem>>
    %613 = vector.broadcast %612 : f32 to vector<8x316xf32>
    %614 = arith.mulf %613, %603 : vector<8x316xf32>
    %615 = arith.addf %602, %614 : vector<8x316xf32>
    %616 = vector.extract_strided_slice %453 {offsets = [0, 20], sizes = [8, 316], strides = [1, 1]} : vector<8x400xf32> to vector<8x316xf32>
    %c5_104 = arith.constant 5 : index
    %617 = memref.load %arg11[%c5_104] : memref<150xf32, #tpu.memory_space<smem>>
    %618 = vector.broadcast %617 : f32 to vector<8x316xf32>
    %619 = arith.mulf %618, %616 : vector<8x316xf32>
    %620 = arith.addf %607, %619 : vector<8x316xf32>
    %c55 = arith.constant 55 : index
    %621 = memref.load %arg11[%c55] : memref<150xf32, #tpu.memory_space<smem>>
    %622 = vector.broadcast %621 : f32 to vector<8x316xf32>
    %623 = arith.mulf %622, %616 : vector<8x316xf32>
    %624 = arith.addf %611, %623 : vector<8x316xf32>
    %c105 = arith.constant 105 : index
    %625 = memref.load %arg11[%c105] : memref<150xf32, #tpu.memory_space<smem>>
    %626 = vector.broadcast %625 : f32 to vector<8x316xf32>
    %627 = arith.mulf %626, %616 : vector<8x316xf32>
    %628 = arith.addf %615, %627 : vector<8x316xf32>
    %629 = vector.extract_strided_slice %473 {offsets = [0, 20], sizes = [8, 316], strides = [1, 1]} : vector<8x400xf32> to vector<8x316xf32>
    %c30_105 = arith.constant 30 : index
    %630 = memref.load %arg11[%c30_105] : memref<150xf32, #tpu.memory_space<smem>>
    %631 = vector.broadcast %630 : f32 to vector<8x316xf32>
    %632 = arith.mulf %631, %629 : vector<8x316xf32>
    %633 = arith.addf %620, %632 : vector<8x316xf32>
    %c80 = arith.constant 80 : index
    %634 = memref.load %arg11[%c80] : memref<150xf32, #tpu.memory_space<smem>>
    %635 = vector.broadcast %634 : f32 to vector<8x316xf32>
    %636 = arith.mulf %635, %629 : vector<8x316xf32>
    %637 = arith.addf %624, %636 : vector<8x316xf32>
    %c130 = arith.constant 130 : index
    %638 = memref.load %arg11[%c130] : memref<150xf32, #tpu.memory_space<smem>>
    %639 = vector.broadcast %638 : f32 to vector<8x316xf32>
    %640 = arith.mulf %639, %629 : vector<8x316xf32>
    %641 = arith.addf %628, %640 : vector<8x316xf32>
    %642 = vector.extract_strided_slice %453 {offsets = [0, 21], sizes = [8, 316], strides = [1, 1]} : vector<8x400xf32> to vector<8x316xf32>
    %c6_106 = arith.constant 6 : index
    %643 = memref.load %arg11[%c6_106] : memref<150xf32, #tpu.memory_space<smem>>
    %644 = vector.broadcast %643 : f32 to vector<8x316xf32>
    %645 = arith.mulf %644, %642 : vector<8x316xf32>
    %646 = arith.addf %633, %645 : vector<8x316xf32>
    %c56 = arith.constant 56 : index
    %647 = memref.load %arg11[%c56] : memref<150xf32, #tpu.memory_space<smem>>
    %648 = vector.broadcast %647 : f32 to vector<8x316xf32>
    %649 = arith.mulf %648, %642 : vector<8x316xf32>
    %650 = arith.addf %637, %649 : vector<8x316xf32>
    %c106 = arith.constant 106 : index
    %651 = memref.load %arg11[%c106] : memref<150xf32, #tpu.memory_space<smem>>
    %652 = vector.broadcast %651 : f32 to vector<8x316xf32>
    %653 = arith.mulf %652, %642 : vector<8x316xf32>
    %654 = arith.addf %641, %653 : vector<8x316xf32>
    %655 = vector.extract_strided_slice %473 {offsets = [0, 21], sizes = [8, 316], strides = [1, 1]} : vector<8x400xf32> to vector<8x316xf32>
    %c31_107 = arith.constant 31 : index
    %656 = memref.load %arg11[%c31_107] : memref<150xf32, #tpu.memory_space<smem>>
    %657 = vector.broadcast %656 : f32 to vector<8x316xf32>
    %658 = arith.mulf %657, %655 : vector<8x316xf32>
    %659 = arith.addf %646, %658 : vector<8x316xf32>
    %c81 = arith.constant 81 : index
    %660 = memref.load %arg11[%c81] : memref<150xf32, #tpu.memory_space<smem>>
    %661 = vector.broadcast %660 : f32 to vector<8x316xf32>
    %662 = arith.mulf %661, %655 : vector<8x316xf32>
    %663 = arith.addf %650, %662 : vector<8x316xf32>
    %c131 = arith.constant 131 : index
    %664 = memref.load %arg11[%c131] : memref<150xf32, #tpu.memory_space<smem>>
    %665 = vector.broadcast %664 : f32 to vector<8x316xf32>
    %666 = arith.mulf %665, %655 : vector<8x316xf32>
    %667 = arith.addf %654, %666 : vector<8x316xf32>
    %668 = vector.extract_strided_slice %453 {offsets = [0, 22], sizes = [8, 316], strides = [1, 1]} : vector<8x400xf32> to vector<8x316xf32>
    %c7_108 = arith.constant 7 : index
    %669 = memref.load %arg11[%c7_108] : memref<150xf32, #tpu.memory_space<smem>>
    %670 = vector.broadcast %669 : f32 to vector<8x316xf32>
    %671 = arith.mulf %670, %668 : vector<8x316xf32>
    %672 = arith.addf %659, %671 : vector<8x316xf32>
    %c57 = arith.constant 57 : index
    %673 = memref.load %arg11[%c57] : memref<150xf32, #tpu.memory_space<smem>>
    %674 = vector.broadcast %673 : f32 to vector<8x316xf32>
    %675 = arith.mulf %674, %668 : vector<8x316xf32>
    %676 = arith.addf %663, %675 : vector<8x316xf32>
    %c107 = arith.constant 107 : index
    %677 = memref.load %arg11[%c107] : memref<150xf32, #tpu.memory_space<smem>>
    %678 = vector.broadcast %677 : f32 to vector<8x316xf32>
    %679 = arith.mulf %678, %668 : vector<8x316xf32>
    %680 = arith.addf %667, %679 : vector<8x316xf32>
    %681 = vector.extract_strided_slice %473 {offsets = [0, 22], sizes = [8, 316], strides = [1, 1]} : vector<8x400xf32> to vector<8x316xf32>
    %c32_109 = arith.constant 32 : index
    %682 = memref.load %arg11[%c32_109] : memref<150xf32, #tpu.memory_space<smem>>
    %683 = vector.broadcast %682 : f32 to vector<8x316xf32>
    %684 = arith.mulf %683, %681 : vector<8x316xf32>
    %685 = arith.addf %672, %684 : vector<8x316xf32>
    %c82 = arith.constant 82 : index
    %686 = memref.load %arg11[%c82] : memref<150xf32, #tpu.memory_space<smem>>
    %687 = vector.broadcast %686 : f32 to vector<8x316xf32>
    %688 = arith.mulf %687, %681 : vector<8x316xf32>
    %689 = arith.addf %676, %688 : vector<8x316xf32>
    %c132 = arith.constant 132 : index
    %690 = memref.load %arg11[%c132] : memref<150xf32, #tpu.memory_space<smem>>
    %691 = vector.broadcast %690 : f32 to vector<8x316xf32>
    %692 = arith.mulf %691, %681 : vector<8x316xf32>
    %693 = arith.addf %680, %692 : vector<8x316xf32>
    %694 = vector.extract_strided_slice %453 {offsets = [0, 23], sizes = [8, 316], strides = [1, 1]} : vector<8x400xf32> to vector<8x316xf32>
    %c8_110 = arith.constant 8 : index
    %695 = memref.load %arg11[%c8_110] : memref<150xf32, #tpu.memory_space<smem>>
    %696 = vector.broadcast %695 : f32 to vector<8x316xf32>
    %697 = arith.mulf %696, %694 : vector<8x316xf32>
    %698 = arith.addf %685, %697 : vector<8x316xf32>
    %c58 = arith.constant 58 : index
    %699 = memref.load %arg11[%c58] : memref<150xf32, #tpu.memory_space<smem>>
    %700 = vector.broadcast %699 : f32 to vector<8x316xf32>
    %701 = arith.mulf %700, %694 : vector<8x316xf32>
    %702 = arith.addf %689, %701 : vector<8x316xf32>
    %c108 = arith.constant 108 : index
    %703 = memref.load %arg11[%c108] : memref<150xf32, #tpu.memory_space<smem>>
    %704 = vector.broadcast %703 : f32 to vector<8x316xf32>
    %705 = arith.mulf %704, %694 : vector<8x316xf32>
    %706 = arith.addf %693, %705 : vector<8x316xf32>
    %707 = vector.extract_strided_slice %473 {offsets = [0, 23], sizes = [8, 316], strides = [1, 1]} : vector<8x400xf32> to vector<8x316xf32>
    %c33_111 = arith.constant 33 : index
    %708 = memref.load %arg11[%c33_111] : memref<150xf32, #tpu.memory_space<smem>>
    %709 = vector.broadcast %708 : f32 to vector<8x316xf32>
    %710 = arith.mulf %709, %707 : vector<8x316xf32>
    %711 = arith.addf %698, %710 : vector<8x316xf32>
    %c83 = arith.constant 83 : index
    %712 = memref.load %arg11[%c83] : memref<150xf32, #tpu.memory_space<smem>>
    %713 = vector.broadcast %712 : f32 to vector<8x316xf32>
    %714 = arith.mulf %713, %707 : vector<8x316xf32>
    %715 = arith.addf %702, %714 : vector<8x316xf32>
    %c133 = arith.constant 133 : index
    %716 = memref.load %arg11[%c133] : memref<150xf32, #tpu.memory_space<smem>>
    %717 = vector.broadcast %716 : f32 to vector<8x316xf32>
    %718 = arith.mulf %717, %707 : vector<8x316xf32>
    %719 = arith.addf %706, %718 : vector<8x316xf32>
    %720 = vector.extract_strided_slice %453 {offsets = [0, 24], sizes = [8, 316], strides = [1, 1]} : vector<8x400xf32> to vector<8x316xf32>
    %c9_112 = arith.constant 9 : index
    %721 = memref.load %arg11[%c9_112] : memref<150xf32, #tpu.memory_space<smem>>
    %722 = vector.broadcast %721 : f32 to vector<8x316xf32>
    %723 = arith.mulf %722, %720 : vector<8x316xf32>
    %724 = arith.addf %711, %723 : vector<8x316xf32>
    %c59 = arith.constant 59 : index
    %725 = memref.load %arg11[%c59] : memref<150xf32, #tpu.memory_space<smem>>
    %726 = vector.broadcast %725 : f32 to vector<8x316xf32>
    %727 = arith.mulf %726, %720 : vector<8x316xf32>
    %728 = arith.addf %715, %727 : vector<8x316xf32>
    %c109 = arith.constant 109 : index
    %729 = memref.load %arg11[%c109] : memref<150xf32, #tpu.memory_space<smem>>
    %730 = vector.broadcast %729 : f32 to vector<8x316xf32>
    %731 = arith.mulf %730, %720 : vector<8x316xf32>
    %732 = arith.addf %719, %731 : vector<8x316xf32>
    %733 = vector.extract_strided_slice %473 {offsets = [0, 24], sizes = [8, 316], strides = [1, 1]} : vector<8x400xf32> to vector<8x316xf32>
    %c34_113 = arith.constant 34 : index
    %734 = memref.load %arg11[%c34_113] : memref<150xf32, #tpu.memory_space<smem>>
    %735 = vector.broadcast %734 : f32 to vector<8x316xf32>
    %736 = arith.mulf %735, %733 : vector<8x316xf32>
    %737 = arith.addf %724, %736 : vector<8x316xf32>
    %c84 = arith.constant 84 : index
    %738 = memref.load %arg11[%c84] : memref<150xf32, #tpu.memory_space<smem>>
    %739 = vector.broadcast %738 : f32 to vector<8x316xf32>
    %740 = arith.mulf %739, %733 : vector<8x316xf32>
    %741 = arith.addf %728, %740 : vector<8x316xf32>
    %c134 = arith.constant 134 : index
    %742 = memref.load %arg11[%c134] : memref<150xf32, #tpu.memory_space<smem>>
    %743 = vector.broadcast %742 : f32 to vector<8x316xf32>
    %744 = arith.mulf %743, %733 : vector<8x316xf32>
    %745 = arith.addf %732, %744 : vector<8x316xf32>
    %746 = vector.extract_strided_slice %453 {offsets = [0, 40], sizes = [8, 316], strides = [1, 1]} : vector<8x400xf32> to vector<8x316xf32>
    %c10_114 = arith.constant 10 : index
    %747 = memref.load %arg11[%c10_114] : memref<150xf32, #tpu.memory_space<smem>>
    %748 = vector.broadcast %747 : f32 to vector<8x316xf32>
    %749 = arith.mulf %748, %746 : vector<8x316xf32>
    %750 = arith.addf %737, %749 : vector<8x316xf32>
    %c60 = arith.constant 60 : index
    %751 = memref.load %arg11[%c60] : memref<150xf32, #tpu.memory_space<smem>>
    %752 = vector.broadcast %751 : f32 to vector<8x316xf32>
    %753 = arith.mulf %752, %746 : vector<8x316xf32>
    %754 = arith.addf %741, %753 : vector<8x316xf32>
    %c110 = arith.constant 110 : index
    %755 = memref.load %arg11[%c110] : memref<150xf32, #tpu.memory_space<smem>>
    %756 = vector.broadcast %755 : f32 to vector<8x316xf32>
    %757 = arith.mulf %756, %746 : vector<8x316xf32>
    %758 = arith.addf %745, %757 : vector<8x316xf32>
    %759 = vector.extract_strided_slice %473 {offsets = [0, 40], sizes = [8, 316], strides = [1, 1]} : vector<8x400xf32> to vector<8x316xf32>
    %c35_115 = arith.constant 35 : index
    %760 = memref.load %arg11[%c35_115] : memref<150xf32, #tpu.memory_space<smem>>
    %761 = vector.broadcast %760 : f32 to vector<8x316xf32>
    %762 = arith.mulf %761, %759 : vector<8x316xf32>
    %763 = arith.addf %750, %762 : vector<8x316xf32>
    %c85 = arith.constant 85 : index
    %764 = memref.load %arg11[%c85] : memref<150xf32, #tpu.memory_space<smem>>
    %765 = vector.broadcast %764 : f32 to vector<8x316xf32>
    %766 = arith.mulf %765, %759 : vector<8x316xf32>
    %767 = arith.addf %754, %766 : vector<8x316xf32>
    %c135 = arith.constant 135 : index
    %768 = memref.load %arg11[%c135] : memref<150xf32, #tpu.memory_space<smem>>
    %769 = vector.broadcast %768 : f32 to vector<8x316xf32>
    %770 = arith.mulf %769, %759 : vector<8x316xf32>
    %771 = arith.addf %758, %770 : vector<8x316xf32>
    %772 = vector.extract_strided_slice %453 {offsets = [0, 41], sizes = [8, 316], strides = [1, 1]} : vector<8x400xf32> to vector<8x316xf32>
    %c11_116 = arith.constant 11 : index
    %773 = memref.load %arg11[%c11_116] : memref<150xf32, #tpu.memory_space<smem>>
    %774 = vector.broadcast %773 : f32 to vector<8x316xf32>
    %775 = arith.mulf %774, %772 : vector<8x316xf32>
    %776 = arith.addf %763, %775 : vector<8x316xf32>
    %c61 = arith.constant 61 : index
    %777 = memref.load %arg11[%c61] : memref<150xf32, #tpu.memory_space<smem>>
    %778 = vector.broadcast %777 : f32 to vector<8x316xf32>
    %779 = arith.mulf %778, %772 : vector<8x316xf32>
    %780 = arith.addf %767, %779 : vector<8x316xf32>
    %c111 = arith.constant 111 : index
    %781 = memref.load %arg11[%c111] : memref<150xf32, #tpu.memory_space<smem>>
    %782 = vector.broadcast %781 : f32 to vector<8x316xf32>
    %783 = arith.mulf %782, %772 : vector<8x316xf32>
    %784 = arith.addf %771, %783 : vector<8x316xf32>
    %785 = vector.extract_strided_slice %473 {offsets = [0, 41], sizes = [8, 316], strides = [1, 1]} : vector<8x400xf32> to vector<8x316xf32>
    %c36_117 = arith.constant 36 : index
    %786 = memref.load %arg11[%c36_117] : memref<150xf32, #tpu.memory_space<smem>>
    %787 = vector.broadcast %786 : f32 to vector<8x316xf32>
    %788 = arith.mulf %787, %785 : vector<8x316xf32>
    %789 = arith.addf %776, %788 : vector<8x316xf32>
    %c86 = arith.constant 86 : index
    %790 = memref.load %arg11[%c86] : memref<150xf32, #tpu.memory_space<smem>>
    %791 = vector.broadcast %790 : f32 to vector<8x316xf32>
    %792 = arith.mulf %791, %785 : vector<8x316xf32>
    %793 = arith.addf %780, %792 : vector<8x316xf32>
    %c136 = arith.constant 136 : index
    %794 = memref.load %arg11[%c136] : memref<150xf32, #tpu.memory_space<smem>>
    %795 = vector.broadcast %794 : f32 to vector<8x316xf32>
    %796 = arith.mulf %795, %785 : vector<8x316xf32>
    %797 = arith.addf %784, %796 : vector<8x316xf32>
    %798 = vector.extract_strided_slice %453 {offsets = [0, 42], sizes = [8, 316], strides = [1, 1]} : vector<8x400xf32> to vector<8x316xf32>
    %c12_118 = arith.constant 12 : index
    %799 = memref.load %arg11[%c12_118] : memref<150xf32, #tpu.memory_space<smem>>
    %800 = vector.broadcast %799 : f32 to vector<8x316xf32>
    %801 = arith.mulf %800, %798 : vector<8x316xf32>
    %802 = arith.addf %789, %801 : vector<8x316xf32>
    %c62 = arith.constant 62 : index
    %803 = memref.load %arg11[%c62] : memref<150xf32, #tpu.memory_space<smem>>
    %804 = vector.broadcast %803 : f32 to vector<8x316xf32>
    %805 = arith.mulf %804, %798 : vector<8x316xf32>
    %806 = arith.addf %793, %805 : vector<8x316xf32>
    %c112 = arith.constant 112 : index
    %807 = memref.load %arg11[%c112] : memref<150xf32, #tpu.memory_space<smem>>
    %808 = vector.broadcast %807 : f32 to vector<8x316xf32>
    %809 = arith.mulf %808, %798 : vector<8x316xf32>
    %810 = arith.addf %797, %809 : vector<8x316xf32>
    %811 = vector.extract_strided_slice %473 {offsets = [0, 42], sizes = [8, 316], strides = [1, 1]} : vector<8x400xf32> to vector<8x316xf32>
    %c37_119 = arith.constant 37 : index
    %812 = memref.load %arg11[%c37_119] : memref<150xf32, #tpu.memory_space<smem>>
    %813 = vector.broadcast %812 : f32 to vector<8x316xf32>
    %814 = arith.mulf %813, %811 : vector<8x316xf32>
    %815 = arith.addf %802, %814 : vector<8x316xf32>
    %c87 = arith.constant 87 : index
    %816 = memref.load %arg11[%c87] : memref<150xf32, #tpu.memory_space<smem>>
    %817 = vector.broadcast %816 : f32 to vector<8x316xf32>
    %818 = arith.mulf %817, %811 : vector<8x316xf32>
    %819 = arith.addf %806, %818 : vector<8x316xf32>
    %c137 = arith.constant 137 : index
    %820 = memref.load %arg11[%c137] : memref<150xf32, #tpu.memory_space<smem>>
    %821 = vector.broadcast %820 : f32 to vector<8x316xf32>
    %822 = arith.mulf %821, %811 : vector<8x316xf32>
    %823 = arith.addf %810, %822 : vector<8x316xf32>
    %824 = vector.extract_strided_slice %453 {offsets = [0, 43], sizes = [8, 316], strides = [1, 1]} : vector<8x400xf32> to vector<8x316xf32>
    %c13_120 = arith.constant 13 : index
    %825 = memref.load %arg11[%c13_120] : memref<150xf32, #tpu.memory_space<smem>>
    %826 = vector.broadcast %825 : f32 to vector<8x316xf32>
    %827 = arith.mulf %826, %824 : vector<8x316xf32>
    %828 = arith.addf %815, %827 : vector<8x316xf32>
    %c63 = arith.constant 63 : index
    %829 = memref.load %arg11[%c63] : memref<150xf32, #tpu.memory_space<smem>>
    %830 = vector.broadcast %829 : f32 to vector<8x316xf32>
    %831 = arith.mulf %830, %824 : vector<8x316xf32>
    %832 = arith.addf %819, %831 : vector<8x316xf32>
    %c113 = arith.constant 113 : index
    %833 = memref.load %arg11[%c113] : memref<150xf32, #tpu.memory_space<smem>>
    %834 = vector.broadcast %833 : f32 to vector<8x316xf32>
    %835 = arith.mulf %834, %824 : vector<8x316xf32>
    %836 = arith.addf %823, %835 : vector<8x316xf32>
    %837 = vector.extract_strided_slice %473 {offsets = [0, 43], sizes = [8, 316], strides = [1, 1]} : vector<8x400xf32> to vector<8x316xf32>
    %c38_121 = arith.constant 38 : index
    %838 = memref.load %arg11[%c38_121] : memref<150xf32, #tpu.memory_space<smem>>
    %839 = vector.broadcast %838 : f32 to vector<8x316xf32>
    %840 = arith.mulf %839, %837 : vector<8x316xf32>
    %841 = arith.addf %828, %840 : vector<8x316xf32>
    %c88 = arith.constant 88 : index
    %842 = memref.load %arg11[%c88] : memref<150xf32, #tpu.memory_space<smem>>
    %843 = vector.broadcast %842 : f32 to vector<8x316xf32>
    %844 = arith.mulf %843, %837 : vector<8x316xf32>
    %845 = arith.addf %832, %844 : vector<8x316xf32>
    %c138 = arith.constant 138 : index
    %846 = memref.load %arg11[%c138] : memref<150xf32, #tpu.memory_space<smem>>
    %847 = vector.broadcast %846 : f32 to vector<8x316xf32>
    %848 = arith.mulf %847, %837 : vector<8x316xf32>
    %849 = arith.addf %836, %848 : vector<8x316xf32>
    %850 = vector.extract_strided_slice %453 {offsets = [0, 44], sizes = [8, 316], strides = [1, 1]} : vector<8x400xf32> to vector<8x316xf32>
    %c14_122 = arith.constant 14 : index
    %851 = memref.load %arg11[%c14_122] : memref<150xf32, #tpu.memory_space<smem>>
    %852 = vector.broadcast %851 : f32 to vector<8x316xf32>
    %853 = arith.mulf %852, %850 : vector<8x316xf32>
    %854 = arith.addf %841, %853 : vector<8x316xf32>
    %c64 = arith.constant 64 : index
    %855 = memref.load %arg11[%c64] : memref<150xf32, #tpu.memory_space<smem>>
    %856 = vector.broadcast %855 : f32 to vector<8x316xf32>
    %857 = arith.mulf %856, %850 : vector<8x316xf32>
    %858 = arith.addf %845, %857 : vector<8x316xf32>
    %c114 = arith.constant 114 : index
    %859 = memref.load %arg11[%c114] : memref<150xf32, #tpu.memory_space<smem>>
    %860 = vector.broadcast %859 : f32 to vector<8x316xf32>
    %861 = arith.mulf %860, %850 : vector<8x316xf32>
    %862 = arith.addf %849, %861 : vector<8x316xf32>
    %863 = vector.extract_strided_slice %473 {offsets = [0, 44], sizes = [8, 316], strides = [1, 1]} : vector<8x400xf32> to vector<8x316xf32>
    %c39_123 = arith.constant 39 : index
    %864 = memref.load %arg11[%c39_123] : memref<150xf32, #tpu.memory_space<smem>>
    %865 = vector.broadcast %864 : f32 to vector<8x316xf32>
    %866 = arith.mulf %865, %863 : vector<8x316xf32>
    %867 = arith.addf %854, %866 : vector<8x316xf32>
    %c89 = arith.constant 89 : index
    %868 = memref.load %arg11[%c89] : memref<150xf32, #tpu.memory_space<smem>>
    %869 = vector.broadcast %868 : f32 to vector<8x316xf32>
    %870 = arith.mulf %869, %863 : vector<8x316xf32>
    %871 = arith.addf %858, %870 : vector<8x316xf32>
    %c139 = arith.constant 139 : index
    %872 = memref.load %arg11[%c139] : memref<150xf32, #tpu.memory_space<smem>>
    %873 = vector.broadcast %872 : f32 to vector<8x316xf32>
    %874 = arith.mulf %873, %863 : vector<8x316xf32>
    %875 = arith.addf %862, %874 : vector<8x316xf32>
    %876 = vector.extract_strided_slice %453 {offsets = [0, 60], sizes = [8, 316], strides = [1, 1]} : vector<8x400xf32> to vector<8x316xf32>
    %c15_124 = arith.constant 15 : index
    %877 = memref.load %arg11[%c15_124] : memref<150xf32, #tpu.memory_space<smem>>
    %878 = vector.broadcast %877 : f32 to vector<8x316xf32>
    %879 = arith.mulf %878, %876 : vector<8x316xf32>
    %880 = arith.addf %867, %879 : vector<8x316xf32>
    %c65 = arith.constant 65 : index
    %881 = memref.load %arg11[%c65] : memref<150xf32, #tpu.memory_space<smem>>
    %882 = vector.broadcast %881 : f32 to vector<8x316xf32>
    %883 = arith.mulf %882, %876 : vector<8x316xf32>
    %884 = arith.addf %871, %883 : vector<8x316xf32>
    %c115 = arith.constant 115 : index
    %885 = memref.load %arg11[%c115] : memref<150xf32, #tpu.memory_space<smem>>
    %886 = vector.broadcast %885 : f32 to vector<8x316xf32>
    %887 = arith.mulf %886, %876 : vector<8x316xf32>
    %888 = arith.addf %875, %887 : vector<8x316xf32>
    %889 = vector.extract_strided_slice %473 {offsets = [0, 60], sizes = [8, 316], strides = [1, 1]} : vector<8x400xf32> to vector<8x316xf32>
    %c40_125 = arith.constant 40 : index
    %890 = memref.load %arg11[%c40_125] : memref<150xf32, #tpu.memory_space<smem>>
    %891 = vector.broadcast %890 : f32 to vector<8x316xf32>
    %892 = arith.mulf %891, %889 : vector<8x316xf32>
    %893 = arith.addf %880, %892 : vector<8x316xf32>
    %c90 = arith.constant 90 : index
    %894 = memref.load %arg11[%c90] : memref<150xf32, #tpu.memory_space<smem>>
    %895 = vector.broadcast %894 : f32 to vector<8x316xf32>
    %896 = arith.mulf %895, %889 : vector<8x316xf32>
    %897 = arith.addf %884, %896 : vector<8x316xf32>
    %c140 = arith.constant 140 : index
    %898 = memref.load %arg11[%c140] : memref<150xf32, #tpu.memory_space<smem>>
    %899 = vector.broadcast %898 : f32 to vector<8x316xf32>
    %900 = arith.mulf %899, %889 : vector<8x316xf32>
    %901 = arith.addf %888, %900 : vector<8x316xf32>
    %902 = vector.extract_strided_slice %453 {offsets = [0, 61], sizes = [8, 316], strides = [1, 1]} : vector<8x400xf32> to vector<8x316xf32>
    %c16_126 = arith.constant 16 : index
    %903 = memref.load %arg11[%c16_126] : memref<150xf32, #tpu.memory_space<smem>>
    %904 = vector.broadcast %903 : f32 to vector<8x316xf32>
    %905 = arith.mulf %904, %902 : vector<8x316xf32>
    %906 = arith.addf %893, %905 : vector<8x316xf32>
    %c66 = arith.constant 66 : index
    %907 = memref.load %arg11[%c66] : memref<150xf32, #tpu.memory_space<smem>>
    %908 = vector.broadcast %907 : f32 to vector<8x316xf32>
    %909 = arith.mulf %908, %902 : vector<8x316xf32>
    %910 = arith.addf %897, %909 : vector<8x316xf32>
    %c116 = arith.constant 116 : index
    %911 = memref.load %arg11[%c116] : memref<150xf32, #tpu.memory_space<smem>>
    %912 = vector.broadcast %911 : f32 to vector<8x316xf32>
    %913 = arith.mulf %912, %902 : vector<8x316xf32>
    %914 = arith.addf %901, %913 : vector<8x316xf32>
    %915 = vector.extract_strided_slice %473 {offsets = [0, 61], sizes = [8, 316], strides = [1, 1]} : vector<8x400xf32> to vector<8x316xf32>
    %c41_127 = arith.constant 41 : index
    %916 = memref.load %arg11[%c41_127] : memref<150xf32, #tpu.memory_space<smem>>
    %917 = vector.broadcast %916 : f32 to vector<8x316xf32>
    %918 = arith.mulf %917, %915 : vector<8x316xf32>
    %919 = arith.addf %906, %918 : vector<8x316xf32>
    %c91 = arith.constant 91 : index
    %920 = memref.load %arg11[%c91] : memref<150xf32, #tpu.memory_space<smem>>
    %921 = vector.broadcast %920 : f32 to vector<8x316xf32>
    %922 = arith.mulf %921, %915 : vector<8x316xf32>
    %923 = arith.addf %910, %922 : vector<8x316xf32>
    %c141 = arith.constant 141 : index
    %924 = memref.load %arg11[%c141] : memref<150xf32, #tpu.memory_space<smem>>
    %925 = vector.broadcast %924 : f32 to vector<8x316xf32>
    %926 = arith.mulf %925, %915 : vector<8x316xf32>
    %927 = arith.addf %914, %926 : vector<8x316xf32>
    %928 = vector.extract_strided_slice %453 {offsets = [0, 62], sizes = [8, 316], strides = [1, 1]} : vector<8x400xf32> to vector<8x316xf32>
    %c17_128 = arith.constant 17 : index
    %929 = memref.load %arg11[%c17_128] : memref<150xf32, #tpu.memory_space<smem>>
    %930 = vector.broadcast %929 : f32 to vector<8x316xf32>
    %931 = arith.mulf %930, %928 : vector<8x316xf32>
    %932 = arith.addf %919, %931 : vector<8x316xf32>
    %c67 = arith.constant 67 : index
    %933 = memref.load %arg11[%c67] : memref<150xf32, #tpu.memory_space<smem>>
    %934 = vector.broadcast %933 : f32 to vector<8x316xf32>
    %935 = arith.mulf %934, %928 : vector<8x316xf32>
    %936 = arith.addf %923, %935 : vector<8x316xf32>
    %c117 = arith.constant 117 : index
    %937 = memref.load %arg11[%c117] : memref<150xf32, #tpu.memory_space<smem>>
    %938 = vector.broadcast %937 : f32 to vector<8x316xf32>
    %939 = arith.mulf %938, %928 : vector<8x316xf32>
    %940 = arith.addf %927, %939 : vector<8x316xf32>
    %941 = vector.extract_strided_slice %473 {offsets = [0, 62], sizes = [8, 316], strides = [1, 1]} : vector<8x400xf32> to vector<8x316xf32>
    %c42_129 = arith.constant 42 : index
    %942 = memref.load %arg11[%c42_129] : memref<150xf32, #tpu.memory_space<smem>>
    %943 = vector.broadcast %942 : f32 to vector<8x316xf32>
    %944 = arith.mulf %943, %941 : vector<8x316xf32>
    %945 = arith.addf %932, %944 : vector<8x316xf32>
    %c92 = arith.constant 92 : index
    %946 = memref.load %arg11[%c92] : memref<150xf32, #tpu.memory_space<smem>>
    %947 = vector.broadcast %946 : f32 to vector<8x316xf32>
    %948 = arith.mulf %947, %941 : vector<8x316xf32>
    %949 = arith.addf %936, %948 : vector<8x316xf32>
    %c142 = arith.constant 142 : index
    %950 = memref.load %arg11[%c142] : memref<150xf32, #tpu.memory_space<smem>>
    %951 = vector.broadcast %950 : f32 to vector<8x316xf32>
    %952 = arith.mulf %951, %941 : vector<8x316xf32>
    %953 = arith.addf %940, %952 : vector<8x316xf32>
    %954 = vector.extract_strided_slice %453 {offsets = [0, 63], sizes = [8, 316], strides = [1, 1]} : vector<8x400xf32> to vector<8x316xf32>
    %c18_130 = arith.constant 18 : index
    %955 = memref.load %arg11[%c18_130] : memref<150xf32, #tpu.memory_space<smem>>
    %956 = vector.broadcast %955 : f32 to vector<8x316xf32>
    %957 = arith.mulf %956, %954 : vector<8x316xf32>
    %958 = arith.addf %945, %957 : vector<8x316xf32>
    %c68 = arith.constant 68 : index
    %959 = memref.load %arg11[%c68] : memref<150xf32, #tpu.memory_space<smem>>
    %960 = vector.broadcast %959 : f32 to vector<8x316xf32>
    %961 = arith.mulf %960, %954 : vector<8x316xf32>
    %962 = arith.addf %949, %961 : vector<8x316xf32>
    %c118 = arith.constant 118 : index
    %963 = memref.load %arg11[%c118] : memref<150xf32, #tpu.memory_space<smem>>
    %964 = vector.broadcast %963 : f32 to vector<8x316xf32>
    %965 = arith.mulf %964, %954 : vector<8x316xf32>
    %966 = arith.addf %953, %965 : vector<8x316xf32>
    %967 = vector.extract_strided_slice %473 {offsets = [0, 63], sizes = [8, 316], strides = [1, 1]} : vector<8x400xf32> to vector<8x316xf32>
    %c43_131 = arith.constant 43 : index
    %968 = memref.load %arg11[%c43_131] : memref<150xf32, #tpu.memory_space<smem>>
    %969 = vector.broadcast %968 : f32 to vector<8x316xf32>
    %970 = arith.mulf %969, %967 : vector<8x316xf32>
    %971 = arith.addf %958, %970 : vector<8x316xf32>
    %c93 = arith.constant 93 : index
    %972 = memref.load %arg11[%c93] : memref<150xf32, #tpu.memory_space<smem>>
    %973 = vector.broadcast %972 : f32 to vector<8x316xf32>
    %974 = arith.mulf %973, %967 : vector<8x316xf32>
    %975 = arith.addf %962, %974 : vector<8x316xf32>
    %c143 = arith.constant 143 : index
    %976 = memref.load %arg11[%c143] : memref<150xf32, #tpu.memory_space<smem>>
    %977 = vector.broadcast %976 : f32 to vector<8x316xf32>
    %978 = arith.mulf %977, %967 : vector<8x316xf32>
    %979 = arith.addf %966, %978 : vector<8x316xf32>
    %980 = vector.extract_strided_slice %453 {offsets = [0, 64], sizes = [8, 316], strides = [1, 1]} : vector<8x400xf32> to vector<8x316xf32>
    %c19_132 = arith.constant 19 : index
    %981 = memref.load %arg11[%c19_132] : memref<150xf32, #tpu.memory_space<smem>>
    %982 = vector.broadcast %981 : f32 to vector<8x316xf32>
    %983 = arith.mulf %982, %980 : vector<8x316xf32>
    %984 = arith.addf %971, %983 : vector<8x316xf32>
    %c69 = arith.constant 69 : index
    %985 = memref.load %arg11[%c69] : memref<150xf32, #tpu.memory_space<smem>>
    %986 = vector.broadcast %985 : f32 to vector<8x316xf32>
    %987 = arith.mulf %986, %980 : vector<8x316xf32>
    %988 = arith.addf %975, %987 : vector<8x316xf32>
    %c119 = arith.constant 119 : index
    %989 = memref.load %arg11[%c119] : memref<150xf32, #tpu.memory_space<smem>>
    %990 = vector.broadcast %989 : f32 to vector<8x316xf32>
    %991 = arith.mulf %990, %980 : vector<8x316xf32>
    %992 = arith.addf %979, %991 : vector<8x316xf32>
    %993 = vector.extract_strided_slice %473 {offsets = [0, 64], sizes = [8, 316], strides = [1, 1]} : vector<8x400xf32> to vector<8x316xf32>
    %c44_133 = arith.constant 44 : index
    %994 = memref.load %arg11[%c44_133] : memref<150xf32, #tpu.memory_space<smem>>
    %995 = vector.broadcast %994 : f32 to vector<8x316xf32>
    %996 = arith.mulf %995, %993 : vector<8x316xf32>
    %997 = arith.addf %984, %996 : vector<8x316xf32>
    %c94 = arith.constant 94 : index
    %998 = memref.load %arg11[%c94] : memref<150xf32, #tpu.memory_space<smem>>
    %999 = vector.broadcast %998 : f32 to vector<8x316xf32>
    %1000 = arith.mulf %999, %993 : vector<8x316xf32>
    %1001 = arith.addf %988, %1000 : vector<8x316xf32>
    %c144 = arith.constant 144 : index
    %1002 = memref.load %arg11[%c144] : memref<150xf32, #tpu.memory_space<smem>>
    %1003 = vector.broadcast %1002 : f32 to vector<8x316xf32>
    %1004 = arith.mulf %1003, %993 : vector<8x316xf32>
    %1005 = arith.addf %992, %1004 : vector<8x316xf32>
    %1006 = vector.extract_strided_slice %453 {offsets = [0, 80], sizes = [8, 316], strides = [1, 1]} : vector<8x400xf32> to vector<8x316xf32>
    %c20_134 = arith.constant 20 : index
    %1007 = memref.load %arg11[%c20_134] : memref<150xf32, #tpu.memory_space<smem>>
    %1008 = vector.broadcast %1007 : f32 to vector<8x316xf32>
    %1009 = arith.mulf %1008, %1006 : vector<8x316xf32>
    %1010 = arith.addf %997, %1009 : vector<8x316xf32>
    %c70 = arith.constant 70 : index
    %1011 = memref.load %arg11[%c70] : memref<150xf32, #tpu.memory_space<smem>>
    %1012 = vector.broadcast %1011 : f32 to vector<8x316xf32>
    %1013 = arith.mulf %1012, %1006 : vector<8x316xf32>
    %1014 = arith.addf %1001, %1013 : vector<8x316xf32>
    %c120 = arith.constant 120 : index
    %1015 = memref.load %arg11[%c120] : memref<150xf32, #tpu.memory_space<smem>>
    %1016 = vector.broadcast %1015 : f32 to vector<8x316xf32>
    %1017 = arith.mulf %1016, %1006 : vector<8x316xf32>
    %1018 = arith.addf %1005, %1017 : vector<8x316xf32>
    %1019 = vector.extract_strided_slice %473 {offsets = [0, 80], sizes = [8, 316], strides = [1, 1]} : vector<8x400xf32> to vector<8x316xf32>
    %c45_135 = arith.constant 45 : index
    %1020 = memref.load %arg11[%c45_135] : memref<150xf32, #tpu.memory_space<smem>>
    %1021 = vector.broadcast %1020 : f32 to vector<8x316xf32>
    %1022 = arith.mulf %1021, %1019 : vector<8x316xf32>
    %1023 = arith.addf %1010, %1022 : vector<8x316xf32>
    %c95 = arith.constant 95 : index
    %1024 = memref.load %arg11[%c95] : memref<150xf32, #tpu.memory_space<smem>>
    %1025 = vector.broadcast %1024 : f32 to vector<8x316xf32>
    %1026 = arith.mulf %1025, %1019 : vector<8x316xf32>
    %1027 = arith.addf %1014, %1026 : vector<8x316xf32>
    %c145 = arith.constant 145 : index
    %1028 = memref.load %arg11[%c145] : memref<150xf32, #tpu.memory_space<smem>>
    %1029 = vector.broadcast %1028 : f32 to vector<8x316xf32>
    %1030 = arith.mulf %1029, %1019 : vector<8x316xf32>
    %1031 = arith.addf %1018, %1030 : vector<8x316xf32>
    %1032 = vector.extract_strided_slice %453 {offsets = [0, 81], sizes = [8, 316], strides = [1, 1]} : vector<8x400xf32> to vector<8x316xf32>
    %c21_136 = arith.constant 21 : index
    %1033 = memref.load %arg11[%c21_136] : memref<150xf32, #tpu.memory_space<smem>>
    %1034 = vector.broadcast %1033 : f32 to vector<8x316xf32>
    %1035 = arith.mulf %1034, %1032 : vector<8x316xf32>
    %1036 = arith.addf %1023, %1035 : vector<8x316xf32>
    %c71 = arith.constant 71 : index
    %1037 = memref.load %arg11[%c71] : memref<150xf32, #tpu.memory_space<smem>>
    %1038 = vector.broadcast %1037 : f32 to vector<8x316xf32>
    %1039 = arith.mulf %1038, %1032 : vector<8x316xf32>
    %1040 = arith.addf %1027, %1039 : vector<8x316xf32>
    %c121 = arith.constant 121 : index
    %1041 = memref.load %arg11[%c121] : memref<150xf32, #tpu.memory_space<smem>>
    %1042 = vector.broadcast %1041 : f32 to vector<8x316xf32>
    %1043 = arith.mulf %1042, %1032 : vector<8x316xf32>
    %1044 = arith.addf %1031, %1043 : vector<8x316xf32>
    %1045 = vector.extract_strided_slice %473 {offsets = [0, 81], sizes = [8, 316], strides = [1, 1]} : vector<8x400xf32> to vector<8x316xf32>
    %c46_137 = arith.constant 46 : index
    %1046 = memref.load %arg11[%c46_137] : memref<150xf32, #tpu.memory_space<smem>>
    %1047 = vector.broadcast %1046 : f32 to vector<8x316xf32>
    %1048 = arith.mulf %1047, %1045 : vector<8x316xf32>
    %1049 = arith.addf %1036, %1048 : vector<8x316xf32>
    %c96 = arith.constant 96 : index
    %1050 = memref.load %arg11[%c96] : memref<150xf32, #tpu.memory_space<smem>>
    %1051 = vector.broadcast %1050 : f32 to vector<8x316xf32>
    %1052 = arith.mulf %1051, %1045 : vector<8x316xf32>
    %1053 = arith.addf %1040, %1052 : vector<8x316xf32>
    %c146 = arith.constant 146 : index
    %1054 = memref.load %arg11[%c146] : memref<150xf32, #tpu.memory_space<smem>>
    %1055 = vector.broadcast %1054 : f32 to vector<8x316xf32>
    %1056 = arith.mulf %1055, %1045 : vector<8x316xf32>
    %1057 = arith.addf %1044, %1056 : vector<8x316xf32>
    %1058 = vector.extract_strided_slice %453 {offsets = [0, 82], sizes = [8, 316], strides = [1, 1]} : vector<8x400xf32> to vector<8x316xf32>
    %c22_138 = arith.constant 22 : index
    %1059 = memref.load %arg11[%c22_138] : memref<150xf32, #tpu.memory_space<smem>>
    %1060 = vector.broadcast %1059 : f32 to vector<8x316xf32>
    %1061 = arith.mulf %1060, %1058 : vector<8x316xf32>
    %1062 = arith.addf %1049, %1061 : vector<8x316xf32>
    %c72 = arith.constant 72 : index
    %1063 = memref.load %arg11[%c72] : memref<150xf32, #tpu.memory_space<smem>>
    %1064 = vector.broadcast %1063 : f32 to vector<8x316xf32>
    %1065 = arith.mulf %1064, %1058 : vector<8x316xf32>
    %1066 = arith.addf %1053, %1065 : vector<8x316xf32>
    %c122 = arith.constant 122 : index
    %1067 = memref.load %arg11[%c122] : memref<150xf32, #tpu.memory_space<smem>>
    %1068 = vector.broadcast %1067 : f32 to vector<8x316xf32>
    %1069 = arith.mulf %1068, %1058 : vector<8x316xf32>
    %1070 = arith.addf %1057, %1069 : vector<8x316xf32>
    %1071 = vector.extract_strided_slice %473 {offsets = [0, 82], sizes = [8, 316], strides = [1, 1]} : vector<8x400xf32> to vector<8x316xf32>
    %c47_139 = arith.constant 47 : index
    %1072 = memref.load %arg11[%c47_139] : memref<150xf32, #tpu.memory_space<smem>>
    %1073 = vector.broadcast %1072 : f32 to vector<8x316xf32>
    %1074 = arith.mulf %1073, %1071 : vector<8x316xf32>
    %1075 = arith.addf %1062, %1074 : vector<8x316xf32>
    %c97 = arith.constant 97 : index
    %1076 = memref.load %arg11[%c97] : memref<150xf32, #tpu.memory_space<smem>>
    %1077 = vector.broadcast %1076 : f32 to vector<8x316xf32>
    %1078 = arith.mulf %1077, %1071 : vector<8x316xf32>
    %1079 = arith.addf %1066, %1078 : vector<8x316xf32>
    %c147 = arith.constant 147 : index
    %1080 = memref.load %arg11[%c147] : memref<150xf32, #tpu.memory_space<smem>>
    %1081 = vector.broadcast %1080 : f32 to vector<8x316xf32>
    %1082 = arith.mulf %1081, %1071 : vector<8x316xf32>
    %1083 = arith.addf %1070, %1082 : vector<8x316xf32>
    %1084 = vector.extract_strided_slice %453 {offsets = [0, 83], sizes = [8, 316], strides = [1, 1]} : vector<8x400xf32> to vector<8x316xf32>
    %c23_140 = arith.constant 23 : index
    %1085 = memref.load %arg11[%c23_140] : memref<150xf32, #tpu.memory_space<smem>>
    %1086 = vector.broadcast %1085 : f32 to vector<8x316xf32>
    %1087 = arith.mulf %1086, %1084 : vector<8x316xf32>
    %1088 = arith.addf %1075, %1087 : vector<8x316xf32>
    %c73 = arith.constant 73 : index
    %1089 = memref.load %arg11[%c73] : memref<150xf32, #tpu.memory_space<smem>>
    %1090 = vector.broadcast %1089 : f32 to vector<8x316xf32>
    %1091 = arith.mulf %1090, %1084 : vector<8x316xf32>
    %1092 = arith.addf %1079, %1091 : vector<8x316xf32>
    %c123 = arith.constant 123 : index
    %1093 = memref.load %arg11[%c123] : memref<150xf32, #tpu.memory_space<smem>>
    %1094 = vector.broadcast %1093 : f32 to vector<8x316xf32>
    %1095 = arith.mulf %1094, %1084 : vector<8x316xf32>
    %1096 = arith.addf %1083, %1095 : vector<8x316xf32>
    %1097 = vector.extract_strided_slice %473 {offsets = [0, 83], sizes = [8, 316], strides = [1, 1]} : vector<8x400xf32> to vector<8x316xf32>
    %c48_141 = arith.constant 48 : index
    %1098 = memref.load %arg11[%c48_141] : memref<150xf32, #tpu.memory_space<smem>>
    %1099 = vector.broadcast %1098 : f32 to vector<8x316xf32>
    %1100 = arith.mulf %1099, %1097 : vector<8x316xf32>
    %1101 = arith.addf %1088, %1100 : vector<8x316xf32>
    %c98 = arith.constant 98 : index
    %1102 = memref.load %arg11[%c98] : memref<150xf32, #tpu.memory_space<smem>>
    %1103 = vector.broadcast %1102 : f32 to vector<8x316xf32>
    %1104 = arith.mulf %1103, %1097 : vector<8x316xf32>
    %1105 = arith.addf %1092, %1104 : vector<8x316xf32>
    %c148 = arith.constant 148 : index
    %1106 = memref.load %arg11[%c148] : memref<150xf32, #tpu.memory_space<smem>>
    %1107 = vector.broadcast %1106 : f32 to vector<8x316xf32>
    %1108 = arith.mulf %1107, %1097 : vector<8x316xf32>
    %1109 = arith.addf %1096, %1108 : vector<8x316xf32>
    %1110 = vector.extract_strided_slice %453 {offsets = [0, 84], sizes = [8, 316], strides = [1, 1]} : vector<8x400xf32> to vector<8x316xf32>
    %c24_142 = arith.constant 24 : index
    %1111 = memref.load %arg11[%c24_142] : memref<150xf32, #tpu.memory_space<smem>>
    %1112 = vector.broadcast %1111 : f32 to vector<8x316xf32>
    %1113 = arith.mulf %1112, %1110 : vector<8x316xf32>
    %1114 = arith.addf %1101, %1113 : vector<8x316xf32>
    %c74 = arith.constant 74 : index
    %1115 = memref.load %arg11[%c74] : memref<150xf32, #tpu.memory_space<smem>>
    %1116 = vector.broadcast %1115 : f32 to vector<8x316xf32>
    %1117 = arith.mulf %1116, %1110 : vector<8x316xf32>
    %1118 = arith.addf %1105, %1117 : vector<8x316xf32>
    %c124 = arith.constant 124 : index
    %1119 = memref.load %arg11[%c124] : memref<150xf32, #tpu.memory_space<smem>>
    %1120 = vector.broadcast %1119 : f32 to vector<8x316xf32>
    %1121 = arith.mulf %1120, %1110 : vector<8x316xf32>
    %1122 = arith.addf %1109, %1121 : vector<8x316xf32>
    %1123 = vector.extract_strided_slice %473 {offsets = [0, 84], sizes = [8, 316], strides = [1, 1]} : vector<8x400xf32> to vector<8x316xf32>
    %c49_143 = arith.constant 49 : index
    %1124 = memref.load %arg11[%c49_143] : memref<150xf32, #tpu.memory_space<smem>>
    %1125 = vector.broadcast %1124 : f32 to vector<8x316xf32>
    %1126 = arith.mulf %1125, %1123 : vector<8x316xf32>
    %1127 = arith.addf %1114, %1126 : vector<8x316xf32>
    %c99 = arith.constant 99 : index
    %1128 = memref.load %arg11[%c99] : memref<150xf32, #tpu.memory_space<smem>>
    %1129 = vector.broadcast %1128 : f32 to vector<8x316xf32>
    %1130 = arith.mulf %1129, %1123 : vector<8x316xf32>
    %1131 = arith.addf %1118, %1130 : vector<8x316xf32>
    %c149 = arith.constant 149 : index
    %1132 = memref.load %arg11[%c149] : memref<150xf32, #tpu.memory_space<smem>>
    %1133 = vector.broadcast %1132 : f32 to vector<8x316xf32>
    %1134 = arith.mulf %1133, %1123 : vector<8x316xf32>
    %1135 = arith.addf %1122, %1134 : vector<8x316xf32>
    %c5_144 = arith.constant 5 : index
    %c0_145 = arith.constant 0 : index
    %c0_146 = arith.constant 0 : index
    %1136 = vector.load %arg15[%c5_144, %c0_145, %c0_146] : memref<10x8x316xf32, #tpu.memory_space<vmem>>, vector<1x8x316xf32>
    %1137 = vector.shape_cast %1136 : vector<1x8x316xf32> to vector<8x316xf32>
    %1138 = vector.shape_cast %1127 : vector<8x316xf32> to vector<1x8x316xf32>
    tpu.vector_store %arg15[%c5_144, %c0_145, %c0_146], %1138 {strides = array<i32>} : memref<10x8x316xf32, #tpu.memory_space<vmem>>, vector<1x8x316xf32>,
    %c6_147 = arith.constant 6 : index
    %c0_148 = arith.constant 0 : index
    %c0_149 = arith.constant 0 : index
    %1139 = vector.load %arg15[%c6_147, %c0_148, %c0_149] : memref<10x8x316xf32, #tpu.memory_space<vmem>>, vector<1x8x316xf32>
    %1140 = vector.shape_cast %1139 : vector<1x8x316xf32> to vector<8x316xf32>
    %1141 = vector.shape_cast %1131 : vector<8x316xf32> to vector<1x8x316xf32>
    tpu.vector_store %arg15[%c6_147, %c0_148, %c0_149], %1141 {strides = array<i32>} : memref<10x8x316xf32, #tpu.memory_space<vmem>>, vector<1x8x316xf32>,
    %c7_150 = arith.constant 7 : index
    %c0_151 = arith.constant 0 : index
    %c0_152 = arith.constant 0 : index
    %1142 = vector.load %arg15[%c7_150, %c0_151, %c0_152] : memref<10x8x316xf32, #tpu.memory_space<vmem>>, vector<1x8x316xf32>
    %1143 = vector.shape_cast %1142 : vector<1x8x316xf32> to vector<8x316xf32>
    %1144 = vector.shape_cast %1135 : vector<8x316xf32> to vector<1x8x316xf32>
    tpu.vector_store %arg15[%c7_150, %c0_151, %c0_152], %1144 {strides = array<i32>} : memref<10x8x316xf32, #tpu.memory_space<vmem>>, vector<1x8x316xf32>,
    return
  }
  func.func @transform_0(%arg0: i32) -> (i32, i32) {
    %c0_i32 = arith.constant 0 : i32
    %c0_i32_0 = arith.constant 0 : i32
    %c0_i32_1 = arith.constant 0 : i32
    return %c0_i32, %c0_i32_0 : i32, i32
  }
  func.func @transform_1(%arg0: i32) -> (i32, i32, i32) {
    %c0_i32 = arith.constant 0 : i32
    %c0_i32_0 = arith.constant 0 : i32
    %c0_i32_1 = arith.constant 0 : i32
    return %c0_i32, %arg0, %c0_i32_0 : i32, i32, i32
  }
  func.func @transform_2(%arg0: i32) -> i32 {
    %c0_i32 = arith.constant 0 : i32
    %c0_i32_0 = arith.constant 0 : i32
    return %c0_i32 : i32
  }
  func.func @transform_3(%arg0: i32) -> i32 {
    %c0_i32 = arith.constant 0 : i32
    %c0_i32_0 = arith.constant 0 : i32
    return %c0_i32 : i32
  }
  func.func @transform_4(%arg0: i32) -> i32 {
    %c0_i32 = arith.constant 0 : i32
    %c0_i32_0 = arith.constant 0 : i32
    return %c0_i32 : i32
  }
  func.func @transform_5(%arg0: i32) -> i32 {
    %c0_i32 = arith.constant 0 : i32
    %c0_i32_0 = arith.constant 0 : i32
    return %c0_i32 : i32
  }
  func.func @transform_6(%arg0: i32) -> i32 {
    %c0_i32 = arith.constant 0 : i32
    %c0_i32_0 = arith.constant 0 : i32
    return %c0_i32 : i32
  }
  func.func @transform_7(%arg0: i32) -> i32 {
    %c0_i32 = arith.constant 0 : i32
    %c0_i32_0 = arith.constant 0 : i32
    return %c0_i32 : i32
  }
  func.func @transform_8(%arg0: i32) -> i32 {
    %c0_i32 = arith.constant 0 : i32
    %c0_i32_0 = arith.constant 0 : i32
    return %c0_i32 : i32
  }
  func.func @transform_9(%arg0: i32) -> i32 {
    %c0_i32 = arith.constant 0 : i32
    %c0_i32_0 = arith.constant 0 : i32
    return %c0_i32 : i32
  }
  func.func @transform_10(%arg0: i32) -> i32 {
    %c0_i32 = arith.constant 0 : i32
    %c0_i32_0 = arith.constant 0 : i32
    return %c0_i32 : i32
  }
  func.func @transform_11(%arg0: i32) -> i32 {
    %c0_i32 = arith.constant 0 : i32
    %c0_i32_0 = arith.constant 0 : i32
    return %c0_i32 : i32
  }
  func.func @transform_12(%arg0: i32) -> i32 {
    %c0_i32 = arith.constant 0 : i32
    %c0_i32_0 = arith.constant 0 : i32
    return %c0_i32 : i32
  }
  func.func @transform_13(%arg0: i32) -> i32 {
    %c0_i32 = arith.constant 0 : i32
    %c0_i32_0 = arith.constant 0 : i32
    return %c0_i32 : i32
  }
  func.func @transform_14(%arg0: i32) -> (i32, i32, i32) {
    %c0_i32 = arith.constant 0 : i32
    %c0_i32_0 = arith.constant 0 : i32
    %c0_i32_1 = arith.constant 0 : i32
    return %c0_i32, %arg0, %c0_i32_0 : i32, i32, i32
  }
}

</mosaic_0001>

<llo_original>
// kernel: inception_a.1
$region0: #{inception_a.1}
  #allocation0 [shape = 'u32[]', space=smem, size = 0x4, offset = 0x4, fixed_abs, tag = 'smem constant byte address 0x4 - core index']
  #allocation1 [shape = 'u32[144,128]{1,0:T(1,128)}', space=vmem, size = 0x12000, scoped, tag = 'internal scratch']
  %s0 = inlined_call_operand.vmem [shape: f32[1,400], index: 0, kind: input, shape index: {}]
  %s1 = inlined_call_operand.vmem [shape: f32[4,16,400], index: 1, kind: input, shape index: {}]
  %s2 = inlined_call_operand.vmem [shape: f32[8], index: 2, kind: input, shape index: {}]
  %s3 = inlined_call_operand.vmem [shape: f32[2], index: 3, kind: input, shape index: {}]
  %s4 = inlined_call_operand.vmem [shape: f32[8], index: 4, kind: input, shape index: {}]
  %s5 = inlined_call_operand.vmem [shape: f32[2], index: 5, kind: input, shape index: {}]
  %s6 = inlined_call_operand.vmem [shape: f32[54], index: 6, kind: input, shape index: {}]
  %s7 = inlined_call_operand.vmem [shape: f32[3], index: 7, kind: input, shape index: {}]
  %s8 = inlined_call_operand.vmem [shape: f32[8], index: 8, kind: input, shape index: {}]
  %s9 = inlined_call_operand.vmem [shape: f32[2], index: 9, kind: input, shape index: {}]
  %s10 = inlined_call_operand.vmem [shape: f32[150], index: 10, kind: input, shape index: {}]
  %s11 = inlined_call_operand.vmem [shape: f32[3], index: 11, kind: input, shape index: {}]
  %s12 = inlined_call_operand.vmem [shape: f32[8], index: 12, kind: input, shape index: {}]
  %s13 = inlined_call_operand.vmem [shape: f32[2], index: 13, kind: input, shape index: {}]
  %s14 = inlined_call_operand.vmem [shape: f32[10,16,316], index: 14, kind: output, shape index: {}]
  %s15 = sld [smem:[#allocation0]]
  $region179: #{inception_a.1} parent=0
    _
  %s17 = ssub.s32 1, %s15
  %s18 = scalar_select 0, %s17, %s15
  $region1: #{inception_a.1} parent=0
    #allocation2 [shape = 'u8[131072]{0}', space=vmem, size = 0x20000, scoped, tag = 'input window, operand 1']
    #allocation3 [shape = 'u8[512]{0}', space=smem, size = 0x200, scoped, tag = 'input window, operand 2, single buffered']
    #allocation4 [shape = 's32[2]{0}', space=sflag, size = 0x8, scoped, tag = 'scoped memory for inception_a.1']
    #allocation5 [shape = 'u8[512]{0}', space=smem, size = 0x200, scoped, tag = 'input window, operand 3, single buffered']
    #allocation6 [shape = 's32[1]{0}', space=sflag, size = 0x4, scoped, tag = 'scoped memory for inception_a.1']
    #allocation7 [shape = 'u8[512]{0}', space=smem, size = 0x200, scoped, tag = 'input window, operand 4, single buffered']
    #allocation8 [shape = 'u8[512]{0}', space=smem, size = 0x200, scoped, tag = 'input window, operand 5, single buffered']
    #allocation9 [shape = 's32[1]{0}', space=sflag, size = 0x4, scoped, tag = 'scoped memory for inception_a.1']
    #allocation10 [shape = 'u8[512]{0}', space=smem, size = 0x200, scoped, tag = 'input window, operand 6, single buffered']
    #allocation11 [shape = 'u8[512]{0}', space=smem, size = 0x200, scoped, tag = 'input window, operand 7, single buffered']
    #allocation12 [shape = 's32[1]{0}', space=sflag, size = 0x4, scoped, tag = 'scoped memory for inception_a.1']
    #allocation13 [shape = 'u8[512]{0}', space=smem, size = 0x200, scoped, tag = 'input window, operand 8, single buffered']
    #allocation14 [shape = 'u8[512]{0}', space=smem, size = 0x200, scoped, tag = 'input window, operand 9, single buffered']
    #allocation15 [shape = 's32[1]{0}', space=sflag, size = 0x4, scoped, tag = 'scoped memory for inception_a.1']
    #allocation16 [shape = 'u8[1024]{0}', space=smem, size = 0x400, scoped, tag = 'input window, operand 10, single buffered']
    #allocation17 [shape = 'u8[512]{0}', space=smem, size = 0x200, scoped, tag = 'input window, operand 11, single buffered']
    #allocation18 [shape = 's32[1]{0}', space=sflag, size = 0x4, scoped, tag = 'scoped memory for inception_a.1']
    #allocation19 [shape = 'u8[512]{0}', space=smem, size = 0x200, scoped, tag = 'input window, operand 12, single buffered']
    #allocation20 [shape = 'u8[512]{0}', space=smem, size = 0x200, scoped, tag = 'input window, operand 13, single buffered']
    #allocation21 [shape = 's32[1]{0}', space=sflag, size = 0x4, scoped, tag = 'scoped memory for inception_a.1']
    #allocation22 [shape = 'u8[245760]{0}', space=vmem, size = 0x3c000, scoped, tag = 'output window, operand 0']
    %19 = vsyncpa [#allocation4], 0
    %20 = vsyncpa [#allocation6], 0
    %21 = vsyncpa [#allocation9], 0
    %22 = vsyncpa [#allocation12], 0
    %23 = vsyncpa [#allocation15], 0
    %24 = vsyncpa [#allocation18], 0
    %25 = vsyncpa [#allocation21], 0
    loop: start=0, step=1, limit=4
    $region2: #{inception_a.1} parent=1 // loop_pre_header
      _
    $region3: #{inception_a.1} parent=1 // loop_header
      %s27 = sphi 0, %s31
      %p28 = scmp.ge.s32.totalorder %s27, 4
      %s35 = sphi 0, %s35
      %s37 = sphi 0, %s35
      %s38 = sphi 0, %s37
      %s52 = sphi 0, %s38
      %s58 = sphi 0, %s60
      %s61 = sphi 0, %s58
      %s62 = sphi 0, %s61
      %s78 = sphi 0, %s62
      %s82 = sphi 0, %s82
      %s84 = sphi 0, %s82
      %s85 = sphi 0, %s84
      %s99 = sphi 0, %s85
      %s103 = sphi 0, %s103
      %s105 = sphi 0, %s103
      %s106 = sphi 0, %s105
      %s120 = sphi 0, %s106
      %s124 = sphi 0, %s124
      %s126 = sphi 0, %s124
      %s127 = sphi 0, %s126
      %s141 = sphi 0, %s127
      %s145 = sphi 0, %s145
      %s147 = sphi 0, %s145
      %s148 = sphi 0, %s147
      %s162 = sphi 0, %s148
      %s166 = sphi 0, %s166
      %s168 = sphi 0, %s166
      %s169 = sphi 0, %s168
      %s183 = sphi 0, %s169
      %s187 = sphi 0, %s187
      %s189 = sphi 0, %s187
      %s190 = sphi 0, %s189
      %s204 = sphi 0, %s190
      %s208 = sphi 0, %s208
      %s210 = sphi 0, %s208
      %s211 = sphi 0, %s210
      %s225 = sphi 0, %s211
      %s229 = sphi 0, %s229
      %s231 = sphi 0, %s229
      %s232 = sphi 0, %s231
      %s246 = sphi 0, %s232
      %s250 = sphi 0, %s250
      %s252 = sphi 0, %s250
      %s253 = sphi 0, %s252
      %s267 = sphi 0, %s253
      %s271 = sphi 0, %s271
      %s273 = sphi 0, %s271
      %s274 = sphi 0, %s273
      %s288 = sphi 0, %s274
      %s292 = sphi 0, %s292
      %s294 = sphi 0, %s292
      %s295 = sphi 0, %s294
      %s309 = sphi 0, %s295
      %s313 = sphi 0, %s313
      %s315 = sphi 0, %s313
      %s316 = sphi 0, %s315
      %s330 = sphi 0, %s316
      %s336 = sphi 0, %s338
      %s339 = sphi 0, %s336
      %s340 = sphi 0, %s339
      %s356 = sphi 0, %s340
    $region4: #{inception_a.1} parent=1 // loop_header_branch
      %30 = sbr.rel (%p28) target = $region8
    $region5: #{inception_a.1} parent=1 // loop_body
      %s32 = ssub.s32 %s27, 1
      %s33 = ssub.s32 %s27, 2
      %s34 = sadd.s32 %s27, 1
      %s36 = sadd.s32 %s35, 1
      %p39 = scmp.eq.s32.totalorder %s27, 1
      %p40 = scmp.ne.s32.totalorder %s35, %s37
      %p41 = scmp.eq.s32.totalorder %s27, 0
      %p42 = por %p40, %p41
      %p43 = scmp.ne.s32.totalorder %s35, %s37
      %p44 = scmp.eq.s32.totalorder %s32, 1
      %p45 = por %p43, %p44
      %p46 = scmp.ne.s32.totalorder %s37, %s38
      %p47 = scmp.eq.s32.totalorder %s32, 0
      %p48 = por %p46, %p47
      %p49 = scmp.ne.s32.totalorder %s37, %s38
      %p50 = scmp.eq.s32.totalorder %s33, 1
      %p51 = por %p49, %p50
      %p53 = scmp.ne.s32.totalorder %s38, %s52
      %p54 = scmp.eq.s32.totalorder %s33, 0
      %p55 = por %p53, %p54
      %s56 = ssub.s32 %s27, %s34
      %p57 = scmp.eq.s32.totalorder %s56, 0
      %s59 = sadd.s32 %s58, 1
      %s60 = scalar_select %p57, %s58, %s59
      %p63 = pneg %p57
      %p64 = scmp.eq.s32.totalorder %s27, 1
      %p65 = por %p63, %p64
      %p66 = scmp.ne.s32.totalorder %s58, %s61
      %p67 = scmp.eq.s32.totalorder %s27, 0
      %p68 = por %p66, %p67
      %p69 = scmp.ne.s32.totalorder %s58, %s61
      %p70 = scmp.eq.s32.totalorder %s32, 1
      %p71 = por %p69, %p70
      %p72 = scmp.ne.s32.totalorder %s61, %s62
      %p73 = scmp.eq.s32.totalorder %s32, 0
      %p74 = por %p72, %p73
      %p75 = scmp.ne.s32.totalorder %s61, %s62
      %p76 = scmp.eq.s32.totalorder %s33, 1
      %p77 = por %p75, %p76
      %p79 = scmp.ne.s32.totalorder %s62, %s78
      %p80 = scmp.eq.s32.totalorder %s33, 0
      %p81 = por %p79, %p80
      %s83 = sadd.s32 %s82, 1
      %p86 = scmp.eq.s32.totalorder %s27, 1
      %p87 = scmp.ne.s32.totalorder %s82, %s84
      %p88 = scmp.eq.s32.totalorder %s27, 0
      %p89 = por %p87, %p88
      %p90 = scmp.ne.s32.totalorder %s82, %s84
      %p91 = scmp.eq.s32.totalorder %s32, 1
      %p92 = por %p90, %p91
      %p93 = scmp.ne.s32.totalorder %s84, %s85
      %p94 = scmp.eq.s32.totalorder %s32, 0
      %p95 = por %p93, %p94
      %p96 = scmp.ne.s32.totalorder %s84, %s85
      %p97 = scmp.eq.s32.totalorder %s33, 1
      %p98 = por %p96, %p97
      %p100 = scmp.ne.s32.totalorder %s85, %s99
      %p101 = scmp.eq.s32.totalorder %s33, 0
      %p102 = por %p100, %p101
      %s104 = sadd.s32 %s103, 1
      %p107 = scmp.eq.s32.totalorder %s27, 1
      %p108 = scmp.ne.s32.totalorder %s103, %s105
      %p109 = scmp.eq.s32.totalorder %s27, 0
      %p110 = por %p108, %p109
      %p111 = scmp.ne.s32.totalorder %s103, %s105
      %p112 = scmp.eq.s32.totalorder %s32, 1
      %p113 = por %p111, %p112
      %p114 = scmp.ne.s32.totalorder %s105, %s106
      %p115 = scmp.eq.s32.totalorder %s32, 0
      %p116 = por %p114, %p115
      %p117 = scmp.ne.s32.totalorder %s105, %s106
      %p118 = scmp.eq.s32.totalorder %s33, 1
      %p119 = por %p117, %p118
      %p121 = scmp.ne.s32.totalorder %s106, %s120
      %p122 = scmp.eq.s32.totalorder %s33, 0
      %p123 = por %p121, %p122
      %s125 = sadd.s32 %s124, 1
      %p128 = scmp.eq.s32.totalorder %s27, 1
      %p129 = scmp.ne.s32.totalorder %s124, %s126
      %p130 = scmp.eq.s32.totalorder %s27, 0
      %p131 = por %p129, %p130
      %p132 = scmp.ne.s32.totalorder %s124, %s126
      %p133 = scmp.eq.s32.totalorder %s32, 1
      %p134 = por %p132, %p133
      %p135 = scmp.ne.s32.totalorder %s126, %s127
      %p136 = scmp.eq.s32.totalorder %s32, 0
      %p137 = por %p135, %p136
      %p138 = scmp.ne.s32.totalorder %s126, %s127
      %p139 = scmp.eq.s32.totalorder %s33, 1
      %p140 = por %p138, %p139
      %p142 = scmp.ne.s32.totalorder %s127, %s141
      %p143 = scmp.eq.s32.totalorder %s33, 0
      %p144 = por %p142, %p143
      %s146 = sadd.s32 %s145, 1
      %p149 = scmp.eq.s32.totalorder %s27, 1
      %p150 = scmp.ne.s32.totalorder %s145, %s147
      %p151 = scmp.eq.s32.totalorder %s27, 0
      %p152 = por %p150, %p151
      %p153 = scmp.ne.s32.totalorder %s145, %s147
      %p154 = scmp.eq.s32.totalorder %s32, 1
      %p155 = por %p153, %p154
      %p156 = scmp.ne.s32.totalorder %s147, %s148
      %p157 = scmp.eq.s32.totalorder %s32, 0
      %p158 = por %p156, %p157
      %p159 = scmp.ne.s32.totalorder %s147, %s148
      %p160 = scmp.eq.s32.totalorder %s33, 1
      %p161 = por %p159, %p160
      %p163 = scmp.ne.s32.totalorder %s148, %s162
      %p164 = scmp.eq.s32.totalorder %s33, 0
      %p165 = por %p163, %p164
      %s167 = sadd.s32 %s166, 1
      %p170 = scmp.eq.s32.totalorder %s27, 1
      %p171 = scmp.ne.s32.totalorder %s166, %s168
      %p172 = scmp.eq.s32.totalorder %s27, 0
      %p173 = por %p171, %p172
      %p174 = scmp.ne.s32.totalorder %s166, %s168
      %p175 = scmp.eq.s32.totalorder %s32, 1
      %p176 = por %p174, %p175
      %p177 = scmp.ne.s32.totalorder %s168, %s169
      %p178 = scmp.eq.s32.totalorder %s32, 0
      %p179 = por %p177, %p178
      %p180 = scmp.ne.s32.totalorder %s168, %s169
      %p181 = scmp.eq.s32.totalorder %s33, 1
      %p182 = por %p180, %p181
      %p184 = scmp.ne.s32.totalorder %s169, %s183
      %p185 = scmp.eq.s32.totalorder %s33, 0
      %p186 = por %p184, %p185
      %s188 = sadd.s32 %s187, 1
      %p191 = scmp.eq.s32.totalorder %s27, 1
      %p192 = scmp.ne.s32.totalorder %s187, %s189
      %p193 = scmp.eq.s32.totalorder %s27, 0
      %p194 = por %p192, %p193
      %p195 = scmp.ne.s32.totalorder %s187, %s189
      %p196 = scmp.eq.s32.totalorder %s32, 1
      %p197 = por %p195, %p196
      %p198 = scmp.ne.s32.totalorder %s189, %s190
      %p199 = scmp.eq.s32.totalorder %s32, 0
      %p200 = por %p198, %p199
      %p201 = scmp.ne.s32.totalorder %s189, %s190
      %p202 = scmp.eq.s32.totalorder %s33, 1
      %p203 = por %p201, %p202
      %p205 = scmp.ne.s32.totalorder %s190, %s204
      %p206 = scmp.eq.s32.totalorder %s33, 0
      %p207 = por %p205, %p206
      %s209 = sadd.s32 %s208, 1
      %p212 = scmp.eq.s32.totalorder %s27, 1
      %p213 = scmp.ne.s32.totalorder %s208, %s210
      %p214 = scmp.eq.s32.totalorder %s27, 0
      %p215 = por %p213, %p214
      %p216 = scmp.ne.s32.totalorder %s208, %s210
      %p217 = scmp.eq.s32.totalorder %s32, 1
      %p218 = por %p216, %p217
      %p219 = scmp.ne.s32.totalorder %s210, %s211
      %p220 = scmp.eq.s32.totalorder %s32, 0
      %p221 = por %p219, %p220
      %p222 = scmp.ne.s32.totalorder %s210, %s211
      %p223 = scmp.eq.s32.totalorder %s33, 1
      %p224 = por %p222, %p223
      %p226 = scmp.ne.s32.totalorder %s211, %s225
      %p227 = scmp.eq.s32.totalorder %s33, 0
      %p228 = por %p226, %p227
      %s230 = sadd.s32 %s229, 1
      %p233 = scmp.eq.s32.totalorder %s27, 1
      %p234 = scmp.ne.s32.totalorder %s229, %s231
      %p235 = scmp.eq.s32.totalorder %s27, 0
      %p236 = por %p234, %p235
      %p237 = scmp.ne.s32.totalorder %s229, %s231
      %p238 = scmp.eq.s32.totalorder %s32, 1
      %p239 = por %p237, %p238
      %p240 = scmp.ne.s32.totalorder %s231, %s232
      %p241 = scmp.eq.s32.totalorder %s32, 0
      %p242 = por %p240, %p241
      %p243 = scmp.ne.s32.totalorder %s231, %s232
      %p244 = scmp.eq.s32.totalorder %s33, 1
      %p245 = por %p243, %p244
      %p247 = scmp.ne.s32.totalorder %s232, %s246
      %p248 = scmp.eq.s32.totalorder %s33, 0
      %p249 = por %p247, %p248
      %s251 = sadd.s32 %s250, 1
      %p254 = scmp.eq.s32.totalorder %s27, 1
      %p255 = scmp.ne.s32.totalorder %s250, %s252
      %p256 = scmp.eq.s32.totalorder %s27, 0
      %p257 = por %p255, %p256
      %p258 = scmp.ne.s32.totalorder %s250, %s252
      %p259 = scmp.eq.s32.totalorder %s32, 1
      %p260 = por %p258, %p259
      %p261 = scmp.ne.s32.totalorder %s252, %s253
      %p262 = scmp.eq.s32.totalorder %s32, 0
      %p263 = por %p261, %p262
      %p264 = scmp.ne.s32.totalorder %s252, %s253
      %p265 = scmp.eq.s32.totalorder %s33, 1
      %p266 = por %p264, %p265
      %p268 = scmp.ne.s32.totalorder %s253, %s267
      %p269 = scmp.eq.s32.totalorder %s33, 0
      %p270 = por %p268, %p269
      %s272 = sadd.s32 %s271, 1
      %p275 = scmp.eq.s32.totalorder %s27, 1
      %p276 = scmp.ne.s32.totalorder %s271, %s273
      %p277 = scmp.eq.s32.totalorder %s27, 0
      %p278 = por %p276, %p277
      %p279 = scmp.ne.s32.totalorder %s271, %s273
      %p280 = scmp.eq.s32.totalorder %s32, 1
      %p281 = por %p279, %p280
      %p282 = scmp.ne.s32.totalorder %s273, %s274
      %p283 = scmp.eq.s32.totalorder %s32, 0
      %p284 = por %p282, %p283
      %p285 = scmp.ne.s32.totalorder %s273, %s274
      %p286 = scmp.eq.s32.totalorder %s33, 1
      %p287 = por %p285, %p286
      %p289 = scmp.ne.s32.totalorder %s274, %s288
      %p290 = scmp.eq.s32.totalorder %s33, 0
      %p291 = por %p289, %p290
      %s293 = sadd.s32 %s292, 1
      %p296 = scmp.eq.s32.totalorder %s27, 1
      %p297 = scmp.ne.s32.totalorder %s292, %s294
      %p298 = scmp.eq.s32.totalorder %s27, 0
      %p299 = por %p297, %p298
      %p300 = scmp.ne.s32.totalorder %s292, %s294
      %p301 = scmp.eq.s32.totalorder %s32, 1
      %p302 = por %p300, %p301
      %p303 = scmp.ne.s32.totalorder %s294, %s295
      %p304 = scmp.eq.s32.totalorder %s32, 0
      %p305 = por %p303, %p304
      %p306 = scmp.ne.s32.totalorder %s294, %s295
      %p307 = scmp.eq.s32.totalorder %s33, 1
      %p308 = por %p306, %p307
      %p310 = scmp.ne.s32.totalorder %s295, %s309
      %p311 = scmp.eq.s32.totalorder %s33, 0
      %p312 = por %p310, %p311
      %s314 = sadd.s32 %s313, 1
      %p317 = scmp.eq.s32.totalorder %s27, 1
      %p318 = scmp.ne.s32.totalorder %s313, %s315
      %p319 = scmp.eq.s32.totalorder %s27, 0
      %p320 = por %p318, %p319
      %p321 = scmp.ne.s32.totalorder %s313, %s315
      %p322 = scmp.eq.s32.totalorder %s32, 1
      %p323 = por %p321, %p322
      %p324 = scmp.ne.s32.totalorder %s315, %s316
      %p325 = scmp.eq.s32.totalorder %s32, 0
      %p326 = por %p324, %p325
      %p327 = scmp.ne.s32.totalorder %s315, %s316
      %p328 = scmp.eq.s32.totalorder %s33, 1
      %p329 = por %p327, %p328
      %p331 = scmp.ne.s32.totalorder %s316, %s330
      %p332 = scmp.eq.s32.totalorder %s33, 0
      %p333 = por %p331, %p332
      %s334 = ssub.s32 %s27, %s34
      %p335 = scmp.eq.s32.totalorder %s334, 0
      %s337 = sadd.s32 %s336, 1
      %s338 = scalar_select %p335, %s336, %s337
      %p341 = pneg %p335
      %p342 = scmp.eq.s32.totalorder %s27, 1
      %p343 = por %p341, %p342
      %p344 = scmp.ne.s32.totalorder %s336, %s339
      %p345 = scmp.eq.s32.totalorder %s27, 0
      %p346 = por %p344, %p345
      %p347 = scmp.ne.s32.totalorder %s336, %s339
      %p348 = scmp.eq.s32.totalorder %s32, 1
      %p349 = por %p347, %p348
      %p350 = scmp.ne.s32.totalorder %s339, %s340
      %p351 = scmp.eq.s32.totalorder %s32, 0
      %p352 = por %p350, %p351
      %p353 = scmp.ne.s32.totalorder %s339, %s340
      %p354 = scmp.eq.s32.totalorder %s33, 1
      %p355 = por %p353, %p354
      %p357 = scmp.ne.s32.totalorder %s340, %s356
      %p358 = scmp.eq.s32.totalorder %s33, 0
      %p359 = por %p357, %p358
      %p360 = scmp.le.s32.totalorder 1, %s27
      %p361 = scmp.lt.s32.totalorder %s27, 3
      %p362 = pnand %p360, %p361
      %p363 = pneg %p362
      // Predicated region
      $region9: #{inception_a.1} parent=5 // pred_check
        _
      $region10: #{inception_a.1} parent=5 // pred_check_branch
        %365 = sbr.rel (%p362) target = $region12
      $region11: #{inception_a.1} parent=5 // pred_region
        %s366 = ssub.s32 %s27, 1
        // Predicated region
        $region13: #{inception_a.1} parent=11 // pred_check
          %p367 = pneg %p48
        $region14: #{inception_a.1} parent=11 // pred_check_branch
          %369 = sbr.rel (%p367) target = $region16
        $region15: #{inception_a.1} parent=11 // pred_region
          _
        $region16: #{inception_a.1} parent=11 // pred_fallthru
          _
        // Predicated region
        $region17: #{inception_a.1} parent=11 // pred_check
          %p370 = pneg %p95
        $region18: #{inception_a.1} parent=11 // pred_check_branch
          %372 = sbr.rel (%p370) target = $region20
        $region19: #{inception_a.1} parent=11 // pred_region
          %s374 = ssub.s32 16, 16
          %375 = vsyncadd [#allocation4], %s374
          %s377 = sshll.u32 %s2, 4
          %s378 = int_to_ptr.vmem [resolvable:$true] %s377
          %380 = dma.vmem_to_smem %s378, 16, [#allocation3], [#allocation4]
        $region20: #{inception_a.1} parent=11 // pred_fallthru
          _
        // Predicated region
        $region21: #{inception_a.1} parent=11 // pred_check
          %p381 = pneg %p116
        $region22: #{inception_a.1} parent=11 // pred_check_branch
          %383 = sbr.rel (%p381) target = $region24
        $region23: #{inception_a.1} parent=11 // pred_region
          %s385 = ssub.s32 16, 16
          %386 = vsyncadd [#allocation6], %s385
          %s388 = sshll.u32 %s3, 4
          %s389 = int_to_ptr.vmem [resolvable:$true] %s388
          %391 = dma.vmem_to_smem %s389, 16, [#allocation5], [#allocation6]
        $region24: #{inception_a.1} parent=11 // pred_fallthru
          _
        // Predicated region
        $region25: #{inception_a.1} parent=11 // pred_check
          %p392 = pneg %p137
        $region26: #{inception_a.1} parent=11 // pred_check_branch
          %394 = sbr.rel (%p392) target = $region28
        $region27: #{inception_a.1} parent=11 // pred_region
          %s396 = ssub.s32 16, 16
          %397 = vsyncadd [#allocation6], %s396
          %s399 = sshll.u32 %s4, 4
          %s400 = int_to_ptr.vmem [resolvable:$true] %s399
          %402 = dma.vmem_to_smem %s400, 16, [#allocation7], [#allocation6]
        $region28: #{inception_a.1} parent=11 // pred_fallthru
          _
        // Predicated region
        $region29: #{inception_a.1} parent=11 // pred_check
          %p403 = pneg %p158
        $region30: #{inception_a.1} parent=11 // pred_check_branch
          %405 = sbr.rel (%p403) target = $region32
        $region31: #{inception_a.1} parent=11 // pred_region
          %s407 = ssub.s32 16, 16
          %408 = vsyncadd [#allocation9], %s407
          %s410 = sshll.u32 %s5, 4
          %s411 = int_to_ptr.vmem [resolvable:$true] %s410
          %413 = dma.vmem_to_smem %s411, 16, [#allocation8], [#allocation9]
        $region32: #{inception_a.1} parent=11 // pred_fallthru
          _
        // Predicated region
        $region33: #{inception_a.1} parent=11 // pred_check
          %p414 = pneg %p179
        $region34: #{inception_a.1} parent=11 // pred_check_branch
          %416 = sbr.rel (%p414) target = $region36
        $region35: #{inception_a.1} parent=11 // pred_region
          %s418 = ssub.s32 16, 16
          %419 = vsyncadd [#allocation9], %s418
          %s421 = sshll.u32 %s6, 4
          %s422 = int_to_ptr.vmem [resolvable:$true] %s421
          %424 = dma.vmem_to_smem %s422, 16, [#allocation10], [#allocation9]
        $region36: #{inception_a.1} parent=11 // pred_fallthru
          _
        // Predicated region
        $region37: #{inception_a.1} parent=11 // pred_check
          %p425 = pneg %p200
        $region38: #{inception_a.1} parent=11 // pred_check_branch
          %427 = sbr.rel (%p425) target = $region40
        $region39: #{inception_a.1} parent=11 // pred_region
          %s429 = ssub.s32 16, 16
          %430 = vsyncadd [#allocation12], %s429
          %s432 = sshll.u32 %s7, 4
          %s433 = int_to_ptr.vmem [resolvable:$true] %s432
          %435 = dma.vmem_to_smem %s433, 16, [#allocation11], [#allocation12]
        $region40: #{inception_a.1} parent=11 // pred_fallthru
          _
        // Predicated region
        $region41: #{inception_a.1} parent=11 // pred_check
          %p436 = pneg %p221
        $region42: #{inception_a.1} parent=11 // pred_check_branch
          %438 = sbr.rel (%p436) target = $region44
        $region43: #{inception_a.1} parent=11 // pred_region
          %s440 = ssub.s32 16, 16
          %441 = vsyncadd [#allocation12], %s440
          %s443 = sshll.u32 %s8, 4
          %s444 = int_to_ptr.vmem [resolvable:$true] %s443
          %446 = dma.vmem_to_smem %s444, 16, [#allocation13], [#allocation12]
        $region44: #{inception_a.1} parent=11 // pred_fallthru
          _
        // Predicated region
        $region45: #{inception_a.1} parent=11 // pred_check
          %p447 = pneg %p242
        $region46: #{inception_a.1} parent=11 // pred_check_branch
          %449 = sbr.rel (%p447) target = $region48
        $region47: #{inception_a.1} parent=11 // pred_region
          %s451 = ssub.s32 16, 16
          %452 = vsyncadd [#allocation15], %s451
          %s454 = sshll.u32 %s9, 4
          %s455 = int_to_ptr.vmem [resolvable:$true] %s454
          %457 = dma.vmem_to_smem %s455, 16, [#allocation14], [#allocation15]
        $region48: #{inception_a.1} parent=11 // pred_fallthru
          _
        // Predicated region
        $region49: #{inception_a.1} parent=11 // pred_check
          %p458 = pneg %p263
        $region50: #{inception_a.1} parent=11 // pred_check_branch
          %460 = sbr.rel (%p458) target = $region52
        $region51: #{inception_a.1} parent=11 // pred_region
          %s462 = ssub.s32 32, 32
          %463 = vsyncadd [#allocation15], %s462
          %s465 = sshll.u32 %s10, 4
          %s466 = int_to_ptr.vmem [resolvable:$true] %s465
          %468 = dma.vmem_to_smem %s466, 32, [#allocation16], [#allocation15]
        $region52: #{inception_a.1} parent=11 // pred_fallthru
          _
        // Predicated region
        $region53: #{inception_a.1} parent=11 // pred_check
          %p469 = pneg %p284
        $region54: #{inception_a.1} parent=11 // pred_check_branch
          %471 = sbr.rel (%p469) target = $region56
        $region55: #{inception_a.1} parent=11 // pred_region
          %s473 = ssub.s32 16, 16
          %474 = vsyncadd [#allocation18], %s473
          %s476 = sshll.u32 %s11, 4
          %s477 = int_to_ptr.vmem [resolvable:$true] %s476
          %479 = dma.vmem_to_smem %s477, 16, [#allocation17], [#allocation18]
        $region56: #{inception_a.1} parent=11 // pred_fallthru
          _
        // Predicated region
        $region57: #{inception_a.1} parent=11 // pred_check
          %p480 = pneg %p305
        $region58: #{inception_a.1} parent=11 // pred_check_branch
          %482 = sbr.rel (%p480) target = $region60
        $region59: #{inception_a.1} parent=11 // pred_region
          %s484 = ssub.s32 16, 16
          %485 = vsyncadd [#allocation18], %s484
          %s487 = sshll.u32 %s12, 4
          %s488 = int_to_ptr.vmem [resolvable:$true] %s487
          %490 = dma.vmem_to_smem %s488, 16, [#allocation19], [#allocation18]
        $region60: #{inception_a.1} parent=11 // pred_fallthru
          _
        // Predicated region
        $region61: #{inception_a.1} parent=11 // pred_check
          %p491 = pneg %p326
        $region62: #{inception_a.1} parent=11 // pred_check_branch
          %493 = sbr.rel (%p491) target = $region64
        $region63: #{inception_a.1} parent=11 // pred_region
          %s495 = ssub.s32 16, 16
          %496 = vsyncadd [#allocation21], %s495
          %s498 = sshll.u32 %s13, 4
          %s499 = int_to_ptr.vmem [resolvable:$true] %s498
          %501 = dma.vmem_to_smem %s499, 16, [#allocation20], [#allocation21]
        $region64: #{inception_a.1} parent=11 // pred_fallthru
          _
      $region12: #{inception_a.1} parent=5 // pred_fallthru
        _
      %p502 = scmp.lt.s32.totalorder %s27, 2
      // Predicated region
      $region65: #{inception_a.1} parent=5 // pred_check
        %p503 = pneg %p502
      $region66: #{inception_a.1} parent=5 // pred_check_branch
        %505 = sbr.rel (%p503) target = $region68
      $region67: #{inception_a.1} parent=5 // pred_region
        // Predicated region
        $region69: #{inception_a.1} parent=67 // pred_check
          %p506 = pneg %p68
        $region70: #{inception_a.1} parent=67 // pred_check_branch
          %508 = sbr.rel (%p506) target = $region72
        $region71: #{inception_a.1} parent=67 // pred_region
          %s509 = sand.u32 %s58, 1
          %s510 = sand.u32 %s58, 1
          %s511 = smul.addr %s510, 128
          %s512 = scalar_lea.vmem [#allocation2], %s511
          %s513 = smul.addr %s27, 4
          %s514 = smul.addr %s513, 8
          %s515 = scalar_lea.vmem %s1, %s514
          // Predicated region
          $region73: #{inception_a.1} parent=71 // pred_check
            _
          $region74: #{inception_a.1} parent=71 // pred_check_branch
            %517 = sbr.rel (0) target = $region76
          $region75: #{inception_a.1} parent=71 // pred_region
            // Predicated region
            $region77: #{inception_a.1} parent=75 // pred_check
              _
            $region78: #{inception_a.1} parent=75 // pred_check_branch
              %519 = sbr.rel (0) target = $region80
            $region79: #{inception_a.1} parent=75 // pred_region
              loop: start=0, step=1, limit=1
              $region81: #{inception_a.1} parent=79 // loop_pre_header
                _
              $region82: #{inception_a.1} parent=79 // loop_header
                %s521 = sphi 0, %s525
                %p522 = scmp.ge.s32.totalorder %s521, 1
                %s526 = sphi %s515, %s515
                %s527 = sphi %s512, %s512
              $region83: #{inception_a.1} parent=79 // loop_header_branch
                %524 = sbr.rel (%p522) target = $region87
              $region84: #{inception_a.1} parent=79 // loop_body
                %v528 = vld [vmem:[%s526] sm:$0xff]
                %529 = vst [vmem:[%s527] sm:$0xff] %v528
                %v530 = vld [vmem:[%s526 + $0x8] sm:$0xff]
                %531 = vst [vmem:[%s527 + $0x8] sm:$0xff] %v530
                %v532 = vld [vmem:[%s526 + $0x10] sm:$0xff]
                %533 = vst [vmem:[%s527 + $0x10] sm:$0xff] %v532
                %v534 = vld [vmem:[%s526 + $0x18] sm:$0xff]
                %535 = vst [vmem:[%s527 + $0x18] sm:$0xff] %v534
                %v536 = vld [vmem:[%s526 + $0x40] sm:$0xff]
                %537 = vst [vmem:[%s527 + $0x20] sm:$0xff] %v536
                %v538 = vld [vmem:[%s526 + $0x48] sm:$0xff]
                %539 = vst [vmem:[%s527 + $0x28] sm:$0xff] %v538
                %v540 = vld [vmem:[%s526 + $0x50] sm:$0xff]
                %541 = vst [vmem:[%s527 + $0x30] sm:$0xff] %v540
                %v542 = vld [vmem:[%s526 + $0x58] sm:$0xff]
                %543 = vst [vmem:[%s527 + $0x38] sm:$0xff] %v542
                %v544 = vld [vmem:[%s526 + $0x80] sm:$0xff]
                %545 = vst [vmem:[%s527 + $0x40] sm:$0xff] %v544
                %v546 = vld [vmem:[%s526 + $0x88] sm:$0xff]
                %547 = vst [vmem:[%s527 + $0x48] sm:$0xff] %v546
                %v548 = vld [vmem:[%s526 + $0x90] sm:$0xff]
                %549 = vst [vmem:[%s527 + $0x50] sm:$0xff] %v548
                %v550 = vld [vmem:[%s526 + $0x98] sm:$0xff]
                %551 = vst [vmem:[%s527 + $0x58] sm:$0xff] %v550
                %v552 = vld [vmem:[%s526 + $0xc0] sm:$0xff]
                %553 = vst [vmem:[%s527 + $0x60] sm:$0xff] %v552
                %v554 = vld [vmem:[%s526 + $0xc8] sm:$0xff]
                %555 = vst [vmem:[%s527 + $0x68] sm:$0xff] %v554
                %v556 = vld [vmem:[%s526 + $0xd0] sm:$0xff]
                %557 = vst [vmem:[%s527 + $0x70] sm:$0xff] %v556
                %v558 = vld [vmem:[%s526 + $0xd8] sm:$0xff]
                %559 = vst [vmem:[%s527 + $0x78] sm:$0xff] %v558
              $region85: #{inception_a.1} parent=79 // loop_footer
                %s525 = sadd.s32 1, %s521
              $region86: #{inception_a.1} parent=79 // loop_footer_branch
                %520 = sbr.rel target = $region82
              $region87: #{inception_a.1} parent=79 // loop_exit
                _
            $region80: #{inception_a.1} parent=75 // pred_fallthru
              _
            // Predicated region
            $region88: #{inception_a.1} parent=75 // pred_check
              _
            $region89: #{inception_a.1} parent=75 // pred_check_branch
              %561 = sbr.rel target = $region91
            $region90: #{inception_a.1} parent=75 // pred_region
              _
            $region91: #{inception_a.1} parent=75 // pred_fallthru
              _
          $region76: #{inception_a.1} parent=71 // pred_fallthru
            _
          %562 = vnop
        $region72: #{inception_a.1} parent=67 // pred_fallthru
          _
      $region68: #{inception_a.1} parent=5 // pred_fallthru
        _
      %p563 = scmp.le.s32.totalorder 1, %s27
      %p564 = scmp.lt.s32.totalorder %s27, 3
      %p565 = pnand %p563, %p564
      %p566 = pneg %p565
      // Predicated region
      $region92: #{inception_a.1} parent=5 // pred_check
        _
      $region93: #{inception_a.1} parent=5 // pred_check_branch
        %568 = sbr.rel (%p565) target = $region95
      $region94: #{inception_a.1} parent=5 // pred_region
        %s569 = ssub.s32 %s27, 1
        %s570 = sand.u32 %s61, 1
        %s571 = sand.u32 %s61, 1
        %s572 = smul.addr %s571, 128
        %s573 = scalar_lea.vmem [#allocation2], %s572
        // Predicated region
        $region96: #{inception_a.1} parent=94 // pred_check
          %p574 = pneg %p74
        $region97: #{inception_a.1} parent=94 // pred_check_branch
          %576 = sbr.rel (%p574) target = $region99
        $region98: #{inception_a.1} parent=94 // pred_region
          _
        $region99: #{inception_a.1} parent=94 // pred_fallthru
          _
        // Predicated region
        $region100: #{inception_a.1} parent=94 // pred_check
          %p577 = pneg %p95
        $region101: #{inception_a.1} parent=94 // pred_check_branch
          %579 = sbr.rel (%p577) target = $region103
        $region102: #{inception_a.1} parent=94 // pred_region
          %580 = dma.done [#allocation4], 16
        $region103: #{inception_a.1} parent=94 // pred_fallthru
          _
        // Predicated region
        $region104: #{inception_a.1} parent=94 // pred_check
          %p581 = pneg %p116
        $region105: #{inception_a.1} parent=94 // pred_check_branch
          %583 = sbr.rel (%p581) target = $region107
        $region106: #{inception_a.1} parent=94 // pred_region
          %584 = dma.done [#allocation6], 16
        $region107: #{inception_a.1} parent=94 // pred_fallthru
          _
        // Predicated region
        $region108: #{inception_a.1} parent=94 // pred_check
          %p585 = pneg %p137
        $region109: #{inception_a.1} parent=94 // pred_check_branch
          %587 = sbr.rel (%p585) target = $region111
        $region110: #{inception_a.1} parent=94 // pred_region
          %588 = dma.done [#allocation6], 16
        $region111: #{inception_a.1} parent=94 // pred_fallthru
          _
        // Predicated region
        $region112: #{inception_a.1} parent=94 // pred_check
          %p589 = pneg %p158
        $region113: #{inception_a.1} parent=94 // pred_check_branch
          %591 = sbr.rel (%p589) target = $region115
        $region114: #{inception_a.1} parent=94 // pred_region
          %592 = dma.done [#allocation9], 16
        $region115: #{inception_a.1} parent=94 // pred_fallthru
          _
        // Predicated region
        $region116: #{inception_a.1} parent=94 // pred_check
          %p593 = pneg %p179
        $region117: #{inception_a.1} parent=94 // pred_check_branch
          %595 = sbr.rel (%p593) target = $region119
        $region118: #{inception_a.1} parent=94 // pred_region
          %596 = dma.done [#allocation9], 16
        $region119: #{inception_a.1} parent=94 // pred_fallthru
          _
        // Predicated region
        $region120: #{inception_a.1} parent=94 // pred_check
          %p597 = pneg %p200
        $region121: #{inception_a.1} parent=94 // pred_check_branch
          %599 = sbr.rel (%p597) target = $region123
        $region122: #{inception_a.1} parent=94 // pred_region
          %600 = dma.done [#allocation12], 16
        $region123: #{inception_a.1} parent=94 // pred_fallthru
          _
        // Predicated region
        $region124: #{inception_a.1} parent=94 // pred_check
          %p601 = pneg %p221
        $region125: #{inception_a.1} parent=94 // pred_check_branch
          %603 = sbr.rel (%p601) target = $region127
        $region126: #{inception_a.1} parent=94 // pred_region
          %604 = dma.done [#allocation12], 16
        $region127: #{inception_a.1} parent=94 // pred_fallthru
          _
        // Predicated region
        $region128: #{inception_a.1} parent=94 // pred_check
          %p605 = pneg %p242
        $region129: #{inception_a.1} parent=94 // pred_check_branch
          %607 = sbr.rel (%p605) target = $region131
        $region130: #{inception_a.1} parent=94 // pred_region
          %608 = dma.done [#allocation15], 16
        $region131: #{inception_a.1} parent=94 // pred_fallthru
          _
        // Predicated region
        $region132: #{inception_a.1} parent=94 // pred_check
          %p609 = pneg %p263
        $region133: #{inception_a.1} parent=94 // pred_check_branch
          %611 = sbr.rel (%p609) target = $region135
        $region134: #{inception_a.1} parent=94 // pred_region
          %612 = dma.done [#allocation15], 32
        $region135: #{inception_a.1} parent=94 // pred_fallthru
          _
        // Predicated region
        $region136: #{inception_a.1} parent=94 // pred_check
          %p613 = pneg %p284
        $region137: #{inception_a.1} parent=94 // pred_check_branch
          %615 = sbr.rel (%p613) target = $region139
        $region138: #{inception_a.1} parent=94 // pred_region
          %616 = dma.done [#allocation18], 16
        $region139: #{inception_a.1} parent=94 // pred_fallthru
          _
        // Predicated region
        $region140: #{inception_a.1} parent=94 // pred_check
          %p617 = pneg %p305
        $region141: #{inception_a.1} parent=94 // pred_check_branch
          %619 = sbr.rel (%p617) target = $region143
        $region142: #{inception_a.1} parent=94 // pred_region
          %620 = dma.done [#allocation18], 16
        $region143: #{inception_a.1} parent=94 // pred_fallthru
          _
        // Predicated region
        $region144: #{inception_a.1} parent=94 // pred_check
          %p621 = pneg %p326
        $region145: #{inception_a.1} parent=94 // pred_check_branch
          %623 = sbr.rel (%p621) target = $region147
        $region146: #{inception_a.1} parent=94 // pred_region
          %624 = dma.done [#allocation21], 16
        $region147: #{inception_a.1} parent=94 // pred_fallthru
          _
        %625 = sfence
        %p626 = pneg %p48
        %p627 = pneg %p45
        %s628 = sand.u32 %s61, 1
        %s629 = sand.u32 %s61, 1
        %s630 = smul.addr %s629, 128
        %s631 = scalar_lea.vmem [#allocation2], %s630
        %p632 = pneg %p74
        %p633 = pneg %p71
        %p634 = pneg %p95
        %p635 = pneg %p92
        %p636 = pneg %p116
        %p637 = pneg %p113
        %p638 = pneg %p137
        %p639 = pneg %p134
        %p640 = pneg %p158
        %p641 = pneg %p155
        %p642 = pneg %p179
        %p643 = pneg %p176
        %p644 = pneg %p200
        %p645 = pneg %p197
        %p646 = pneg %p221
        %p647 = pneg %p218
        %p648 = pneg %p242
        %p649 = pneg %p239
        %p650 = pneg %p263
        %p651 = pneg %p260
        %p652 = pneg %p284
        %p653 = pneg %p281
        %p654 = pneg %p305
        %p655 = pneg %p302
        %p656 = pneg %p326
        %p657 = pneg %p323
        %p658 = pneg %p352
        %p659 = pneg %p349
        %s660 = sand.u32 %s339, 1
        %s661 = sand.u32 %s339, 1
        %s662 = smul.addr %s661, 240
        %s663 = scalar_lea.vmem [#allocation22], %s662
        %v664 = vld [vmem:[%s573] sm:$0xff]
        %v665 = vld [vmem:[%s573 + $0x8] sm:$0xff]
        %v666 = vld [vmem:[%s573 + $0x10] sm:$0xff]
        %v667 = vld [vmem:[%s573 + $0x18] sm:$0xff]
        %s668 = scalar_lea.vmem %s573, 32 [#allocation2]
        %v669 = vld [vmem:[%s668] sm:$0xff]
        %v670 = vld [vmem:[%s668 + $0x8] sm:$0xff]
        %v671 = vld [vmem:[%s668 + $0x10] sm:$0xff]
        %v672 = vld [vmem:[%s668 + $0x18] sm:$0xff]
        %s673 = scalar_lea.vmem %s573, 64 [#allocation2]
        %v674 = vld [vmem:[%s673] sm:$0xff]
        %v675 = vld [vmem:[%s673 + $0x8] sm:$0xff]
        %v676 = vld [vmem:[%s673 + $0x10] sm:$0xff]
        %v677 = vld [vmem:[%s673 + $0x18] sm:$0xff]
        %s678 = scalar_lea.vmem %s573, 96 [#allocation2]
        %v679 = vld [vmem:[%s678] sm:$0xff]
        %v680 = vld [vmem:[%s678 + $0x8] sm:$0xff]
        %v681 = vld [vmem:[%s678 + $0x10] sm:$0xff]
        %v682 = vld [vmem:[%s678 + $0x18] sm:$0xff]
        %v683 = vld [vmem:[%s0] sm:$0xf]
        %s684 = sld [smem:[#allocation5]]
        %v685 = vstv %s684
        %v686 = vadd.f32 %v685, 0.0
        %s687 = sld [smem:[#allocation3]]
        %v688 = vstv %s687
        %v689 = vmul.f32 %v688, %v664
        %v690 = vmul.f32 %v688, %v665
        %v691 = vmul.f32 %v688, %v666
        %v692 = vadd.f32 %v686, %v689
        %v693 = vadd.f32 %v686, %v690
        %v694 = vadd.f32 %v686, %v691
        %s695 = sld [smem:[#allocation3 + $0x1]]
        %v696 = vstv %s695
        %v697 = vmul.f32 %v696, %v669
        %v698 = vmul.f32 %v696, %v670
        %v699 = vmul.f32 %v696, %v671
        %v700 = vadd.f32 %v692, %v697
        %v701 = vadd.f32 %v693, %v698
        %v702 = vadd.f32 %v694, %v699
        %s703 = sld [smem:[#allocation3 + $0x2]]
        %v704 = vstv %s703
        %v705 = vmul.f32 %v704, %v674
        %v706 = vmul.f32 %v704, %v675
        %v707 = vmul.f32 %v704, %v676
        %v708 = vadd.f32 %v700, %v705
        %v709 = vadd.f32 %v701, %v706
        %v710 = vadd.f32 %v702, %v707
        %s711 = sld [smem:[#allocation3 + $0x3]]
        %v712 = vstv %s711
        %v713 = vmul.f32 %v712, %v679
        %v714 = vmul.f32 %v712, %v680
        %v715 = vmul.f32 %v712, %v681
        %v716 = vadd.f32 %v708, %v713
        %v717 = vadd.f32 %v709, %v714
        %v718 = vadd.f32 %v710, %v715
        %722 = vrot.lane.b32.xlu0 %v716, 86
        %v723 = vpop.permute.xlu0 %722
        %724 = vrot.lane.b32.xlu0 %v717, 86
        %v725 = vpop.permute.xlu0 %724
        %726 = vrot.lane.b32.xlu0 %v718, 86
        %v727 = vpop.permute.xlu0 %726
        %vm728 = vcmask 703488
        %v729 = vsel %vm728, %v723, %v725
        %v730 = vsel %vm728, %v725, %v727
        %734 = vst [vmem:[%s663] sm:$0xff] %v729
        %735 = vst [vmem:[%s663 + $0x8] sm:$0xff] %v730
        %vm736 = vcmask 490496
        %737 = vst.msk [vmem:[%s663 + $0x10] sm:$0xff] %vm736, %v727
        %s738 = sld [smem:[#allocation5 + $0x1]]
        %v739 = vstv %s738
        %v740 = vadd.f32 %v739, 0.0
        %s741 = sld [smem:[#allocation3 + $0x4]]
        %v742 = vstv %s741
        %v743 = vmul.f32 %v742, %v664
        %v744 = vmul.f32 %v742, %v665
        %v745 = vmul.f32 %v742, %v666
        %v746 = vadd.f32 %v740, %v743
        %v747 = vadd.f32 %v740, %v744
        %v748 = vadd.f32 %v740, %v745
        %s749 = sld [smem:[#allocation3 + $0x5]]
        %v750 = vstv %s749
        %v751 = vmul.f32 %v750, %v669
        %v752 = vmul.f32 %v750, %v670
        %v753 = vmul.f32 %v750, %v671
        %v754 = vadd.f32 %v746, %v751
        %v755 = vadd.f32 %v747, %v752
        %v756 = vadd.f32 %v748, %v753
        %s757 = sld [smem:[#allocation3 + $0x6]]
        %v758 = vstv %s757
        %v759 = vmul.f32 %v758, %v674
        %v760 = vmul.f32 %v758, %v675
        %v761 = vmul.f32 %v758, %v676
        %v762 = vadd.f32 %v754, %v759
        %v763 = vadd.f32 %v755, %v760
        %v764 = vadd.f32 %v756, %v761
        %s765 = sld [smem:[#allocation3 + $0x7]]
        %v766 = vstv %s765
        %v767 = vmul.f32 %v766, %v679
        %v768 = vmul.f32 %v766, %v680
        %v769 = vmul.f32 %v766, %v681
        %v770 = vadd.f32 %v762, %v767
        %v771 = vadd.f32 %v763, %v768
        %v772 = vadd.f32 %v764, %v769
        %776 = vrot.lane.b32.xlu0 %v770, 86
        %v777 = vpop.permute.xlu0 %776
        %778 = vrot.lane.b32.xlu0 %v771, 86
        %v779 = vpop.permute.xlu0 %778
        %780 = vrot.lane.b32.xlu0 %v772, 86
        %v781 = vpop.permute.xlu0 %780
        %v782 = vsel %vm728, %v777, %v779
        %v783 = vsel %vm728, %v779, %v781
        %s787 = scalar_lea.vmem %s663, 24 [#allocation22]
        %788 = vst [vmem:[%s787] sm:$0xff] %v782
        %789 = vst [vmem:[%s787 + $0x8] sm:$0xff] %v783
        %790 = vst.msk [vmem:[%s787 + $0x10] sm:$0xff] %vm736, %v781
        %s791 = sld [smem:[#allocation20]]
        %v792 = vstv %s791
        %v793 = vadd.f32 %v792, 0.0
        %s794 = sld [smem:[#allocation19]]
        %v795 = vstv %s794
        %v796 = vmul.f32 %v795, %v664
        %v797 = vmul.f32 %v795, %v665
        %v798 = vmul.f32 %v795, %v666
        %v799 = vadd.f32 %v793, %v796
        %v800 = vadd.f32 %v793, %v797
        %v801 = vadd.f32 %v793, %v798
        %s802 = sld [smem:[#allocation19 + $0x1]]
        %v803 = vstv %s802
        %v804 = vmul.f32 %v803, %v669
        %v805 = vmul.f32 %v803, %v670
        %v806 = vmul.f32 %v803, %v671
        %v807 = vadd.f32 %v799, %v804
        %v808 = vadd.f32 %v800, %v805
        %v809 = vadd.f32 %v801, %v806
        %s810 = sld [smem:[#allocation19 + $0x2]]
        %v811 = vstv %s810
        %v812 = vmul.f32 %v811, %v674
        %v813 = vmul.f32 %v811, %v675
        %v814 = vmul.f32 %v811, %v676
        %v815 = vadd.f32 %v807, %v812
        %v816 = vadd.f32 %v808, %v813
        %v817 = vadd.f32 %v809, %v814
        %s818 = sld [smem:[#allocation19 + $0x3]]
        %v819 = vstv %s818
        %v820 = vmul.f32 %v819, %v679
        %v821 = vmul.f32 %v819, %v680
        %v822 = vmul.f32 %v819, %v681
        %v823 = vadd.f32 %v815, %v820
        %v824 = vadd.f32 %v816, %v821
        %v825 = vadd.f32 %v817, %v822
        %829 = vrot.lane.b32.xlu0 %v823, 21
        %v830 = vpop.permute.xlu0 %829
        %831 = vrot.lane.b32.xlu0 %v824, 21
        %v832 = vpop.permute.xlu0 %831
        %833 = vrot.lane.b32.xlu0 %v825, 21
        %v834 = vpop.permute.xlu0 %833
        %vm835 = vcmask 171008
        %v836 = vsel %vm835, %v830, %v832
        %v837 = vsel %vm835, %v832, %v834
        %v841 = vmax.f32 %v823, %v830
        %v842 = vmax.f32 %v824, %v836
        %v843 = vmax.f32 %v825, %v837
        %844 = vrot.lane.b32.xlu0 %v823, 20
        %v845 = vpop.permute.xlu0 %844
        %846 = vrot.lane.b32.xlu0 %v824, 20
        %v847 = vpop.permute.xlu0 %846
        %848 = vrot.lane.b32.xlu0 %v825, 20
        %v849 = vpop.permute.xlu0 %848
        %vm850 = vcmask 162816
        %v851 = vsel %vm850, %v845, %v847
        %v852 = vsel %vm850, %v847, %v849
        %v856 = vmax.f32 %v841, %v845
        %v857 = vmax.f32 %v842, %v851
        %v858 = vmax.f32 %v843, %v852
        %859 = vrot.lane.b32.xlu0 %v823, 19
        %v860 = vpop.permute.xlu0 %859
        %861 = vrot.lane.b32.xlu0 %v824, 19
        %v862 = vpop.permute.xlu0 %861
        %863 = vrot.lane.b32.xlu0 %v825, 19
        %v864 = vpop.permute.xlu0 %863
        %vm865 = vcmask 154624
        %v866 = vsel %vm865, %v860, %v862
        %v867 = vsel %vm865, %v862, %v864
        %v871 = vmax.f32 %v856, %v860
        %v872 = vmax.f32 %v857, %v866
        %v873 = vmax.f32 %v858, %v867
        %874 = vrot.lane.b32.xlu0 %v823, 1
        %v875 = vpop.permute.xlu0 %874
        %876 = vrot.lane.b32.xlu0 %v824, 1
        %v877 = vpop.permute.xlu0 %876
        %878 = vrot.lane.b32.xlu0 %v825, 1
        %v879 = vpop.permute.xlu0 %878
        %vm880 = vcmask 7168
        %v881 = vsel %vm880, %v875, %v877
        %v882 = vsel %vm880, %v877, %v879
        %v886 = vmax.f32 %v871, %v875
        %v887 = vmax.f32 %v872, %v881
        %v888 = vmax.f32 %v873, %v882
        %889 = vrot.lane.b32.xlu0 %v823, 127
        %v890 = vpop.permute.xlu0 %889
        %891 = vrot.lane.b32.xlu0 %v824, 127
        %v892 = vpop.permute.xlu0 %891
        %893 = vrot.lane.b32.xlu0 %v825, 127
        %v894 = vpop.permute.xlu0 %893
        %vm895 = vcmask 1039360
        %v896 = vsel %vm895, %v890, %v892
        %v897 = vsel %vm895, %v892, %v894
        %v901 = vmax.f32 %v886, %v896
        %v902 = vmax.f32 %v887, %v897
        %v903 = vmax.f32 %v888, %v894
        %904 = vrot.lane.b32.xlu0 %v823, 109
        %v905 = vpop.permute.xlu0 %904
        %906 = vrot.lane.b32.xlu0 %v824, 109
        %v907 = vpop.permute.xlu0 %906
        %908 = vrot.lane.b32.xlu0 %v825, 109
        %v909 = vpop.permute.xlu0 %908
        %vm910 = vcmask 891904
        %v911 = vsel %vm910, %v905, %v907
        %v912 = vsel %vm910, %v907, %v909
        %v916 = vmax.f32 %v901, %v911
        %v917 = vmax.f32 %v902, %v912
        %v918 = vmax.f32 %v903, %v909
        %919 = vrot.lane.b32.xlu0 %v823, 108
        %v920 = vpop.permute.xlu0 %919
        %921 = vrot.lane.b32.xlu0 %v824, 108
        %v922 = vpop.permute.xlu0 %921
        %923 = vrot.lane.b32.xlu0 %v825, 108
        %v924 = vpop.permute.xlu0 %923
        %vm925 = vcmask 883712
        %v926 = vsel %vm925, %v920, %v922
        %v927 = vsel %vm925, %v922, %v924
        %v931 = vmax.f32 %v916, %v926
        %v932 = vmax.f32 %v917, %v927
        %v933 = vmax.f32 %v918, %v924
        %934 = vrot.lane.b32.xlu0 %v823, 107
        %v935 = vpop.permute.xlu0 %934
        %936 = vrot.lane.b32.xlu0 %v824, 107
        %v937 = vpop.permute.xlu0 %936
        %938 = vrot.lane.b32.xlu0 %v825, 107
        %v939 = vpop.permute.xlu0 %938
        %vm940 = vcmask 875520
        %v941 = vsel %vm940, %v935, %v937
        %v942 = vsel %vm940, %v937, %v939
        %v946 = vmax.f32 %v931, %v941
        %v947 = vmax.f32 %v932, %v942
        %v948 = vmax.f32 %v933, %v939
        %952 = vrot.lane.b32.xlu0 %v946, 86
        %v953 = vpop.permute.xlu0 %952
        %954 = vrot.lane.b32.xlu0 %v947, 86
        %v955 = vpop.permute.xlu0 %954
        %956 = vrot.lane.b32.xlu0 %v948, 86
        %v957 = vpop.permute.xlu0 %956
        %v958 = vsel %vm728, %v953, %v955
        %v959 = vsel %vm728, %v955, %v957
        %s963 = scalar_lea.vmem %s663, 192 [#allocation22]
        %964 = vst [vmem:[%s963] sm:$0xff] %v958
        %965 = vst [vmem:[%s963 + $0x8] sm:$0xff] %v959
        %966 = vst.msk [vmem:[%s963 + $0x10] sm:$0xff] %vm736, %v957
        %s967 = sld [smem:[#allocation20 + $0x1]]
        %v968 = vstv %s967
        %v969 = vadd.f32 %v968, 0.0
        %s970 = sld [smem:[#allocation19 + $0x4]]
        %v971 = vstv %s970
        %v972 = vmul.f32 %v971, %v664
        %v973 = vmul.f32 %v971, %v665
        %v974 = vmul.f32 %v971, %v666
        %v975 = vadd.f32 %v969, %v972
        %v976 = vadd.f32 %v969, %v973
        %v977 = vadd.f32 %v969, %v974
        %s978 = sld [smem:[#allocation19 + $0x5]]
        %v979 = vstv %s978
        %v980 = vmul.f32 %v979, %v669
        %v981 = vmul.f32 %v979, %v670
        %v982 = vmul.f32 %v979, %v671
        %v983 = vadd.f32 %v975, %v980
        %v984 = vadd.f32 %v976, %v981
        %v985 = vadd.f32 %v977, %v982
        %s986 = sld [smem:[#allocation19 + $0x6]]
        %v987 = vstv %s986
        %v988 = vmul.f32 %v987, %v674
        %v989 = vmul.f32 %v987, %v675
        %v990 = vmul.f32 %v987, %v676
        %v991 = vadd.f32 %v983, %v988
        %v992 = vadd.f32 %v984, %v989
        %v993 = vadd.f32 %v985, %v990
        %s994 = sld [smem:[#allocation19 + $0x7]]
        %v995 = vstv %s994
        %v996 = vmul.f32 %v995, %v679
        %v997 = vmul.f32 %v995, %v680
        %v998 = vmul.f32 %v995, %v681
        %v999 = vadd.f32 %v991, %v996
        %v1000 = vadd.f32 %v992, %v997
        %v1001 = vadd.f32 %v993, %v998
        %1005 = vrot.lane.b32.xlu0 %v999, 21
        %v1006 = vpop.permute.xlu0 %1005
        %1007 = vrot.lane.b32.xlu0 %v1000, 21
        %v1008 = vpop.permute.xlu0 %1007
        %1009 = vrot.lane.b32.xlu0 %v1001, 21
        %v1010 = vpop.permute.xlu0 %1009
        %v1011 = vsel %vm835, %v1006, %v1008
        %v1012 = vsel %vm835, %v1008, %v1010
        %v1016 = vmax.f32 %v999, %v1006
        %v1017 = vmax.f32 %v1000, %v1011
        %v1018 = vmax.f32 %v1001, %v1012
        %1019 = vrot.lane.b32.xlu0 %v999, 20
        %v1020 = vpop.permute.xlu0 %1019
        %1021 = vrot.lane.b32.xlu0 %v1000, 20
        %v1022 = vpop.permute.xlu0 %1021
        %1023 = vrot.lane.b32.xlu0 %v1001, 20
        %v1024 = vpop.permute.xlu0 %1023
        %v1025 = vsel %vm850, %v1020, %v1022
        %v1026 = vsel %vm850, %v1022, %v1024
        %v1030 = vmax.f32 %v1016, %v1020
        %v1031 = vmax.f32 %v1017, %v1025
        %v1032 = vmax.f32 %v1018, %v1026
        %1033 = vrot.lane.b32.xlu0 %v999, 19
        %v1034 = vpop.permute.xlu0 %1033
        %1035 = vrot.lane.b32.xlu0 %v1000, 19
        %v1036 = vpop.permute.xlu0 %1035
        %1037 = vrot.lane.b32.xlu0 %v1001, 19
        %v1038 = vpop.permute.xlu0 %1037
        %v1039 = vsel %vm865, %v1034, %v1036
        %v1040 = vsel %vm865, %v1036, %v1038
        %v1044 = vmax.f32 %v1030, %v1034
        %v1045 = vmax.f32 %v1031, %v1039
        %v1046 = vmax.f32 %v1032, %v1040
        %1047 = vrot.lane.b32.xlu0 %v999, 1
        %v1048 = vpop.permute.xlu0 %1047
        %1049 = vrot.lane.b32.xlu0 %v1000, 1
        %v1050 = vpop.permute.xlu0 %1049
        %1051 = vrot.lane.b32.xlu0 %v1001, 1
        %v1052 = vpop.permute.xlu0 %1051
        %v1053 = vsel %vm880, %v1048, %v1050
        %v1054 = vsel %vm880, %v1050, %v1052
        %v1058 = vmax.f32 %v1044, %v1048
        %v1059 = vmax.f32 %v1045, %v1053
        %v1060 = vmax.f32 %v1046, %v1054
        %1061 = vrot.lane.b32.xlu0 %v999, 127
        %v1062 = vpop.permute.xlu0 %1061
        %1063 = vrot.lane.b32.xlu0 %v1000, 127
        %v1064 = vpop.permute.xlu0 %1063
        %1065 = vrot.lane.b32.xlu0 %v1001, 127
        %v1066 = vpop.permute.xlu0 %1065
        %v1067 = vsel %vm895, %v1062, %v1064
        %v1068 = vsel %vm895, %v1064, %v1066
        %v1072 = vmax.f32 %v1058, %v1067
        %v1073 = vmax.f32 %v1059, %v1068
        %v1074 = vmax.f32 %v1060, %v1066
        %1075 = vrot.lane.b32.xlu0 %v999, 109
        %v1076 = vpop.permute.xlu0 %1075
        %1077 = vrot.lane.b32.xlu0 %v1000, 109
        %v1078 = vpop.permute.xlu0 %1077
        %1079 = vrot.lane.b32.xlu0 %v1001, 109
        %v1080 = vpop.permute.xlu0 %1079
        %v1081 = vsel %vm910, %v1076, %v1078
        %v1082 = vsel %vm910, %v1078, %v1080
        %v1086 = vmax.f32 %v1072, %v1081
        %v1087 = vmax.f32 %v1073, %v1082
        %v1088 = vmax.f32 %v1074, %v1080
        %1089 = vrot.lane.b32.xlu0 %v999, 108
        %v1090 = vpop.permute.xlu0 %1089
        %1091 = vrot.lane.b32.xlu0 %v1000, 108
        %v1092 = vpop.permute.xlu0 %1091
        %1093 = vrot.lane.b32.xlu0 %v1001, 108
        %v1094 = vpop.permute.xlu0 %1093
        %v1095 = vsel %vm925, %v1090, %v1092
        %v1096 = vsel %vm925, %v1092, %v1094
        %v1100 = vmax.f32 %v1086, %v1095
        %v1101 = vmax.f32 %v1087, %v1096
        %v1102 = vmax.f32 %v1088, %v1094
        %1103 = vrot.lane.b32.xlu0 %v999, 107
        %v1104 = vpop.permute.xlu0 %1103
        %1105 = vrot.lane.b32.xlu0 %v1000, 107
        %v1106 = vpop.permute.xlu0 %1105
        %1107 = vrot.lane.b32.xlu0 %v1001, 107
        %v1108 = vpop.permute.xlu0 %1107
        %v1109 = vsel %vm940, %v1104, %v1106
        %v1110 = vsel %vm940, %v1106, %v1108
        %v1114 = vmax.f32 %v1100, %v1109
        %v1115 = vmax.f32 %v1101, %v1110
        %v1116 = vmax.f32 %v1102, %v1108
        %1120 = vrot.lane.b32.xlu0 %v1114, 86
        %v1121 = vpop.permute.xlu0 %1120
        %1122 = vrot.lane.b32.xlu0 %v1115, 86
        %v1123 = vpop.permute.xlu0 %1122
        %1124 = vrot.lane.b32.xlu0 %v1116, 86
        %v1125 = vpop.permute.xlu0 %1124
        %v1126 = vsel %vm728, %v1121, %v1123
        %v1127 = vsel %vm728, %v1123, %v1125
        %s1131 = scalar_lea.vmem %s663, 216 [#allocation22]
        %1132 = vst [vmem:[%s1131] sm:$0xff] %v1126
        %1133 = vst [vmem:[%s1131 + $0x8] sm:$0xff] %v1127
        %1134 = vst.msk [vmem:[%s1131 + $0x10] sm:$0xff] %vm736, %v1125
        %s1135 = sld [smem:[#allocation8]]
        %v1136 = vstv %s1135
        %v1137 = vmul.f32 %v683, %v1136
        %s1138 = sld [smem:[#allocation7]]
        %v1139 = vstv %s1138
        %v1140 = vmul.f32 %v1139, %v664
        %v1141 = vmul.f32 %v1139, %v665
        %v1142 = vmul.f32 %v1139, %v666
        %v1144 = vlaneseq
        %v1145 = vshrl.u32 %v1144, 7
        %v1146 = vsub.s32 0, %v1145
        %v1147 = vrot.slane %v1137, %v1146
        %v1148 = vlaneseq
        %v1149 = vshrl.u32 %v1148, 7
        %v1150 = vsub.s32 1, %v1149
        %v1151 = vrot.slane %v1137, %v1150
        %v1152 = vlaneseq
        %v1153 = vshrl.u32 %v1152, 7
        %v1154 = vsub.s32 2, %v1153
        %v1155 = vrot.slane %v1137, %v1154
        %v1159 = vadd.f32 %v1147, %v1140
        %v1160 = vadd.f32 %v1151, %v1141
        %v1161 = vadd.f32 %v1155, %v1142
        %s1162 = sld [smem:[#allocation7 + $0x1]]
        %v1163 = vstv %s1162
        %v1164 = vmul.f32 %v1163, %v669
        %v1165 = vmul.f32 %v1163, %v670
        %v1166 = vmul.f32 %v1163, %v671
        %v1167 = vadd.f32 %v1159, %v1164
        %v1168 = vadd.f32 %v1160, %v1165
        %v1169 = vadd.f32 %v1161, %v1166
        %s1170 = sld [smem:[#allocation7 + $0x2]]
        %v1171 = vstv %s1170
        %v1172 = vmul.f32 %v1171, %v674
        %v1173 = vmul.f32 %v1171, %v675
        %v1174 = vmul.f32 %v1171, %v676
        %v1175 = vadd.f32 %v1167, %v1172
        %v1176 = vadd.f32 %v1168, %v1173
        %v1177 = vadd.f32 %v1169, %v1174
        %s1178 = sld [smem:[#allocation7 + $0x3]]
        %v1179 = vstv %s1178
        %v1180 = vmul.f32 %v1179, %v679
        %v1181 = vmul.f32 %v1179, %v680
        %v1182 = vmul.f32 %v1179, %v681
        %v1183 = vadd.f32 %v1175, %v1180
        %v1184 = vadd.f32 %v1176, %v1181
        %v1185 = vadd.f32 %v1177, %v1182
        %s1186 = sld [smem:[#allocation8 + $0x1]]
        %v1187 = vstv %s1186
        %v1188 = vmul.f32 %v683, %v1187
        %s1189 = sld [smem:[#allocation7 + $0x4]]
        %v1190 = vstv %s1189
        %v1191 = vmul.f32 %v1190, %v664
        %v1192 = vmul.f32 %v1190, %v665
        %v1193 = vmul.f32 %v1190, %v666
        %v1195 = vlaneseq
        %v1196 = vshrl.u32 %v1195, 7
        %v1197 = vsub.s32 0, %v1196
        %v1198 = vrot.slane %v1188, %v1197
        %v1199 = vlaneseq
        %v1200 = vshrl.u32 %v1199, 7
        %v1201 = vsub.s32 1, %v1200
        %v1202 = vrot.slane %v1188, %v1201
        %v1203 = vlaneseq
        %v1204 = vshrl.u32 %v1203, 7
        %v1205 = vsub.s32 2, %v1204
        %v1206 = vrot.slane %v1188, %v1205
        %v1210 = vadd.f32 %v1198, %v1191
        %v1211 = vadd.f32 %v1202, %v1192
        %v1212 = vadd.f32 %v1206, %v1193
        %s1213 = sld [smem:[#allocation7 + $0x5]]
        %v1214 = vstv %s1213
        %v1215 = vmul.f32 %v1214, %v669
        %v1216 = vmul.f32 %v1214, %v670
        %v1217 = vmul.f32 %v1214, %v671
        %v1218 = vadd.f32 %v1210, %v1215
        %v1219 = vadd.f32 %v1211, %v1216
        %v1220 = vadd.f32 %v1212, %v1217
        %s1221 = sld [smem:[#allocation7 + $0x6]]
        %v1222 = vstv %s1221
        %v1223 = vmul.f32 %v1222, %v674
        %v1224 = vmul.f32 %v1222, %v675
        %v1225 = vmul.f32 %v1222, %v676
        %v1226 = vadd.f32 %v1218, %v1223
        %v1227 = vadd.f32 %v1219, %v1224
        %v1228 = vadd.f32 %v1220, %v1225
        %s1229 = sld [smem:[#allocation7 + $0x7]]
        %v1230 = vstv %s1229
        %v1231 = vmul.f32 %v1230, %v679
        %v1232 = vmul.f32 %v1230, %v680
        %v1233 = vmul.f32 %v1230, %v681
        %v1234 = vadd.f32 %v1226, %v1231
        %v1235 = vadd.f32 %v1227, %v1232
        %v1236 = vadd.f32 %v1228, %v1233
        %s1237 = sld [smem:[#allocation11]]
        %v1238 = vstv %s1237
        %v1239 = vadd.f32 %v1238, 0.0
        %s1240 = sld [smem:[#allocation11 + $0x1]]
        %v1241 = vstv %s1240
        %v1242 = vadd.f32 %v1241, 0.0
        %s1243 = sld [smem:[#allocation11 + $0x2]]
        %v1244 = vstv %s1243
        %v1245 = vadd.f32 %v1244, 0.0
        %s1246 = sld [smem:[#allocation10]]
        %v1247 = vstv %s1246
        %v1248 = vmul.f32 %v1247, %v1183
        %v1249 = vmul.f32 %v1247, %v1184
        %v1250 = vmul.f32 %v1247, %v1185
        %v1251 = vadd.f32 %v1239, %v1248
        %v1252 = vadd.f32 %v1239, %v1249
        %v1253 = vadd.f32 %v1239, %v1250
        %s1254 = sld [smem:[#allocation10 + $0x12]]
        %v1255 = vstv %s1254
        %v1256 = vmul.f32 %v1255, %v1183
        %v1257 = vmul.f32 %v1255, %v1184
        %v1258 = vmul.f32 %v1255, %v1185
        %v1259 = vadd.f32 %v1242, %v1256
        %v1260 = vadd.f32 %v1242, %v1257
        %v1261 = vadd.f32 %v1242, %v1258
        %s1262 = sld [smem:[#allocation10 + $0x24]]
        %v1263 = vstv %s1262
        %v1264 = vmul.f32 %v1263, %v1183
        %v1265 = vmul.f32 %v1263, %v1184
        %v1266 = vmul.f32 %v1263, %v1185
        %v1267 = vadd.f32 %v1245, %v1264
        %v1268 = vadd.f32 %v1245, %v1265
        %v1269 = vadd.f32 %v1245, %v1266
        %s1270 = sld [smem:[#allocation10 + $0x9]]
        %v1271 = vstv %s1270
        %v1272 = vmul.f32 %v1271, %v1234
        %v1273 = vmul.f32 %v1271, %v1235
        %v1274 = vmul.f32 %v1271, %v1236
        %v1275 = vadd.f32 %v1251, %v1272
        %v1276 = vadd.f32 %v1252, %v1273
        %v1277 = vadd.f32 %v1253, %v1274
        %s1278 = sld [smem:[#allocation10 + $0x1b]]
        %v1279 = vstv %s1278
        %v1280 = vmul.f32 %v1279, %v1234
        %v1281 = vmul.f32 %v1279, %v1235
        %v1282 = vmul.f32 %v1279, %v1236
        %v1283 = vadd.f32 %v1259, %v1280
        %v1284 = vadd.f32 %v1260, %v1281
        %v1285 = vadd.f32 %v1261, %v1282
        %s1286 = sld [smem:[#allocation10 + $0x2d]]
        %v1287 = vstv %s1286
        %v1288 = vmul.f32 %v1287, %v1234
        %v1289 = vmul.f32 %v1287, %v1235
        %v1290 = vmul.f32 %v1287, %v1236
        %v1291 = vadd.f32 %v1267, %v1288
        %v1292 = vadd.f32 %v1268, %v1289
        %v1293 = vadd.f32 %v1269, %v1290
        %s1294 = sld [smem:[#allocation10 + $0x1]]
        %v1295 = vstv %s1294
        %v1296 = vmul.f32 %v1295, %v1183
        %v1297 = vmul.f32 %v1295, %v1184
        %v1298 = vmul.f32 %v1295, %v1185
        %1302 = vrot.lane.b32.xlu0 %v1296, 127
        %v1303 = vpop.permute.xlu0 %1302
        %1304 = vrot.lane.b32.xlu0 %v1297, 127
        %v1305 = vpop.permute.xlu0 %1304
        %1306 = vrot.lane.b32.xlu0 %v1298, 127
        %v1307 = vpop.permute.xlu0 %1306
        %v1308 = vsel %vm895, %v1303, %v1305
        %v1309 = vsel %vm895, %v1305, %v1307
        %v1313 = vadd.f32 %v1275, %v1308
        %v1314 = vadd.f32 %v1276, %v1309
        %v1315 = vadd.f32 %v1277, %v1307
        %s1316 = sld [smem:[#allocation10 + $0x13]]
        %v1317 = vstv %s1316
        %v1318 = vmul.f32 %v1317, %v1183
        %v1319 = vmul.f32 %v1317, %v1184
        %v1320 = vmul.f32 %v1317, %v1185
        %1324 = vrot.lane.b32.xlu0 %v1318, 127
        %v1325 = vpop.permute.xlu0 %1324
        %1326 = vrot.lane.b32.xlu0 %v1319, 127
        %v1327 = vpop.permute.xlu0 %1326
        %1328 = vrot.lane.b32.xlu0 %v1320, 127
        %v1329 = vpop.permute.xlu0 %1328
        %v1330 = vsel %vm895, %v1325, %v1327
        %v1331 = vsel %vm895, %v1327, %v1329
        %v1335 = vadd.f32 %v1283, %v1330
        %v1336 = vadd.f32 %v1284, %v1331
        %v1337 = vadd.f32 %v1285, %v1329
        %s1338 = sld [smem:[#allocation10 + $0x25]]
        %v1339 = vstv %s1338
        %v1340 = vmul.f32 %v1339, %v1183
        %v1341 = vmul.f32 %v1339, %v1184
        %v1342 = vmul.f32 %v1339, %v1185
        %1346 = vrot.lane.b32.xlu0 %v1340, 127
        %v1347 = vpop.permute.xlu0 %1346
        %1348 = vrot.lane.b32.xlu0 %v1341, 127
        %v1349 = vpop.permute.xlu0 %1348
        %1350 = vrot.lane.b32.xlu0 %v1342, 127
        %v1351 = vpop.permute.xlu0 %1350
        %v1352 = vsel %vm895, %v1347, %v1349
        %v1353 = vsel %vm895, %v1349, %v1351
        %v1357 = vadd.f32 %v1291, %v1352
        %v1358 = vadd.f32 %v1292, %v1353
        %v1359 = vadd.f32 %v1293, %v1351
        %s1360 = sld [smem:[#allocation10 + $0xa]]
        %v1361 = vstv %s1360
        %v1362 = vmul.f32 %v1361, %v1234
        %v1363 = vmul.f32 %v1361, %v1235
        %v1364 = vmul.f32 %v1361, %v1236
        %1368 = vrot.lane.b32.xlu0 %v1362, 127
        %v1369 = vpop.permute.xlu0 %1368
        %1370 = vrot.lane.b32.xlu0 %v1363, 127
        %v1371 = vpop.permute.xlu0 %1370
        %1372 = vrot.lane.b32.xlu0 %v1364, 127
        %v1373 = vpop.permute.xlu0 %1372
        %v1374 = vsel %vm895, %v1369, %v1371
        %v1375 = vsel %vm895, %v1371, %v1373
        %v1379 = vadd.f32 %v1313, %v1374
        %v1380 = vadd.f32 %v1314, %v1375
        %v1381 = vadd.f32 %v1315, %v1373
        %s1382 = sld [smem:[#allocation10 + $0x1c]]
        %v1383 = vstv %s1382
        %v1384 = vmul.f32 %v1383, %v1234
        %v1385 = vmul.f32 %v1383, %v1235
        %v1386 = vmul.f32 %v1383, %v1236
        %1390 = vrot.lane.b32.xlu0 %v1384, 127
        %v1391 = vpop.permute.xlu0 %1390
        %1392 = vrot.lane.b32.xlu0 %v1385, 127
        %v1393 = vpop.permute.xlu0 %1392
        %1394 = vrot.lane.b32.xlu0 %v1386, 127
        %v1395 = vpop.permute.xlu0 %1394
        %v1396 = vsel %vm895, %v1391, %v1393
        %v1397 = vsel %vm895, %v1393, %v1395
        %v1401 = vadd.f32 %v1335, %v1396
        %v1402 = vadd.f32 %v1336, %v1397
        %v1403 = vadd.f32 %v1337, %v1395
        %s1404 = sld [smem:[#allocation10 + $0x2e]]
        %v1405 = vstv %s1404
        %v1406 = vmul.f32 %v1405, %v1234
        %v1407 = vmul.f32 %v1405, %v1235
        %v1408 = vmul.f32 %v1405, %v1236
        %1412 = vrot.lane.b32.xlu0 %v1406, 127
        %v1413 = vpop.permute.xlu0 %1412
        %1414 = vrot.lane.b32.xlu0 %v1407, 127
        %v1415 = vpop.permute.xlu0 %1414
        %1416 = vrot.lane.b32.xlu0 %v1408, 127
        %v1417 = vpop.permute.xlu0 %1416
        %v1418 = vsel %vm895, %v1413, %v1415
        %v1419 = vsel %vm895, %v1415, %v1417
        %v1423 = vadd.f32 %v1357, %v1418
        %v1424 = vadd.f32 %v1358, %v1419
        %v1425 = vadd.f32 %v1359, %v1417
        %s1426 = sld [smem:[#allocation10 + $0x2]]
        %v1427 = vstv %s1426
        %v1428 = vmul.f32 %v1427, %v1183
        %v1429 = vmul.f32 %v1427, %v1184
        %v1430 = vmul.f32 %v1427, %v1185
        %1434 = vrot.lane.b32.xlu0 %v1428, 126
        %v1435 = vpop.permute.xlu0 %1434
        %1436 = vrot.lane.b32.xlu0 %v1429, 126
        %v1437 = vpop.permute.xlu0 %1436
        %1438 = vrot.lane.b32.xlu0 %v1430, 126
        %v1439 = vpop.permute.xlu0 %1438
        %vm1440 = vcmask 1031168
        %v1441 = vsel %vm1440, %v1435, %v1437
        %v1442 = vsel %vm1440, %v1437, %v1439
        %v1446 = vadd.f32 %v1379, %v1441
        %v1447 = vadd.f32 %v1380, %v1442
        %v1448 = vadd.f32 %v1381, %v1439
        %s1449 = sld [smem:[#allocation10 + $0x14]]
        %v1450 = vstv %s1449
        %v1451 = vmul.f32 %v1450, %v1183
        %v1452 = vmul.f32 %v1450, %v1184
        %v1453 = vmul.f32 %v1450, %v1185
        %1457 = vrot.lane.b32.xlu0 %v1451, 126
        %v1458 = vpop.permute.xlu0 %1457
        %1459 = vrot.lane.b32.xlu0 %v1452, 126
        %v1460 = vpop.permute.xlu0 %1459
        %1461 = vrot.lane.b32.xlu0 %v1453, 126
        %v1462 = vpop.permute.xlu0 %1461
        %v1463 = vsel %vm1440, %v1458, %v1460
        %v1464 = vsel %vm1440, %v1460, %v1462
        %v1468 = vadd.f32 %v1401, %v1463
        %v1469 = vadd.f32 %v1402, %v1464
        %v1470 = vadd.f32 %v1403, %v1462
        %s1471 = sld [smem:[#allocation10 + $0x26]]
        %v1472 = vstv %s1471
        %v1473 = vmul.f32 %v1472, %v1183
        %v1474 = vmul.f32 %v1472, %v1184
        %v1475 = vmul.f32 %v1472, %v1185
        %1479 = vrot.lane.b32.xlu0 %v1473, 126
        %v1480 = vpop.permute.xlu0 %1479
        %1481 = vrot.lane.b32.xlu0 %v1474, 126
        %v1482 = vpop.permute.xlu0 %1481
        %1483 = vrot.lane.b32.xlu0 %v1475, 126
        %v1484 = vpop.permute.xlu0 %1483
        %v1485 = vsel %vm1440, %v1480, %v1482
        %v1486 = vsel %vm1440, %v1482, %v1484
        %v1490 = vadd.f32 %v1423, %v1485
        %v1491 = vadd.f32 %v1424, %v1486
        %v1492 = vadd.f32 %v1425, %v1484
        %s1493 = sld [smem:[#allocation10 + $0xb]]
        %v1494 = vstv %s1493
        %v1495 = vmul.f32 %v1494, %v1234
        %v1496 = vmul.f32 %v1494, %v1235
        %v1497 = vmul.f32 %v1494, %v1236
        %1501 = vrot.lane.b32.xlu0 %v1495, 126
        %v1502 = vpop.permute.xlu0 %1501
        %1503 = vrot.lane.b32.xlu0 %v1496, 126
        %v1504 = vpop.permute.xlu0 %1503
        %1505 = vrot.lane.b32.xlu0 %v1497, 126
        %v1506 = vpop.permute.xlu0 %1505
        %v1507 = vsel %vm1440, %v1502, %v1504
        %v1508 = vsel %vm1440, %v1504, %v1506
        %v1512 = vadd.f32 %v1446, %v1507
        %v1513 = vadd.f32 %v1447, %v1508
        %v1514 = vadd.f32 %v1448, %v1506
        %s1515 = sld [smem:[#allocation10 + $0x1d]]
        %v1516 = vstv %s1515
        %v1517 = vmul.f32 %v1516, %v1234
        %v1518 = vmul.f32 %v1516, %v1235
        %v1519 = vmul.f32 %v1516, %v1236
        %1523 = vrot.lane.b32.xlu0 %v1517, 126
        %v1524 = vpop.permute.xlu0 %1523
        %1525 = vrot.lane.b32.xlu0 %v1518, 126
        %v1526 = vpop.permute.xlu0 %1525
        %1527 = vrot.lane.b32.xlu0 %v1519, 126
        %v1528 = vpop.permute.xlu0 %1527
        %v1529 = vsel %vm1440, %v1524, %v1526
        %v1530 = vsel %vm1440, %v1526, %v1528
        %v1534 = vadd.f32 %v1468, %v1529
        %v1535 = vadd.f32 %v1469, %v1530
        %v1536 = vadd.f32 %v1470, %v1528
        %s1537 = sld [smem:[#allocation10 + $0x2f]]
        %v1538 = vstv %s1537
        %v1539 = vmul.f32 %v1538, %v1234
        %v1540 = vmul.f32 %v1538, %v1235
        %v1541 = vmul.f32 %v1538, %v1236
        %1545 = vrot.lane.b32.xlu0 %v1539, 126
        %v1546 = vpop.permute.xlu0 %1545
        %1547 = vrot.lane.b32.xlu0 %v1540, 126
        %v1548 = vpop.permute.xlu0 %1547
        %1549 = vrot.lane.b32.xlu0 %v1541, 126
        %v1550 = vpop.permute.xlu0 %1549
        %v1551 = vsel %vm1440, %v1546, %v1548
        %v1552 = vsel %vm1440, %v1548, %v1550
        %v1556 = vadd.f32 %v1490, %v1551
        %v1557 = vadd.f32 %v1491, %v1552
        %v1558 = vadd.f32 %v1492, %v1550
        %s1559 = sld [smem:[#allocation10 + $0x3]]
        %v1560 = vstv %s1559
        %v1561 = vmul.f32 %v1560, %v1183
        %v1562 = vmul.f32 %v1560, %v1184
        %v1563 = vmul.f32 %v1560, %v1185
        %1567 = vrot.lane.b32.xlu0 %v1561, 108
        %v1568 = vpop.permute.xlu0 %1567
        %1569 = vrot.lane.b32.xlu0 %v1562, 108
        %v1570 = vpop.permute.xlu0 %1569
        %1571 = vrot.lane.b32.xlu0 %v1563, 108
        %v1572 = vpop.permute.xlu0 %1571
        %v1573 = vsel %vm925, %v1568, %v1570
        %v1574 = vsel %vm925, %v1570, %v1572
        %v1578 = vadd.f32 %v1512, %v1573
        %v1579 = vadd.f32 %v1513, %v1574
        %v1580 = vadd.f32 %v1514, %v1572
        %s1581 = sld [smem:[#allocation10 + $0x15]]
        %v1582 = vstv %s1581
        %v1583 = vmul.f32 %v1582, %v1183
        %v1584 = vmul.f32 %v1582, %v1184
        %v1585 = vmul.f32 %v1582, %v1185
        %1589 = vrot.lane.b32.xlu0 %v1583, 108
        %v1590 = vpop.permute.xlu0 %1589
        %1591 = vrot.lane.b32.xlu0 %v1584, 108
        %v1592 = vpop.permute.xlu0 %1591
        %1593 = vrot.lane.b32.xlu0 %v1585, 108
        %v1594 = vpop.permute.xlu0 %1593
        %v1595 = vsel %vm925, %v1590, %v1592
        %v1596 = vsel %vm925, %v1592, %v1594
        %v1600 = vadd.f32 %v1534, %v1595
        %v1601 = vadd.f32 %v1535, %v1596
        %v1602 = vadd.f32 %v1536, %v1594
        %s1603 = sld [smem:[#allocation10 + $0x27]]
        %v1604 = vstv %s1603
        %v1605 = vmul.f32 %v1604, %v1183
        %v1606 = vmul.f32 %v1604, %v1184
        %v1607 = vmul.f32 %v1604, %v1185
        %1611 = vrot.lane.b32.xlu0 %v1605, 108
        %v1612 = vpop.permute.xlu0 %1611
        %1613 = vrot.lane.b32.xlu0 %v1606, 108
        %v1614 = vpop.permute.xlu0 %1613
        %1615 = vrot.lane.b32.xlu0 %v1607, 108
        %v1616 = vpop.permute.xlu0 %1615
        %v1617 = vsel %vm925, %v1612, %v1614
        %v1618 = vsel %vm925, %v1614, %v1616
        %v1622 = vadd.f32 %v1556, %v1617
        %v1623 = vadd.f32 %v1557, %v1618
        %v1624 = vadd.f32 %v1558, %v1616
        %s1625 = sld [smem:[#allocation10 + $0xc]]
        %v1626 = vstv %s1625
        %v1627 = vmul.f32 %v1626, %v1234
        %v1628 = vmul.f32 %v1626, %v1235
        %v1629 = vmul.f32 %v1626, %v1236
        %1633 = vrot.lane.b32.xlu0 %v1627, 108
        %v1634 = vpop.permute.xlu0 %1633
        %1635 = vrot.lane.b32.xlu0 %v1628, 108
        %v1636 = vpop.permute.xlu0 %1635
        %1637 = vrot.lane.b32.xlu0 %v1629, 108
        %v1638 = vpop.permute.xlu0 %1637
        %v1639 = vsel %vm925, %v1634, %v1636
        %v1640 = vsel %vm925, %v1636, %v1638
        %v1644 = vadd.f32 %v1578, %v1639
        %v1645 = vadd.f32 %v1579, %v1640
        %v1646 = vadd.f32 %v1580, %v1638
        %s1647 = sld [smem:[#allocation10 + $0x1e]]
        %v1648 = vstv %s1647
        %v1649 = vmul.f32 %v1648, %v1234
        %v1650 = vmul.f32 %v1648, %v1235
        %v1651 = vmul.f32 %v1648, %v1236
        %1655 = vrot.lane.b32.xlu0 %v1649, 108
        %v1656 = vpop.permute.xlu0 %1655
        %1657 = vrot.lane.b32.xlu0 %v1650, 108
        %v1658 = vpop.permute.xlu0 %1657
        %1659 = vrot.lane.b32.xlu0 %v1651, 108
        %v1660 = vpop.permute.xlu0 %1659
        %v1661 = vsel %vm925, %v1656, %v1658
        %v1662 = vsel %vm925, %v1658, %v1660
        %v1666 = vadd.f32 %v1600, %v1661
        %v1667 = vadd.f32 %v1601, %v1662
        %v1668 = vadd.f32 %v1602, %v1660
        %s1669 = sld [smem:[#allocation10 + $0x30]]
        %v1670 = vstv %s1669
        %v1671 = vmul.f32 %v1670, %v1234
        %v1672 = vmul.f32 %v1670, %v1235
        %v1673 = vmul.f32 %v1670, %v1236
        %1677 = vrot.lane.b32.xlu0 %v1671, 108
        %v1678 = vpop.permute.xlu0 %1677
        %1679 = vrot.lane.b32.xlu0 %v1672, 108
        %v1680 = vpop.permute.xlu0 %1679
        %1681 = vrot.lane.b32.xlu0 %v1673, 108
        %v1682 = vpop.permute.xlu0 %1681
        %v1683 = vsel %vm925, %v1678, %v1680
        %v1684 = vsel %vm925, %v1680, %v1682
        %v1688 = vadd.f32 %v1622, %v1683
        %v1689 = vadd.f32 %v1623, %v1684
        %v1690 = vadd.f32 %v1624, %v1682
        %s1691 = sld [smem:[#allocation10 + $0x4]]
        %v1692 = vstv %s1691
        %v1693 = vmul.f32 %v1692, %v1183
        %v1694 = vmul.f32 %v1692, %v1184
        %v1695 = vmul.f32 %v1692, %v1185
        %1699 = vrot.lane.b32.xlu0 %v1693, 107
        %v1700 = vpop.permute.xlu0 %1699
        %1701 = vrot.lane.b32.xlu0 %v1694, 107
        %v1702 = vpop.permute.xlu0 %1701
        %1703 = vrot.lane.b32.xlu0 %v1695, 107
        %v1704 = vpop.permute.xlu0 %1703
        %v1705 = vsel %vm940, %v1700, %v1702
        %v1706 = vsel %vm940, %v1702, %v1704
        %v1710 = vadd.f32 %v1644, %v1705
        %v1711 = vadd.f32 %v1645, %v1706
        %v1712 = vadd.f32 %v1646, %v1704
        %s1713 = sld [smem:[#allocation10 + $0x16]]
        %v1714 = vstv %s1713
        %v1715 = vmul.f32 %v1714, %v1183
        %v1716 = vmul.f32 %v1714, %v1184
        %v1717 = vmul.f32 %v1714, %v1185
        %1721 = vrot.lane.b32.xlu0 %v1715, 107
        %v1722 = vpop.permute.xlu0 %1721
        %1723 = vrot.lane.b32.xlu0 %v1716, 107
        %v1724 = vpop.permute.xlu0 %1723
        %1725 = vrot.lane.b32.xlu0 %v1717, 107
        %v1726 = vpop.permute.xlu0 %1725
        %v1727 = vsel %vm940, %v1722, %v1724
        %v1728 = vsel %vm940, %v1724, %v1726
        %v1732 = vadd.f32 %v1666, %v1727
        %v1733 = vadd.f32 %v1667, %v1728
        %v1734 = vadd.f32 %v1668, %v1726
        %s1735 = sld [smem:[#allocation10 + $0x28]]
        %v1736 = vstv %s1735
        %v1737 = vmul.f32 %v1736, %v1183
        %v1738 = vmul.f32 %v1736, %v1184
        %v1739 = vmul.f32 %v1736, %v1185
        %1743 = vrot.lane.b32.xlu0 %v1737, 107
        %v1744 = vpop.permute.xlu0 %1743
        %1745 = vrot.lane.b32.xlu0 %v1738, 107
        %v1746 = vpop.permute.xlu0 %1745
        %1747 = vrot.lane.b32.xlu0 %v1739, 107
        %v1748 = vpop.permute.xlu0 %1747
        %v1749 = vsel %vm940, %v1744, %v1746
        %v1750 = vsel %vm940, %v1746, %v1748
        %v1754 = vadd.f32 %v1688, %v1749
        %v1755 = vadd.f32 %v1689, %v1750
        %v1756 = vadd.f32 %v1690, %v1748
        %s1757 = sld [smem:[#allocation10 + $0xd]]
        %v1758 = vstv %s1757
        %v1759 = vmul.f32 %v1758, %v1234
        %v1760 = vmul.f32 %v1758, %v1235
        %v1761 = vmul.f32 %v1758, %v1236
        %1765 = vrot.lane.b32.xlu0 %v1759, 107
        %v1766 = vpop.permute.xlu0 %1765
        %1767 = vrot.lane.b32.xlu0 %v1760, 107
        %v1768 = vpop.permute.xlu0 %1767
        %1769 = vrot.lane.b32.xlu0 %v1761, 107
        %v1770 = vpop.permute.xlu0 %1769
        %v1771 = vsel %vm940, %v1766, %v1768
        %v1772 = vsel %vm940, %v1768, %v1770
        %v1776 = vadd.f32 %v1710, %v1771
        %v1777 = vadd.f32 %v1711, %v1772
        %v1778 = vadd.f32 %v1712, %v1770
        %s1779 = sld [smem:[#allocation10 + $0x1f]]
        %v1780 = vstv %s1779
        %v1781 = vmul.f32 %v1780, %v1234
        %v1782 = vmul.f32 %v1780, %v1235
        %v1783 = vmul.f32 %v1780, %v1236
        %1787 = vrot.lane.b32.xlu0 %v1781, 107
        %v1788 = vpop.permute.xlu0 %1787
        %1789 = vrot.lane.b32.xlu0 %v1782, 107
        %v1790 = vpop.permute.xlu0 %1789
        %1791 = vrot.lane.b32.xlu0 %v1783, 107
        %v1792 = vpop.permute.xlu0 %1791
        %v1793 = vsel %vm940, %v1788, %v1790
        %v1794 = vsel %vm940, %v1790, %v1792
        %v1798 = vadd.f32 %v1732, %v1793
        %v1799 = vadd.f32 %v1733, %v1794
        %v1800 = vadd.f32 %v1734, %v1792
        %s1801 = sld [smem:[#allocation10 + $0x31]]
        %v1802 = vstv %s1801
        %v1803 = vmul.f32 %v1802, %v1234
        %v1804 = vmul.f32 %v1802, %v1235
        %v1805 = vmul.f32 %v1802, %v1236
        %1809 = vrot.lane.b32.xlu0 %v1803, 107
        %v1810 = vpop.permute.xlu0 %1809
        %1811 = vrot.lane.b32.xlu0 %v1804, 107
        %v1812 = vpop.permute.xlu0 %1811
        %1813 = vrot.lane.b32.xlu0 %v1805, 107
        %v1814 = vpop.permute.xlu0 %1813
        %v1815 = vsel %vm940, %v1810, %v1812
        %v1816 = vsel %vm940, %v1812, %v1814
        %v1820 = vadd.f32 %v1754, %v1815
        %v1821 = vadd.f32 %v1755, %v1816
        %v1822 = vadd.f32 %v1756, %v1814
        %s1823 = sld [smem:[#allocation10 + $0x5]]
        %v1824 = vstv %s1823
        %v1825 = vmul.f32 %v1824, %v1183
        %v1826 = vmul.f32 %v1824, %v1184
        %v1827 = vmul.f32 %v1824, %v1185
        %1831 = vrot.lane.b32.xlu0 %v1825, 106
        %v1832 = vpop.permute.xlu0 %1831
        %1833 = vrot.lane.b32.xlu0 %v1826, 106
        %v1834 = vpop.permute.xlu0 %1833
        %1835 = vrot.lane.b32.xlu0 %v1827, 106
        %v1836 = vpop.permute.xlu0 %1835
        %vm1837 = vcmask 867328
        %v1838 = vsel %vm1837, %v1832, %v1834
        %v1839 = vsel %vm1837, %v1834, %v1836
        %v1843 = vadd.f32 %v1776, %v1838
        %v1844 = vadd.f32 %v1777, %v1839
        %v1845 = vadd.f32 %v1778, %v1836
        %s1846 = sld [smem:[#allocation10 + $0x17]]
        %v1847 = vstv %s1846
        %v1848 = vmul.f32 %v1847, %v1183
        %v1849 = vmul.f32 %v1847, %v1184
        %v1850 = vmul.f32 %v1847, %v1185
        %1854 = vrot.lane.b32.xlu0 %v1848, 106
        %v1855 = vpop.permute.xlu0 %1854
        %1856 = vrot.lane.b32.xlu0 %v1849, 106
        %v1857 = vpop.permute.xlu0 %1856
        %1858 = vrot.lane.b32.xlu0 %v1850, 106
        %v1859 = vpop.permute.xlu0 %1858
        %v1860 = vsel %vm1837, %v1855, %v1857
        %v1861 = vsel %vm1837, %v1857, %v1859
        %v1865 = vadd.f32 %v1798, %v1860
        %v1866 = vadd.f32 %v1799, %v1861
        %v1867 = vadd.f32 %v1800, %v1859
        %s1868 = sld [smem:[#allocation10 + $0x29]]
        %v1869 = vstv %s1868
        %v1870 = vmul.f32 %v1869, %v1183
        %v1871 = vmul.f32 %v1869, %v1184
        %v1872 = vmul.f32 %v1869, %v1185
        %1876 = vrot.lane.b32.xlu0 %v1870, 106
        %v1877 = vpop.permute.xlu0 %1876
        %1878 = vrot.lane.b32.xlu0 %v1871, 106
        %v1879 = vpop.permute.xlu0 %1878
        %1880 = vrot.lane.b32.xlu0 %v1872, 106
        %v1881 = vpop.permute.xlu0 %1880
        %v1882 = vsel %vm1837, %v1877, %v1879
        %v1883 = vsel %vm1837, %v1879, %v1881
        %v1887 = vadd.f32 %v1820, %v1882
        %v1888 = vadd.f32 %v1821, %v1883
        %v1889 = vadd.f32 %v1822, %v1881
        %s1890 = sld [smem:[#allocation10 + $0xe]]
        %v1891 = vstv %s1890
        %v1892 = vmul.f32 %v1891, %v1234
        %v1893 = vmul.f32 %v1891, %v1235
        %v1894 = vmul.f32 %v1891, %v1236
        %1898 = vrot.lane.b32.xlu0 %v1892, 106
        %v1899 = vpop.permute.xlu0 %1898
        %1900 = vrot.lane.b32.xlu0 %v1893, 106
        %v1901 = vpop.permute.xlu0 %1900
        %1902 = vrot.lane.b32.xlu0 %v1894, 106
        %v1903 = vpop.permute.xlu0 %1902
        %v1904 = vsel %vm1837, %v1899, %v1901
        %v1905 = vsel %vm1837, %v1901, %v1903
        %v1909 = vadd.f32 %v1843, %v1904
        %v1910 = vadd.f32 %v1844, %v1905
        %v1911 = vadd.f32 %v1845, %v1903
        %s1912 = sld [smem:[#allocation10 + $0x20]]
        %v1913 = vstv %s1912
        %v1914 = vmul.f32 %v1913, %v1234
        %v1915 = vmul.f32 %v1913, %v1235
        %v1916 = vmul.f32 %v1913, %v1236
        %1920 = vrot.lane.b32.xlu0 %v1914, 106
        %v1921 = vpop.permute.xlu0 %1920
        %1922 = vrot.lane.b32.xlu0 %v1915, 106
        %v1923 = vpop.permute.xlu0 %1922
        %1924 = vrot.lane.b32.xlu0 %v1916, 106
        %v1925 = vpop.permute.xlu0 %1924
        %v1926 = vsel %vm1837, %v1921, %v1923
        %v1927 = vsel %vm1837, %v1923, %v1925
        %v1931 = vadd.f32 %v1865, %v1926
        %v1932 = vadd.f32 %v1866, %v1927
        %v1933 = vadd.f32 %v1867, %v1925
        %s1934 = sld [smem:[#allocation10 + $0x32]]
        %v1935 = vstv %s1934
        %v1936 = vmul.f32 %v1935, %v1234
        %v1937 = vmul.f32 %v1935, %v1235
        %v1938 = vmul.f32 %v1935, %v1236
        %1942 = vrot.lane.b32.xlu0 %v1936, 106
        %v1943 = vpop.permute.xlu0 %1942
        %1944 = vrot.lane.b32.xlu0 %v1937, 106
        %v1945 = vpop.permute.xlu0 %1944
        %1946 = vrot.lane.b32.xlu0 %v1938, 106
        %v1947 = vpop.permute.xlu0 %1946
        %v1948 = vsel %vm1837, %v1943, %v1945
        %v1949 = vsel %vm1837, %v1945, %v1947
        %v1953 = vadd.f32 %v1887, %v1948
        %v1954 = vadd.f32 %v1888, %v1949
        %v1955 = vadd.f32 %v1889, %v1947
        %s1956 = sld [smem:[#allocation10 + $0x6]]
        %v1957 = vstv %s1956
        %v1958 = vmul.f32 %v1957, %v1183
        %v1959 = vmul.f32 %v1957, %v1184
        %v1960 = vmul.f32 %v1957, %v1185
        %1964 = vrot.lane.b32.xlu0 %v1958, 88
        %v1965 = vpop.permute.xlu0 %1964
        %1966 = vrot.lane.b32.xlu0 %v1959, 88
        %v1967 = vpop.permute.xlu0 %1966
        %1968 = vrot.lane.b32.xlu0 %v1960, 88
        %v1969 = vpop.permute.xlu0 %1968
        %vm1970 = vcmask 719872
        %v1971 = vsel %vm1970, %v1965, %v1967
        %v1972 = vsel %vm1970, %v1967, %v1969
        %v1976 = vadd.f32 %v1909, %v1971
        %v1977 = vadd.f32 %v1910, %v1972
        %v1978 = vadd.f32 %v1911, %v1969
        %s1979 = sld [smem:[#allocation10 + $0x18]]
        %v1980 = vstv %s1979
        %v1981 = vmul.f32 %v1980, %v1183
        %v1982 = vmul.f32 %v1980, %v1184
        %v1983 = vmul.f32 %v1980, %v1185
        %1987 = vrot.lane.b32.xlu0 %v1981, 88
        %v1988 = vpop.permute.xlu0 %1987
        %1989 = vrot.lane.b32.xlu0 %v1982, 88
        %v1990 = vpop.permute.xlu0 %1989
        %1991 = vrot.lane.b32.xlu0 %v1983, 88
        %v1992 = vpop.permute.xlu0 %1991
        %v1993 = vsel %vm1970, %v1988, %v1990
        %v1994 = vsel %vm1970, %v1990, %v1992
        %v1998 = vadd.f32 %v1931, %v1993
        %v1999 = vadd.f32 %v1932, %v1994
        %v2000 = vadd.f32 %v1933, %v1992
        %s2001 = sld [smem:[#allocation10 + $0x2a]]
        %v2002 = vstv %s2001
        %v2003 = vmul.f32 %v2002, %v1183
        %v2004 = vmul.f32 %v2002, %v1184
        %v2005 = vmul.f32 %v2002, %v1185
        %2009 = vrot.lane.b32.xlu0 %v2003, 88
        %v2010 = vpop.permute.xlu0 %2009
        %2011 = vrot.lane.b32.xlu0 %v2004, 88
        %v2012 = vpop.permute.xlu0 %2011
        %2013 = vrot.lane.b32.xlu0 %v2005, 88
        %v2014 = vpop.permute.xlu0 %2013
        %v2015 = vsel %vm1970, %v2010, %v2012
        %v2016 = vsel %vm1970, %v2012, %v2014
        %v2020 = vadd.f32 %v1953, %v2015
        %v2021 = vadd.f32 %v1954, %v2016
        %v2022 = vadd.f32 %v1955, %v2014
        %s2023 = sld [smem:[#allocation10 + $0xf]]
        %v2024 = vstv %s2023
        %v2025 = vmul.f32 %v2024, %v1234
        %v2026 = vmul.f32 %v2024, %v1235
        %v2027 = vmul.f32 %v2024, %v1236
        %2031 = vrot.lane.b32.xlu0 %v2025, 88
        %v2032 = vpop.permute.xlu0 %2031
        %2033 = vrot.lane.b32.xlu0 %v2026, 88
        %v2034 = vpop.permute.xlu0 %2033
        %2035 = vrot.lane.b32.xlu0 %v2027, 88
        %v2036 = vpop.permute.xlu0 %2035
        %v2037 = vsel %vm1970, %v2032, %v2034
        %v2038 = vsel %vm1970, %v2034, %v2036
        %v2042 = vadd.f32 %v1976, %v2037
        %v2043 = vadd.f32 %v1977, %v2038
        %v2044 = vadd.f32 %v1978, %v2036
        %s2045 = sld [smem:[#allocation10 + $0x21]]
        %v2046 = vstv %s2045
        %v2047 = vmul.f32 %v2046, %v1234
        %v2048 = vmul.f32 %v2046, %v1235
        %v2049 = vmul.f32 %v2046, %v1236
        %2053 = vrot.lane.b32.xlu0 %v2047, 88
        %v2054 = vpop.permute.xlu0 %2053
        %2055 = vrot.lane.b32.xlu0 %v2048, 88
        %v2056 = vpop.permute.xlu0 %2055
        %2057 = vrot.lane.b32.xlu0 %v2049, 88
        %v2058 = vpop.permute.xlu0 %2057
        %v2059 = vsel %vm1970, %v2054, %v2056
        %v2060 = vsel %vm1970, %v2056, %v2058
        %v2064 = vadd.f32 %v1998, %v2059
        %v2065 = vadd.f32 %v1999, %v2060
        %v2066 = vadd.f32 %v2000, %v2058
        %s2067 = sld [smem:[#allocation10 + $0x33]]
        %v2068 = vstv %s2067
        %v2069 = vmul.f32 %v2068, %v1234
        %v2070 = vmul.f32 %v2068, %v1235
        %v2071 = vmul.f32 %v2068, %v1236
        %2075 = vrot.lane.b32.xlu0 %v2069, 88
        %v2076 = vpop.permute.xlu0 %2075
        %2077 = vrot.lane.b32.xlu0 %v2070, 88
        %v2078 = vpop.permute.xlu0 %2077
        %2079 = vrot.lane.b32.xlu0 %v2071, 88
        %v2080 = vpop.permute.xlu0 %2079
        %v2081 = vsel %vm1970, %v2076, %v2078
        %v2082 = vsel %vm1970, %v2078, %v2080
        %v2086 = vadd.f32 %v2020, %v2081
        %v2087 = vadd.f32 %v2021, %v2082
        %v2088 = vadd.f32 %v2022, %v2080
        %s2089 = sld [smem:[#allocation10 + $0x7]]
        %v2090 = vstv %s2089
        %v2091 = vmul.f32 %v2090, %v1183
        %v2092 = vmul.f32 %v2090, %v1184
        %v2093 = vmul.f32 %v2090, %v1185
        %2097 = vrot.lane.b32.xlu0 %v2091, 87
        %v2098 = vpop.permute.xlu0 %2097
        %2099 = vrot.lane.b32.xlu0 %v2092, 87
        %v2100 = vpop.permute.xlu0 %2099
        %2101 = vrot.lane.b32.xlu0 %v2093, 87
        %v2102 = vpop.permute.xlu0 %2101
        %vm2103 = vcmask 711680
        %v2104 = vsel %vm2103, %v2098, %v2100
        %v2105 = vsel %vm2103, %v2100, %v2102
        %v2109 = vadd.f32 %v2042, %v2104
        %v2110 = vadd.f32 %v2043, %v2105
        %v2111 = vadd.f32 %v2044, %v2102
        %s2112 = sld [smem:[#allocation10 + $0x19]]
        %v2113 = vstv %s2112
        %v2114 = vmul.f32 %v2113, %v1183
        %v2115 = vmul.f32 %v2113, %v1184
        %v2116 = vmul.f32 %v2113, %v1185
        %2120 = vrot.lane.b32.xlu0 %v2114, 87
        %v2121 = vpop.permute.xlu0 %2120
        %2122 = vrot.lane.b32.xlu0 %v2115, 87
        %v2123 = vpop.permute.xlu0 %2122
        %2124 = vrot.lane.b32.xlu0 %v2116, 87
        %v2125 = vpop.permute.xlu0 %2124
        %v2126 = vsel %vm2103, %v2121, %v2123
        %v2127 = vsel %vm2103, %v2123, %v2125
        %v2131 = vadd.f32 %v2064, %v2126
        %v2132 = vadd.f32 %v2065, %v2127
        %v2133 = vadd.f32 %v2066, %v2125
        %s2134 = sld [smem:[#allocation10 + $0x2b]]
        %v2135 = vstv %s2134
        %v2136 = vmul.f32 %v2135, %v1183
        %v2137 = vmul.f32 %v2135, %v1184
        %v2138 = vmul.f32 %v2135, %v1185
        %2142 = vrot.lane.b32.xlu0 %v2136, 87
        %v2143 = vpop.permute.xlu0 %2142
        %2144 = vrot.lane.b32.xlu0 %v2137, 87
        %v2145 = vpop.permute.xlu0 %2144
        %2146 = vrot.lane.b32.xlu0 %v2138, 87
        %v2147 = vpop.permute.xlu0 %2146
        %v2148 = vsel %vm2103, %v2143, %v2145
        %v2149 = vsel %vm2103, %v2145, %v2147
        %v2153 = vadd.f32 %v2086, %v2148
        %v2154 = vadd.f32 %v2087, %v2149
        %v2155 = vadd.f32 %v2088, %v2147
        %s2156 = sld [smem:[#allocation10 + $0x10]]
        %v2157 = vstv %s2156
        %v2158 = vmul.f32 %v2157, %v1234
        %v2159 = vmul.f32 %v2157, %v1235
        %v2160 = vmul.f32 %v2157, %v1236
        %2164 = vrot.lane.b32.xlu0 %v2158, 87
        %v2165 = vpop.permute.xlu0 %2164
        %2166 = vrot.lane.b32.xlu0 %v2159, 87
        %v2167 = vpop.permute.xlu0 %2166
        %2168 = vrot.lane.b32.xlu0 %v2160, 87
        %v2169 = vpop.permute.xlu0 %2168
        %v2170 = vsel %vm2103, %v2165, %v2167
        %v2171 = vsel %vm2103, %v2167, %v2169
        %v2175 = vadd.f32 %v2109, %v2170
        %v2176 = vadd.f32 %v2110, %v2171
        %v2177 = vadd.f32 %v2111, %v2169
        %s2178 = sld [smem:[#allocation10 + $0x22]]
        %v2179 = vstv %s2178
        %v2180 = vmul.f32 %v2179, %v1234
        %v2181 = vmul.f32 %v2179, %v1235
        %v2182 = vmul.f32 %v2179, %v1236
        %2186 = vrot.lane.b32.xlu0 %v2180, 87
        %v2187 = vpop.permute.xlu0 %2186
        %2188 = vrot.lane.b32.xlu0 %v2181, 87
        %v2189 = vpop.permute.xlu0 %2188
        %2190 = vrot.lane.b32.xlu0 %v2182, 87
        %v2191 = vpop.permute.xlu0 %2190
        %v2192 = vsel %vm2103, %v2187, %v2189
        %v2193 = vsel %vm2103, %v2189, %v2191
        %v2197 = vadd.f32 %v2131, %v2192
        %v2198 = vadd.f32 %v2132, %v2193
        %v2199 = vadd.f32 %v2133, %v2191
        %s2200 = sld [smem:[#allocation10 + $0x34]]
        %v2201 = vstv %s2200
        %v2202 = vmul.f32 %v2201, %v1234
        %v2203 = vmul.f32 %v2201, %v1235
        %v2204 = vmul.f32 %v2201, %v1236
        %2208 = vrot.lane.b32.xlu0 %v2202, 87
        %v2209 = vpop.permute.xlu0 %2208
        %2210 = vrot.lane.b32.xlu0 %v2203, 87
        %v2211 = vpop.permute.xlu0 %2210
        %2212 = vrot.lane.b32.xlu0 %v2204, 87
        %v2213 = vpop.permute.xlu0 %2212
        %v2214 = vsel %vm2103, %v2209, %v2211
        %v2215 = vsel %vm2103, %v2211, %v2213
        %v2219 = vadd.f32 %v2153, %v2214
        %v2220 = vadd.f32 %v2154, %v2215
        %v2221 = vadd.f32 %v2155, %v2213
        %s2222 = sld [smem:[#allocation10 + $0x8]]
        %v2223 = vstv %s2222
        %v2224 = vmul.f32 %v2223, %v1183
        %v2225 = vmul.f32 %v2223, %v1184
        %v2226 = vmul.f32 %v2223, %v1185
        %2230 = vrot.lane.b32.xlu0 %v2224, 86
        %v2231 = vpop.permute.xlu0 %2230
        %2232 = vrot.lane.b32.xlu0 %v2225, 86
        %v2233 = vpop.permute.xlu0 %2232
        %2234 = vrot.lane.b32.xlu0 %v2226, 86
        %v2235 = vpop.permute.xlu0 %2234
        %v2236 = vsel %vm728, %v2231, %v2233
        %v2237 = vsel %vm728, %v2233, %v2235
        %v2241 = vadd.f32 %v2175, %v2236
        %v2242 = vadd.f32 %v2176, %v2237
        %v2243 = vadd.f32 %v2177, %v2235
        %s2244 = sld [smem:[#allocation10 + $0x1a]]
        %v2245 = vstv %s2244
        %v2246 = vmul.f32 %v2245, %v1183
        %v2247 = vmul.f32 %v2245, %v1184
        %v2248 = vmul.f32 %v2245, %v1185
        %2252 = vrot.lane.b32.xlu0 %v2246, 86
        %v2253 = vpop.permute.xlu0 %2252
        %2254 = vrot.lane.b32.xlu0 %v2247, 86
        %v2255 = vpop.permute.xlu0 %2254
        %2256 = vrot.lane.b32.xlu0 %v2248, 86
        %v2257 = vpop.permute.xlu0 %2256
        %v2258 = vsel %vm728, %v2253, %v2255
        %v2259 = vsel %vm728, %v2255, %v2257
        %v2263 = vadd.f32 %v2197, %v2258
        %v2264 = vadd.f32 %v2198, %v2259
        %v2265 = vadd.f32 %v2199, %v2257
        %s2266 = sld [smem:[#allocation10 + $0x2c]]
        %v2267 = vstv %s2266
        %v2268 = vmul.f32 %v2267, %v1183
        %v2269 = vmul.f32 %v2267, %v1184
        %v2270 = vmul.f32 %v2267, %v1185
        %2274 = vrot.lane.b32.xlu0 %v2268, 86
        %v2275 = vpop.permute.xlu0 %2274
        %2276 = vrot.lane.b32.xlu0 %v2269, 86
        %v2277 = vpop.permute.xlu0 %2276
        %2278 = vrot.lane.b32.xlu0 %v2270, 86
        %v2279 = vpop.permute.xlu0 %2278
        %v2280 = vsel %vm728, %v2275, %v2277
        %v2281 = vsel %vm728, %v2277, %v2279
        %v2285 = vadd.f32 %v2219, %v2280
        %v2286 = vadd.f32 %v2220, %v2281
        %v2287 = vadd.f32 %v2221, %v2279
        %s2288 = sld [smem:[#allocation10 + $0x11]]
        %v2289 = vstv %s2288
        %v2290 = vmul.f32 %v2289, %v1234
        %v2291 = vmul.f32 %v2289, %v1235
        %v2292 = vmul.f32 %v2289, %v1236
        %2296 = vrot.lane.b32.xlu0 %v2290, 86
        %v2297 = vpop.permute.xlu0 %2296
        %2298 = vrot.lane.b32.xlu0 %v2291, 86
        %v2299 = vpop.permute.xlu0 %2298
        %2300 = vrot.lane.b32.xlu0 %v2292, 86
        %v2301 = vpop.permute.xlu0 %2300
        %v2302 = vsel %vm728, %v2297, %v2299
        %v2303 = vsel %vm728, %v2299, %v2301
        %v2307 = vadd.f32 %v2241, %v2302
        %v2308 = vadd.f32 %v2242, %v2303
        %v2309 = vadd.f32 %v2243, %v2301
        %s2310 = sld [smem:[#allocation10 + $0x23]]
        %v2311 = vstv %s2310
        %v2312 = vmul.f32 %v2311, %v1234
        %v2313 = vmul.f32 %v2311, %v1235
        %v2314 = vmul.f32 %v2311, %v1236
        %2318 = vrot.lane.b32.xlu0 %v2312, 86
        %v2319 = vpop.permute.xlu0 %2318
        %2320 = vrot.lane.b32.xlu0 %v2313, 86
        %v2321 = vpop.permute.xlu0 %2320
        %2322 = vrot.lane.b32.xlu0 %v2314, 86
        %v2323 = vpop.permute.xlu0 %2322
        %v2324 = vsel %vm728, %v2319, %v2321
        %v2325 = vsel %vm728, %v2321, %v2323
        %v2329 = vadd.f32 %v2263, %v2324
        %v2330 = vadd.f32 %v2264, %v2325
        %v2331 = vadd.f32 %v2265, %v2323
        %s2332 = sld [smem:[#allocation10 + $0x35]]
        %v2333 = vstv %s2332
        %v2334 = vmul.f32 %v2333, %v1234
        %v2335 = vmul.f32 %v2333, %v1235
        %v2336 = vmul.f32 %v2333, %v1236
        %2340 = vrot.lane.b32.xlu0 %v2334, 86
        %v2341 = vpop.permute.xlu0 %2340
        %2342 = vrot.lane.b32.xlu0 %v2335, 86
        %v2343 = vpop.permute.xlu0 %2342
        %2344 = vrot.lane.b32.xlu0 %v2336, 86
        %v2345 = vpop.permute.xlu0 %2344
        %v2346 = vsel %vm728, %v2341, %v2343
        %v2347 = vsel %vm728, %v2343, %v2345
        %v2351 = vadd.f32 %v2285, %v2346
        %v2352 = vadd.f32 %v2286, %v2347
        %v2353 = vadd.f32 %v2287, %v2345
        %2357 = vrot.lane.b32.xlu0 %v2307, 107
        %v2358 = vpop.permute.xlu0 %2357
        %2359 = vrot.lane.b32.xlu0 %v2308, 107
        %v2360 = vpop.permute.xlu0 %2359
        %2361 = vrot.lane.b32.xlu0 %v2309, 107
        %v2362 = vpop.permute.xlu0 %2361
        %v2363 = vsel %vm940, %v2358, %v2360
        %v2364 = vsel %vm940, %v2360, %v2362
        %s2368 = scalar_lea.vmem %s663, 48 [#allocation22]
        %2369 = vst [vmem:[%s2368] sm:$0xff] %v2363
        %2370 = vst [vmem:[%s2368 + $0x8] sm:$0xff] %v2364
        %2371 = vst.msk [vmem:[%s2368 + $0x10] sm:$0xff] %vm736, %v2362
        %2375 = vrot.lane.b32.xlu0 %v2329, 107
        %v2376 = vpop.permute.xlu0 %2375
        %2377 = vrot.lane.b32.xlu0 %v2330, 107
        %v2378 = vpop.permute.xlu0 %2377
        %2379 = vrot.lane.b32.xlu0 %v2331, 107
        %v2380 = vpop.permute.xlu0 %2379
        %v2381 = vsel %vm940, %v2376, %v2378
        %v2382 = vsel %vm940, %v2378, %v2380
        %s2386 = scalar_lea.vmem %s663, 72 [#allocation22]
        %2387 = vst [vmem:[%s2386] sm:$0xff] %v2381
        %2388 = vst [vmem:[%s2386 + $0x8] sm:$0xff] %v2382
        %2389 = vst.msk [vmem:[%s2386 + $0x10] sm:$0xff] %vm736, %v2380
        %2393 = vrot.lane.b32.xlu0 %v2351, 107
        %v2394 = vpop.permute.xlu0 %2393
        %2395 = vrot.lane.b32.xlu0 %v2352, 107
        %v2396 = vpop.permute.xlu0 %2395
        %2397 = vrot.lane.b32.xlu0 %v2353, 107
        %v2398 = vpop.permute.xlu0 %2397
        %v2399 = vsel %vm940, %v2394, %v2396
        %v2400 = vsel %vm940, %v2396, %v2398
        %s2404 = scalar_lea.vmem %s663, 96 [#allocation22]
        %2405 = vst [vmem:[%s2404] sm:$0xff] %v2399
        %2406 = vst [vmem:[%s2404 + $0x8] sm:$0xff] %v2400
        %2407 = vst.msk [vmem:[%s2404 + $0x10] sm:$0xff] %vm736, %v2398
        %s2408 = sld [smem:[#allocation14]]
        %v2409 = vstv %s2408
        %v2410 = vmul.f32 %v683, %v2409
        %s2411 = sld [smem:[#allocation13]]
        %v2412 = vstv %s2411
        %v2413 = vmul.f32 %v2412, %v664
        %v2414 = vmul.f32 %v2412, %v665
        %v2415 = vmul.f32 %v2412, %v666
        %v2416 = vmul.f32 %v2412, %v667
        %v2418 = vlaneseq
        %v2419 = vshrl.u32 %v2418, 7
        %v2420 = vsub.s32 0, %v2419
        %v2421 = vrot.slane %v2410, %v2420
        %v2422 = vlaneseq
        %v2423 = vshrl.u32 %v2422, 7
        %v2424 = vsub.s32 1, %v2423
        %v2425 = vrot.slane %v2410, %v2424
        %v2426 = vlaneseq
        %v2427 = vshrl.u32 %v2426, 7
        %v2428 = vsub.s32 2, %v2427
        %v2429 = vrot.slane %v2410, %v2428
        %v2430 = vlaneseq
        %v2431 = vshrl.u32 %v2430, 7
        %v2432 = vsub.s32 3, %v2431
        %v2433 = vrot.slane %v2410, %v2432
        %v2438 = vadd.f32 %v2421, %v2413
        %v2439 = vadd.f32 %v2425, %v2414
        %v2440 = vadd.f32 %v2429, %v2415
        %v2441 = vadd.f32 %v2433, %v2416
        %s2442 = sld [smem:[#allocation13 + $0x1]]
        %v2443 = vstv %s2442
        %v2444 = vmul.f32 %v2443, %v669
        %v2445 = vmul.f32 %v2443, %v670
        %v2446 = vmul.f32 %v2443, %v671
        %v2447 = vmul.f32 %v2443, %v672
        %v2448 = vadd.f32 %v2438, %v2444
        %v2449 = vadd.f32 %v2439, %v2445
        %v2450 = vadd.f32 %v2440, %v2446
        %v2451 = vadd.f32 %v2441, %v2447
        %s2452 = sld [smem:[#allocation13 + $0x2]]
        %v2453 = vstv %s2452
        %v2454 = vmul.f32 %v2453, %v674
        %v2455 = vmul.f32 %v2453, %v675
        %v2456 = vmul.f32 %v2453, %v676
        %v2457 = vmul.f32 %v2453, %v677
        %v2458 = vadd.f32 %v2448, %v2454
        %v2459 = vadd.f32 %v2449, %v2455
        %v2460 = vadd.f32 %v2450, %v2456
        %v2461 = vadd.f32 %v2451, %v2457
        %s2462 = sld [smem:[#allocation13 + $0x3]]
        %v2463 = vstv %s2462
        %v2464 = vmul.f32 %v2463, %v679
        %v2465 = vmul.f32 %v2463, %v680
        %v2466 = vmul.f32 %v2463, %v681
        %v2467 = vmul.f32 %v2463, %v682
        %v2468 = vadd.f32 %v2458, %v2464
        %v2469 = vadd.f32 %v2459, %v2465
        %v2470 = vadd.f32 %v2460, %v2466
        %v2471 = vadd.f32 %v2461, %v2467
        %s2472 = sld [smem:[#allocation14 + $0x1]]
        %v2473 = vstv %s2472
        %v2474 = vmul.f32 %v683, %v2473
        %s2475 = sld [smem:[#allocation13 + $0x4]]
        %v2476 = vstv %s2475
        %v2477 = vmul.f32 %v2476, %v664
        %v2478 = vmul.f32 %v2476, %v665
        %v2479 = vmul.f32 %v2476, %v666
        %v2480 = vmul.f32 %v2476, %v667
        %v2482 = vlaneseq
        %v2483 = vshrl.u32 %v2482, 7
        %v2484 = vsub.s32 0, %v2483
        %v2485 = vrot.slane %v2474, %v2484
        %v2486 = vlaneseq
        %v2487 = vshrl.u32 %v2486, 7
        %v2488 = vsub.s32 1, %v2487
        %v2489 = vrot.slane %v2474, %v2488
        %v2490 = vlaneseq
        %v2491 = vshrl.u32 %v2490, 7
        %v2492 = vsub.s32 2, %v2491
        %v2493 = vrot.slane %v2474, %v2492
        %v2494 = vlaneseq
        %v2495 = vshrl.u32 %v2494, 7
        %v2496 = vsub.s32 3, %v2495
        %v2497 = vrot.slane %v2474, %v2496
        %v2502 = vadd.f32 %v2485, %v2477
        %v2503 = vadd.f32 %v2489, %v2478
        %v2504 = vadd.f32 %v2493, %v2479
        %v2505 = vadd.f32 %v2497, %v2480
        %s2506 = sld [smem:[#allocation13 + $0x5]]
        %v2507 = vstv %s2506
        %v2508 = vmul.f32 %v2507, %v669
        %v2509 = vmul.f32 %v2507, %v670
        %v2510 = vmul.f32 %v2507, %v671
        %v2511 = vmul.f32 %v2507, %v672
        %v2512 = vadd.f32 %v2502, %v2508
        %v2513 = vadd.f32 %v2503, %v2509
        %v2514 = vadd.f32 %v2504, %v2510
        %v2515 = vadd.f32 %v2505, %v2511
        %s2516 = sld [smem:[#allocation13 + $0x6]]
        %v2517 = vstv %s2516
        %v2518 = vmul.f32 %v2517, %v674
        %v2519 = vmul.f32 %v2517, %v675
        %v2520 = vmul.f32 %v2517, %v676
        %v2521 = vmul.f32 %v2517, %v677
        %v2522 = vadd.f32 %v2512, %v2518
        %v2523 = vadd.f32 %v2513, %v2519
        %v2524 = vadd.f32 %v2514, %v2520
        %v2525 = vadd.f32 %v2515, %v2521
        %s2526 = sld [smem:[#allocation13 + $0x7]]
        %v2527 = vstv %s2526
        %v2528 = vmul.f32 %v2527, %v679
        %v2529 = vmul.f32 %v2527, %v680
        %v2530 = vmul.f32 %v2527, %v681
        %v2531 = vmul.f32 %v2527, %v682
        %v2532 = vadd.f32 %v2522, %v2528
        %v2533 = vadd.f32 %v2523, %v2529
        %v2534 = vadd.f32 %v2524, %v2530
        %v2535 = vadd.f32 %v2525, %v2531
        %s2536 = sld [smem:[#allocation17]]
        %v2537 = vstv %s2536
        %v2538 = vadd.f32 %v2537, 0.0
        %s2539 = sld [smem:[#allocation17 + $0x1]]
        %v2540 = vstv %s2539
        %v2541 = vadd.f32 %v2540, 0.0
        %s2542 = sld [smem:[#allocation17 + $0x2]]
        %v2543 = vstv %s2542
        %v2544 = vadd.f32 %v2543, 0.0
        %s2545 = sld [smem:[#allocation16]]
        %v2546 = vstv %s2545
        %v2547 = vmul.f32 %v2546, %v2468
        %v2548 = vmul.f32 %v2546, %v2469
        %v2549 = vmul.f32 %v2546, %v2470
        %v2550 = vadd.f32 %v2538, %v2547
        %v2551 = vadd.f32 %v2538, %v2548
        %v2552 = vadd.f32 %v2538, %v2549
        %s2553 = sld [smem:[#allocation16 + $0x32]]
        %v2554 = vstv %s2553
        %v2555 = vmul.f32 %v2554, %v2468
        %v2556 = vmul.f32 %v2554, %v2469
        %v2557 = vmul.f32 %v2554, %v2470
        %v2558 = vadd.f32 %v2541, %v2555
        %v2559 = vadd.f32 %v2541, %v2556
        %v2560 = vadd.f32 %v2541, %v2557
        %s2561 = sld [smem:[#allocation16 + $0x64]]
        %v2562 = vstv %s2561
        %v2563 = vmul.f32 %v2562, %v2468
        %v2564 = vmul.f32 %v2562, %v2469
        %v2565 = vmul.f32 %v2562, %v2470
        %v2566 = vadd.f32 %v2544, %v2563
        %v2567 = vadd.f32 %v2544, %v2564
        %v2568 = vadd.f32 %v2544, %v2565
        %s2569 = sld [smem:[#allocation16 + $0x19]]
        %v2570 = vstv %s2569
        %v2571 = vmul.f32 %v2570, %v2532
        %v2572 = vmul.f32 %v2570, %v2533
        %v2573 = vmul.f32 %v2570, %v2534
        %v2574 = vadd.f32 %v2550, %v2571
        %v2575 = vadd.f32 %v2551, %v2572
        %v2576 = vadd.f32 %v2552, %v2573
        %s2577 = sld [smem:[#allocation16 + $0x4b]]
        %v2578 = vstv %s2577
        %v2579 = vmul.f32 %v2578, %v2532
        %v2580 = vmul.f32 %v2578, %v2533
        %v2581 = vmul.f32 %v2578, %v2534
        %v2582 = vadd.f32 %v2558, %v2579
        %v2583 = vadd.f32 %v2559, %v2580
        %v2584 = vadd.f32 %v2560, %v2581
        %s2585 = sld [smem:[#allocation16 + $0x7d]]
        %v2586 = vstv %s2585
        %v2587 = vmul.f32 %v2586, %v2532
        %v2588 = vmul.f32 %v2586, %v2533
        %v2589 = vmul.f32 %v2586, %v2534
        %v2590 = vadd.f32 %v2566, %v2587
        %v2591 = vadd.f32 %v2567, %v2588
        %v2592 = vadd.f32 %v2568, %v2589
        %s2593 = sld [smem:[#allocation16 + $0x1]]
        %v2594 = vstv %s2593
        %v2595 = vmul.f32 %v2594, %v2468
        %v2596 = vmul.f32 %v2594, %v2469
        %v2597 = vmul.f32 %v2594, %v2470
        %2601 = vrot.lane.b32.xlu0 %v2595, 127
        %v2602 = vpop.permute.xlu0 %2601
        %2603 = vrot.lane.b32.xlu0 %v2596, 127
        %v2604 = vpop.permute.xlu0 %2603
        %2605 = vrot.lane.b32.xlu0 %v2597, 127
        %v2606 = vpop.permute.xlu0 %2605
        %v2607 = vsel %vm895, %v2602, %v2604
        %v2608 = vsel %vm895, %v2604, %v2606
        %v2612 = vadd.f32 %v2574, %v2607
        %v2613 = vadd.f32 %v2575, %v2608
        %v2614 = vadd.f32 %v2576, %v2606
        %s2615 = sld [smem:[#allocation16 + $0x33]]
        %v2616 = vstv %s2615
        %v2617 = vmul.f32 %v2616, %v2468
        %v2618 = vmul.f32 %v2616, %v2469
        %v2619 = vmul.f32 %v2616, %v2470
        %2623 = vrot.lane.b32.xlu0 %v2617, 127
        %v2624 = vpop.permute.xlu0 %2623
        %2625 = vrot.lane.b32.xlu0 %v2618, 127
        %v2626 = vpop.permute.xlu0 %2625
        %2627 = vrot.lane.b32.xlu0 %v2619, 127
        %v2628 = vpop.permute.xlu0 %2627
        %v2629 = vsel %vm895, %v2624, %v2626
        %v2630 = vsel %vm895, %v2626, %v2628
        %v2634 = vadd.f32 %v2582, %v2629
        %v2635 = vadd.f32 %v2583, %v2630
        %v2636 = vadd.f32 %v2584, %v2628
        %s2637 = sld [smem:[#allocation16 + $0x65]]
        %v2638 = vstv %s2637
        %v2639 = vmul.f32 %v2638, %v2468
        %v2640 = vmul.f32 %v2638, %v2469
        %v2641 = vmul.f32 %v2638, %v2470
        %2645 = vrot.lane.b32.xlu0 %v2639, 127
        %v2646 = vpop.permute.xlu0 %2645
        %2647 = vrot.lane.b32.xlu0 %v2640, 127
        %v2648 = vpop.permute.xlu0 %2647
        %2649 = vrot.lane.b32.xlu0 %v2641, 127
        %v2650 = vpop.permute.xlu0 %2649
        %v2651 = vsel %vm895, %v2646, %v2648
        %v2652 = vsel %vm895, %v2648, %v2650
        %v2656 = vadd.f32 %v2590, %v2651
        %v2657 = vadd.f32 %v2591, %v2652
        %v2658 = vadd.f32 %v2592, %v2650
        %s2659 = sld [smem:[#allocation16 + $0x1a]]
        %v2660 = vstv %s2659
        %v2661 = vmul.f32 %v2660, %v2532
        %v2662 = vmul.f32 %v2660, %v2533
        %v2663 = vmul.f32 %v2660, %v2534
        %2667 = vrot.lane.b32.xlu0 %v2661, 127
        %v2668 = vpop.permute.xlu0 %2667
        %2669 = vrot.lane.b32.xlu0 %v2662, 127
        %v2670 = vpop.permute.xlu0 %2669
        %2671 = vrot.lane.b32.xlu0 %v2663, 127
        %v2672 = vpop.permute.xlu0 %2671
        %v2673 = vsel %vm895, %v2668, %v2670
        %v2674 = vsel %vm895, %v2670, %v2672
        %v2678 = vadd.f32 %v2612, %v2673
        %v2679 = vadd.f32 %v2613, %v2674
        %v2680 = vadd.f32 %v2614, %v2672
        %s2681 = sld [smem:[#allocation16 + $0x4c]]
        %v2682 = vstv %s2681
        %v2683 = vmul.f32 %v2682, %v2532
        %v2684 = vmul.f32 %v2682, %v2533
        %v2685 = vmul.f32 %v2682, %v2534
        %2689 = vrot.lane.b32.xlu0 %v2683, 127
        %v2690 = vpop.permute.xlu0 %2689
        %2691 = vrot.lane.b32.xlu0 %v2684, 127
        %v2692 = vpop.permute.xlu0 %2691
        %2693 = vrot.lane.b32.xlu0 %v2685, 127
        %v2694 = vpop.permute.xlu0 %2693
        %v2695 = vsel %vm895, %v2690, %v2692
        %v2696 = vsel %vm895, %v2692, %v2694
        %v2700 = vadd.f32 %v2634, %v2695
        %v2701 = vadd.f32 %v2635, %v2696
        %v2702 = vadd.f32 %v2636, %v2694
        %s2703 = sld [smem:[#allocation16 + $0x7e]]
        %v2704 = vstv %s2703
        %v2705 = vmul.f32 %v2704, %v2532
        %v2706 = vmul.f32 %v2704, %v2533
        %v2707 = vmul.f32 %v2704, %v2534
        %2711 = vrot.lane.b32.xlu0 %v2705, 127
        %v2712 = vpop.permute.xlu0 %2711
        %2713 = vrot.lane.b32.xlu0 %v2706, 127
        %v2714 = vpop.permute.xlu0 %2713
        %2715 = vrot.lane.b32.xlu0 %v2707, 127
        %v2716 = vpop.permute.xlu0 %2715
        %v2717 = vsel %vm895, %v2712, %v2714
        %v2718 = vsel %vm895, %v2714, %v2716
        %v2722 = vadd.f32 %v2656, %v2717
        %v2723 = vadd.f32 %v2657, %v2718
        %v2724 = vadd.f32 %v2658, %v2716
        %s2725 = sld [smem:[#allocation16 + $0x2]]
        %v2726 = vstv %s2725
        %v2727 = vmul.f32 %v2726, %v2468
        %v2728 = vmul.f32 %v2726, %v2469
        %v2729 = vmul.f32 %v2726, %v2470
        %2733 = vrot.lane.b32.xlu0 %v2727, 126
        %v2734 = vpop.permute.xlu0 %2733
        %2735 = vrot.lane.b32.xlu0 %v2728, 126
        %v2736 = vpop.permute.xlu0 %2735
        %2737 = vrot.lane.b32.xlu0 %v2729, 126
        %v2738 = vpop.permute.xlu0 %2737
        %v2739 = vsel %vm1440, %v2734, %v2736
        %v2740 = vsel %vm1440, %v2736, %v2738
        %v2744 = vadd.f32 %v2678, %v2739
        %v2745 = vadd.f32 %v2679, %v2740
        %v2746 = vadd.f32 %v2680, %v2738
        %s2747 = sld [smem:[#allocation16 + $0x34]]
        %v2748 = vstv %s2747
        %v2749 = vmul.f32 %v2748, %v2468
        %v2750 = vmul.f32 %v2748, %v2469
        %v2751 = vmul.f32 %v2748, %v2470
        %2755 = vrot.lane.b32.xlu0 %v2749, 126
        %v2756 = vpop.permute.xlu0 %2755
        %2757 = vrot.lane.b32.xlu0 %v2750, 126
        %v2758 = vpop.permute.xlu0 %2757
        %2759 = vrot.lane.b32.xlu0 %v2751, 126
        %v2760 = vpop.permute.xlu0 %2759
        %v2761 = vsel %vm1440, %v2756, %v2758
        %v2762 = vsel %vm1440, %v2758, %v2760
        %v2766 = vadd.f32 %v2700, %v2761
        %v2767 = vadd.f32 %v2701, %v2762
        %v2768 = vadd.f32 %v2702, %v2760
        %s2769 = sld [smem:[#allocation16 + $0x66]]
        %v2770 = vstv %s2769
        %v2771 = vmul.f32 %v2770, %v2468
        %v2772 = vmul.f32 %v2770, %v2469
        %v2773 = vmul.f32 %v2770, %v2470
        %2777 = vrot.lane.b32.xlu0 %v2771, 126
        %v2778 = vpop.permute.xlu0 %2777
        %2779 = vrot.lane.b32.xlu0 %v2772, 126
        %v2780 = vpop.permute.xlu0 %2779
        %2781 = vrot.lane.b32.xlu0 %v2773, 126
        %v2782 = vpop.permute.xlu0 %2781
        %v2783 = vsel %vm1440, %v2778, %v2780
        %v2784 = vsel %vm1440, %v2780, %v2782
        %v2788 = vadd.f32 %v2722, %v2783
        %v2789 = vadd.f32 %v2723, %v2784
        %v2790 = vadd.f32 %v2724, %v2782
        %s2791 = sld [smem:[#allocation16 + $0x1b]]
        %v2792 = vstv %s2791
        %v2793 = vmul.f32 %v2792, %v2532
        %v2794 = vmul.f32 %v2792, %v2533
        %v2795 = vmul.f32 %v2792, %v2534
        %2799 = vrot.lane.b32.xlu0 %v2793, 126
        %v2800 = vpop.permute.xlu0 %2799
        %2801 = vrot.lane.b32.xlu0 %v2794, 126
        %v2802 = vpop.permute.xlu0 %2801
        %2803 = vrot.lane.b32.xlu0 %v2795, 126
        %v2804 = vpop.permute.xlu0 %2803
        %v2805 = vsel %vm1440, %v2800, %v2802
        %v2806 = vsel %vm1440, %v2802, %v2804
        %v2810 = vadd.f32 %v2744, %v2805
        %v2811 = vadd.f32 %v2745, %v2806
        %v2812 = vadd.f32 %v2746, %v2804
        %s2813 = sld [smem:[#allocation16 + $0x4d]]
        %v2814 = vstv %s2813
        %v2815 = vmul.f32 %v2814, %v2532
        %v2816 = vmul.f32 %v2814, %v2533
        %v2817 = vmul.f32 %v2814, %v2534
        %2821 = vrot.lane.b32.xlu0 %v2815, 126
        %v2822 = vpop.permute.xlu0 %2821
        %2823 = vrot.lane.b32.xlu0 %v2816, 126
        %v2824 = vpop.permute.xlu0 %2823
        %2825 = vrot.lane.b32.xlu0 %v2817, 126
        %v2826 = vpop.permute.xlu0 %2825
        %v2827 = vsel %vm1440, %v2822, %v2824
        %v2828 = vsel %vm1440, %v2824, %v2826
        %v2832 = vadd.f32 %v2766, %v2827
        %v2833 = vadd.f32 %v2767, %v2828
        %v2834 = vadd.f32 %v2768, %v2826
        %s2835 = sld [smem:[#allocation16 + $0x7f]]
        %v2836 = vstv %s2835
        %v2837 = vmul.f32 %v2836, %v2532
        %v2838 = vmul.f32 %v2836, %v2533
        %v2839 = vmul.f32 %v2836, %v2534
        %2843 = vrot.lane.b32.xlu0 %v2837, 126
        %v2844 = vpop.permute.xlu0 %2843
        %2845 = vrot.lane.b32.xlu0 %v2838, 126
        %v2846 = vpop.permute.xlu0 %2845
        %2847 = vrot.lane.b32.xlu0 %v2839, 126
        %v2848 = vpop.permute.xlu0 %2847
        %v2849 = vsel %vm1440, %v2844, %v2846
        %v2850 = vsel %vm1440, %v2846, %v2848
        %v2854 = vadd.f32 %v2788, %v2849
        %v2855 = vadd.f32 %v2789, %v2850
        %v2856 = vadd.f32 %v2790, %v2848
        %s2857 = sld [smem:[#allocation16 + $0x3]]
        %v2858 = vstv %s2857
        %v2859 = vmul.f32 %v2858, %v2468
        %v2860 = vmul.f32 %v2858, %v2469
        %v2861 = vmul.f32 %v2858, %v2470
        %2865 = vrot.lane.b32.xlu0 %v2859, 125
        %v2866 = vpop.permute.xlu0 %2865
        %2867 = vrot.lane.b32.xlu0 %v2860, 125
        %v2868 = vpop.permute.xlu0 %2867
        %2869 = vrot.lane.b32.xlu0 %v2861, 125
        %v2870 = vpop.permute.xlu0 %2869
        %vm2871 = vcmask 1022976
        %v2872 = vsel %vm2871, %v2866, %v2868
        %v2873 = vsel %vm2871, %v2868, %v2870
        %v2877 = vadd.f32 %v2810, %v2872
        %v2878 = vadd.f32 %v2811, %v2873
        %v2879 = vadd.f32 %v2812, %v2870
        %s2880 = sld [smem:[#allocation16 + $0x35]]
        %v2881 = vstv %s2880
        %v2882 = vmul.f32 %v2881, %v2468
        %v2883 = vmul.f32 %v2881, %v2469
        %v2884 = vmul.f32 %v2881, %v2470
        %2888 = vrot.lane.b32.xlu0 %v2882, 125
        %v2889 = vpop.permute.xlu0 %2888
        %2890 = vrot.lane.b32.xlu0 %v2883, 125
        %v2891 = vpop.permute.xlu0 %2890
        %2892 = vrot.lane.b32.xlu0 %v2884, 125
        %v2893 = vpop.permute.xlu0 %2892
        %v2894 = vsel %vm2871, %v2889, %v2891
        %v2895 = vsel %vm2871, %v2891, %v2893
        %v2899 = vadd.f32 %v2832, %v2894
        %v2900 = vadd.f32 %v2833, %v2895
        %v2901 = vadd.f32 %v2834, %v2893
        %s2902 = sld [smem:[#allocation16 + $0x67]]
        %v2903 = vstv %s2902
        %v2904 = vmul.f32 %v2903, %v2468
        %v2905 = vmul.f32 %v2903, %v2469
        %v2906 = vmul.f32 %v2903, %v2470
        %2910 = vrot.lane.b32.xlu0 %v2904, 125
        %v2911 = vpop.permute.xlu0 %2910
        %2912 = vrot.lane.b32.xlu0 %v2905, 125
        %v2913 = vpop.permute.xlu0 %2912
        %2914 = vrot.lane.b32.xlu0 %v2906, 125
        %v2915 = vpop.permute.xlu0 %2914
        %v2916 = vsel %vm2871, %v2911, %v2913
        %v2917 = vsel %vm2871, %v2913, %v2915
        %v2921 = vadd.f32 %v2854, %v2916
        %v2922 = vadd.f32 %v2855, %v2917
        %v2923 = vadd.f32 %v2856, %v2915
        %s2924 = sld [smem:[#allocation16 + $0x1c]]
        %v2925 = vstv %s2924
        %v2926 = vmul.f32 %v2925, %v2532
        %v2927 = vmul.f32 %v2925, %v2533
        %v2928 = vmul.f32 %v2925, %v2534
        %2932 = vrot.lane.b32.xlu0 %v2926, 125
        %v2933 = vpop.permute.xlu0 %2932
        %2934 = vrot.lane.b32.xlu0 %v2927, 125
        %v2935 = vpop.permute.xlu0 %2934
        %2936 = vrot.lane.b32.xlu0 %v2928, 125
        %v2937 = vpop.permute.xlu0 %2936
        %v2938 = vsel %vm2871, %v2933, %v2935
        %v2939 = vsel %vm2871, %v2935, %v2937
        %v2943 = vadd.f32 %v2877, %v2938
        %v2944 = vadd.f32 %v2878, %v2939
        %v2945 = vadd.f32 %v2879, %v2937
        %s2946 = sld [smem:[#allocation16 + $0x4e]]
        %v2947 = vstv %s2946
        %v2948 = vmul.f32 %v2947, %v2532
        %v2949 = vmul.f32 %v2947, %v2533
        %v2950 = vmul.f32 %v2947, %v2534
        %2954 = vrot.lane.b32.xlu0 %v2948, 125
        %v2955 = vpop.permute.xlu0 %2954
        %2956 = vrot.lane.b32.xlu0 %v2949, 125
        %v2957 = vpop.permute.xlu0 %2956
        %2958 = vrot.lane.b32.xlu0 %v2950, 125
        %v2959 = vpop.permute.xlu0 %2958
        %v2960 = vsel %vm2871, %v2955, %v2957
        %v2961 = vsel %vm2871, %v2957, %v2959
        %v2965 = vadd.f32 %v2899, %v2960
        %v2966 = vadd.f32 %v2900, %v2961
        %v2967 = vadd.f32 %v2901, %v2959
        %s2968 = sld [smem:[#allocation16 + $0x80]]
        %v2969 = vstv %s2968
        %v2970 = vmul.f32 %v2969, %v2532
        %v2971 = vmul.f32 %v2969, %v2533
        %v2972 = vmul.f32 %v2969, %v2534
        %2976 = vrot.lane.b32.xlu0 %v2970, 125
        %v2977 = vpop.permute.xlu0 %2976
        %2978 = vrot.lane.b32.xlu0 %v2971, 125
        %v2979 = vpop.permute.xlu0 %2978
        %2980 = vrot.lane.b32.xlu0 %v2972, 125
        %v2981 = vpop.permute.xlu0 %2980
        %v2982 = vsel %vm2871, %v2977, %v2979
        %v2983 = vsel %vm2871, %v2979, %v2981
        %v2987 = vadd.f32 %v2921, %v2982
        %v2988 = vadd.f32 %v2922, %v2983
        %v2989 = vadd.f32 %v2923, %v2981
        %s2990 = sld [smem:[#allocation16 + $0x4]]
        %v2991 = vstv %s2990
        %v2992 = vmul.f32 %v2991, %v2468
        %v2993 = vmul.f32 %v2991, %v2469
        %v2994 = vmul.f32 %v2991, %v2470
        %2998 = vrot.lane.b32.xlu0 %v2992, 124
        %v2999 = vpop.permute.xlu0 %2998
        %3000 = vrot.lane.b32.xlu0 %v2993, 124
        %v3001 = vpop.permute.xlu0 %3000
        %3002 = vrot.lane.b32.xlu0 %v2994, 124
        %v3003 = vpop.permute.xlu0 %3002
        %vm3004 = vcmask 1014784
        %v3005 = vsel %vm3004, %v2999, %v3001
        %v3006 = vsel %vm3004, %v3001, %v3003
        %v3010 = vadd.f32 %v2943, %v3005
        %v3011 = vadd.f32 %v2944, %v3006
        %v3012 = vadd.f32 %v2945, %v3003
        %s3013 = sld [smem:[#allocation16 + $0x36]]
        %v3014 = vstv %s3013
        %v3015 = vmul.f32 %v3014, %v2468
        %v3016 = vmul.f32 %v3014, %v2469
        %v3017 = vmul.f32 %v3014, %v2470
        %3021 = vrot.lane.b32.xlu0 %v3015, 124
        %v3022 = vpop.permute.xlu0 %3021
        %3023 = vrot.lane.b32.xlu0 %v3016, 124
        %v3024 = vpop.permute.xlu0 %3023
        %3025 = vrot.lane.b32.xlu0 %v3017, 124
        %v3026 = vpop.permute.xlu0 %3025
        %v3027 = vsel %vm3004, %v3022, %v3024
        %v3028 = vsel %vm3004, %v3024, %v3026
        %v3032 = vadd.f32 %v2965, %v3027
        %v3033 = vadd.f32 %v2966, %v3028
        %v3034 = vadd.f32 %v2967, %v3026
        %s3035 = sld [smem:[#allocation16 + $0x68]]
        %v3036 = vstv %s3035
        %v3037 = vmul.f32 %v3036, %v2468
        %v3038 = vmul.f32 %v3036, %v2469
        %v3039 = vmul.f32 %v3036, %v2470
        %3043 = vrot.lane.b32.xlu0 %v3037, 124
        %v3044 = vpop.permute.xlu0 %3043
        %3045 = vrot.lane.b32.xlu0 %v3038, 124
        %v3046 = vpop.permute.xlu0 %3045
        %3047 = vrot.lane.b32.xlu0 %v3039, 124
        %v3048 = vpop.permute.xlu0 %3047
        %v3049 = vsel %vm3004, %v3044, %v3046
        %v3050 = vsel %vm3004, %v3046, %v3048
        %v3054 = vadd.f32 %v2987, %v3049
        %v3055 = vadd.f32 %v2988, %v3050
        %v3056 = vadd.f32 %v2989, %v3048
        %s3057 = sld [smem:[#allocation16 + $0x1d]]
        %v3058 = vstv %s3057
        %v3059 = vmul.f32 %v3058, %v2532
        %v3060 = vmul.f32 %v3058, %v2533
        %v3061 = vmul.f32 %v3058, %v2534
        %3065 = vrot.lane.b32.xlu0 %v3059, 124
        %v3066 = vpop.permute.xlu0 %3065
        %3067 = vrot.lane.b32.xlu0 %v3060, 124
        %v3068 = vpop.permute.xlu0 %3067
        %3069 = vrot.lane.b32.xlu0 %v3061, 124
        %v3070 = vpop.permute.xlu0 %3069
        %v3071 = vsel %vm3004, %v3066, %v3068
        %v3072 = vsel %vm3004, %v3068, %v3070
        %v3076 = vadd.f32 %v3010, %v3071
        %v3077 = vadd.f32 %v3011, %v3072
        %v3078 = vadd.f32 %v3012, %v3070
        %s3079 = sld [smem:[#allocation16 + $0x4f]]
        %v3080 = vstv %s3079
        %v3081 = vmul.f32 %v3080, %v2532
        %v3082 = vmul.f32 %v3080, %v2533
        %v3083 = vmul.f32 %v3080, %v2534
        %3087 = vrot.lane.b32.xlu0 %v3081, 124
        %v3088 = vpop.permute.xlu0 %3087
        %3089 = vrot.lane.b32.xlu0 %v3082, 124
        %v3090 = vpop.permute.xlu0 %3089
        %3091 = vrot.lane.b32.xlu0 %v3083, 124
        %v3092 = vpop.permute.xlu0 %3091
        %v3093 = vsel %vm3004, %v3088, %v3090
        %v3094 = vsel %vm3004, %v3090, %v3092
        %v3098 = vadd.f32 %v3032, %v3093
        %v3099 = vadd.f32 %v3033, %v3094
        %v3100 = vadd.f32 %v3034, %v3092
        %s3101 = sld [smem:[#allocation16 + $0x81]]
        %v3102 = vstv %s3101
        %v3103 = vmul.f32 %v3102, %v2532
        %v3104 = vmul.f32 %v3102, %v2533
        %v3105 = vmul.f32 %v3102, %v2534
        %3109 = vrot.lane.b32.xlu0 %v3103, 124
        %v3110 = vpop.permute.xlu0 %3109
        %3111 = vrot.lane.b32.xlu0 %v3104, 124
        %v3112 = vpop.permute.xlu0 %3111
        %3113 = vrot.lane.b32.xlu0 %v3105, 124
        %v3114 = vpop.permute.xlu0 %3113
        %v3115 = vsel %vm3004, %v3110, %v3112
        %v3116 = vsel %vm3004, %v3112, %v3114
        %v3120 = vadd.f32 %v3054, %v3115
        %v3121 = vadd.f32 %v3055, %v3116
        %v3122 = vadd.f32 %v3056, %v3114
        %s3123 = sld [smem:[#allocation16 + $0x5]]
        %v3124 = vstv %s3123
        %v3125 = vmul.f32 %v3124, %v2468
        %v3126 = vmul.f32 %v3124, %v2469
        %v3127 = vmul.f32 %v3124, %v2470
        %3131 = vrot.lane.b32.xlu0 %v3125, 108
        %v3132 = vpop.permute.xlu0 %3131
        %3133 = vrot.lane.b32.xlu0 %v3126, 108
        %v3134 = vpop.permute.xlu0 %3133
        %3135 = vrot.lane.b32.xlu0 %v3127, 108
        %v3136 = vpop.permute.xlu0 %3135
        %v3137 = vsel %vm925, %v3132, %v3134
        %v3138 = vsel %vm925, %v3134, %v3136
        %v3142 = vadd.f32 %v3076, %v3137
        %v3143 = vadd.f32 %v3077, %v3138
        %v3144 = vadd.f32 %v3078, %v3136
        %s3145 = sld [smem:[#allocation16 + $0x37]]
        %v3146 = vstv %s3145
        %v3147 = vmul.f32 %v3146, %v2468
        %v3148 = vmul.f32 %v3146, %v2469
        %v3149 = vmul.f32 %v3146, %v2470
        %3153 = vrot.lane.b32.xlu0 %v3147, 108
        %v3154 = vpop.permute.xlu0 %3153
        %3155 = vrot.lane.b32.xlu0 %v3148, 108
        %v3156 = vpop.permute.xlu0 %3155
        %3157 = vrot.lane.b32.xlu0 %v3149, 108
        %v3158 = vpop.permute.xlu0 %3157
        %v3159 = vsel %vm925, %v3154, %v3156
        %v3160 = vsel %vm925, %v3156, %v3158
        %v3164 = vadd.f32 %v3098, %v3159
        %v3165 = vadd.f32 %v3099, %v3160
        %v3166 = vadd.f32 %v3100, %v3158
        %s3167 = sld [smem:[#allocation16 + $0x69]]
        %v3168 = vstv %s3167
        %v3169 = vmul.f32 %v3168, %v2468
        %v3170 = vmul.f32 %v3168, %v2469
        %v3171 = vmul.f32 %v3168, %v2470
        %3175 = vrot.lane.b32.xlu0 %v3169, 108
        %v3176 = vpop.permute.xlu0 %3175
        %3177 = vrot.lane.b32.xlu0 %v3170, 108
        %v3178 = vpop.permute.xlu0 %3177
        %3179 = vrot.lane.b32.xlu0 %v3171, 108
        %v3180 = vpop.permute.xlu0 %3179
        %v3181 = vsel %vm925, %v3176, %v3178
        %v3182 = vsel %vm925, %v3178, %v3180
        %v3186 = vadd.f32 %v3120, %v3181
        %v3187 = vadd.f32 %v3121, %v3182
        %v3188 = vadd.f32 %v3122, %v3180
        %s3189 = sld [smem:[#allocation16 + $0x1e]]
        %v3190 = vstv %s3189
        %v3191 = vmul.f32 %v3190, %v2532
        %v3192 = vmul.f32 %v3190, %v2533
        %v3193 = vmul.f32 %v3190, %v2534
        %3197 = vrot.lane.b32.xlu0 %v3191, 108
        %v3198 = vpop.permute.xlu0 %3197
        %3199 = vrot.lane.b32.xlu0 %v3192, 108
        %v3200 = vpop.permute.xlu0 %3199
        %3201 = vrot.lane.b32.xlu0 %v3193, 108
        %v3202 = vpop.permute.xlu0 %3201
        %v3203 = vsel %vm925, %v3198, %v3200
        %v3204 = vsel %vm925, %v3200, %v3202
        %v3208 = vadd.f32 %v3142, %v3203
        %v3209 = vadd.f32 %v3143, %v3204
        %v3210 = vadd.f32 %v3144, %v3202
        %s3211 = sld [smem:[#allocation16 + $0x50]]
        %v3212 = vstv %s3211
        %v3213 = vmul.f32 %v3212, %v2532
        %v3214 = vmul.f32 %v3212, %v2533
        %v3215 = vmul.f32 %v3212, %v2534
        %3219 = vrot.lane.b32.xlu0 %v3213, 108
        %v3220 = vpop.permute.xlu0 %3219
        %3221 = vrot.lane.b32.xlu0 %v3214, 108
        %v3222 = vpop.permute.xlu0 %3221
        %3223 = vrot.lane.b32.xlu0 %v3215, 108
        %v3224 = vpop.permute.xlu0 %3223
        %v3225 = vsel %vm925, %v3220, %v3222
        %v3226 = vsel %vm925, %v3222, %v3224
        %v3230 = vadd.f32 %v3164, %v3225
        %v3231 = vadd.f32 %v3165, %v3226
        %v3232 = vadd.f32 %v3166, %v3224
        %s3233 = sld [smem:[#allocation16 + $0x82]]
        %v3234 = vstv %s3233
        %v3235 = vmul.f32 %v3234, %v2532
        %v3236 = vmul.f32 %v3234, %v2533
        %v3237 = vmul.f32 %v3234, %v2534
        %3241 = vrot.lane.b32.xlu0 %v3235, 108
        %v3242 = vpop.permute.xlu0 %3241
        %3243 = vrot.lane.b32.xlu0 %v3236, 108
        %v3244 = vpop.permute.xlu0 %3243
        %3245 = vrot.lane.b32.xlu0 %v3237, 108
        %v3246 = vpop.permute.xlu0 %3245
        %v3247 = vsel %vm925, %v3242, %v3244
        %v3248 = vsel %vm925, %v3244, %v3246
        %v3252 = vadd.f32 %v3186, %v3247
        %v3253 = vadd.f32 %v3187, %v3248
        %v3254 = vadd.f32 %v3188, %v3246
        %s3255 = sld [smem:[#allocation16 + $0x6]]
        %v3256 = vstv %s3255
        %v3257 = vmul.f32 %v3256, %v2468
        %v3258 = vmul.f32 %v3256, %v2469
        %v3259 = vmul.f32 %v3256, %v2470
        %3263 = vrot.lane.b32.xlu0 %v3257, 107
        %v3264 = vpop.permute.xlu0 %3263
        %3265 = vrot.lane.b32.xlu0 %v3258, 107
        %v3266 = vpop.permute.xlu0 %3265
        %3267 = vrot.lane.b32.xlu0 %v3259, 107
        %v3268 = vpop.permute.xlu0 %3267
        %v3269 = vsel %vm940, %v3264, %v3266
        %v3270 = vsel %vm940, %v3266, %v3268
        %v3274 = vadd.f32 %v3208, %v3269
        %v3275 = vadd.f32 %v3209, %v3270
        %v3276 = vadd.f32 %v3210, %v3268
        %s3277 = sld [smem:[#allocation16 + $0x38]]
        %v3278 = vstv %s3277
        %v3279 = vmul.f32 %v3278, %v2468
        %v3280 = vmul.f32 %v3278, %v2469
        %v3281 = vmul.f32 %v3278, %v2470
        %3285 = vrot.lane.b32.xlu0 %v3279, 107
        %v3286 = vpop.permute.xlu0 %3285
        %3287 = vrot.lane.b32.xlu0 %v3280, 107
        %v3288 = vpop.permute.xlu0 %3287
        %3289 = vrot.lane.b32.xlu0 %v3281, 107
        %v3290 = vpop.permute.xlu0 %3289
        %v3291 = vsel %vm940, %v3286, %v3288
        %v3292 = vsel %vm940, %v3288, %v3290
        %v3296 = vadd.f32 %v3230, %v3291
        %v3297 = vadd.f32 %v3231, %v3292
        %v3298 = vadd.f32 %v3232, %v3290
        %s3299 = sld [smem:[#allocation16 + $0x6a]]
        %v3300 = vstv %s3299
        %v3301 = vmul.f32 %v3300, %v2468
        %v3302 = vmul.f32 %v3300, %v2469
        %v3303 = vmul.f32 %v3300, %v2470
        %3307 = vrot.lane.b32.xlu0 %v3301, 107
        %v3308 = vpop.permute.xlu0 %3307
        %3309 = vrot.lane.b32.xlu0 %v3302, 107
        %v3310 = vpop.permute.xlu0 %3309
        %3311 = vrot.lane.b32.xlu0 %v3303, 107
        %v3312 = vpop.permute.xlu0 %3311
        %v3313 = vsel %vm940, %v3308, %v3310
        %v3314 = vsel %vm940, %v3310, %v3312
        %v3318 = vadd.f32 %v3252, %v3313
        %v3319 = vadd.f32 %v3253, %v3314
        %v3320 = vadd.f32 %v3254, %v3312
        %s3321 = sld [smem:[#allocation16 + $0x1f]]
        %v3322 = vstv %s3321
        %v3323 = vmul.f32 %v3322, %v2532
        %v3324 = vmul.f32 %v3322, %v2533
        %v3325 = vmul.f32 %v3322, %v2534
        %3329 = vrot.lane.b32.xlu0 %v3323, 107
        %v3330 = vpop.permute.xlu0 %3329
        %3331 = vrot.lane.b32.xlu0 %v3324, 107
        %v3332 = vpop.permute.xlu0 %3331
        %3333 = vrot.lane.b32.xlu0 %v3325, 107
        %v3334 = vpop.permute.xlu0 %3333
        %v3335 = vsel %vm940, %v3330, %v3332
        %v3336 = vsel %vm940, %v3332, %v3334
        %v3340 = vadd.f32 %v3274, %v3335
        %v3341 = vadd.f32 %v3275, %v3336
        %v3342 = vadd.f32 %v3276, %v3334
        %s3343 = sld [smem:[#allocation16 + $0x51]]
        %v3344 = vstv %s3343
        %v3345 = vmul.f32 %v3344, %v2532
        %v3346 = vmul.f32 %v3344, %v2533
        %v3347 = vmul.f32 %v3344, %v2534
        %3351 = vrot.lane.b32.xlu0 %v3345, 107
        %v3352 = vpop.permute.xlu0 %3351
        %3353 = vrot.lane.b32.xlu0 %v3346, 107
        %v3354 = vpop.permute.xlu0 %3353
        %3355 = vrot.lane.b32.xlu0 %v3347, 107
        %v3356 = vpop.permute.xlu0 %3355
        %v3357 = vsel %vm940, %v3352, %v3354
        %v3358 = vsel %vm940, %v3354, %v3356
        %v3362 = vadd.f32 %v3296, %v3357
        %v3363 = vadd.f32 %v3297, %v3358
        %v3364 = vadd.f32 %v3298, %v3356
        %s3365 = sld [smem:[#allocation16 + $0x83]]
        %v3366 = vstv %s3365
        %v3367 = vmul.f32 %v3366, %v2532
        %v3368 = vmul.f32 %v3366, %v2533
        %v3369 = vmul.f32 %v3366, %v2534
        %3373 = vrot.lane.b32.xlu0 %v3367, 107
        %v3374 = vpop.permute.xlu0 %3373
        %3375 = vrot.lane.b32.xlu0 %v3368, 107
        %v3376 = vpop.permute.xlu0 %3375
        %3377 = vrot.lane.b32.xlu0 %v3369, 107
        %v3378 = vpop.permute.xlu0 %3377
        %v3379 = vsel %vm940, %v3374, %v3376
        %v3380 = vsel %vm940, %v3376, %v3378
        %v3384 = vadd.f32 %v3318, %v3379
        %v3385 = vadd.f32 %v3319, %v3380
        %v3386 = vadd.f32 %v3320, %v3378
        %s3387 = sld [smem:[#allocation16 + $0x7]]
        %v3388 = vstv %s3387
        %v3389 = vmul.f32 %v3388, %v2468
        %v3390 = vmul.f32 %v3388, %v2469
        %v3391 = vmul.f32 %v3388, %v2470
        %3395 = vrot.lane.b32.xlu0 %v3389, 106
        %v3396 = vpop.permute.xlu0 %3395
        %3397 = vrot.lane.b32.xlu0 %v3390, 106
        %v3398 = vpop.permute.xlu0 %3397
        %3399 = vrot.lane.b32.xlu0 %v3391, 106
        %v3400 = vpop.permute.xlu0 %3399
        %v3401 = vsel %vm1837, %v3396, %v3398
        %v3402 = vsel %vm1837, %v3398, %v3400
        %v3406 = vadd.f32 %v3340, %v3401
        %v3407 = vadd.f32 %v3341, %v3402
        %v3408 = vadd.f32 %v3342, %v3400
        %s3409 = sld [smem:[#allocation16 + $0x39]]
        %v3410 = vstv %s3409
        %v3411 = vmul.f32 %v3410, %v2468
        %v3412 = vmul.f32 %v3410, %v2469
        %v3413 = vmul.f32 %v3410, %v2470
        %3417 = vrot.lane.b32.xlu0 %v3411, 106
        %v3418 = vpop.permute.xlu0 %3417
        %3419 = vrot.lane.b32.xlu0 %v3412, 106
        %v3420 = vpop.permute.xlu0 %3419
        %3421 = vrot.lane.b32.xlu0 %v3413, 106
        %v3422 = vpop.permute.xlu0 %3421
        %v3423 = vsel %vm1837, %v3418, %v3420
        %v3424 = vsel %vm1837, %v3420, %v3422
        %v3428 = vadd.f32 %v3362, %v3423
        %v3429 = vadd.f32 %v3363, %v3424
        %v3430 = vadd.f32 %v3364, %v3422
        %s3431 = sld [smem:[#allocation16 + $0x6b]]
        %v3432 = vstv %s3431
        %v3433 = vmul.f32 %v3432, %v2468
        %v3434 = vmul.f32 %v3432, %v2469
        %v3435 = vmul.f32 %v3432, %v2470
        %3439 = vrot.lane.b32.xlu0 %v3433, 106
        %v3440 = vpop.permute.xlu0 %3439
        %3441 = vrot.lane.b32.xlu0 %v3434, 106
        %v3442 = vpop.permute.xlu0 %3441
        %3443 = vrot.lane.b32.xlu0 %v3435, 106
        %v3444 = vpop.permute.xlu0 %3443
        %v3445 = vsel %vm1837, %v3440, %v3442
        %v3446 = vsel %vm1837, %v3442, %v3444
        %v3450 = vadd.f32 %v3384, %v3445
        %v3451 = vadd.f32 %v3385, %v3446
        %v3452 = vadd.f32 %v3386, %v3444
        %s3453 = sld [smem:[#allocation16 + $0x20]]
        %v3454 = vstv %s3453
        %v3455 = vmul.f32 %v3454, %v2532
        %v3456 = vmul.f32 %v3454, %v2533
        %v3457 = vmul.f32 %v3454, %v2534
        %3461 = vrot.lane.b32.xlu0 %v3455, 106
        %v3462 = vpop.permute.xlu0 %3461
        %3463 = vrot.lane.b32.xlu0 %v3456, 106
        %v3464 = vpop.permute.xlu0 %3463
        %3465 = vrot.lane.b32.xlu0 %v3457, 106
        %v3466 = vpop.permute.xlu0 %3465
        %v3467 = vsel %vm1837, %v3462, %v3464
        %v3468 = vsel %vm1837, %v3464, %v3466
        %v3472 = vadd.f32 %v3406, %v3467
        %v3473 = vadd.f32 %v3407, %v3468
        %v3474 = vadd.f32 %v3408, %v3466
        %s3475 = sld [smem:[#allocation16 + $0x52]]
        %v3476 = vstv %s3475
        %v3477 = vmul.f32 %v3476, %v2532
        %v3478 = vmul.f32 %v3476, %v2533
        %v3479 = vmul.f32 %v3476, %v2534
        %3483 = vrot.lane.b32.xlu0 %v3477, 106
        %v3484 = vpop.permute.xlu0 %3483
        %3485 = vrot.lane.b32.xlu0 %v3478, 106
        %v3486 = vpop.permute.xlu0 %3485
        %3487 = vrot.lane.b32.xlu0 %v3479, 106
        %v3488 = vpop.permute.xlu0 %3487
        %v3489 = vsel %vm1837, %v3484, %v3486
        %v3490 = vsel %vm1837, %v3486, %v3488
        %v3494 = vadd.f32 %v3428, %v3489
        %v3495 = vadd.f32 %v3429, %v3490
        %v3496 = vadd.f32 %v3430, %v3488
        %s3497 = sld [smem:[#allocation16 + $0x84]]
        %v3498 = vstv %s3497
        %v3499 = vmul.f32 %v3498, %v2532
        %v3500 = vmul.f32 %v3498, %v2533
        %v3501 = vmul.f32 %v3498, %v2534
        %3505 = vrot.lane.b32.xlu0 %v3499, 106
        %v3506 = vpop.permute.xlu0 %3505
        %3507 = vrot.lane.b32.xlu0 %v3500, 106
        %v3508 = vpop.permute.xlu0 %3507
        %3509 = vrot.lane.b32.xlu0 %v3501, 106
        %v3510 = vpop.permute.xlu0 %3509
        %v3511 = vsel %vm1837, %v3506, %v3508
        %v3512 = vsel %vm1837, %v3508, %v3510
        %v3516 = vadd.f32 %v3450, %v3511
        %v3517 = vadd.f32 %v3451, %v3512
        %v3518 = vadd.f32 %v3452, %v3510
        %s3519 = sld [smem:[#allocation16 + $0x8]]
        %v3520 = vstv %s3519
        %v3521 = vmul.f32 %v3520, %v2468
        %v3522 = vmul.f32 %v3520, %v2469
        %v3523 = vmul.f32 %v3520, %v2470
        %3527 = vrot.lane.b32.xlu0 %v3521, 105
        %v3528 = vpop.permute.xlu0 %3527
        %3529 = vrot.lane.b32.xlu0 %v3522, 105
        %v3530 = vpop.permute.xlu0 %3529
        %3531 = vrot.lane.b32.xlu0 %v3523, 105
        %v3532 = vpop.permute.xlu0 %3531
        %vm3533 = vcmask 859136
        %v3534 = vsel %vm3533, %v3528, %v3530
        %v3535 = vsel %vm3533, %v3530, %v3532
        %v3539 = vadd.f32 %v3472, %v3534
        %v3540 = vadd.f32 %v3473, %v3535
        %v3541 = vadd.f32 %v3474, %v3532
        %s3542 = sld [smem:[#allocation16 + $0x3a]]
        %v3543 = vstv %s3542
        %v3544 = vmul.f32 %v3543, %v2468
        %v3545 = vmul.f32 %v3543, %v2469
        %v3546 = vmul.f32 %v3543, %v2470
        %3550 = vrot.lane.b32.xlu0 %v3544, 105
        %v3551 = vpop.permute.xlu0 %3550
        %3552 = vrot.lane.b32.xlu0 %v3545, 105
        %v3553 = vpop.permute.xlu0 %3552
        %3554 = vrot.lane.b32.xlu0 %v3546, 105
        %v3555 = vpop.permute.xlu0 %3554
        %v3556 = vsel %vm3533, %v3551, %v3553
        %v3557 = vsel %vm3533, %v3553, %v3555
        %v3561 = vadd.f32 %v3494, %v3556
        %v3562 = vadd.f32 %v3495, %v3557
        %v3563 = vadd.f32 %v3496, %v3555
        %s3564 = sld [smem:[#allocation16 + $0x6c]]
        %v3565 = vstv %s3564
        %v3566 = vmul.f32 %v3565, %v2468
        %v3567 = vmul.f32 %v3565, %v2469
        %v3568 = vmul.f32 %v3565, %v2470
        %3572 = vrot.lane.b32.xlu0 %v3566, 105
        %v3573 = vpop.permute.xlu0 %3572
        %3574 = vrot.lane.b32.xlu0 %v3567, 105
        %v3575 = vpop.permute.xlu0 %3574
        %3576 = vrot.lane.b32.xlu0 %v3568, 105
        %v3577 = vpop.permute.xlu0 %3576
        %v3578 = vsel %vm3533, %v3573, %v3575
        %v3579 = vsel %vm3533, %v3575, %v3577
        %v3583 = vadd.f32 %v3516, %v3578
        %v3584 = vadd.f32 %v3517, %v3579
        %v3585 = vadd.f32 %v3518, %v3577
        %s3586 = sld [smem:[#allocation16 + $0x21]]
        %v3587 = vstv %s3586
        %v3588 = vmul.f32 %v3587, %v2532
        %v3589 = vmul.f32 %v3587, %v2533
        %v3590 = vmul.f32 %v3587, %v2534
        %3594 = vrot.lane.b32.xlu0 %v3588, 105
        %v3595 = vpop.permute.xlu0 %3594
        %3596 = vrot.lane.b32.xlu0 %v3589, 105
        %v3597 = vpop.permute.xlu0 %3596
        %3598 = vrot.lane.b32.xlu0 %v3590, 105
        %v3599 = vpop.permute.xlu0 %3598
        %v3600 = vsel %vm3533, %v3595, %v3597
        %v3601 = vsel %vm3533, %v3597, %v3599
        %v3605 = vadd.f32 %v3539, %v3600
        %v3606 = vadd.f32 %v3540, %v3601
        %v3607 = vadd.f32 %v3541, %v3599
        %s3608 = sld [smem:[#allocation16 + $0x53]]
        %v3609 = vstv %s3608
        %v3610 = vmul.f32 %v3609, %v2532
        %v3611 = vmul.f32 %v3609, %v2533
        %v3612 = vmul.f32 %v3609, %v2534
        %3616 = vrot.lane.b32.xlu0 %v3610, 105
        %v3617 = vpop.permute.xlu0 %3616
        %3618 = vrot.lane.b32.xlu0 %v3611, 105
        %v3619 = vpop.permute.xlu0 %3618
        %3620 = vrot.lane.b32.xlu0 %v3612, 105
        %v3621 = vpop.permute.xlu0 %3620
        %v3622 = vsel %vm3533, %v3617, %v3619
        %v3623 = vsel %vm3533, %v3619, %v3621
        %v3627 = vadd.f32 %v3561, %v3622
        %v3628 = vadd.f32 %v3562, %v3623
        %v3629 = vadd.f32 %v3563, %v3621
        %s3630 = sld [smem:[#allocation16 + $0x85]]
        %v3631 = vstv %s3630
        %v3632 = vmul.f32 %v3631, %v2532
        %v3633 = vmul.f32 %v3631, %v2533
        %v3634 = vmul.f32 %v3631, %v2534
        %3638 = vrot.lane.b32.xlu0 %v3632, 105
        %v3639 = vpop.permute.xlu0 %3638
        %3640 = vrot.lane.b32.xlu0 %v3633, 105
        %v3641 = vpop.permute.xlu0 %3640
        %3642 = vrot.lane.b32.xlu0 %v3634, 105
        %v3643 = vpop.permute.xlu0 %3642
        %v3644 = vsel %vm3533, %v3639, %v3641
        %v3645 = vsel %vm3533, %v3641, %v3643
        %v3649 = vadd.f32 %v3583, %v3644
        %v3650 = vadd.f32 %v3584, %v3645
        %v3651 = vadd.f32 %v3585, %v3643
        %s3652 = sld [smem:[#allocation16 + $0x9]]
        %v3653 = vstv %s3652
        %v3654 = vmul.f32 %v3653, %v2468
        %v3655 = vmul.f32 %v3653, %v2469
        %v3656 = vmul.f32 %v3653, %v2470
        %3660 = vrot.lane.b32.xlu0 %v3654, 104
        %v3661 = vpop.permute.xlu0 %3660
        %3662 = vrot.lane.b32.xlu0 %v3655, 104
        %v3663 = vpop.permute.xlu0 %3662
        %3664 = vrot.lane.b32.xlu0 %v3656, 104
        %v3665 = vpop.permute.xlu0 %3664
        %vm3666 = vcmask 850944
        %v3667 = vsel %vm3666, %v3661, %v3663
        %v3668 = vsel %vm3666, %v3663, %v3665
        %v3672 = vadd.f32 %v3605, %v3667
        %v3673 = vadd.f32 %v3606, %v3668
        %v3674 = vadd.f32 %v3607, %v3665
        %s3675 = sld [smem:[#allocation16 + $0x3b]]
        %v3676 = vstv %s3675
        %v3677 = vmul.f32 %v3676, %v2468
        %v3678 = vmul.f32 %v3676, %v2469
        %v3679 = vmul.f32 %v3676, %v2470
        %3683 = vrot.lane.b32.xlu0 %v3677, 104
        %v3684 = vpop.permute.xlu0 %3683
        %3685 = vrot.lane.b32.xlu0 %v3678, 104
        %v3686 = vpop.permute.xlu0 %3685
        %3687 = vrot.lane.b32.xlu0 %v3679, 104
        %v3688 = vpop.permute.xlu0 %3687
        %v3689 = vsel %vm3666, %v3684, %v3686
        %v3690 = vsel %vm3666, %v3686, %v3688
        %v3694 = vadd.f32 %v3627, %v3689
        %v3695 = vadd.f32 %v3628, %v3690
        %v3696 = vadd.f32 %v3629, %v3688
        %s3697 = sld [smem:[#allocation16 + $0x6d]]
        %v3698 = vstv %s3697
        %v3699 = vmul.f32 %v3698, %v2468
        %v3700 = vmul.f32 %v3698, %v2469
        %v3701 = vmul.f32 %v3698, %v2470
        %3705 = vrot.lane.b32.xlu0 %v3699, 104
        %v3706 = vpop.permute.xlu0 %3705
        %3707 = vrot.lane.b32.xlu0 %v3700, 104
        %v3708 = vpop.permute.xlu0 %3707
        %3709 = vrot.lane.b32.xlu0 %v3701, 104
        %v3710 = vpop.permute.xlu0 %3709
        %v3711 = vsel %vm3666, %v3706, %v3708
        %v3712 = vsel %vm3666, %v3708, %v3710
        %v3716 = vadd.f32 %v3649, %v3711
        %v3717 = vadd.f32 %v3650, %v3712
        %v3718 = vadd.f32 %v3651, %v3710
        %s3719 = sld [smem:[#allocation16 + $0x22]]
        %v3720 = vstv %s3719
        %v3721 = vmul.f32 %v3720, %v2532
        %v3722 = vmul.f32 %v3720, %v2533
        %v3723 = vmul.f32 %v3720, %v2534
        %3727 = vrot.lane.b32.xlu0 %v3721, 104
        %v3728 = vpop.permute.xlu0 %3727
        %3729 = vrot.lane.b32.xlu0 %v3722, 104
        %v3730 = vpop.permute.xlu0 %3729
        %3731 = vrot.lane.b32.xlu0 %v3723, 104
        %v3732 = vpop.permute.xlu0 %3731
        %v3733 = vsel %vm3666, %v3728, %v3730
        %v3734 = vsel %vm3666, %v3730, %v3732
        %v3738 = vadd.f32 %v3672, %v3733
        %v3739 = vadd.f32 %v3673, %v3734
        %v3740 = vadd.f32 %v3674, %v3732
        %s3741 = sld [smem:[#allocation16 + $0x54]]
        %v3742 = vstv %s3741
        %v3743 = vmul.f32 %v3742, %v2532
        %v3744 = vmul.f32 %v3742, %v2533
        %v3745 = vmul.f32 %v3742, %v2534
        %3749 = vrot.lane.b32.xlu0 %v3743, 104
        %v3750 = vpop.permute.xlu0 %3749
        %3751 = vrot.lane.b32.xlu0 %v3744, 104
        %v3752 = vpop.permute.xlu0 %3751
        %3753 = vrot.lane.b32.xlu0 %v3745, 104
        %v3754 = vpop.permute.xlu0 %3753
        %v3755 = vsel %vm3666, %v3750, %v3752
        %v3756 = vsel %vm3666, %v3752, %v3754
        %v3760 = vadd.f32 %v3694, %v3755
        %v3761 = vadd.f32 %v3695, %v3756
        %v3762 = vadd.f32 %v3696, %v3754
        %s3763 = sld [smem:[#allocation16 + $0x86]]
        %v3764 = vstv %s3763
        %v3765 = vmul.f32 %v3764, %v2532
        %v3766 = vmul.f32 %v3764, %v2533
        %v3767 = vmul.f32 %v3764, %v2534
        %3771 = vrot.lane.b32.xlu0 %v3765, 104
        %v3772 = vpop.permute.xlu0 %3771
        %3773 = vrot.lane.b32.xlu0 %v3766, 104
        %v3774 = vpop.permute.xlu0 %3773
        %3775 = vrot.lane.b32.xlu0 %v3767, 104
        %v3776 = vpop.permute.xlu0 %3775
        %v3777 = vsel %vm3666, %v3772, %v3774
        %v3778 = vsel %vm3666, %v3774, %v3776
        %v3782 = vadd.f32 %v3716, %v3777
        %v3783 = vadd.f32 %v3717, %v3778
        %v3784 = vadd.f32 %v3718, %v3776
        %s3785 = sld [smem:[#allocation16 + $0xa]]
        %v3786 = vstv %s3785
        %v3787 = vmul.f32 %v3786, %v2468
        %v3788 = vmul.f32 %v3786, %v2469
        %v3789 = vmul.f32 %v3786, %v2470
        %3793 = vrot.lane.b32.xlu0 %v3787, 88
        %v3794 = vpop.permute.xlu0 %3793
        %3795 = vrot.lane.b32.xlu0 %v3788, 88
        %v3796 = vpop.permute.xlu0 %3795
        %3797 = vrot.lane.b32.xlu0 %v3789, 88
        %v3798 = vpop.permute.xlu0 %3797
        %v3799 = vsel %vm1970, %v3794, %v3796
        %v3800 = vsel %vm1970, %v3796, %v3798
        %v3804 = vadd.f32 %v3738, %v3799
        %v3805 = vadd.f32 %v3739, %v3800
        %v3806 = vadd.f32 %v3740, %v3798
        %s3807 = sld [smem:[#allocation16 + $0x3c]]
        %v3808 = vstv %s3807
        %v3809 = vmul.f32 %v3808, %v2468
        %v3810 = vmul.f32 %v3808, %v2469
        %v3811 = vmul.f32 %v3808, %v2470
        %3815 = vrot.lane.b32.xlu0 %v3809, 88
        %v3816 = vpop.permute.xlu0 %3815
        %3817 = vrot.lane.b32.xlu0 %v3810, 88
        %v3818 = vpop.permute.xlu0 %3817
        %3819 = vrot.lane.b32.xlu0 %v3811, 88
        %v3820 = vpop.permute.xlu0 %3819
        %v3821 = vsel %vm1970, %v3816, %v3818
        %v3822 = vsel %vm1970, %v3818, %v3820
        %v3826 = vadd.f32 %v3760, %v3821
        %v3827 = vadd.f32 %v3761, %v3822
        %v3828 = vadd.f32 %v3762, %v3820
        %s3829 = sld [smem:[#allocation16 + $0x6e]]
        %v3830 = vstv %s3829
        %v3831 = vmul.f32 %v3830, %v2468
        %v3832 = vmul.f32 %v3830, %v2469
        %v3833 = vmul.f32 %v3830, %v2470
        %3837 = vrot.lane.b32.xlu0 %v3831, 88
        %v3838 = vpop.permute.xlu0 %3837
        %3839 = vrot.lane.b32.xlu0 %v3832, 88
        %v3840 = vpop.permute.xlu0 %3839
        %3841 = vrot.lane.b32.xlu0 %v3833, 88
        %v3842 = vpop.permute.xlu0 %3841
        %v3843 = vsel %vm1970, %v3838, %v3840
        %v3844 = vsel %vm1970, %v3840, %v3842
        %v3848 = vadd.f32 %v3782, %v3843
        %v3849 = vadd.f32 %v3783, %v3844
        %v3850 = vadd.f32 %v3784, %v3842
        %s3851 = sld [smem:[#allocation16 + $0x23]]
        %v3852 = vstv %s3851
        %v3853 = vmul.f32 %v3852, %v2532
        %v3854 = vmul.f32 %v3852, %v2533
        %v3855 = vmul.f32 %v3852, %v2534
        %3859 = vrot.lane.b32.xlu0 %v3853, 88
        %v3860 = vpop.permute.xlu0 %3859
        %3861 = vrot.lane.b32.xlu0 %v3854, 88
        %v3862 = vpop.permute.xlu0 %3861
        %3863 = vrot.lane.b32.xlu0 %v3855, 88
        %v3864 = vpop.permute.xlu0 %3863
        %v3865 = vsel %vm1970, %v3860, %v3862
        %v3866 = vsel %vm1970, %v3862, %v3864
        %v3870 = vadd.f32 %v3804, %v3865
        %v3871 = vadd.f32 %v3805, %v3866
        %v3872 = vadd.f32 %v3806, %v3864
        %s3873 = sld [smem:[#allocation16 + $0x55]]
        %v3874 = vstv %s3873
        %v3875 = vmul.f32 %v3874, %v2532
        %v3876 = vmul.f32 %v3874, %v2533
        %v3877 = vmul.f32 %v3874, %v2534
        %3881 = vrot.lane.b32.xlu0 %v3875, 88
        %v3882 = vpop.permute.xlu0 %3881
        %3883 = vrot.lane.b32.xlu0 %v3876, 88
        %v3884 = vpop.permute.xlu0 %3883
        %3885 = vrot.lane.b32.xlu0 %v3877, 88
        %v3886 = vpop.permute.xlu0 %3885
        %v3887 = vsel %vm1970, %v3882, %v3884
        %v3888 = vsel %vm1970, %v3884, %v3886
        %v3892 = vadd.f32 %v3826, %v3887
        %v3893 = vadd.f32 %v3827, %v3888
        %v3894 = vadd.f32 %v3828, %v3886
        %s3895 = sld [smem:[#allocation16 + $0x87]]
        %v3896 = vstv %s3895
        %v3897 = vmul.f32 %v3896, %v2532
        %v3898 = vmul.f32 %v3896, %v2533
        %v3899 = vmul.f32 %v3896, %v2534
        %3903 = vrot.lane.b32.xlu0 %v3897, 88
        %v3904 = vpop.permute.xlu0 %3903
        %3905 = vrot.lane.b32.xlu0 %v3898, 88
        %v3906 = vpop.permute.xlu0 %3905
        %3907 = vrot.lane.b32.xlu0 %v3899, 88
        %v3908 = vpop.permute.xlu0 %3907
        %v3909 = vsel %vm1970, %v3904, %v3906
        %v3910 = vsel %vm1970, %v3906, %v3908
        %v3914 = vadd.f32 %v3848, %v3909
        %v3915 = vadd.f32 %v3849, %v3910
        %v3916 = vadd.f32 %v3850, %v3908
        %s3917 = sld [smem:[#allocation16 + $0xb]]
        %v3918 = vstv %s3917
        %v3919 = vmul.f32 %v3918, %v2468
        %v3920 = vmul.f32 %v3918, %v2469
        %v3921 = vmul.f32 %v3918, %v2470
        %3925 = vrot.lane.b32.xlu0 %v3919, 87
        %v3926 = vpop.permute.xlu0 %3925
        %3927 = vrot.lane.b32.xlu0 %v3920, 87
        %v3928 = vpop.permute.xlu0 %3927
        %3929 = vrot.lane.b32.xlu0 %v3921, 87
        %v3930 = vpop.permute.xlu0 %3929
        %v3931 = vsel %vm2103, %v3926, %v3928
        %v3932 = vsel %vm2103, %v3928, %v3930
        %v3936 = vadd.f32 %v3870, %v3931
        %v3937 = vadd.f32 %v3871, %v3932
        %v3938 = vadd.f32 %v3872, %v3930
        %s3939 = sld [smem:[#allocation16 + $0x3d]]
        %v3940 = vstv %s3939
        %v3941 = vmul.f32 %v3940, %v2468
        %v3942 = vmul.f32 %v3940, %v2469
        %v3943 = vmul.f32 %v3940, %v2470
        %3947 = vrot.lane.b32.xlu0 %v3941, 87
        %v3948 = vpop.permute.xlu0 %3947
        %3949 = vrot.lane.b32.xlu0 %v3942, 87
        %v3950 = vpop.permute.xlu0 %3949
        %3951 = vrot.lane.b32.xlu0 %v3943, 87
        %v3952 = vpop.permute.xlu0 %3951
        %v3953 = vsel %vm2103, %v3948, %v3950
        %v3954 = vsel %vm2103, %v3950, %v3952
        %v3958 = vadd.f32 %v3892, %v3953
        %v3959 = vadd.f32 %v3893, %v3954
        %v3960 = vadd.f32 %v3894, %v3952
        %s3961 = sld [smem:[#allocation16 + $0x6f]]
        %v3962 = vstv %s3961
        %v3963 = vmul.f32 %v3962, %v2468
        %v3964 = vmul.f32 %v3962, %v2469
        %v3965 = vmul.f32 %v3962, %v2470
        %3969 = vrot.lane.b32.xlu0 %v3963, 87
        %v3970 = vpop.permute.xlu0 %3969
        %3971 = vrot.lane.b32.xlu0 %v3964, 87
        %v3972 = vpop.permute.xlu0 %3971
        %3973 = vrot.lane.b32.xlu0 %v3965, 87
        %v3974 = vpop.permute.xlu0 %3973
        %v3975 = vsel %vm2103, %v3970, %v3972
        %v3976 = vsel %vm2103, %v3972, %v3974
        %v3980 = vadd.f32 %v3914, %v3975
        %v3981 = vadd.f32 %v3915, %v3976
        %v3982 = vadd.f32 %v3916, %v3974
        %s3983 = sld [smem:[#allocation16 + $0x24]]
        %v3984 = vstv %s3983
        %v3985 = vmul.f32 %v3984, %v2532
        %v3986 = vmul.f32 %v3984, %v2533
        %v3987 = vmul.f32 %v3984, %v2534
        %3991 = vrot.lane.b32.xlu0 %v3985, 87
        %v3992 = vpop.permute.xlu0 %3991
        %3993 = vrot.lane.b32.xlu0 %v3986, 87
        %v3994 = vpop.permute.xlu0 %3993
        %3995 = vrot.lane.b32.xlu0 %v3987, 87
        %v3996 = vpop.permute.xlu0 %3995
        %v3997 = vsel %vm2103, %v3992, %v3994
        %v3998 = vsel %vm2103, %v3994, %v3996
        %v4002 = vadd.f32 %v3936, %v3997
        %v4003 = vadd.f32 %v3937, %v3998
        %v4004 = vadd.f32 %v3938, %v3996
        %s4005 = sld [smem:[#allocation16 + $0x56]]
        %v4006 = vstv %s4005
        %v4007 = vmul.f32 %v4006, %v2532
        %v4008 = vmul.f32 %v4006, %v2533
        %v4009 = vmul.f32 %v4006, %v2534
        %4013 = vrot.lane.b32.xlu0 %v4007, 87
        %v4014 = vpop.permute.xlu0 %4013
        %4015 = vrot.lane.b32.xlu0 %v4008, 87
        %v4016 = vpop.permute.xlu0 %4015
        %4017 = vrot.lane.b32.xlu0 %v4009, 87
        %v4018 = vpop.permute.xlu0 %4017
        %v4019 = vsel %vm2103, %v4014, %v4016
        %v4020 = vsel %vm2103, %v4016, %v4018
        %v4024 = vadd.f32 %v3958, %v4019
        %v4025 = vadd.f32 %v3959, %v4020
        %v4026 = vadd.f32 %v3960, %v4018
        %s4027 = sld [smem:[#allocation16 + $0x88]]
        %v4028 = vstv %s4027
        %v4029 = vmul.f32 %v4028, %v2532
        %v4030 = vmul.f32 %v4028, %v2533
        %v4031 = vmul.f32 %v4028, %v2534
        %4035 = vrot.lane.b32.xlu0 %v4029, 87
        %v4036 = vpop.permute.xlu0 %4035
        %4037 = vrot.lane.b32.xlu0 %v4030, 87
        %v4038 = vpop.permute.xlu0 %4037
        %4039 = vrot.lane.b32.xlu0 %v4031, 87
        %v4040 = vpop.permute.xlu0 %4039
        %v4041 = vsel %vm2103, %v4036, %v4038
        %v4042 = vsel %vm2103, %v4038, %v4040
        %v4046 = vadd.f32 %v3980, %v4041
        %v4047 = vadd.f32 %v3981, %v4042
        %v4048 = vadd.f32 %v3982, %v4040
        %s4049 = sld [smem:[#allocation16 + $0xc]]
        %v4050 = vstv %s4049
        %v4051 = vmul.f32 %v4050, %v2468
        %v4052 = vmul.f32 %v4050, %v2469
        %v4053 = vmul.f32 %v4050, %v2470
        %4057 = vrot.lane.b32.xlu0 %v4051, 86
        %v4058 = vpop.permute.xlu0 %4057
        %4059 = vrot.lane.b32.xlu0 %v4052, 86
        %v4060 = vpop.permute.xlu0 %4059
        %4061 = vrot.lane.b32.xlu0 %v4053, 86
        %v4062 = vpop.permute.xlu0 %4061
        %v4063 = vsel %vm728, %v4058, %v4060
        %v4064 = vsel %vm728, %v4060, %v4062
        %v4068 = vadd.f32 %v4002, %v4063
        %v4069 = vadd.f32 %v4003, %v4064
        %v4070 = vadd.f32 %v4004, %v4062
        %s4071 = sld [smem:[#allocation16 + $0x3e]]
        %v4072 = vstv %s4071
        %v4073 = vmul.f32 %v4072, %v2468
        %v4074 = vmul.f32 %v4072, %v2469
        %v4075 = vmul.f32 %v4072, %v2470
        %4079 = vrot.lane.b32.xlu0 %v4073, 86
        %v4080 = vpop.permute.xlu0 %4079
        %4081 = vrot.lane.b32.xlu0 %v4074, 86
        %v4082 = vpop.permute.xlu0 %4081
        %4083 = vrot.lane.b32.xlu0 %v4075, 86
        %v4084 = vpop.permute.xlu0 %4083
        %v4085 = vsel %vm728, %v4080, %v4082
        %v4086 = vsel %vm728, %v4082, %v4084
        %v4090 = vadd.f32 %v4024, %v4085
        %v4091 = vadd.f32 %v4025, %v4086
        %v4092 = vadd.f32 %v4026, %v4084
        %s4093 = sld [smem:[#allocation16 + $0x70]]
        %v4094 = vstv %s4093
        %v4095 = vmul.f32 %v4094, %v2468
        %v4096 = vmul.f32 %v4094, %v2469
        %v4097 = vmul.f32 %v4094, %v2470
        %4101 = vrot.lane.b32.xlu0 %v4095, 86
        %v4102 = vpop.permute.xlu0 %4101
        %4103 = vrot.lane.b32.xlu0 %v4096, 86
        %v4104 = vpop.permute.xlu0 %4103
        %4105 = vrot.lane.b32.xlu0 %v4097, 86
        %v4106 = vpop.permute.xlu0 %4105
        %v4107 = vsel %vm728, %v4102, %v4104
        %v4108 = vsel %vm728, %v4104, %v4106
        %v4112 = vadd.f32 %v4046, %v4107
        %v4113 = vadd.f32 %v4047, %v4108
        %v4114 = vadd.f32 %v4048, %v4106
        %s4115 = sld [smem:[#allocation16 + $0x25]]
        %v4116 = vstv %s4115
        %v4117 = vmul.f32 %v4116, %v2532
        %v4118 = vmul.f32 %v4116, %v2533
        %v4119 = vmul.f32 %v4116, %v2534
        %4123 = vrot.lane.b32.xlu0 %v4117, 86
        %v4124 = vpop.permute.xlu0 %4123
        %4125 = vrot.lane.b32.xlu0 %v4118, 86
        %v4126 = vpop.permute.xlu0 %4125
        %4127 = vrot.lane.b32.xlu0 %v4119, 86
        %v4128 = vpop.permute.xlu0 %4127
        %v4129 = vsel %vm728, %v4124, %v4126
        %v4130 = vsel %vm728, %v4126, %v4128
        %v4134 = vadd.f32 %v4068, %v4129
        %v4135 = vadd.f32 %v4069, %v4130
        %v4136 = vadd.f32 %v4070, %v4128
        %s4137 = sld [smem:[#allocation16 + $0x57]]
        %v4138 = vstv %s4137
        %v4139 = vmul.f32 %v4138, %v2532
        %v4140 = vmul.f32 %v4138, %v2533
        %v4141 = vmul.f32 %v4138, %v2534
        %4145 = vrot.lane.b32.xlu0 %v4139, 86
        %v4146 = vpop.permute.xlu0 %4145
        %4147 = vrot.lane.b32.xlu0 %v4140, 86
        %v4148 = vpop.permute.xlu0 %4147
        %4149 = vrot.lane.b32.xlu0 %v4141, 86
        %v4150 = vpop.permute.xlu0 %4149
        %v4151 = vsel %vm728, %v4146, %v4148
        %v4152 = vsel %vm728, %v4148, %v4150
        %v4156 = vadd.f32 %v4090, %v4151
        %v4157 = vadd.f32 %v4091, %v4152
        %v4158 = vadd.f32 %v4092, %v4150
        %s4159 = sld [smem:[#allocation16 + $0x89]]
        %v4160 = vstv %s4159
        %v4161 = vmul.f32 %v4160, %v2532
        %v4162 = vmul.f32 %v4160, %v2533
        %v4163 = vmul.f32 %v4160, %v2534
        %4167 = vrot.lane.b32.xlu0 %v4161, 86
        %v4168 = vpop.permute.xlu0 %4167
        %4169 = vrot.lane.b32.xlu0 %v4162, 86
        %v4170 = vpop.permute.xlu0 %4169
        %4171 = vrot.lane.b32.xlu0 %v4163, 86
        %v4172 = vpop.permute.xlu0 %4171
        %v4173 = vsel %vm728, %v4168, %v4170
        %v4174 = vsel %vm728, %v4170, %v4172
        %v4178 = vadd.f32 %v4112, %v4173
        %v4179 = vadd.f32 %v4113, %v4174
        %v4180 = vadd.f32 %v4114, %v4172
        %s4181 = sld [smem:[#allocation16 + $0xd]]
        %v4182 = vstv %s4181
        %v4183 = vmul.f32 %v4182, %v2468
        %v4184 = vmul.f32 %v4182, %v2469
        %v4185 = vmul.f32 %v4182, %v2470
        %4189 = vrot.lane.b32.xlu0 %v4183, 85
        %v4190 = vpop.permute.xlu0 %4189
        %4191 = vrot.lane.b32.xlu0 %v4184, 85
        %v4192 = vpop.permute.xlu0 %4191
        %4193 = vrot.lane.b32.xlu0 %v4185, 85
        %v4194 = vpop.permute.xlu0 %4193
        %vm4195 = vcmask 695296
        %v4196 = vsel %vm4195, %v4190, %v4192
        %v4197 = vsel %vm4195, %v4192, %v4194
        %v4201 = vadd.f32 %v4134, %v4196
        %v4202 = vadd.f32 %v4135, %v4197
        %v4203 = vadd.f32 %v4136, %v4194
        %s4204 = sld [smem:[#allocation16 + $0x3f]]
        %v4205 = vstv %s4204
        %v4206 = vmul.f32 %v4205, %v2468
        %v4207 = vmul.f32 %v4205, %v2469
        %v4208 = vmul.f32 %v4205, %v2470
        %4212 = vrot.lane.b32.xlu0 %v4206, 85
        %v4213 = vpop.permute.xlu0 %4212
        %4214 = vrot.lane.b32.xlu0 %v4207, 85
        %v4215 = vpop.permute.xlu0 %4214
        %4216 = vrot.lane.b32.xlu0 %v4208, 85
        %v4217 = vpop.permute.xlu0 %4216
        %v4218 = vsel %vm4195, %v4213, %v4215
        %v4219 = vsel %vm4195, %v4215, %v4217
        %v4223 = vadd.f32 %v4156, %v4218
        %v4224 = vadd.f32 %v4157, %v4219
        %v4225 = vadd.f32 %v4158, %v4217
        %s4226 = sld [smem:[#allocation16 + $0x71]]
        %v4227 = vstv %s4226
        %v4228 = vmul.f32 %v4227, %v2468
        %v4229 = vmul.f32 %v4227, %v2469
        %v4230 = vmul.f32 %v4227, %v2470
        %4234 = vrot.lane.b32.xlu0 %v4228, 85
        %v4235 = vpop.permute.xlu0 %4234
        %4236 = vrot.lane.b32.xlu0 %v4229, 85
        %v4237 = vpop.permute.xlu0 %4236
        %4238 = vrot.lane.b32.xlu0 %v4230, 85
        %v4239 = vpop.permute.xlu0 %4238
        %v4240 = vsel %vm4195, %v4235, %v4237
        %v4241 = vsel %vm4195, %v4237, %v4239
        %v4245 = vadd.f32 %v4178, %v4240
        %v4246 = vadd.f32 %v4179, %v4241
        %v4247 = vadd.f32 %v4180, %v4239
        %s4248 = sld [smem:[#allocation16 + $0x26]]
        %v4249 = vstv %s4248
        %v4250 = vmul.f32 %v4249, %v2532
        %v4251 = vmul.f32 %v4249, %v2533
        %v4252 = vmul.f32 %v4249, %v2534
        %4256 = vrot.lane.b32.xlu0 %v4250, 85
        %v4257 = vpop.permute.xlu0 %4256
        %4258 = vrot.lane.b32.xlu0 %v4251, 85
        %v4259 = vpop.permute.xlu0 %4258
        %4260 = vrot.lane.b32.xlu0 %v4252, 85
        %v4261 = vpop.permute.xlu0 %4260
        %v4262 = vsel %vm4195, %v4257, %v4259
        %v4263 = vsel %vm4195, %v4259, %v4261
        %v4267 = vadd.f32 %v4201, %v4262
        %v4268 = vadd.f32 %v4202, %v4263
        %v4269 = vadd.f32 %v4203, %v4261
        %s4270 = sld [smem:[#allocation16 + $0x58]]
        %v4271 = vstv %s4270
        %v4272 = vmul.f32 %v4271, %v2532
        %v4273 = vmul.f32 %v4271, %v2533
        %v4274 = vmul.f32 %v4271, %v2534
        %4278 = vrot.lane.b32.xlu0 %v4272, 85
        %v4279 = vpop.permute.xlu0 %4278
        %4280 = vrot.lane.b32.xlu0 %v4273, 85
        %v4281 = vpop.permute.xlu0 %4280
        %4282 = vrot.lane.b32.xlu0 %v4274, 85
        %v4283 = vpop.permute.xlu0 %4282
        %v4284 = vsel %vm4195, %v4279, %v4281
        %v4285 = vsel %vm4195, %v4281, %v4283
        %v4289 = vadd.f32 %v4223, %v4284
        %v4290 = vadd.f32 %v4224, %v4285
        %v4291 = vadd.f32 %v4225, %v4283
        %s4292 = sld [smem:[#allocation16 + $0x8a]]
        %v4293 = vstv %s4292
        %v4294 = vmul.f32 %v4293, %v2532
        %v4295 = vmul.f32 %v4293, %v2533
        %v4296 = vmul.f32 %v4293, %v2534
        %4300 = vrot.lane.b32.xlu0 %v4294, 85
        %v4301 = vpop.permute.xlu0 %4300
        %4302 = vrot.lane.b32.xlu0 %v4295, 85
        %v4303 = vpop.permute.xlu0 %4302
        %4304 = vrot.lane.b32.xlu0 %v4296, 85
        %v4305 = vpop.permute.xlu0 %4304
        %v4306 = vsel %vm4195, %v4301, %v4303
        %v4307 = vsel %vm4195, %v4303, %v4305
        %v4311 = vadd.f32 %v4245, %v4306
        %v4312 = vadd.f32 %v4246, %v4307
        %v4313 = vadd.f32 %v4247, %v4305
        %s4314 = sld [smem:[#allocation16 + $0xe]]
        %v4315 = vstv %s4314
        %v4316 = vmul.f32 %v4315, %v2468
        %v4317 = vmul.f32 %v4315, %v2469
        %v4318 = vmul.f32 %v4315, %v2470
        %4322 = vrot.lane.b32.xlu0 %v4316, 84
        %v4323 = vpop.permute.xlu0 %4322
        %4324 = vrot.lane.b32.xlu0 %v4317, 84
        %v4325 = vpop.permute.xlu0 %4324
        %4326 = vrot.lane.b32.xlu0 %v4318, 84
        %v4327 = vpop.permute.xlu0 %4326
        %vm4328 = vcmask 687104
        %v4329 = vsel %vm4328, %v4323, %v4325
        %v4330 = vsel %vm4328, %v4325, %v4327
        %v4334 = vadd.f32 %v4267, %v4329
        %v4335 = vadd.f32 %v4268, %v4330
        %v4336 = vadd.f32 %v4269, %v4327
        %s4337 = sld [smem:[#allocation16 + $0x40]]
        %v4338 = vstv %s4337
        %v4339 = vmul.f32 %v4338, %v2468
        %v4340 = vmul.f32 %v4338, %v2469
        %v4341 = vmul.f32 %v4338, %v2470
        %4345 = vrot.lane.b32.xlu0 %v4339, 84
        %v4346 = vpop.permute.xlu0 %4345
        %4347 = vrot.lane.b32.xlu0 %v4340, 84
        %v4348 = vpop.permute.xlu0 %4347
        %4349 = vrot.lane.b32.xlu0 %v4341, 84
        %v4350 = vpop.permute.xlu0 %4349
        %v4351 = vsel %vm4328, %v4346, %v4348
        %v4352 = vsel %vm4328, %v4348, %v4350
        %v4356 = vadd.f32 %v4289, %v4351
        %v4357 = vadd.f32 %v4290, %v4352
        %v4358 = vadd.f32 %v4291, %v4350
        %s4359 = sld [smem:[#allocation16 + $0x72]]
        %v4360 = vstv %s4359
        %v4361 = vmul.f32 %v4360, %v2468
        %v4362 = vmul.f32 %v4360, %v2469
        %v4363 = vmul.f32 %v4360, %v2470
        %4367 = vrot.lane.b32.xlu0 %v4361, 84
        %v4368 = vpop.permute.xlu0 %4367
        %4369 = vrot.lane.b32.xlu0 %v4362, 84
        %v4370 = vpop.permute.xlu0 %4369
        %4371 = vrot.lane.b32.xlu0 %v4363, 84
        %v4372 = vpop.permute.xlu0 %4371
        %v4373 = vsel %vm4328, %v4368, %v4370
        %v4374 = vsel %vm4328, %v4370, %v4372
        %v4378 = vadd.f32 %v4311, %v4373
        %v4379 = vadd.f32 %v4312, %v4374
        %v4380 = vadd.f32 %v4313, %v4372
        %s4381 = sld [smem:[#allocation16 + $0x27]]
        %v4382 = vstv %s4381
        %v4383 = vmul.f32 %v4382, %v2532
        %v4384 = vmul.f32 %v4382, %v2533
        %v4385 = vmul.f32 %v4382, %v2534
        %4389 = vrot.lane.b32.xlu0 %v4383, 84
        %v4390 = vpop.permute.xlu0 %4389
        %4391 = vrot.lane.b32.xlu0 %v4384, 84
        %v4392 = vpop.permute.xlu0 %4391
        %4393 = vrot.lane.b32.xlu0 %v4385, 84
        %v4394 = vpop.permute.xlu0 %4393
        %v4395 = vsel %vm4328, %v4390, %v4392
        %v4396 = vsel %vm4328, %v4392, %v4394
        %v4400 = vadd.f32 %v4334, %v4395
        %v4401 = vadd.f32 %v4335, %v4396
        %v4402 = vadd.f32 %v4336, %v4394
        %s4403 = sld [smem:[#allocation16 + $0x59]]
        %v4404 = vstv %s4403
        %v4405 = vmul.f32 %v4404, %v2532
        %v4406 = vmul.f32 %v4404, %v2533
        %v4407 = vmul.f32 %v4404, %v2534
        %4411 = vrot.lane.b32.xlu0 %v4405, 84
        %v4412 = vpop.permute.xlu0 %4411
        %4413 = vrot.lane.b32.xlu0 %v4406, 84
        %v4414 = vpop.permute.xlu0 %4413
        %4415 = vrot.lane.b32.xlu0 %v4407, 84
        %v4416 = vpop.permute.xlu0 %4415
        %v4417 = vsel %vm4328, %v4412, %v4414
        %v4418 = vsel %vm4328, %v4414, %v4416
        %v4422 = vadd.f32 %v4356, %v4417
        %v4423 = vadd.f32 %v4357, %v4418
        %v4424 = vadd.f32 %v4358, %v4416
        %s4425 = sld [smem:[#allocation16 + $0x8b]]
        %v4426 = vstv %s4425
        %v4427 = vmul.f32 %v4426, %v2532
        %v4428 = vmul.f32 %v4426, %v2533
        %v4429 = vmul.f32 %v4426, %v2534
        %4433 = vrot.lane.b32.xlu0 %v4427, 84
        %v4434 = vpop.permute.xlu0 %4433
        %4435 = vrot.lane.b32.xlu0 %v4428, 84
        %v4436 = vpop.permute.xlu0 %4435
        %4437 = vrot.lane.b32.xlu0 %v4429, 84
        %v4438 = vpop.permute.xlu0 %4437
        %v4439 = vsel %vm4328, %v4434, %v4436
        %v4440 = vsel %vm4328, %v4436, %v4438
        %v4444 = vadd.f32 %v4378, %v4439
        %v4445 = vadd.f32 %v4379, %v4440
        %v4446 = vadd.f32 %v4380, %v4438
        %s4447 = sld [smem:[#allocation16 + $0xf]]
        %v4448 = vstv %s4447
        %v4449 = vmul.f32 %v4448, %v2468
        %v4450 = vmul.f32 %v4448, %v2469
        %v4451 = vmul.f32 %v4448, %v2470
        %4455 = vrot.lane.b32.xlu0 %v4449, 68
        %v4456 = vpop.permute.xlu0 %4455
        %4457 = vrot.lane.b32.xlu0 %v4450, 68
        %v4458 = vpop.permute.xlu0 %4457
        %4459 = vrot.lane.b32.xlu0 %v4451, 68
        %v4460 = vpop.permute.xlu0 %4459
        %vm4461 = vcmask 556032
        %v4462 = vsel %vm4461, %v4456, %v4458
        %v4463 = vsel %vm4461, %v4458, %v4460
        %v4467 = vadd.f32 %v4400, %v4462
        %v4468 = vadd.f32 %v4401, %v4463
        %v4469 = vadd.f32 %v4402, %v4460
        %s4470 = sld [smem:[#allocation16 + $0x41]]
        %v4471 = vstv %s4470
        %v4472 = vmul.f32 %v4471, %v2468
        %v4473 = vmul.f32 %v4471, %v2469
        %v4474 = vmul.f32 %v4471, %v2470
        %4478 = vrot.lane.b32.xlu0 %v4472, 68
        %v4479 = vpop.permute.xlu0 %4478
        %4480 = vrot.lane.b32.xlu0 %v4473, 68
        %v4481 = vpop.permute.xlu0 %4480
        %4482 = vrot.lane.b32.xlu0 %v4474, 68
        %v4483 = vpop.permute.xlu0 %4482
        %v4484 = vsel %vm4461, %v4479, %v4481
        %v4485 = vsel %vm4461, %v4481, %v4483
        %v4489 = vadd.f32 %v4422, %v4484
        %v4490 = vadd.f32 %v4423, %v4485
        %v4491 = vadd.f32 %v4424, %v4483
        %s4492 = sld [smem:[#allocation16 + $0x73]]
        %v4493 = vstv %s4492
        %v4494 = vmul.f32 %v4493, %v2468
        %v4495 = vmul.f32 %v4493, %v2469
        %v4496 = vmul.f32 %v4493, %v2470
        %4500 = vrot.lane.b32.xlu0 %v4494, 68
        %v4501 = vpop.permute.xlu0 %4500
        %4502 = vrot.lane.b32.xlu0 %v4495, 68
        %v4503 = vpop.permute.xlu0 %4502
        %4504 = vrot.lane.b32.xlu0 %v4496, 68
        %v4505 = vpop.permute.xlu0 %4504
        %v4506 = vsel %vm4461, %v4501, %v4503
        %v4507 = vsel %vm4461, %v4503, %v4505
        %v4511 = vadd.f32 %v4444, %v4506
        %v4512 = vadd.f32 %v4445, %v4507
        %v4513 = vadd.f32 %v4446, %v4505
        %s4514 = sld [smem:[#allocation16 + $0x28]]
        %v4515 = vstv %s4514
        %v4516 = vmul.f32 %v4515, %v2532
        %v4517 = vmul.f32 %v4515, %v2533
        %v4518 = vmul.f32 %v4515, %v2534
        %4522 = vrot.lane.b32.xlu0 %v4516, 68
        %v4523 = vpop.permute.xlu0 %4522
        %4524 = vrot.lane.b32.xlu0 %v4517, 68
        %v4525 = vpop.permute.xlu0 %4524
        %4526 = vrot.lane.b32.xlu0 %v4518, 68
        %v4527 = vpop.permute.xlu0 %4526
        %v4528 = vsel %vm4461, %v4523, %v4525
        %v4529 = vsel %vm4461, %v4525, %v4527
        %v4533 = vadd.f32 %v4467, %v4528
        %v4534 = vadd.f32 %v4468, %v4529
        %v4535 = vadd.f32 %v4469, %v4527
        %s4536 = sld [smem:[#allocation16 + $0x5a]]
        %v4537 = vstv %s4536
        %v4538 = vmul.f32 %v4537, %v2532
        %v4539 = vmul.f32 %v4537, %v2533
        %v4540 = vmul.f32 %v4537, %v2534
        %4544 = vrot.lane.b32.xlu0 %v4538, 68
        %v4545 = vpop.permute.xlu0 %4544
        %4546 = vrot.lane.b32.xlu0 %v4539, 68
        %v4547 = vpop.permute.xlu0 %4546
        %4548 = vrot.lane.b32.xlu0 %v4540, 68
        %v4549 = vpop.permute.xlu0 %4548
        %v4550 = vsel %vm4461, %v4545, %v4547
        %v4551 = vsel %vm4461, %v4547, %v4549
        %v4555 = vadd.f32 %v4489, %v4550
        %v4556 = vadd.f32 %v4490, %v4551
        %v4557 = vadd.f32 %v4491, %v4549
        %s4558 = sld [smem:[#allocation16 + $0x8c]]
        %v4559 = vstv %s4558
        %v4560 = vmul.f32 %v4559, %v2532
        %v4561 = vmul.f32 %v4559, %v2533
        %v4562 = vmul.f32 %v4559, %v2534
        %4566 = vrot.lane.b32.xlu0 %v4560, 68
        %v4567 = vpop.permute.xlu0 %4566
        %4568 = vrot.lane.b32.xlu0 %v4561, 68
        %v4569 = vpop.permute.xlu0 %4568
        %4570 = vrot.lane.b32.xlu0 %v4562, 68
        %v4571 = vpop.permute.xlu0 %4570
        %v4572 = vsel %vm4461, %v4567, %v4569
        %v4573 = vsel %vm4461, %v4569, %v4571
        %v4577 = vadd.f32 %v4511, %v4572
        %v4578 = vadd.f32 %v4512, %v4573
        %v4579 = vadd.f32 %v4513, %v4571
        %s4580 = sld [smem:[#allocation16 + $0x10]]
        %v4581 = vstv %s4580
        %v4582 = vmul.f32 %v4581, %v2468
        %v4583 = vmul.f32 %v4581, %v2469
        %v4584 = vmul.f32 %v4581, %v2470
        %4588 = vrot.lane.b32.xlu0 %v4582, 67
        %v4589 = vpop.permute.xlu0 %4588
        %4590 = vrot.lane.b32.xlu0 %v4583, 67
        %v4591 = vpop.permute.xlu0 %4590
        %4592 = vrot.lane.b32.xlu0 %v4584, 67
        %v4593 = vpop.permute.xlu0 %4592
        %vm4594 = vcmask 547840
        %v4595 = vsel %vm4594, %v4589, %v4591
        %v4596 = vsel %vm4594, %v4591, %v4593
        %v4600 = vadd.f32 %v4533, %v4595
        %v4601 = vadd.f32 %v4534, %v4596
        %v4602 = vadd.f32 %v4535, %v4593
        %s4603 = sld [smem:[#allocation16 + $0x42]]
        %v4604 = vstv %s4603
        %v4605 = vmul.f32 %v4604, %v2468
        %v4606 = vmul.f32 %v4604, %v2469
        %v4607 = vmul.f32 %v4604, %v2470
        %4611 = vrot.lane.b32.xlu0 %v4605, 67
        %v4612 = vpop.permute.xlu0 %4611
        %4613 = vrot.lane.b32.xlu0 %v4606, 67
        %v4614 = vpop.permute.xlu0 %4613
        %4615 = vrot.lane.b32.xlu0 %v4607, 67
        %v4616 = vpop.permute.xlu0 %4615
        %v4617 = vsel %vm4594, %v4612, %v4614
        %v4618 = vsel %vm4594, %v4614, %v4616
        %v4622 = vadd.f32 %v4555, %v4617
        %v4623 = vadd.f32 %v4556, %v4618
        %v4624 = vadd.f32 %v4557, %v4616
        %s4625 = sld [smem:[#allocation16 + $0x74]]
        %v4626 = vstv %s4625
        %v4627 = vmul.f32 %v4626, %v2468
        %v4628 = vmul.f32 %v4626, %v2469
        %v4629 = vmul.f32 %v4626, %v2470
        %4633 = vrot.lane.b32.xlu0 %v4627, 67
        %v4634 = vpop.permute.xlu0 %4633
        %4635 = vrot.lane.b32.xlu0 %v4628, 67
        %v4636 = vpop.permute.xlu0 %4635
        %4637 = vrot.lane.b32.xlu0 %v4629, 67
        %v4638 = vpop.permute.xlu0 %4637
        %v4639 = vsel %vm4594, %v4634, %v4636
        %v4640 = vsel %vm4594, %v4636, %v4638
        %v4644 = vadd.f32 %v4577, %v4639
        %v4645 = vadd.f32 %v4578, %v4640
        %v4646 = vadd.f32 %v4579, %v4638
        %s4647 = sld [smem:[#allocation16 + $0x29]]
        %v4648 = vstv %s4647
        %v4649 = vmul.f32 %v4648, %v2532
        %v4650 = vmul.f32 %v4648, %v2533
        %v4651 = vmul.f32 %v4648, %v2534
        %4655 = vrot.lane.b32.xlu0 %v4649, 67
        %v4656 = vpop.permute.xlu0 %4655
        %4657 = vrot.lane.b32.xlu0 %v4650, 67
        %v4658 = vpop.permute.xlu0 %4657
        %4659 = vrot.lane.b32.xlu0 %v4651, 67
        %v4660 = vpop.permute.xlu0 %4659
        %v4661 = vsel %vm4594, %v4656, %v4658
        %v4662 = vsel %vm4594, %v4658, %v4660
        %v4666 = vadd.f32 %v4600, %v4661
        %v4667 = vadd.f32 %v4601, %v4662
        %v4668 = vadd.f32 %v4602, %v4660
        %s4669 = sld [smem:[#allocation16 + $0x5b]]
        %v4670 = vstv %s4669
        %v4671 = vmul.f32 %v4670, %v2532
        %v4672 = vmul.f32 %v4670, %v2533
        %v4673 = vmul.f32 %v4670, %v2534
        %4677 = vrot.lane.b32.xlu0 %v4671, 67
        %v4678 = vpop.permute.xlu0 %4677
        %4679 = vrot.lane.b32.xlu0 %v4672, 67
        %v4680 = vpop.permute.xlu0 %4679
        %4681 = vrot.lane.b32.xlu0 %v4673, 67
        %v4682 = vpop.permute.xlu0 %4681
        %v4683 = vsel %vm4594, %v4678, %v4680
        %v4684 = vsel %vm4594, %v4680, %v4682
        %v4688 = vadd.f32 %v4622, %v4683
        %v4689 = vadd.f32 %v4623, %v4684
        %v4690 = vadd.f32 %v4624, %v4682
        %s4691 = sld [smem:[#allocation16 + $0x8d]]
        %v4692 = vstv %s4691
        %v4693 = vmul.f32 %v4692, %v2532
        %v4694 = vmul.f32 %v4692, %v2533
        %v4695 = vmul.f32 %v4692, %v2534
        %4699 = vrot.lane.b32.xlu0 %v4693, 67
        %v4700 = vpop.permute.xlu0 %4699
        %4701 = vrot.lane.b32.xlu0 %v4694, 67
        %v4702 = vpop.permute.xlu0 %4701
        %4703 = vrot.lane.b32.xlu0 %v4695, 67
        %v4704 = vpop.permute.xlu0 %4703
        %v4705 = vsel %vm4594, %v4700, %v4702
        %v4706 = vsel %vm4594, %v4702, %v4704
        %v4710 = vadd.f32 %v4644, %v4705
        %v4711 = vadd.f32 %v4645, %v4706
        %v4712 = vadd.f32 %v4646, %v4704
        %s4713 = sld [smem:[#allocation16 + $0x11]]
        %v4714 = vstv %s4713
        %v4715 = vmul.f32 %v4714, %v2468
        %v4716 = vmul.f32 %v4714, %v2469
        %v4717 = vmul.f32 %v4714, %v2470
        %4721 = vrot.lane.b32.xlu0 %v4715, 66
        %v4722 = vpop.permute.xlu0 %4721
        %4723 = vrot.lane.b32.xlu0 %v4716, 66
        %v4724 = vpop.permute.xlu0 %4723
        %4725 = vrot.lane.b32.xlu0 %v4717, 66
        %v4726 = vpop.permute.xlu0 %4725
        %vm4727 = vcmask 539648
        %v4728 = vsel %vm4727, %v4722, %v4724
        %v4729 = vsel %vm4727, %v4724, %v4726
        %v4733 = vadd.f32 %v4666, %v4728
        %v4734 = vadd.f32 %v4667, %v4729
        %v4735 = vadd.f32 %v4668, %v4726
        %s4736 = sld [smem:[#allocation16 + $0x43]]
        %v4737 = vstv %s4736
        %v4738 = vmul.f32 %v4737, %v2468
        %v4739 = vmul.f32 %v4737, %v2469
        %v4740 = vmul.f32 %v4737, %v2470
        %4744 = vrot.lane.b32.xlu0 %v4738, 66
        %v4745 = vpop.permute.xlu0 %4744
        %4746 = vrot.lane.b32.xlu0 %v4739, 66
        %v4747 = vpop.permute.xlu0 %4746
        %4748 = vrot.lane.b32.xlu0 %v4740, 66
        %v4749 = vpop.permute.xlu0 %4748
        %v4750 = vsel %vm4727, %v4745, %v4747
        %v4751 = vsel %vm4727, %v4747, %v4749
        %v4755 = vadd.f32 %v4688, %v4750
        %v4756 = vadd.f32 %v4689, %v4751
        %v4757 = vadd.f32 %v4690, %v4749
        %s4758 = sld [smem:[#allocation16 + $0x75]]
        %v4759 = vstv %s4758
        %v4760 = vmul.f32 %v4759, %v2468
        %v4761 = vmul.f32 %v4759, %v2469
        %v4762 = vmul.f32 %v4759, %v2470
        %4766 = vrot.lane.b32.xlu0 %v4760, 66
        %v4767 = vpop.permute.xlu0 %4766
        %4768 = vrot.lane.b32.xlu0 %v4761, 66
        %v4769 = vpop.permute.xlu0 %4768
        %4770 = vrot.lane.b32.xlu0 %v4762, 66
        %v4771 = vpop.permute.xlu0 %4770
        %v4772 = vsel %vm4727, %v4767, %v4769
        %v4773 = vsel %vm4727, %v4769, %v4771
        %v4777 = vadd.f32 %v4710, %v4772
        %v4778 = vadd.f32 %v4711, %v4773
        %v4779 = vadd.f32 %v4712, %v4771
        %s4780 = sld [smem:[#allocation16 + $0x2a]]
        %v4781 = vstv %s4780
        %v4782 = vmul.f32 %v4781, %v2532
        %v4783 = vmul.f32 %v4781, %v2533
        %v4784 = vmul.f32 %v4781, %v2534
        %4788 = vrot.lane.b32.xlu0 %v4782, 66
        %v4789 = vpop.permute.xlu0 %4788
        %4790 = vrot.lane.b32.xlu0 %v4783, 66
        %v4791 = vpop.permute.xlu0 %4790
        %4792 = vrot.lane.b32.xlu0 %v4784, 66
        %v4793 = vpop.permute.xlu0 %4792
        %v4794 = vsel %vm4727, %v4789, %v4791
        %v4795 = vsel %vm4727, %v4791, %v4793
        %v4799 = vadd.f32 %v4733, %v4794
        %v4800 = vadd.f32 %v4734, %v4795
        %v4801 = vadd.f32 %v4735, %v4793
        %s4802 = sld [smem:[#allocation16 + $0x5c]]
        %v4803 = vstv %s4802
        %v4804 = vmul.f32 %v4803, %v2532
        %v4805 = vmul.f32 %v4803, %v2533
        %v4806 = vmul.f32 %v4803, %v2534
        %4810 = vrot.lane.b32.xlu0 %v4804, 66
        %v4811 = vpop.permute.xlu0 %4810
        %4812 = vrot.lane.b32.xlu0 %v4805, 66
        %v4813 = vpop.permute.xlu0 %4812
        %4814 = vrot.lane.b32.xlu0 %v4806, 66
        %v4815 = vpop.permute.xlu0 %4814
        %v4816 = vsel %vm4727, %v4811, %v4813
        %v4817 = vsel %vm4727, %v4813, %v4815
        %v4821 = vadd.f32 %v4755, %v4816
        %v4822 = vadd.f32 %v4756, %v4817
        %v4823 = vadd.f32 %v4757, %v4815
        %s4824 = sld [smem:[#allocation16 + $0x8e]]
        %v4825 = vstv %s4824
        %v4826 = vmul.f32 %v4825, %v2532
        %v4827 = vmul.f32 %v4825, %v2533
        %v4828 = vmul.f32 %v4825, %v2534
        %4832 = vrot.lane.b32.xlu0 %v4826, 66
        %v4833 = vpop.permute.xlu0 %4832
        %4834 = vrot.lane.b32.xlu0 %v4827, 66
        %v4835 = vpop.permute.xlu0 %4834
        %4836 = vrot.lane.b32.xlu0 %v4828, 66
        %v4837 = vpop.permute.xlu0 %4836
        %v4838 = vsel %vm4727, %v4833, %v4835
        %v4839 = vsel %vm4727, %v4835, %v4837
        %v4843 = vadd.f32 %v4777, %v4838
        %v4844 = vadd.f32 %v4778, %v4839
        %v4845 = vadd.f32 %v4779, %v4837
        %s4846 = sld [smem:[#allocation16 + $0x12]]
        %v4847 = vstv %s4846
        %v4848 = vmul.f32 %v4847, %v2468
        %v4849 = vmul.f32 %v4847, %v2469
        %v4850 = vmul.f32 %v4847, %v2470
        %4854 = vrot.lane.b32.xlu0 %v4848, 65
        %v4855 = vpop.permute.xlu0 %4854
        %4856 = vrot.lane.b32.xlu0 %v4849, 65
        %v4857 = vpop.permute.xlu0 %4856
        %4858 = vrot.lane.b32.xlu0 %v4850, 65
        %v4859 = vpop.permute.xlu0 %4858
        %vm4860 = vcmask 531456
        %v4861 = vsel %vm4860, %v4855, %v4857
        %v4862 = vsel %vm4860, %v4857, %v4859
        %v4866 = vadd.f32 %v4799, %v4861
        %v4867 = vadd.f32 %v4800, %v4862
        %v4868 = vadd.f32 %v4801, %v4859
        %s4869 = sld [smem:[#allocation16 + $0x44]]
        %v4870 = vstv %s4869
        %v4871 = vmul.f32 %v4870, %v2468
        %v4872 = vmul.f32 %v4870, %v2469
        %v4873 = vmul.f32 %v4870, %v2470
        %4877 = vrot.lane.b32.xlu0 %v4871, 65
        %v4878 = vpop.permute.xlu0 %4877
        %4879 = vrot.lane.b32.xlu0 %v4872, 65
        %v4880 = vpop.permute.xlu0 %4879
        %4881 = vrot.lane.b32.xlu0 %v4873, 65
        %v4882 = vpop.permute.xlu0 %4881
        %v4883 = vsel %vm4860, %v4878, %v4880
        %v4884 = vsel %vm4860, %v4880, %v4882
        %v4888 = vadd.f32 %v4821, %v4883
        %v4889 = vadd.f32 %v4822, %v4884
        %v4890 = vadd.f32 %v4823, %v4882
        %s4891 = sld [smem:[#allocation16 + $0x76]]
        %v4892 = vstv %s4891
        %v4893 = vmul.f32 %v4892, %v2468
        %v4894 = vmul.f32 %v4892, %v2469
        %v4895 = vmul.f32 %v4892, %v2470
        %4899 = vrot.lane.b32.xlu0 %v4893, 65
        %v4900 = vpop.permute.xlu0 %4899
        %4901 = vrot.lane.b32.xlu0 %v4894, 65
        %v4902 = vpop.permute.xlu0 %4901
        %4903 = vrot.lane.b32.xlu0 %v4895, 65
        %v4904 = vpop.permute.xlu0 %4903
        %v4905 = vsel %vm4860, %v4900, %v4902
        %v4906 = vsel %vm4860, %v4902, %v4904
        %v4910 = vadd.f32 %v4843, %v4905
        %v4911 = vadd.f32 %v4844, %v4906
        %v4912 = vadd.f32 %v4845, %v4904
        %s4913 = sld [smem:[#allocation16 + $0x2b]]
        %v4914 = vstv %s4913
        %v4915 = vmul.f32 %v4914, %v2532
        %v4916 = vmul.f32 %v4914, %v2533
        %v4917 = vmul.f32 %v4914, %v2534
        %4921 = vrot.lane.b32.xlu0 %v4915, 65
        %v4922 = vpop.permute.xlu0 %4921
        %4923 = vrot.lane.b32.xlu0 %v4916, 65
        %v4924 = vpop.permute.xlu0 %4923
        %4925 = vrot.lane.b32.xlu0 %v4917, 65
        %v4926 = vpop.permute.xlu0 %4925
        %v4927 = vsel %vm4860, %v4922, %v4924
        %v4928 = vsel %vm4860, %v4924, %v4926
        %v4932 = vadd.f32 %v4866, %v4927
        %v4933 = vadd.f32 %v4867, %v4928
        %v4934 = vadd.f32 %v4868, %v4926
        %s4935 = sld [smem:[#allocation16 + $0x5d]]
        %v4936 = vstv %s4935
        %v4937 = vmul.f32 %v4936, %v2532
        %v4938 = vmul.f32 %v4936, %v2533
        %v4939 = vmul.f32 %v4936, %v2534
        %4943 = vrot.lane.b32.xlu0 %v4937, 65
        %v4944 = vpop.permute.xlu0 %4943
        %4945 = vrot.lane.b32.xlu0 %v4938, 65
        %v4946 = vpop.permute.xlu0 %4945
        %4947 = vrot.lane.b32.xlu0 %v4939, 65
        %v4948 = vpop.permute.xlu0 %4947
        %v4949 = vsel %vm4860, %v4944, %v4946
        %v4950 = vsel %vm4860, %v4946, %v4948
        %v4954 = vadd.f32 %v4888, %v4949
        %v4955 = vadd.f32 %v4889, %v4950
        %v4956 = vadd.f32 %v4890, %v4948
        %s4957 = sld [smem:[#allocation16 + $0x8f]]
        %v4958 = vstv %s4957
        %v4959 = vmul.f32 %v4958, %v2532
        %v4960 = vmul.f32 %v4958, %v2533
        %v4961 = vmul.f32 %v4958, %v2534
        %4965 = vrot.lane.b32.xlu0 %v4959, 65
        %v4966 = vpop.permute.xlu0 %4965
        %4967 = vrot.lane.b32.xlu0 %v4960, 65
        %v4968 = vpop.permute.xlu0 %4967
        %4969 = vrot.lane.b32.xlu0 %v4961, 65
        %v4970 = vpop.permute.xlu0 %4969
        %v4971 = vsel %vm4860, %v4966, %v4968
        %v4972 = vsel %vm4860, %v4968, %v4970
        %v4976 = vadd.f32 %v4910, %v4971
        %v4977 = vadd.f32 %v4911, %v4972
        %v4978 = vadd.f32 %v4912, %v4970
        %s4979 = sld [smem:[#allocation16 + $0x13]]
        %v4980 = vstv %s4979
        %v4981 = vmul.f32 %v4980, %v2468
        %v4982 = vmul.f32 %v4980, %v2469
        %v4983 = vmul.f32 %v4980, %v2470
        %4987 = vrot.lane.b32.xlu0 %v4981, 64
        %v4988 = vpop.permute.xlu0 %4987
        %4989 = vrot.lane.b32.xlu0 %v4982, 64
        %v4990 = vpop.permute.xlu0 %4989
        %4991 = vrot.lane.b32.xlu0 %v4983, 64
        %v4992 = vpop.permute.xlu0 %4991
        %vm4993 = vcmask 523264
        %v4994 = vsel %vm4993, %v4988, %v4990
        %v4995 = vsel %vm4993, %v4990, %v4992
        %v4999 = vadd.f32 %v4932, %v4994
        %v5000 = vadd.f32 %v4933, %v4995
        %v5001 = vadd.f32 %v4934, %v4992
        %s5002 = sld [smem:[#allocation16 + $0x45]]
        %v5003 = vstv %s5002
        %v5004 = vmul.f32 %v5003, %v2468
        %v5005 = vmul.f32 %v5003, %v2469
        %v5006 = vmul.f32 %v5003, %v2470
        %5010 = vrot.lane.b32.xlu0 %v5004, 64
        %v5011 = vpop.permute.xlu0 %5010
        %5012 = vrot.lane.b32.xlu0 %v5005, 64
        %v5013 = vpop.permute.xlu0 %5012
        %5014 = vrot.lane.b32.xlu0 %v5006, 64
        %v5015 = vpop.permute.xlu0 %5014
        %v5016 = vsel %vm4993, %v5011, %v5013
        %v5017 = vsel %vm4993, %v5013, %v5015
        %v5021 = vadd.f32 %v4954, %v5016
        %v5022 = vadd.f32 %v4955, %v5017
        %v5023 = vadd.f32 %v4956, %v5015
        %s5024 = sld [smem:[#allocation16 + $0x77]]
        %v5025 = vstv %s5024
        %v5026 = vmul.f32 %v5025, %v2468
        %v5027 = vmul.f32 %v5025, %v2469
        %v5028 = vmul.f32 %v5025, %v2470
        %5032 = vrot.lane.b32.xlu0 %v5026, 64
        %v5033 = vpop.permute.xlu0 %5032
        %5034 = vrot.lane.b32.xlu0 %v5027, 64
        %v5035 = vpop.permute.xlu0 %5034
        %5036 = vrot.lane.b32.xlu0 %v5028, 64
        %v5037 = vpop.permute.xlu0 %5036
        %v5038 = vsel %vm4993, %v5033, %v5035
        %v5039 = vsel %vm4993, %v5035, %v5037
        %v5043 = vadd.f32 %v4976, %v5038
        %v5044 = vadd.f32 %v4977, %v5039
        %v5045 = vadd.f32 %v4978, %v5037
        %s5046 = sld [smem:[#allocation16 + $0x2c]]
        %v5047 = vstv %s5046
        %v5048 = vmul.f32 %v5047, %v2532
        %v5049 = vmul.f32 %v5047, %v2533
        %v5050 = vmul.f32 %v5047, %v2534
        %5054 = vrot.lane.b32.xlu0 %v5048, 64
        %v5055 = vpop.permute.xlu0 %5054
        %5056 = vrot.lane.b32.xlu0 %v5049, 64
        %v5057 = vpop.permute.xlu0 %5056
        %5058 = vrot.lane.b32.xlu0 %v5050, 64
        %v5059 = vpop.permute.xlu0 %5058
        %v5060 = vsel %vm4993, %v5055, %v5057
        %v5061 = vsel %vm4993, %v5057, %v5059
        %v5065 = vadd.f32 %v4999, %v5060
        %v5066 = vadd.f32 %v5000, %v5061
        %v5067 = vadd.f32 %v5001, %v5059
        %s5068 = sld [smem:[#allocation16 + $0x5e]]
        %v5069 = vstv %s5068
        %v5070 = vmul.f32 %v5069, %v2532
        %v5071 = vmul.f32 %v5069, %v2533
        %v5072 = vmul.f32 %v5069, %v2534
        %5076 = vrot.lane.b32.xlu0 %v5070, 64
        %v5077 = vpop.permute.xlu0 %5076
        %5078 = vrot.lane.b32.xlu0 %v5071, 64
        %v5079 = vpop.permute.xlu0 %5078
        %5080 = vrot.lane.b32.xlu0 %v5072, 64
        %v5081 = vpop.permute.xlu0 %5080
        %v5082 = vsel %vm4993, %v5077, %v5079
        %v5083 = vsel %vm4993, %v5079, %v5081
        %v5087 = vadd.f32 %v5021, %v5082
        %v5088 = vadd.f32 %v5022, %v5083
        %v5089 = vadd.f32 %v5023, %v5081
        %s5090 = sld [smem:[#allocation16 + $0x90]]
        %v5091 = vstv %s5090
        %v5092 = vmul.f32 %v5091, %v2532
        %v5093 = vmul.f32 %v5091, %v2533
        %v5094 = vmul.f32 %v5091, %v2534
        %5098 = vrot.lane.b32.xlu0 %v5092, 64
        %v5099 = vpop.permute.xlu0 %5098
        %5100 = vrot.lane.b32.xlu0 %v5093, 64
        %v5101 = vpop.permute.xlu0 %5100
        %5102 = vrot.lane.b32.xlu0 %v5094, 64
        %v5103 = vpop.permute.xlu0 %5102
        %v5104 = vsel %vm4993, %v5099, %v5101
        %v5105 = vsel %vm4993, %v5101, %v5103
        %v5109 = vadd.f32 %v5043, %v5104
        %v5110 = vadd.f32 %v5044, %v5105
        %v5111 = vadd.f32 %v5045, %v5103
        %s5112 = sld [smem:[#allocation16 + $0x14]]
        %v5113 = vstv %s5112
        %v5114 = vmul.f32 %v5113, %v2468
        %v5115 = vmul.f32 %v5113, %v2469
        %v5116 = vmul.f32 %v5113, %v2470
        %v5117 = vmul.f32 %v5113, %v2471
        %5122 = vrot.lane.b32.xlu0 %v5114, 48
        %v5123 = vpop.permute.xlu0 %5122
        %5124 = vrot.lane.b32.xlu0 %v5115, 48
        %v5125 = vpop.permute.xlu0 %5124
        %5126 = vrot.lane.b32.xlu0 %v5116, 48
        %v5127 = vpop.permute.xlu0 %5126
        %5128 = vrot.lane.b32.xlu0 %v5117, 48
        %v5129 = vpop.permute.xlu0 %5128
        %vm5130 = vcmask 392192
        %v5131 = vsel %vm5130, %v5123, %v5125
        %v5132 = vsel %vm5130, %v5125, %v5127
        %v5133 = vsel %vm5130, %v5127, %v5129
        %v5137 = vadd.f32 %v5065, %v5131
        %v5138 = vadd.f32 %v5066, %v5132
        %v5139 = vadd.f32 %v5067, %v5133
        %s5140 = sld [smem:[#allocation16 + $0x46]]
        %v5141 = vstv %s5140
        %v5142 = vmul.f32 %v5141, %v2468
        %v5143 = vmul.f32 %v5141, %v2469
        %v5144 = vmul.f32 %v5141, %v2470
        %v5145 = vmul.f32 %v5141, %v2471
        %5150 = vrot.lane.b32.xlu0 %v5142, 48
        %v5151 = vpop.permute.xlu0 %5150
        %5152 = vrot.lane.b32.xlu0 %v5143, 48
        %v5153 = vpop.permute.xlu0 %5152
        %5154 = vrot.lane.b32.xlu0 %v5144, 48
        %v5155 = vpop.permute.xlu0 %5154
        %5156 = vrot.lane.b32.xlu0 %v5145, 48
        %v5157 = vpop.permute.xlu0 %5156
        %v5158 = vsel %vm5130, %v5151, %v5153
        %v5159 = vsel %vm5130, %v5153, %v5155
        %v5160 = vsel %vm5130, %v5155, %v5157
        %v5164 = vadd.f32 %v5087, %v5158
        %v5165 = vadd.f32 %v5088, %v5159
        %v5166 = vadd.f32 %v5089, %v5160
        %s5167 = sld [smem:[#allocation16 + $0x78]]
        %v5168 = vstv %s5167
        %v5169 = vmul.f32 %v5168, %v2468
        %v5170 = vmul.f32 %v5168, %v2469
        %v5171 = vmul.f32 %v5168, %v2470
        %v5172 = vmul.f32 %v5168, %v2471
        %5177 = vrot.lane.b32.xlu0 %v5169, 48
        %v5178 = vpop.permute.xlu0 %5177
        %5179 = vrot.lane.b32.xlu0 %v5170, 48
        %v5180 = vpop.permute.xlu0 %5179
        %5181 = vrot.lane.b32.xlu0 %v5171, 48
        %v5182 = vpop.permute.xlu0 %5181
        %5183 = vrot.lane.b32.xlu0 %v5172, 48
        %v5184 = vpop.permute.xlu0 %5183
        %v5185 = vsel %vm5130, %v5178, %v5180
        %v5186 = vsel %vm5130, %v5180, %v5182
        %v5187 = vsel %vm5130, %v5182, %v5184
        %v5191 = vadd.f32 %v5109, %v5185
        %v5192 = vadd.f32 %v5110, %v5186
        %v5193 = vadd.f32 %v5111, %v5187
        %s5194 = sld [smem:[#allocation16 + $0x2d]]
        %v5195 = vstv %s5194
        %v5196 = vmul.f32 %v5195, %v2532
        %v5197 = vmul.f32 %v5195, %v2533
        %v5198 = vmul.f32 %v5195, %v2534
        %v5199 = vmul.f32 %v5195, %v2535
        %5204 = vrot.lane.b32.xlu0 %v5196, 48
        %v5205 = vpop.permute.xlu0 %5204
        %5206 = vrot.lane.b32.xlu0 %v5197, 48
        %v5207 = vpop.permute.xlu0 %5206
        %5208 = vrot.lane.b32.xlu0 %v5198, 48
        %v5209 = vpop.permute.xlu0 %5208
        %5210 = vrot.lane.b32.xlu0 %v5199, 48
        %v5211 = vpop.permute.xlu0 %5210
        %v5212 = vsel %vm5130, %v5205, %v5207
        %v5213 = vsel %vm5130, %v5207, %v5209
        %v5214 = vsel %vm5130, %v5209, %v5211
        %v5218 = vadd.f32 %v5137, %v5212
        %v5219 = vadd.f32 %v5138, %v5213
        %v5220 = vadd.f32 %v5139, %v5214
        %s5221 = sld [smem:[#allocation16 + $0x5f]]
        %v5222 = vstv %s5221
        %v5223 = vmul.f32 %v5222, %v2532
        %v5224 = vmul.f32 %v5222, %v2533
        %v5225 = vmul.f32 %v5222, %v2534
        %v5226 = vmul.f32 %v5222, %v2535
        %5231 = vrot.lane.b32.xlu0 %v5223, 48
        %v5232 = vpop.permute.xlu0 %5231
        %5233 = vrot.lane.b32.xlu0 %v5224, 48
        %v5234 = vpop.permute.xlu0 %5233
        %5235 = vrot.lane.b32.xlu0 %v5225, 48
        %v5236 = vpop.permute.xlu0 %5235
        %5237 = vrot.lane.b32.xlu0 %v5226, 48
        %v5238 = vpop.permute.xlu0 %5237
        %v5239 = vsel %vm5130, %v5232, %v5234
        %v5240 = vsel %vm5130, %v5234, %v5236
        %v5241 = vsel %vm5130, %v5236, %v5238
        %v5245 = vadd.f32 %v5164, %v5239
        %v5246 = vadd.f32 %v5165, %v5240
        %v5247 = vadd.f32 %v5166, %v5241
        %s5248 = sld [smem:[#allocation16 + $0x91]]
        %v5249 = vstv %s5248
        %v5250 = vmul.f32 %v5249, %v2532
        %v5251 = vmul.f32 %v5249, %v2533
        %v5252 = vmul.f32 %v5249, %v2534
        %v5253 = vmul.f32 %v5249, %v2535
        %5258 = vrot.lane.b32.xlu0 %v5250, 48
        %v5259 = vpop.permute.xlu0 %5258
        %5260 = vrot.lane.b32.xlu0 %v5251, 48
        %v5261 = vpop.permute.xlu0 %5260
        %5262 = vrot.lane.b32.xlu0 %v5252, 48
        %v5263 = vpop.permute.xlu0 %5262
        %5264 = vrot.lane.b32.xlu0 %v5253, 48
        %v5265 = vpop.permute.xlu0 %5264
        %v5266 = vsel %vm5130, %v5259, %v5261
        %v5267 = vsel %vm5130, %v5261, %v5263
        %v5268 = vsel %vm5130, %v5263, %v5265
        %v5272 = vadd.f32 %v5191, %v5266
        %v5273 = vadd.f32 %v5192, %v5267
        %v5274 = vadd.f32 %v5193, %v5268
        %s5275 = sld [smem:[#allocation16 + $0x15]]
        %v5276 = vstv %s5275
        %v5277 = vmul.f32 %v5276, %v2468
        %v5278 = vmul.f32 %v5276, %v2469
        %v5279 = vmul.f32 %v5276, %v2470
        %v5280 = vmul.f32 %v5276, %v2471
        %5285 = vrot.lane.b32.xlu0 %v5277, 47
        %v5286 = vpop.permute.xlu0 %5285
        %5287 = vrot.lane.b32.xlu0 %v5278, 47
        %v5288 = vpop.permute.xlu0 %5287
        %5289 = vrot.lane.b32.xlu0 %v5279, 47
        %v5290 = vpop.permute.xlu0 %5289
        %5291 = vrot.lane.b32.xlu0 %v5280, 47
        %v5292 = vpop.permute.xlu0 %5291
        %vm5293 = vcmask 384000
        %v5294 = vsel %vm5293, %v5286, %v5288
        %v5295 = vsel %vm5293, %v5288, %v5290
        %v5296 = vsel %vm5293, %v5290, %v5292
        %v5300 = vadd.f32 %v5218, %v5294
        %v5301 = vadd.f32 %v5219, %v5295
        %v5302 = vadd.f32 %v5220, %v5296
        %s5303 = sld [smem:[#allocation16 + $0x47]]
        %v5304 = vstv %s5303
        %v5305 = vmul.f32 %v5304, %v2468
        %v5306 = vmul.f32 %v5304, %v2469
        %v5307 = vmul.f32 %v5304, %v2470
        %v5308 = vmul.f32 %v5304, %v2471
        %5313 = vrot.lane.b32.xlu0 %v5305, 47
        %v5314 = vpop.permute.xlu0 %5313
        %5315 = vrot.lane.b32.xlu0 %v5306, 47
        %v5316 = vpop.permute.xlu0 %5315
        %5317 = vrot.lane.b32.xlu0 %v5307, 47
        %v5318 = vpop.permute.xlu0 %5317
        %5319 = vrot.lane.b32.xlu0 %v5308, 47
        %v5320 = vpop.permute.xlu0 %5319
        %v5321 = vsel %vm5293, %v5314, %v5316
        %v5322 = vsel %vm5293, %v5316, %v5318
        %v5323 = vsel %vm5293, %v5318, %v5320
        %v5327 = vadd.f32 %v5245, %v5321
        %v5328 = vadd.f32 %v5246, %v5322
        %v5329 = vadd.f32 %v5247, %v5323
        %s5330 = sld [smem:[#allocation16 + $0x79]]
        %v5331 = vstv %s5330
        %v5332 = vmul.f32 %v5331, %v2468
        %v5333 = vmul.f32 %v5331, %v2469
        %v5334 = vmul.f32 %v5331, %v2470
        %v5335 = vmul.f32 %v5331, %v2471
        %5340 = vrot.lane.b32.xlu0 %v5332, 47
        %v5341 = vpop.permute.xlu0 %5340
        %5342 = vrot.lane.b32.xlu0 %v5333, 47
        %v5343 = vpop.permute.xlu0 %5342
        %5344 = vrot.lane.b32.xlu0 %v5334, 47
        %v5345 = vpop.permute.xlu0 %5344
        %5346 = vrot.lane.b32.xlu0 %v5335, 47
        %v5347 = vpop.permute.xlu0 %5346
        %v5348 = vsel %vm5293, %v5341, %v5343
        %v5349 = vsel %vm5293, %v5343, %v5345
        %v5350 = vsel %vm5293, %v5345, %v5347
        %v5354 = vadd.f32 %v5272, %v5348
        %v5355 = vadd.f32 %v5273, %v5349
        %v5356 = vadd.f32 %v5274, %v5350
        %s5357 = sld [smem:[#allocation16 + $0x2e]]
        %v5358 = vstv %s5357
        %v5359 = vmul.f32 %v5358, %v2532
        %v5360 = vmul.f32 %v5358, %v2533
        %v5361 = vmul.f32 %v5358, %v2534
        %v5362 = vmul.f32 %v5358, %v2535
        %5367 = vrot.lane.b32.xlu0 %v5359, 47
        %v5368 = vpop.permute.xlu0 %5367
        %5369 = vrot.lane.b32.xlu0 %v5360, 47
        %v5370 = vpop.permute.xlu0 %5369
        %5371 = vrot.lane.b32.xlu0 %v5361, 47
        %v5372 = vpop.permute.xlu0 %5371
        %5373 = vrot.lane.b32.xlu0 %v5362, 47
        %v5374 = vpop.permute.xlu0 %5373
        %v5375 = vsel %vm5293, %v5368, %v5370
        %v5376 = vsel %vm5293, %v5370, %v5372
        %v5377 = vsel %vm5293, %v5372, %v5374
        %v5381 = vadd.f32 %v5300, %v5375
        %v5382 = vadd.f32 %v5301, %v5376
        %v5383 = vadd.f32 %v5302, %v5377
        %s5384 = sld [smem:[#allocation16 + $0x60]]
        %v5385 = vstv %s5384
        %v5386 = vmul.f32 %v5385, %v2532
        %v5387 = vmul.f32 %v5385, %v2533
        %v5388 = vmul.f32 %v5385, %v2534
        %v5389 = vmul.f32 %v5385, %v2535
        %5394 = vrot.lane.b32.xlu0 %v5386, 47
        %v5395 = vpop.permute.xlu0 %5394
        %5396 = vrot.lane.b32.xlu0 %v5387, 47
        %v5397 = vpop.permute.xlu0 %5396
        %5398 = vrot.lane.b32.xlu0 %v5388, 47
        %v5399 = vpop.permute.xlu0 %5398
        %5400 = vrot.lane.b32.xlu0 %v5389, 47
        %v5401 = vpop.permute.xlu0 %5400
        %v5402 = vsel %vm5293, %v5395, %v5397
        %v5403 = vsel %vm5293, %v5397, %v5399
        %v5404 = vsel %vm5293, %v5399, %v5401
        %v5408 = vadd.f32 %v5327, %v5402
        %v5409 = vadd.f32 %v5328, %v5403
        %v5410 = vadd.f32 %v5329, %v5404
        %s5411 = sld [smem:[#allocation16 + $0x92]]
        %v5412 = vstv %s5411
        %v5413 = vmul.f32 %v5412, %v2532
        %v5414 = vmul.f32 %v5412, %v2533
        %v5415 = vmul.f32 %v5412, %v2534
        %v5416 = vmul.f32 %v5412, %v2535
        %5421 = vrot.lane.b32.xlu0 %v5413, 47
        %v5422 = vpop.permute.xlu0 %5421
        %5423 = vrot.lane.b32.xlu0 %v5414, 47
        %v5424 = vpop.permute.xlu0 %5423
        %5425 = vrot.lane.b32.xlu0 %v5415, 47
        %v5426 = vpop.permute.xlu0 %5425
        %5427 = vrot.lane.b32.xlu0 %v5416, 47
        %v5428 = vpop.permute.xlu0 %5427
        %v5429 = vsel %vm5293, %v5422, %v5424
        %v5430 = vsel %vm5293, %v5424, %v5426
        %v5431 = vsel %vm5293, %v5426, %v5428
        %v5435 = vadd.f32 %v5354, %v5429
        %v5436 = vadd.f32 %v5355, %v5430
        %v5437 = vadd.f32 %v5356, %v5431
        %s5438 = sld [smem:[#allocation16 + $0x16]]
        %v5439 = vstv %s5438
        %v5440 = vmul.f32 %v5439, %v2468
        %v5441 = vmul.f32 %v5439, %v2469
        %v5442 = vmul.f32 %v5439, %v2470
        %v5443 = vmul.f32 %v5439, %v2471
        %5448 = vrot.lane.b32.xlu0 %v5440, 46
        %v5449 = vpop.permute.xlu0 %5448
        %5450 = vrot.lane.b32.xlu0 %v5441, 46
        %v5451 = vpop.permute.xlu0 %5450
        %5452 = vrot.lane.b32.xlu0 %v5442, 46
        %v5453 = vpop.permute.xlu0 %5452
        %5454 = vrot.lane.b32.xlu0 %v5443, 46
        %v5455 = vpop.permute.xlu0 %5454
        %vm5456 = vcmask 375808
        %v5457 = vsel %vm5456, %v5449, %v5451
        %v5458 = vsel %vm5456, %v5451, %v5453
        %v5459 = vsel %vm5456, %v5453, %v5455
        %v5463 = vadd.f32 %v5381, %v5457
        %v5464 = vadd.f32 %v5382, %v5458
        %v5465 = vadd.f32 %v5383, %v5459
        %s5466 = sld [smem:[#allocation16 + $0x48]]
        %v5467 = vstv %s5466
        %v5468 = vmul.f32 %v5467, %v2468
        %v5469 = vmul.f32 %v5467, %v2469
        %v5470 = vmul.f32 %v5467, %v2470
        %v5471 = vmul.f32 %v5467, %v2471
        %5476 = vrot.lane.b32.xlu0 %v5468, 46
        %v5477 = vpop.permute.xlu0 %5476
        %5478 = vrot.lane.b32.xlu0 %v5469, 46
        %v5479 = vpop.permute.xlu0 %5478
        %5480 = vrot.lane.b32.xlu0 %v5470, 46
        %v5481 = vpop.permute.xlu0 %5480
        %5482 = vrot.lane.b32.xlu0 %v5471, 46
        %v5483 = vpop.permute.xlu0 %5482
        %v5484 = vsel %vm5456, %v5477, %v5479
        %v5485 = vsel %vm5456, %v5479, %v5481
        %v5486 = vsel %vm5456, %v5481, %v5483
        %v5490 = vadd.f32 %v5408, %v5484
        %v5491 = vadd.f32 %v5409, %v5485
        %v5492 = vadd.f32 %v5410, %v5486
        %s5493 = sld [smem:[#allocation16 + $0x7a]]
        %v5494 = vstv %s5493
        %v5495 = vmul.f32 %v5494, %v2468
        %v5496 = vmul.f32 %v5494, %v2469
        %v5497 = vmul.f32 %v5494, %v2470
        %v5498 = vmul.f32 %v5494, %v2471
        %5503 = vrot.lane.b32.xlu0 %v5495, 46
        %v5504 = vpop.permute.xlu0 %5503
        %5505 = vrot.lane.b32.xlu0 %v5496, 46
        %v5506 = vpop.permute.xlu0 %5505
        %5507 = vrot.lane.b32.xlu0 %v5497, 46
        %v5508 = vpop.permute.xlu0 %5507
        %5509 = vrot.lane.b32.xlu0 %v5498, 46
        %v5510 = vpop.permute.xlu0 %5509
        %v5511 = vsel %vm5456, %v5504, %v5506
        %v5512 = vsel %vm5456, %v5506, %v5508
        %v5513 = vsel %vm5456, %v5508, %v5510
        %v5517 = vadd.f32 %v5435, %v5511
        %v5518 = vadd.f32 %v5436, %v5512
        %v5519 = vadd.f32 %v5437, %v5513
        %s5520 = sld [smem:[#allocation16 + $0x2f]]
        %v5521 = vstv %s5520
        %v5522 = vmul.f32 %v5521, %v2532
        %v5523 = vmul.f32 %v5521, %v2533
        %v5524 = vmul.f32 %v5521, %v2534
        %v5525 = vmul.f32 %v5521, %v2535
        %5530 = vrot.lane.b32.xlu0 %v5522, 46
        %v5531 = vpop.permute.xlu0 %5530
        %5532 = vrot.lane.b32.xlu0 %v5523, 46
        %v5533 = vpop.permute.xlu0 %5532
        %5534 = vrot.lane.b32.xlu0 %v5524, 46
        %v5535 = vpop.permute.xlu0 %5534
        %5536 = vrot.lane.b32.xlu0 %v5525, 46
        %v5537 = vpop.permute.xlu0 %5536
        %v5538 = vsel %vm5456, %v5531, %v5533
        %v5539 = vsel %vm5456, %v5533, %v5535
        %v5540 = vsel %vm5456, %v5535, %v5537
        %v5544 = vadd.f32 %v5463, %v5538
        %v5545 = vadd.f32 %v5464, %v5539
        %v5546 = vadd.f32 %v5465, %v5540
        %s5547 = sld [smem:[#allocation16 + $0x61]]
        %v5548 = vstv %s5547
        %v5549 = vmul.f32 %v5548, %v2532
        %v5550 = vmul.f32 %v5548, %v2533
        %v5551 = vmul.f32 %v5548, %v2534
        %v5552 = vmul.f32 %v5548, %v2535
        %5557 = vrot.lane.b32.xlu0 %v5549, 46
        %v5558 = vpop.permute.xlu0 %5557
        %5559 = vrot.lane.b32.xlu0 %v5550, 46
        %v5560 = vpop.permute.xlu0 %5559
        %5561 = vrot.lane.b32.xlu0 %v5551, 46
        %v5562 = vpop.permute.xlu0 %5561
        %5563 = vrot.lane.b32.xlu0 %v5552, 46
        %v5564 = vpop.permute.xlu0 %5563
        %v5565 = vsel %vm5456, %v5558, %v5560
        %v5566 = vsel %vm5456, %v5560, %v5562
        %v5567 = vsel %vm5456, %v5562, %v5564
        %v5571 = vadd.f32 %v5490, %v5565
        %v5572 = vadd.f32 %v5491, %v5566
        %v5573 = vadd.f32 %v5492, %v5567
        %s5574 = sld [smem:[#allocation16 + $0x93]]
        %v5575 = vstv %s5574
        %v5576 = vmul.f32 %v5575, %v2532
        %v5577 = vmul.f32 %v5575, %v2533
        %v5578 = vmul.f32 %v5575, %v2534
        %v5579 = vmul.f32 %v5575, %v2535
        %5584 = vrot.lane.b32.xlu0 %v5576, 46
        %v5585 = vpop.permute.xlu0 %5584
        %5586 = vrot.lane.b32.xlu0 %v5577, 46
        %v5587 = vpop.permute.xlu0 %5586
        %5588 = vrot.lane.b32.xlu0 %v5578, 46
        %v5589 = vpop.permute.xlu0 %5588
        %5590 = vrot.lane.b32.xlu0 %v5579, 46
        %v5591 = vpop.permute.xlu0 %5590
        %v5592 = vsel %vm5456, %v5585, %v5587
        %v5593 = vsel %vm5456, %v5587, %v5589
        %v5594 = vsel %vm5456, %v5589, %v5591
        %v5598 = vadd.f32 %v5517, %v5592
        %v5599 = vadd.f32 %v5518, %v5593
        %v5600 = vadd.f32 %v5519, %v5594
        %s5601 = sld [smem:[#allocation16 + $0x17]]
        %v5602 = vstv %s5601
        %v5603 = vmul.f32 %v5602, %v2468
        %v5604 = vmul.f32 %v5602, %v2469
        %v5605 = vmul.f32 %v5602, %v2470
        %v5606 = vmul.f32 %v5602, %v2471
        %5611 = vrot.lane.b32.xlu0 %v5603, 45
        %v5612 = vpop.permute.xlu0 %5611
        %5613 = vrot.lane.b32.xlu0 %v5604, 45
        %v5614 = vpop.permute.xlu0 %5613
        %5615 = vrot.lane.b32.xlu0 %v5605, 45
        %v5616 = vpop.permute.xlu0 %5615
        %5617 = vrot.lane.b32.xlu0 %v5606, 45
        %v5618 = vpop.permute.xlu0 %5617
        %vm5619 = vcmask 367616
        %v5620 = vsel %vm5619, %v5612, %v5614
        %v5621 = vsel %vm5619, %v5614, %v5616
        %v5622 = vsel %vm5619, %v5616, %v5618
        %v5626 = vadd.f32 %v5544, %v5620
        %v5627 = vadd.f32 %v5545, %v5621
        %v5628 = vadd.f32 %v5546, %v5622
        %s5629 = sld [smem:[#allocation16 + $0x49]]
        %v5630 = vstv %s5629
        %v5631 = vmul.f32 %v5630, %v2468
        %v5632 = vmul.f32 %v5630, %v2469
        %v5633 = vmul.f32 %v5630, %v2470
        %v5634 = vmul.f32 %v5630, %v2471
        %5639 = vrot.lane.b32.xlu0 %v5631, 45
        %v5640 = vpop.permute.xlu0 %5639
        %5641 = vrot.lane.b32.xlu0 %v5632, 45
        %v5642 = vpop.permute.xlu0 %5641
        %5643 = vrot.lane.b32.xlu0 %v5633, 45
        %v5644 = vpop.permute.xlu0 %5643
        %5645 = vrot.lane.b32.xlu0 %v5634, 45
        %v5646 = vpop.permute.xlu0 %5645
        %v5647 = vsel %vm5619, %v5640, %v5642
        %v5648 = vsel %vm5619, %v5642, %v5644
        %v5649 = vsel %vm5619, %v5644, %v5646
        %v5653 = vadd.f32 %v5571, %v5647
        %v5654 = vadd.f32 %v5572, %v5648
        %v5655 = vadd.f32 %v5573, %v5649
        %s5656 = sld [smem:[#allocation16 + $0x7b]]
        %v5657 = vstv %s5656
        %v5658 = vmul.f32 %v5657, %v2468
        %v5659 = vmul.f32 %v5657, %v2469
        %v5660 = vmul.f32 %v5657, %v2470
        %v5661 = vmul.f32 %v5657, %v2471
        %5666 = vrot.lane.b32.xlu0 %v5658, 45
        %v5667 = vpop.permute.xlu0 %5666
        %5668 = vrot.lane.b32.xlu0 %v5659, 45
        %v5669 = vpop.permute.xlu0 %5668
        %5670 = vrot.lane.b32.xlu0 %v5660, 45
        %v5671 = vpop.permute.xlu0 %5670
        %5672 = vrot.lane.b32.xlu0 %v5661, 45
        %v5673 = vpop.permute.xlu0 %5672
        %v5674 = vsel %vm5619, %v5667, %v5669
        %v5675 = vsel %vm5619, %v5669, %v5671
        %v5676 = vsel %vm5619, %v5671, %v5673
        %v5680 = vadd.f32 %v5598, %v5674
        %v5681 = vadd.f32 %v5599, %v5675
        %v5682 = vadd.f32 %v5600, %v5676
        %s5683 = sld [smem:[#allocation16 + $0x30]]
        %v5684 = vstv %s5683
        %v5685 = vmul.f32 %v5684, %v2532
        %v5686 = vmul.f32 %v5684, %v2533
        %v5687 = vmul.f32 %v5684, %v2534
        %v5688 = vmul.f32 %v5684, %v2535
        %5693 = vrot.lane.b32.xlu0 %v5685, 45
        %v5694 = vpop.permute.xlu0 %5693
        %5695 = vrot.lane.b32.xlu0 %v5686, 45
        %v5696 = vpop.permute.xlu0 %5695
        %5697 = vrot.lane.b32.xlu0 %v5687, 45
        %v5698 = vpop.permute.xlu0 %5697
        %5699 = vrot.lane.b32.xlu0 %v5688, 45
        %v5700 = vpop.permute.xlu0 %5699
        %v5701 = vsel %vm5619, %v5694, %v5696
        %v5702 = vsel %vm5619, %v5696, %v5698
        %v5703 = vsel %vm5619, %v5698, %v5700
        %v5707 = vadd.f32 %v5626, %v5701
        %v5708 = vadd.f32 %v5627, %v5702
        %v5709 = vadd.f32 %v5628, %v5703
        %s5710 = sld [smem:[#allocation16 + $0x62]]
        %v5711 = vstv %s5710
        %v5712 = vmul.f32 %v5711, %v2532
        %v5713 = vmul.f32 %v5711, %v2533
        %v5714 = vmul.f32 %v5711, %v2534
        %v5715 = vmul.f32 %v5711, %v2535
        %5720 = vrot.lane.b32.xlu0 %v5712, 45
        %v5721 = vpop.permute.xlu0 %5720
        %5722 = vrot.lane.b32.xlu0 %v5713, 45
        %v5723 = vpop.permute.xlu0 %5722
        %5724 = vrot.lane.b32.xlu0 %v5714, 45
        %v5725 = vpop.permute.xlu0 %5724
        %5726 = vrot.lane.b32.xlu0 %v5715, 45
        %v5727 = vpop.permute.xlu0 %5726
        %v5728 = vsel %vm5619, %v5721, %v5723
        %v5729 = vsel %vm5619, %v5723, %v5725
        %v5730 = vsel %vm5619, %v5725, %v5727
        %v5734 = vadd.f32 %v5653, %v5728
        %v5735 = vadd.f32 %v5654, %v5729
        %v5736 = vadd.f32 %v5655, %v5730
        %s5737 = sld [smem:[#allocation16 + $0x94]]
        %v5738 = vstv %s5737
        %v5739 = vmul.f32 %v5738, %v2532
        %v5740 = vmul.f32 %v5738, %v2533
        %v5741 = vmul.f32 %v5738, %v2534
        %v5742 = vmul.f32 %v5738, %v2535
        %5747 = vrot.lane.b32.xlu0 %v5739, 45
        %v5748 = vpop.permute.xlu0 %5747
        %5749 = vrot.lane.b32.xlu0 %v5740, 45
        %v5750 = vpop.permute.xlu0 %5749
        %5751 = vrot.lane.b32.xlu0 %v5741, 45
        %v5752 = vpop.permute.xlu0 %5751
        %5753 = vrot.lane.b32.xlu0 %v5742, 45
        %v5754 = vpop.permute.xlu0 %5753
        %v5755 = vsel %vm5619, %v5748, %v5750
        %v5756 = vsel %vm5619, %v5750, %v5752
        %v5757 = vsel %vm5619, %v5752, %v5754
        %v5761 = vadd.f32 %v5680, %v5755
        %v5762 = vadd.f32 %v5681, %v5756
        %v5763 = vadd.f32 %v5682, %v5757
        %s5764 = sld [smem:[#allocation16 + $0x18]]
        %v5765 = vstv %s5764
        %v5766 = vmul.f32 %v5765, %v2468
        %v5767 = vmul.f32 %v5765, %v2469
        %v5768 = vmul.f32 %v5765, %v2470
        %v5769 = vmul.f32 %v5765, %v2471
        %5774 = vrot.lane.b32.xlu0 %v5766, 44
        %v5775 = vpop.permute.xlu0 %5774
        %5776 = vrot.lane.b32.xlu0 %v5767, 44
        %v5777 = vpop.permute.xlu0 %5776
        %5778 = vrot.lane.b32.xlu0 %v5768, 44
        %v5779 = vpop.permute.xlu0 %5778
        %5780 = vrot.lane.b32.xlu0 %v5769, 44
        %v5781 = vpop.permute.xlu0 %5780
        %vm5782 = vcmask 359424
        %v5783 = vsel %vm5782, %v5775, %v5777
        %v5784 = vsel %vm5782, %v5777, %v5779
        %v5785 = vsel %vm5782, %v5779, %v5781
        %v5789 = vadd.f32 %v5707, %v5783
        %v5790 = vadd.f32 %v5708, %v5784
        %v5791 = vadd.f32 %v5709, %v5785
        %s5792 = sld [smem:[#allocation16 + $0x4a]]
        %v5793 = vstv %s5792
        %v5794 = vmul.f32 %v5793, %v2468
        %v5795 = vmul.f32 %v5793, %v2469
        %v5796 = vmul.f32 %v5793, %v2470
        %v5797 = vmul.f32 %v5793, %v2471
        %5802 = vrot.lane.b32.xlu0 %v5794, 44
        %v5803 = vpop.permute.xlu0 %5802
        %5804 = vrot.lane.b32.xlu0 %v5795, 44
        %v5805 = vpop.permute.xlu0 %5804
        %5806 = vrot.lane.b32.xlu0 %v5796, 44
        %v5807 = vpop.permute.xlu0 %5806
        %5808 = vrot.lane.b32.xlu0 %v5797, 44
        %v5809 = vpop.permute.xlu0 %5808
        %v5810 = vsel %vm5782, %v5803, %v5805
        %v5811 = vsel %vm5782, %v5805, %v5807
        %v5812 = vsel %vm5782, %v5807, %v5809
        %v5816 = vadd.f32 %v5734, %v5810
        %v5817 = vadd.f32 %v5735, %v5811
        %v5818 = vadd.f32 %v5736, %v5812
        %s5819 = sld [smem:[#allocation16 + $0x7c]]
        %v5820 = vstv %s5819
        %v5821 = vmul.f32 %v5820, %v2468
        %v5822 = vmul.f32 %v5820, %v2469
        %v5823 = vmul.f32 %v5820, %v2470
        %v5824 = vmul.f32 %v5820, %v2471
        %5829 = vrot.lane.b32.xlu0 %v5821, 44
        %v5830 = vpop.permute.xlu0 %5829
        %5831 = vrot.lane.b32.xlu0 %v5822, 44
        %v5832 = vpop.permute.xlu0 %5831
        %5833 = vrot.lane.b32.xlu0 %v5823, 44
        %v5834 = vpop.permute.xlu0 %5833
        %5835 = vrot.lane.b32.xlu0 %v5824, 44
        %v5836 = vpop.permute.xlu0 %5835
        %v5837 = vsel %vm5782, %v5830, %v5832
        %v5838 = vsel %vm5782, %v5832, %v5834
        %v5839 = vsel %vm5782, %v5834, %v5836
        %v5843 = vadd.f32 %v5761, %v5837
        %v5844 = vadd.f32 %v5762, %v5838
        %v5845 = vadd.f32 %v5763, %v5839
        %s5846 = sld [smem:[#allocation16 + $0x31]]
        %v5847 = vstv %s5846
        %v5848 = vmul.f32 %v5847, %v2532
        %v5849 = vmul.f32 %v5847, %v2533
        %v5850 = vmul.f32 %v5847, %v2534
        %v5851 = vmul.f32 %v5847, %v2535
        %5856 = vrot.lane.b32.xlu0 %v5848, 44
        %v5857 = vpop.permute.xlu0 %5856
        %5858 = vrot.lane.b32.xlu0 %v5849, 44
        %v5859 = vpop.permute.xlu0 %5858
        %5860 = vrot.lane.b32.xlu0 %v5850, 44
        %v5861 = vpop.permute.xlu0 %5860
        %5862 = vrot.lane.b32.xlu0 %v5851, 44
        %v5863 = vpop.permute.xlu0 %5862
        %v5864 = vsel %vm5782, %v5857, %v5859
        %v5865 = vsel %vm5782, %v5859, %v5861
        %v5866 = vsel %vm5782, %v5861, %v5863
        %v5870 = vadd.f32 %v5789, %v5864
        %v5871 = vadd.f32 %v5790, %v5865
        %v5872 = vadd.f32 %v5791, %v5866
        %s5873 = sld [smem:[#allocation16 + $0x63]]
        %v5874 = vstv %s5873
        %v5875 = vmul.f32 %v5874, %v2532
        %v5876 = vmul.f32 %v5874, %v2533
        %v5877 = vmul.f32 %v5874, %v2534
        %v5878 = vmul.f32 %v5874, %v2535
        %5883 = vrot.lane.b32.xlu0 %v5875, 44
        %v5884 = vpop.permute.xlu0 %5883
        %5885 = vrot.lane.b32.xlu0 %v5876, 44
        %v5886 = vpop.permute.xlu0 %5885
        %5887 = vrot.lane.b32.xlu0 %v5877, 44
        %v5888 = vpop.permute.xlu0 %5887
        %5889 = vrot.lane.b32.xlu0 %v5878, 44
        %v5890 = vpop.permute.xlu0 %5889
        %v5891 = vsel %vm5782, %v5884, %v5886
        %v5892 = vsel %vm5782, %v5886, %v5888
        %v5893 = vsel %vm5782, %v5888, %v5890
        %v5897 = vadd.f32 %v5816, %v5891
        %v5898 = vadd.f32 %v5817, %v5892
        %v5899 = vadd.f32 %v5818, %v5893
        %s5900 = sld [smem:[#allocation16 + $0x95]]
        %v5901 = vstv %s5900
        %v5902 = vmul.f32 %v5901, %v2532
        %v5903 = vmul.f32 %v5901, %v2533
        %v5904 = vmul.f32 %v5901, %v2534
        %v5905 = vmul.f32 %v5901, %v2535
        %5910 = vrot.lane.b32.xlu0 %v5902, 44
        %v5911 = vpop.permute.xlu0 %5910
        %5912 = vrot.lane.b32.xlu0 %v5903, 44
        %v5913 = vpop.permute.xlu0 %5912
        %5914 = vrot.lane.b32.xlu0 %v5904, 44
        %v5915 = vpop.permute.xlu0 %5914
        %5916 = vrot.lane.b32.xlu0 %v5905, 44
        %v5917 = vpop.permute.xlu0 %5916
        %v5918 = vsel %vm5782, %v5911, %v5913
        %v5919 = vsel %vm5782, %v5913, %v5915
        %v5920 = vsel %vm5782, %v5915, %v5917
        %v5924 = vadd.f32 %v5843, %v5918
        %v5925 = vadd.f32 %v5844, %v5919
        %v5926 = vadd.f32 %v5845, %v5920
        %s5927 = scalar_lea.vmem %s663, 120 [#allocation22]
        %5928 = vst [vmem:[%s5927] sm:$0xff] %v5870
        %5929 = vst [vmem:[%s5927 + $0x8] sm:$0xff] %v5871
        %5930 = vst.msk [vmem:[%s5927 + $0x10] sm:$0xff] %vm736, %v5872
        %s5931 = scalar_lea.vmem %s663, 144 [#allocation22]
        %5932 = vst [vmem:[%s5931] sm:$0xff] %v5897
        %5933 = vst [vmem:[%s5931 + $0x8] sm:$0xff] %v5898
        %5934 = vst.msk [vmem:[%s5931 + $0x10] sm:$0xff] %vm736, %v5899
        %s5935 = scalar_lea.vmem %s663, 168 [#allocation22]
        %5936 = vst [vmem:[%s5935] sm:$0xff] %v5924
        %5937 = vst [vmem:[%s5935 + $0x8] sm:$0xff] %v5925
        %5938 = vst.msk [vmem:[%s5935 + $0x10] sm:$0xff] %vm736, %v5926
        %s5939 = sand.u32 %s339, 1
        %s5940 = sand.u32 %s339, 1
        %s5941 = smul.addr %s5940, 240
        %s5942 = scalar_lea.vmem [#allocation22], %s5941
        // Predicated region
        $region148: #{inception_a.1} parent=94 // pred_check
          %p5943 = pneg %p349
        $region149: #{inception_a.1} parent=94 // pred_check_branch
          %5945 = sbr.rel (%p5943) target = $region151
        $region150: #{inception_a.1} parent=94 // pred_region
          %s5946 = smul.addr %s32, 3
          %s5947 = smul.addr %s5946, 8
          %s5948 = scalar_lea.vmem %s14, %s5947
          // Predicated region
          $region152: #{inception_a.1} parent=150 // pred_check
            _
          $region153: #{inception_a.1} parent=150 // pred_check_branch
            %5950 = sbr.rel (0) target = $region155
          $region154: #{inception_a.1} parent=150 // pred_region
            // Predicated region
            $region156: #{inception_a.1} parent=154 // pred_check
              _
            $region157: #{inception_a.1} parent=154 // pred_check_branch
              %5952 = sbr.rel (0) target = $region159
            $region158: #{inception_a.1} parent=154 // pred_region
              loop: start=0, step=1, limit=1
              $region160: #{inception_a.1} parent=158 // loop_pre_header
                _
              $region161: #{inception_a.1} parent=158 // loop_header
                %s5954 = sphi 0, %s5958
                %p5955 = scmp.ge.s32.totalorder %s5954, 1
                %s5959 = sphi %s5942, %s5942
                %s5960 = sphi %s5948, %s5948
              $region162: #{inception_a.1} parent=158 // loop_header_branch
                %5957 = sbr.rel (%p5955) target = $region166
              $region163: #{inception_a.1} parent=158 // loop_body
                %v5961 = vld [vmem:[%s5959] sm:$0xff]
                %5962 = vst [vmem:[%s5960] sm:$0xff] %v5961
                %v5963 = vld [vmem:[%s5959 + $0x8] sm:$0xff]
                %5964 = vst [vmem:[%s5960 + $0x8] sm:$0xff] %v5963
                %v5965 = vld [vmem:[%s5959 + $0x10] sm:$0xff]
                %5966 = vst [vmem:[%s5960 + $0x10] sm:$0xff] %v5965
                %v5967 = vld [vmem:[%s5959 + $0x18] sm:$0xff]
                %5968 = vst [vmem:[%s5960 + $0x30] sm:$0xff] %v5967
                %v5969 = vld [vmem:[%s5959 + $0x20] sm:$0xff]
                %5970 = vst [vmem:[%s5960 + $0x38] sm:$0xff] %v5969
                %v5971 = vld [vmem:[%s5959 + $0x28] sm:$0xff]
                %5972 = vst [vmem:[%s5960 + $0x40] sm:$0xff] %v5971
                %v5973 = vld [vmem:[%s5959 + $0x30] sm:$0xff]
                %5974 = vst [vmem:[%s5960 + $0x60] sm:$0xff] %v5973
                %v5975 = vld [vmem:[%s5959 + $0x38] sm:$0xff]
                %5976 = vst [vmem:[%s5960 + $0x68] sm:$0xff] %v5975
                %v5977 = vld [vmem:[%s5959 + $0x40] sm:$0xff]
                %5978 = vst [vmem:[%s5960 + $0x70] sm:$0xff] %v5977
                %v5979 = vld [vmem:[%s5959 + $0x48] sm:$0xff]
                %5980 = vst [vmem:[%s5960 + $0x90] sm:$0xff] %v5979
                %v5981 = vld [vmem:[%s5959 + $0x50] sm:$0xff]
                %5982 = vst [vmem:[%s5960 + $0x98] sm:$0xff] %v5981
                %v5983 = vld [vmem:[%s5959 + $0x58] sm:$0xff]
                %5984 = vst [vmem:[%s5960 + $0xa0] sm:$0xff] %v5983
                %v5985 = vld [vmem:[%s5959 + $0x60] sm:$0xff]
                %5986 = vst [vmem:[%s5960 + $0xc0] sm:$0xff] %v5985
                %v5987 = vld [vmem:[%s5959 + $0x68] sm:$0xff]
                %5988 = vst [vmem:[%s5960 + $0xc8] sm:$0xff] %v5987
                %v5989 = vld [vmem:[%s5959 + $0x70] sm:$0xff]
                %5990 = vst [vmem:[%s5960 + $0xd0] sm:$0xff] %v5989
                %v5991 = vld [vmem:[%s5959 + $0x78] sm:$0xff]
                %5992 = vst [vmem:[%s5960 + $0xf0] sm:$0xff] %v5991
                %v5993 = vld [vmem:[%s5959 + $0x80] sm:$0xff]
                %5994 = vst [vmem:[%s5960 + $0xf8] sm:$0xff] %v5993
                %v5995 = vld [vmem:[%s5959 + $0x88] sm:$0xff]
                %5996 = vst [vmem:[%s5960 + $0x100] sm:$0xff] %v5995
                %v5997 = vld [vmem:[%s5959 + $0x90] sm:$0xff]
                %5998 = vst [vmem:[%s5960 + $0x120] sm:$0xff] %v5997
                %v5999 = vld [vmem:[%s5959 + $0x98] sm:$0xff]
                %6000 = vst [vmem:[%s5960 + $0x128] sm:$0xff] %v5999
                %v6001 = vld [vmem:[%s5959 + $0xa0] sm:$0xff]
                %6002 = vst [vmem:[%s5960 + $0x130] sm:$0xff] %v6001
                %v6003 = vld [vmem:[%s5959 + $0xa8] sm:$0xff]
                %6004 = vst [vmem:[%s5960 + $0x150] sm:$0xff] %v6003
                %v6005 = vld [vmem:[%s5959 + $0xb0] sm:$0xff]
                %6006 = vst [vmem:[%s5960 + $0x158] sm:$0xff] %v6005
                %v6007 = vld [vmem:[%s5959 + $0xb8] sm:$0xff]
                %6008 = vst [vmem:[%s5960 + $0x160] sm:$0xff] %v6007
                %v6009 = vld [vmem:[%s5959 + $0xc0] sm:$0xff]
                %6010 = vst [vmem:[%s5960 + $0x180] sm:$0xff] %v6009
                %v6011 = vld [vmem:[%s5959 + $0xc8] sm:$0xff]
                %6012 = vst [vmem:[%s5960 + $0x188] sm:$0xff] %v6011
                %v6013 = vld [vmem:[%s5959 + $0xd0] sm:$0xff]
                %6014 = vst [vmem:[%s5960 + $0x190] sm:$0xff] %v6013
                %v6015 = vld [vmem:[%s5959 + $0xd8] sm:$0xff]
                %6016 = vst [vmem:[%s5960 + $0x1b0] sm:$0xff] %v6015
                %v6017 = vld [vmem:[%s5959 + $0xe0] sm:$0xff]
                %6018 = vst [vmem:[%s5960 + $0x1b8] sm:$0xff] %v6017
                %v6019 = vld [vmem:[%s5959 + $0xe8] sm:$0xff]
                %6020 = vst [vmem:[%s5960 + $0x1c0] sm:$0xff] %v6019
              $region164: #{inception_a.1} parent=158 // loop_footer
                %s5958 = sadd.s32 1, %s5954
              $region165: #{inception_a.1} parent=158 // loop_footer_branch
                %5953 = sbr.rel target = $region161
              $region166: #{inception_a.1} parent=158 // loop_exit
                _
            $region159: #{inception_a.1} parent=154 // pred_fallthru
              _
            // Predicated region
            $region167: #{inception_a.1} parent=154 // pred_check
              _
            $region168: #{inception_a.1} parent=154 // pred_check_branch
              %6022 = sbr.rel target = $region170
            $region169: #{inception_a.1} parent=154 // pred_region
              _
            $region170: #{inception_a.1} parent=154 // pred_fallthru
              _
          $region155: #{inception_a.1} parent=150 // pred_fallthru
            _
          %6023 = vnop
        $region151: #{inception_a.1} parent=94 // pred_fallthru
          _
      $region95: #{inception_a.1} parent=5 // pred_fallthru
        _
      %p6024 = scmp.le.s32.totalorder 2, %s27
      // Predicated region
      $region171: #{inception_a.1} parent=5 // pred_check
        %p6025 = pneg %p6024
      $region172: #{inception_a.1} parent=5 // pred_check_branch
        %6027 = sbr.rel (%p6025) target = $region174
      $region173: #{inception_a.1} parent=5 // pred_region
        %s6028 = ssub.s32 %s27, 2
        // Predicated region
        $region175: #{inception_a.1} parent=173 // pred_check
          %p6029 = pneg %p355
        $region176: #{inception_a.1} parent=173 // pred_check_branch
          %6031 = sbr.rel (%p6029) target = $region178
        $region177: #{inception_a.1} parent=173 // pred_region
          %s6032 = sand.u32 %s340, 1
          %s6033 = sand.u32 %s340, 1
          %s6034 = smul.addr %s6033, 240
          %s6035 = scalar_lea.vmem [#allocation22], %s6034
        $region178: #{inception_a.1} parent=173 // pred_fallthru
          _
      $region174: #{inception_a.1} parent=5 // pred_fallthru
        _
    $region6: #{inception_a.1} parent=1 // loop_footer
      %s31 = sadd.s32 1, %s27
    $region7: #{inception_a.1} parent=1 // loop_footer_branch
      %26 = sbr.rel target = $region3
    $region8: #{inception_a.1} parent=1 // loop_exit
      _
    %6036 = vsyncpa [#allocation4], 1
    %s6037 = scalar_lea.sflag [#allocation4], 1
    %6038 = vsyncpa %s6037, 1
    %6039 = vsyncpa [#allocation6], 1
    %6040 = vsyncpa [#allocation9], 1
    %6041 = vsyncpa [#allocation12], 1
    %6042 = vsyncpa [#allocation15], 1
    %6043 = vsyncpa [#allocation18], 1
    %6044 = vsyncpa [#allocation21], 1

</llo_original>
